<compile_context>
chip_gen: v7x
topology: tpu7x:2x2x1
jax: 0.10.0
libtpu: 0.0.40
codegen_flags: <defaults>
</compile_context>

<pallas_src>
import jax
import jax.numpy as jnp
from jax import lax
from jax.experimental import pallas as pl
from jax.experimental.pallas import tpu as pltpu

_EPS = 1e-5
_VMEM = pl.BlockSpec(memory_space=pltpu.MemorySpace.VMEM)
_CDT = jnp.bfloat16   # MXU input dtype (accumulation stays f32)


# ---------------------------------------------------------------------------
# Kernels
# ---------------------------------------------------------------------------
def _l1_kernel(x_ref, w_ref, g_ref, b_ref, o_ref):
    """Layer 1: ConvTranspose(4x4, s=1, p=0) on a 1x1 input == 16 matmuls,
    fused with BatchNorm (batch statistics) + ReLU.

    x_ref: (N, Cin)         bf16
    w_ref: (16, Cin, Cout)  bf16   tap t = y*4 + x
    g_ref, b_ref: (1, Cout) f32
    o_ref: (16, N, Cout)    bf16
    """
    n = x_ref.shape[0]
    cout = o_ref.shape[-1]
    x = x_ref[...]

    hs = []
    s = jnp.zeros((1, cout), jnp.float32)
    for t in range(16):
        h = jnp.dot(x, w_ref[t], preferred_element_type=jnp.float32)
        hs.append(h)
        s = s + h.sum(axis=0, keepdims=True)

    cnt = 16.0 * n                                   # BN samples = N*H*W
    mean = s * (1.0 / cnt)
    sq = jnp.zeros((1, cout), jnp.float32)
    for t in range(16):
        d = hs[t] - mean
        sq = sq + (d * d).sum(axis=0, keepdims=True)
    inv = lax.rsqrt(sq * (1.0 / cnt) + _EPS)
    scale = g_ref[...] * inv
    shift = b_ref[...] - mean * scale
    for t in range(16):
        o_ref[t] = jnp.maximum(hs[t] * scale + shift, 0.0).astype(o_ref.dtype)


def _up_bn_kernel(p_ref, w_ref, g_ref, b_ref, o_ref, acc_ref):
    """ConvTranspose(4x4, s=2, p=1) + BatchNorm + ReLU, sub-pixel form.

    p_ref : (4, 4*Cin, M)    bf16   tap-fused patches, parity-major, M = N*H*W
    w_ref : (4, Cout, 4*Cin) bf16
    g_ref, b_ref : (Cout, 1) f32
    o_ref : (4, Cout, M)     bf16   lane-dense (M on lanes)
    acc_ref: (4, Cout, M)    f32    scratch
    """
    cout, m = o_ref.shape[1], o_ref.shape[2]

    # one fused-contraction matmul per output parity, f32 accumulation
    s = jnp.zeros((cout, 1), jnp.float32)
    for v in range(4):
        h = jnp.dot(w_ref[v], p_ref[v], preferred_element_type=jnp.float32)
        acc_ref[v] = h
        s = s + h.sum(axis=1, keepdims=True)

    cnt = 4.0 * m                                    # BN samples = N*(2H)*(2W)
    mean = s * (1.0 / cnt)
    sq = jnp.zeros((cout, 1), jnp.float32)
    for v in range(4):
        d = acc_ref[v] - mean
        sq = sq + (d * d).sum(axis=1, keepdims=True)
    inv = lax.rsqrt(sq * (1.0 / cnt) + _EPS)
    scale = g_ref[...] * inv
    shift = b_ref[...] - mean * scale
    for v in range(4):
        o_ref[v] = jnp.maximum(acc_ref[v] * scale + shift, 0.0).astype(o_ref.dtype)


def _up_tanh_kernel(p_ref, w_ref, bias_ref, o_ref):
    """Final ConvTranspose(4x4, s=2, p=1) + bias + Tanh, sub-pixel form."""
    for v in range(4):
        h = jnp.dot(w_ref[v], p_ref[v], preferred_element_type=jnp.float32)
        o_ref[v] = jnp.tanh(h + bias_ref[...]).astype(o_ref.dtype)


# ---------------------------------------------------------------------------
# Glue (pure data movement, outside the kernels)
# ---------------------------------------------------------------------------
def _upconv_glue_in(x_nhwc):
    """(N, H, W, Cin) -> tap-fused, parity-major, channel-major patches
    (4, 4*Cin, N*H*W)."""
    n, h, w, cin = x_nhwc.shape
    m = n * h * w
    xp = jnp.pad(x_nhwc, ((0, 0), (1, 1), (1, 1), (0, 0)))
    # tap stack u = 2*d + e with offsets (d, e) in {0,1}^2
    xc = jnp.concatenate(
        [xp[:, d:d + h + 1, e:e + w + 1, :] for d in range(2) for e in range(2)],
        axis=-1)                                            # (N, H+1, W+1, 4*Cin)
    pats = []
    for p in range(2):
        for q in range(2):
            win = xc[:, p:p + h, q:q + w, :]                # (N, H, W, 4*Cin)
            pats.append(jnp.transpose(win, (3, 0, 1, 2)).reshape(4 * cin, m))
    return jnp.stack(pats, axis=0).astype(_CDT)             # (4, 4*Cin, M)


def _upconv_glue_out(o, n, h, w):
    """(4, C, N*H*W) parity-major -> (N, 2H, 2W, C) (pixel shuffle)."""
    c = o.shape[1]
    o = o.reshape(2, 2, c, n, h, w)
    o = jnp.transpose(o, (3, 4, 0, 5, 1, 2))                # (N, H, 2, W, 2, C)
    return o.reshape(n, 2 * h, 2 * w, c)


def upconv_block(x_nhwc, w_sub, p1, p2, use_bn):
    """One generator block: up-sampling ConvT(+BN+ReLU | +bias+Tanh)."""
    n, h, w, _ = x_nhwc.shape
    cout = w_sub.shape[1]
    m = n * h * w
    pats = _upconv_glue_in(x_nhwc)

    if use_bn:
        out = pl.pallas_call(
            _up_bn_kernel,
            out_shape=jax.ShapeDtypeStruct((4, cout, m), _CDT),
            in_specs=[_VMEM] * 4,
            out_specs=_VMEM,
            scratch_shapes=[pltpu.VMEM((4, cout, m), jnp.float32)],
        )(pats, w_sub,
          p1.reshape(cout, 1).astype(jnp.float32),
          p2.reshape(cout, 1).astype(jnp.float32))
    else:
        out = pl.pallas_call(
            _up_tanh_kernel,
            out_shape=jax.ShapeDtypeStruct((4, cout, m), jnp.float32),
            in_specs=[_VMEM] * 3,
            out_specs=_VMEM,
        )(pats, w_sub, p1.reshape(cout, 1).astype(jnp.float32))

    return _upconv_glue_out(out, n, h, w)


# ---------------------------------------------------------------------------
# One-time parameter preprocessing (flip / transpose / tap-pack, bf16 cast)
# ---------------------------------------------------------------------------
def prepare_params(params):
    prepped = {"embed": params["embed"].astype(jnp.float32)}

    # layer 1: PyTorch (Cin, Cout, 4, 4) -> (16, Cin, Cout), tap t = y*4 + x
    w1 = params["w1"]
    prepped["w1"] = jnp.transpose(w1, (2, 3, 0, 1)).reshape(
        16, w1.shape[0], w1.shape[1]).astype(_CDT)
    prepped["g1"] = params["g1"].reshape(1, -1).astype(jnp.float32)
    prepped["b1"] = params["b1"].reshape(1, -1).astype(jnp.float32)

    def pack_stride2(w_pt):
        # flipped HWIO: wf[a, b, ci, co] = w_pt[ci, co, 3-a, 3-b]
        wf = jnp.transpose(w_pt[:, :, ::-1, ::-1], (2, 3, 0, 1))
        blocks = []
        for p in range(2):
            for q in range(2):
                taps = [wf[2 * d + p, 2 * e + q].T          # (Cout, Cin)
                        for d in range(2) for e in range(2)]
                blocks.append(jnp.concatenate(taps, axis=1))  # (Cout, 4*Cin)
        return jnp.stack(blocks, axis=0).astype(_CDT)         # (4, Cout, 4*Cin)

    for i in (2, 3, 4, 5):
        prepped[f"w{i}"] = pack_stride2(params[f"w{i}"])
    for i in (2, 3, 4):
        prepped[f"g{i}"] = params[f"g{i}"].astype(jnp.float32)
        prepped[f"b{i}"] = params[f"b{i}"].astype(jnp.float32)
    prepped["bias5"] = params["bias5"].astype(jnp.float32)
    return prepped


# ---------------------------------------------------------------------------
# Forward pass
# ---------------------------------------------------------------------------
def generator_forward(x_nchw, labels, prepped):
    n = x_nchw.shape[0]
    z = x_nchw.reshape(n, -1)                                 # (N, noise_dim)
    emb = jnp.take(prepped["embed"], labels, axis=0)          # (N, embed)
    x = jnp.concatenate([z, emb], axis=-1).astype(_CDT)       # (N, Cz+E)

    # layer 1: 1x1 -> 4x4, ConvT + BN + ReLU (single fused kernel)
    c1 = prepped["w1"].shape[-1]
    o1 = pl.pallas_call(
        _l1_kernel,
        out_shape=jax.ShapeDtypeStruct((16, n, c1), _CDT),
        in_specs=[_VMEM] * 4,
        out_specs=_VMEM,
    )(x, prepped["w1"], prepped["g1"], prepped["b1"])
    h = jnp.transpose(o1, (1, 0, 2)).reshape(n, 4, 4, c1)     # NHWC

    # layers 2-4: x2 upsample + BN + ReLU; layer 5: x2 upsample + bias + Tanh
    h = upconv_block(h, prepped["w2"], prepped["g2"], prepped["b2"], True)   # 8x8
    h = upconv_block(h, prepped["w3"], prepped["g3"], prepped["b3"], True)   # 16x16
    h = upconv_block(h, prepped["w4"], prepped["g4"], prepped["b4"], True)   # 32x32
    h = upconv_block(h, prepped["w5"], prepped["bias5"], None, False)        # 64x64
    return jnp.transpose(h, (0, 3, 1, 2))                     # NCHW, f32


if __name__ == "__main__":
    noise_dim, img_channels, filters = 32, 3, 4
    num_classes, img_size, embed_size = 10, 64, 8
    N = 2

    key = jax.random.PRNGKey(0)
    ks = jax.random.split(key, 12)

    def conv_w(k, cin, cout):
        return 0.02 * jax.random.normal(k, (cin, cout, 4, 4), jnp.float32)

    f = filters
    params = {
        "embed": jax.random.normal(ks[0], (num_classes, embed_size), jnp.float32),
        "w1": conv_w(ks[1], noise_dim + embed_size, f * 16),
        "g1": jnp.ones((f * 16,), jnp.float32), "b1": jnp.zeros((f * 16,), jnp.float32),
        "w2": conv_w(ks[2], f * 16, f * 8),
        "g2": jnp.ones((f * 8,), jnp.float32), "b2": jnp.zeros((f * 8,), jnp.float32),
        "w3": conv_w(ks[3], f * 8, f * 4),
        "g3": jnp.ones((f * 4,), jnp.float32), "b3": jnp.zeros((f * 4,), jnp.float32),
        "w4": conv_w(ks[4], f * 4, f * 2),
        "g4": jnp.ones((f * 2,), jnp.float32), "b4": jnp.zeros((f * 2,), jnp.float32),
        "w5": conv_w(ks[5], f * 2, img_channels),
        "bias5": 0.1 * jax.random.normal(ks[6], (img_channels,), jnp.float32),
    }

    prepped = prepare_params(params)        # one-time weight preprocessing
    x = jax.random.normal(ks[7], (N, noise_dim, 1, 1), jnp.float32)
    labels = jax.random.randint(ks[8], (N,), 0, num_classes)

    fwd = jax.jit(generator_forward)
    out = fwd(x, labels, prepped)
    jax.block_until_ready(out)

    assert out.shape == (N, img_channels, img_size, img_size), out.shape
    assert out.dtype == jnp.float32
    assert bool(jnp.all(jnp.isfinite(out)))
    assert bool(jnp.all(jnp.abs(out) <= 1.0 + 1e-6))  # tanh range
    print("KERNEL_OK")
</pallas_src>

<mosaic_0001>
module attributes {stable_mosaic.version = 11 : i64} {
  func.func @_l1_kernel(%arg0: memref<2x40xbf16, #tpu.memory_space<vmem>>, %arg1: memref<16x40x64xbf16, #tpu.memory_space<vmem>>, %arg2: memref<1x64xf32, #tpu.memory_space<vmem>>, %arg3: memref<1x64xf32, #tpu.memory_space<vmem>>, %arg4: memref<16x2x64xbf16, #tpu.memory_space<vmem>>) attributes {dimension_semantics = [], scalar_prefetch = 0 : i64, scratch_operands = 0 : i64, tpu.core_type = #tpu.core_type<tc>} {
    %c0 = arith.constant 0 : index
    %c0_0 = arith.constant 0 : index
    %0 = vector.load %arg0[%c0, %c0_0] : memref<2x40xbf16, #tpu.memory_space<vmem>>, vector<2x40xbf16>
    %cst = arith.constant 0.000000e+00 : f32
    %1 = vector.broadcast %cst : f32 to vector<1x64xf32>
    %c0_1 = arith.constant 0 : index
    %c0_2 = arith.constant 0 : index
    %c0_3 = arith.constant 0 : index
    %2 = vector.load %arg1[%c0_1, %c0_2, %c0_3] : memref<16x40x64xbf16, #tpu.memory_space<vmem>>, vector<1x40x64xbf16>
    %3 = vector.shape_cast %2 : vector<1x40x64xbf16> to vector<40x64xbf16>
    %cst_4 = arith.constant dense<0.000000e+00> : vector<2x64xf32>
    %4 = tpu.matmul %0, %3, %cst_4 {dimension_numbers = #tpu.dot_dimension_numbers<[1], [0], [0], [1], [0, 0, 1, 1], [], []>} : vector<2x40xbf16>, vector<40x64xbf16>, vector<2x64xf32> -> vector<2x64xf32>
    %cst_5 = arith.constant dense<0.000000e+00> : vector<64xf32>
    %5 = vector.multi_reduction <add>, %4, %cst_5 [0] : vector<2x64xf32> to vector<64xf32>
    %6 = vector.shape_cast %5 : vector<64xf32> to vector<1x64xf32>
    %7 = arith.addf %1, %6 : vector<1x64xf32>
    %c1 = arith.constant 1 : index
    %c0_6 = arith.constant 0 : index
    %c0_7 = arith.constant 0 : index
    %8 = vector.load %arg1[%c1, %c0_6, %c0_7] : memref<16x40x64xbf16, #tpu.memory_space<vmem>>, vector<1x40x64xbf16>
    %9 = vector.shape_cast %8 : vector<1x40x64xbf16> to vector<40x64xbf16>
    %cst_8 = arith.constant dense<0.000000e+00> : vector<2x64xf32>
    %10 = tpu.matmul %0, %9, %cst_8 {dimension_numbers = #tpu.dot_dimension_numbers<[1], [0], [0], [1], [0, 0, 1, 1], [], []>} : vector<2x40xbf16>, vector<40x64xbf16>, vector<2x64xf32> -> vector<2x64xf32>
    %cst_9 = arith.constant dense<0.000000e+00> : vector<64xf32>
    %11 = vector.multi_reduction <add>, %10, %cst_9 [0] : vector<2x64xf32> to vector<64xf32>
    %12 = vector.shape_cast %11 : vector<64xf32> to vector<1x64xf32>
    %13 = arith.addf %7, %12 : vector<1x64xf32>
    %c2 = arith.constant 2 : index
    %c0_10 = arith.constant 0 : index
    %c0_11 = arith.constant 0 : index
    %14 = vector.load %arg1[%c2, %c0_10, %c0_11] : memref<16x40x64xbf16, #tpu.memory_space<vmem>>, vector<1x40x64xbf16>
    %15 = vector.shape_cast %14 : vector<1x40x64xbf16> to vector<40x64xbf16>
    %cst_12 = arith.constant dense<0.000000e+00> : vector<2x64xf32>
    %16 = tpu.matmul %0, %15, %cst_12 {dimension_numbers = #tpu.dot_dimension_numbers<[1], [0], [0], [1], [0, 0, 1, 1], [], []>} : vector<2x40xbf16>, vector<40x64xbf16>, vector<2x64xf32> -> vector<2x64xf32>
    %cst_13 = arith.constant dense<0.000000e+00> : vector<64xf32>
    %17 = vector.multi_reduction <add>, %16, %cst_13 [0] : vector<2x64xf32> to vector<64xf32>
    %18 = vector.shape_cast %17 : vector<64xf32> to vector<1x64xf32>
    %19 = arith.addf %13, %18 : vector<1x64xf32>
    %c3 = arith.constant 3 : index
    %c0_14 = arith.constant 0 : index
    %c0_15 = arith.constant 0 : index
    %20 = vector.load %arg1[%c3, %c0_14, %c0_15] : memref<16x40x64xbf16, #tpu.memory_space<vmem>>, vector<1x40x64xbf16>
    %21 = vector.shape_cast %20 : vector<1x40x64xbf16> to vector<40x64xbf16>
    %cst_16 = arith.constant dense<0.000000e+00> : vector<2x64xf32>
    %22 = tpu.matmul %0, %21, %cst_16 {dimension_numbers = #tpu.dot_dimension_numbers<[1], [0], [0], [1], [0, 0, 1, 1], [], []>} : vector<2x40xbf16>, vector<40x64xbf16>, vector<2x64xf32> -> vector<2x64xf32>
    %cst_17 = arith.constant dense<0.000000e+00> : vector<64xf32>
    %23 = vector.multi_reduction <add>, %22, %cst_17 [0] : vector<2x64xf32> to vector<64xf32>
    %24 = vector.shape_cast %23 : vector<64xf32> to vector<1x64xf32>
    %25 = arith.addf %19, %24 : vector<1x64xf32>
    %c4 = arith.constant 4 : index
    %c0_18 = arith.constant 0 : index
    %c0_19 = arith.constant 0 : index
    %26 = vector.load %arg1[%c4, %c0_18, %c0_19] : memref<16x40x64xbf16, #tpu.memory_space<vmem>>, vector<1x40x64xbf16>
    %27 = vector.shape_cast %26 : vector<1x40x64xbf16> to vector<40x64xbf16>
    %cst_20 = arith.constant dense<0.000000e+00> : vector<2x64xf32>
    %28 = tpu.matmul %0, %27, %cst_20 {dimension_numbers = #tpu.dot_dimension_numbers<[1], [0], [0], [1], [0, 0, 1, 1], [], []>} : vector<2x40xbf16>, vector<40x64xbf16>, vector<2x64xf32> -> vector<2x64xf32>
    %cst_21 = arith.constant dense<0.000000e+00> : vector<64xf32>
    %29 = vector.multi_reduction <add>, %28, %cst_21 [0] : vector<2x64xf32> to vector<64xf32>
    %30 = vector.shape_cast %29 : vector<64xf32> to vector<1x64xf32>
    %31 = arith.addf %25, %30 : vector<1x64xf32>
    %c5 = arith.constant 5 : index
    %c0_22 = arith.constant 0 : index
    %c0_23 = arith.constant 0 : index
    %32 = vector.load %arg1[%c5, %c0_22, %c0_23] : memref<16x40x64xbf16, #tpu.memory_space<vmem>>, vector<1x40x64xbf16>
    %33 = vector.shape_cast %32 : vector<1x40x64xbf16> to vector<40x64xbf16>
    %cst_24 = arith.constant dense<0.000000e+00> : vector<2x64xf32>
    %34 = tpu.matmul %0, %33, %cst_24 {dimension_numbers = #tpu.dot_dimension_numbers<[1], [0], [0], [1], [0, 0, 1, 1], [], []>} : vector<2x40xbf16>, vector<40x64xbf16>, vector<2x64xf32> -> vector<2x64xf32>
    %cst_25 = arith.constant dense<0.000000e+00> : vector<64xf32>
    %35 = vector.multi_reduction <add>, %34, %cst_25 [0] : vector<2x64xf32> to vector<64xf32>
    %36 = vector.shape_cast %35 : vector<64xf32> to vector<1x64xf32>
    %37 = arith.addf %31, %36 : vector<1x64xf32>
    %c6 = arith.constant 6 : index
    %c0_26 = arith.constant 0 : index
    %c0_27 = arith.constant 0 : index
    %38 = vector.load %arg1[%c6, %c0_26, %c0_27] : memref<16x40x64xbf16, #tpu.memory_space<vmem>>, vector<1x40x64xbf16>
    %39 = vector.shape_cast %38 : vector<1x40x64xbf16> to vector<40x64xbf16>
    %cst_28 = arith.constant dense<0.000000e+00> : vector<2x64xf32>
    %40 = tpu.matmul %0, %39, %cst_28 {dimension_numbers = #tpu.dot_dimension_numbers<[1], [0], [0], [1], [0, 0, 1, 1], [], []>} : vector<2x40xbf16>, vector<40x64xbf16>, vector<2x64xf32> -> vector<2x64xf32>
    %cst_29 = arith.constant dense<0.000000e+00> : vector<64xf32>
    %41 = vector.multi_reduction <add>, %40, %cst_29 [0] : vector<2x64xf32> to vector<64xf32>
    %42 = vector.shape_cast %41 : vector<64xf32> to vector<1x64xf32>
    %43 = arith.addf %37, %42 : vector<1x64xf32>
    %c7 = arith.constant 7 : index
    %c0_30 = arith.constant 0 : index
    %c0_31 = arith.constant 0 : index
    %44 = vector.load %arg1[%c7, %c0_30, %c0_31] : memref<16x40x64xbf16, #tpu.memory_space<vmem>>, vector<1x40x64xbf16>
    %45 = vector.shape_cast %44 : vector<1x40x64xbf16> to vector<40x64xbf16>
    %cst_32 = arith.constant dense<0.000000e+00> : vector<2x64xf32>
    %46 = tpu.matmul %0, %45, %cst_32 {dimension_numbers = #tpu.dot_dimension_numbers<[1], [0], [0], [1], [0, 0, 1, 1], [], []>} : vector<2x40xbf16>, vector<40x64xbf16>, vector<2x64xf32> -> vector<2x64xf32>
    %cst_33 = arith.constant dense<0.000000e+00> : vector<64xf32>
    %47 = vector.multi_reduction <add>, %46, %cst_33 [0] : vector<2x64xf32> to vector<64xf32>
    %48 = vector.shape_cast %47 : vector<64xf32> to vector<1x64xf32>
    %49 = arith.addf %43, %48 : vector<1x64xf32>
    %c8 = arith.constant 8 : index
    %c0_34 = arith.constant 0 : index
    %c0_35 = arith.constant 0 : index
    %50 = vector.load %arg1[%c8, %c0_34, %c0_35] : memref<16x40x64xbf16, #tpu.memory_space<vmem>>, vector<1x40x64xbf16>
    %51 = vector.shape_cast %50 : vector<1x40x64xbf16> to vector<40x64xbf16>
    %cst_36 = arith.constant dense<0.000000e+00> : vector<2x64xf32>
    %52 = tpu.matmul %0, %51, %cst_36 {dimension_numbers = #tpu.dot_dimension_numbers<[1], [0], [0], [1], [0, 0, 1, 1], [], []>} : vector<2x40xbf16>, vector<40x64xbf16>, vector<2x64xf32> -> vector<2x64xf32>
    %cst_37 = arith.constant dense<0.000000e+00> : vector<64xf32>
    %53 = vector.multi_reduction <add>, %52, %cst_37 [0] : vector<2x64xf32> to vector<64xf32>
    %54 = vector.shape_cast %53 : vector<64xf32> to vector<1x64xf32>
    %55 = arith.addf %49, %54 : vector<1x64xf32>
    %c9 = arith.constant 9 : index
    %c0_38 = arith.constant 0 : index
    %c0_39 = arith.constant 0 : index
    %56 = vector.load %arg1[%c9, %c0_38, %c0_39] : memref<16x40x64xbf16, #tpu.memory_space<vmem>>, vector<1x40x64xbf16>
    %57 = vector.shape_cast %56 : vector<1x40x64xbf16> to vector<40x64xbf16>
    %cst_40 = arith.constant dense<0.000000e+00> : vector<2x64xf32>
    %58 = tpu.matmul %0, %57, %cst_40 {dimension_numbers = #tpu.dot_dimension_numbers<[1], [0], [0], [1], [0, 0, 1, 1], [], []>} : vector<2x40xbf16>, vector<40x64xbf16>, vector<2x64xf32> -> vector<2x64xf32>
    %cst_41 = arith.constant dense<0.000000e+00> : vector<64xf32>
    %59 = vector.multi_reduction <add>, %58, %cst_41 [0] : vector<2x64xf32> to vector<64xf32>
    %60 = vector.shape_cast %59 : vector<64xf32> to vector<1x64xf32>
    %61 = arith.addf %55, %60 : vector<1x64xf32>
    %c10 = arith.constant 10 : index
    %c0_42 = arith.constant 0 : index
    %c0_43 = arith.constant 0 : index
    %62 = vector.load %arg1[%c10, %c0_42, %c0_43] : memref<16x40x64xbf16, #tpu.memory_space<vmem>>, vector<1x40x64xbf16>
    %63 = vector.shape_cast %62 : vector<1x40x64xbf16> to vector<40x64xbf16>
    %cst_44 = arith.constant dense<0.000000e+00> : vector<2x64xf32>
    %64 = tpu.matmul %0, %63, %cst_44 {dimension_numbers = #tpu.dot_dimension_numbers<[1], [0], [0], [1], [0, 0, 1, 1], [], []>} : vector<2x40xbf16>, vector<40x64xbf16>, vector<2x64xf32> -> vector<2x64xf32>
    %cst_45 = arith.constant dense<0.000000e+00> : vector<64xf32>
    %65 = vector.multi_reduction <add>, %64, %cst_45 [0] : vector<2x64xf32> to vector<64xf32>
    %66 = vector.shape_cast %65 : vector<64xf32> to vector<1x64xf32>
    %67 = arith.addf %61, %66 : vector<1x64xf32>
    %c11 = arith.constant 11 : index
    %c0_46 = arith.constant 0 : index
    %c0_47 = arith.constant 0 : index
    %68 = vector.load %arg1[%c11, %c0_46, %c0_47] : memref<16x40x64xbf16, #tpu.memory_space<vmem>>, vector<1x40x64xbf16>
    %69 = vector.shape_cast %68 : vector<1x40x64xbf16> to vector<40x64xbf16>
    %cst_48 = arith.constant dense<0.000000e+00> : vector<2x64xf32>
    %70 = tpu.matmul %0, %69, %cst_48 {dimension_numbers = #tpu.dot_dimension_numbers<[1], [0], [0], [1], [0, 0, 1, 1], [], []>} : vector<2x40xbf16>, vector<40x64xbf16>, vector<2x64xf32> -> vector<2x64xf32>
    %cst_49 = arith.constant dense<0.000000e+00> : vector<64xf32>
    %71 = vector.multi_reduction <add>, %70, %cst_49 [0] : vector<2x64xf32> to vector<64xf32>
    %72 = vector.shape_cast %71 : vector<64xf32> to vector<1x64xf32>
    %73 = arith.addf %67, %72 : vector<1x64xf32>
    %c12 = arith.constant 12 : index
    %c0_50 = arith.constant 0 : index
    %c0_51 = arith.constant 0 : index
    %74 = vector.load %arg1[%c12, %c0_50, %c0_51] : memref<16x40x64xbf16, #tpu.memory_space<vmem>>, vector<1x40x64xbf16>
    %75 = vector.shape_cast %74 : vector<1x40x64xbf16> to vector<40x64xbf16>
    %cst_52 = arith.constant dense<0.000000e+00> : vector<2x64xf32>
    %76 = tpu.matmul %0, %75, %cst_52 {dimension_numbers = #tpu.dot_dimension_numbers<[1], [0], [0], [1], [0, 0, 1, 1], [], []>} : vector<2x40xbf16>, vector<40x64xbf16>, vector<2x64xf32> -> vector<2x64xf32>
    %cst_53 = arith.constant dense<0.000000e+00> : vector<64xf32>
    %77 = vector.multi_reduction <add>, %76, %cst_53 [0] : vector<2x64xf32> to vector<64xf32>
    %78 = vector.shape_cast %77 : vector<64xf32> to vector<1x64xf32>
    %79 = arith.addf %73, %78 : vector<1x64xf32>
    %c13 = arith.constant 13 : index
    %c0_54 = arith.constant 0 : index
    %c0_55 = arith.constant 0 : index
    %80 = vector.load %arg1[%c13, %c0_54, %c0_55] : memref<16x40x64xbf16, #tpu.memory_space<vmem>>, vector<1x40x64xbf16>
    %81 = vector.shape_cast %80 : vector<1x40x64xbf16> to vector<40x64xbf16>
    %cst_56 = arith.constant dense<0.000000e+00> : vector<2x64xf32>
    %82 = tpu.matmul %0, %81, %cst_56 {dimension_numbers = #tpu.dot_dimension_numbers<[1], [0], [0], [1], [0, 0, 1, 1], [], []>} : vector<2x40xbf16>, vector<40x64xbf16>, vector<2x64xf32> -> vector<2x64xf32>
    %cst_57 = arith.constant dense<0.000000e+00> : vector<64xf32>
    %83 = vector.multi_reduction <add>, %82, %cst_57 [0] : vector<2x64xf32> to vector<64xf32>
    %84 = vector.shape_cast %83 : vector<64xf32> to vector<1x64xf32>
    %85 = arith.addf %79, %84 : vector<1x64xf32>
    %c14 = arith.constant 14 : index
    %c0_58 = arith.constant 0 : index
    %c0_59 = arith.constant 0 : index
    %86 = vector.load %arg1[%c14, %c0_58, %c0_59] : memref<16x40x64xbf16, #tpu.memory_space<vmem>>, vector<1x40x64xbf16>
    %87 = vector.shape_cast %86 : vector<1x40x64xbf16> to vector<40x64xbf16>
    %cst_60 = arith.constant dense<0.000000e+00> : vector<2x64xf32>
    %88 = tpu.matmul %0, %87, %cst_60 {dimension_numbers = #tpu.dot_dimension_numbers<[1], [0], [0], [1], [0, 0, 1, 1], [], []>} : vector<2x40xbf16>, vector<40x64xbf16>, vector<2x64xf32> -> vector<2x64xf32>
    %cst_61 = arith.constant dense<0.000000e+00> : vector<64xf32>
    %89 = vector.multi_reduction <add>, %88, %cst_61 [0] : vector<2x64xf32> to vector<64xf32>
    %90 = vector.shape_cast %89 : vector<64xf32> to vector<1x64xf32>
    %91 = arith.addf %85, %90 : vector<1x64xf32>
    %c15 = arith.constant 15 : index
    %c0_62 = arith.constant 0 : index
    %c0_63 = arith.constant 0 : index
    %92 = vector.load %arg1[%c15, %c0_62, %c0_63] : memref<16x40x64xbf16, #tpu.memory_space<vmem>>, vector<1x40x64xbf16>
    %93 = vector.shape_cast %92 : vector<1x40x64xbf16> to vector<40x64xbf16>
    %cst_64 = arith.constant dense<0.000000e+00> : vector<2x64xf32>
    %94 = tpu.matmul %0, %93, %cst_64 {dimension_numbers = #tpu.dot_dimension_numbers<[1], [0], [0], [1], [0, 0, 1, 1], [], []>} : vector<2x40xbf16>, vector<40x64xbf16>, vector<2x64xf32> -> vector<2x64xf32>
    %cst_65 = arith.constant dense<0.000000e+00> : vector<64xf32>
    %95 = vector.multi_reduction <add>, %94, %cst_65 [0] : vector<2x64xf32> to vector<64xf32>
    %96 = vector.shape_cast %95 : vector<64xf32> to vector<1x64xf32>
    %97 = arith.addf %91, %96 : vector<1x64xf32>
    %cst_66 = arith.constant 3.125000e-02 : f32
    %98 = vector.broadcast %cst_66 : f32 to vector<1x64xf32>
    %99 = arith.mulf %97, %98 : vector<1x64xf32>
    %cst_67 = arith.constant 0.000000e+00 : f32
    %100 = vector.broadcast %cst_67 : f32 to vector<1x64xf32>
    %101 = vector.broadcast %99 : vector<1x64xf32> to vector<2x64xf32>
    %102 = arith.subf %4, %101 : vector<2x64xf32>
    %103 = arith.mulf %102, %102 : vector<2x64xf32>
    %cst_68 = arith.constant dense<0.000000e+00> : vector<64xf32>
    %104 = vector.multi_reduction <add>, %103, %cst_68 [0] : vector<2x64xf32> to vector<64xf32>
    %105 = vector.shape_cast %104 : vector<64xf32> to vector<1x64xf32>
    %106 = arith.addf %100, %105 : vector<1x64xf32>
    %107 = vector.broadcast %99 : vector<1x64xf32> to vector<2x64xf32>
    %108 = arith.subf %10, %107 : vector<2x64xf32>
    %109 = arith.mulf %108, %108 : vector<2x64xf32>
    %cst_69 = arith.constant dense<0.000000e+00> : vector<64xf32>
    %110 = vector.multi_reduction <add>, %109, %cst_69 [0] : vector<2x64xf32> to vector<64xf32>
    %111 = vector.shape_cast %110 : vector<64xf32> to vector<1x64xf32>
    %112 = arith.addf %106, %111 : vector<1x64xf32>
    %113 = vector.broadcast %99 : vector<1x64xf32> to vector<2x64xf32>
    %114 = arith.subf %16, %113 : vector<2x64xf32>
    %115 = arith.mulf %114, %114 : vector<2x64xf32>
    %cst_70 = arith.constant dense<0.000000e+00> : vector<64xf32>
    %116 = vector.multi_reduction <add>, %115, %cst_70 [0] : vector<2x64xf32> to vector<64xf32>
    %117 = vector.shape_cast %116 : vector<64xf32> to vector<1x64xf32>
    %118 = arith.addf %112, %117 : vector<1x64xf32>
    %119 = vector.broadcast %99 : vector<1x64xf32> to vector<2x64xf32>
    %120 = arith.subf %22, %119 : vector<2x64xf32>
    %121 = arith.mulf %120, %120 : vector<2x64xf32>
    %cst_71 = arith.constant dense<0.000000e+00> : vector<64xf32>
    %122 = vector.multi_reduction <add>, %121, %cst_71 [0] : vector<2x64xf32> to vector<64xf32>
    %123 = vector.shape_cast %122 : vector<64xf32> to vector<1x64xf32>
    %124 = arith.addf %118, %123 : vector<1x64xf32>
    %125 = vector.broadcast %99 : vector<1x64xf32> to vector<2x64xf32>
    %126 = arith.subf %28, %125 : vector<2x64xf32>
    %127 = arith.mulf %126, %126 : vector<2x64xf32>
    %cst_72 = arith.constant dense<0.000000e+00> : vector<64xf32>
    %128 = vector.multi_reduction <add>, %127, %cst_72 [0] : vector<2x64xf32> to vector<64xf32>
    %129 = vector.shape_cast %128 : vector<64xf32> to vector<1x64xf32>
    %130 = arith.addf %124, %129 : vector<1x64xf32>
    %131 = vector.broadcast %99 : vector<1x64xf32> to vector<2x64xf32>
    %132 = arith.subf %34, %131 : vector<2x64xf32>
    %133 = arith.mulf %132, %132 : vector<2x64xf32>
    %cst_73 = arith.constant dense<0.000000e+00> : vector<64xf32>
    %134 = vector.multi_reduction <add>, %133, %cst_73 [0] : vector<2x64xf32> to vector<64xf32>
    %135 = vector.shape_cast %134 : vector<64xf32> to vector<1x64xf32>
    %136 = arith.addf %130, %135 : vector<1x64xf32>
    %137 = vector.broadcast %99 : vector<1x64xf32> to vector<2x64xf32>
    %138 = arith.subf %40, %137 : vector<2x64xf32>
    %139 = arith.mulf %138, %138 : vector<2x64xf32>
    %cst_74 = arith.constant dense<0.000000e+00> : vector<64xf32>
    %140 = vector.multi_reduction <add>, %139, %cst_74 [0] : vector<2x64xf32> to vector<64xf32>
    %141 = vector.shape_cast %140 : vector<64xf32> to vector<1x64xf32>
    %142 = arith.addf %136, %141 : vector<1x64xf32>
    %143 = vector.broadcast %99 : vector<1x64xf32> to vector<2x64xf32>
    %144 = arith.subf %46, %143 : vector<2x64xf32>
    %145 = arith.mulf %144, %144 : vector<2x64xf32>
    %cst_75 = arith.constant dense<0.000000e+00> : vector<64xf32>
    %146 = vector.multi_reduction <add>, %145, %cst_75 [0] : vector<2x64xf32> to vector<64xf32>
    %147 = vector.shape_cast %146 : vector<64xf32> to vector<1x64xf32>
    %148 = arith.addf %142, %147 : vector<1x64xf32>
    %149 = vector.broadcast %99 : vector<1x64xf32> to vector<2x64xf32>
    %150 = arith.subf %52, %149 : vector<2x64xf32>
    %151 = arith.mulf %150, %150 : vector<2x64xf32>
    %cst_76 = arith.constant dense<0.000000e+00> : vector<64xf32>
    %152 = vector.multi_reduction <add>, %151, %cst_76 [0] : vector<2x64xf32> to vector<64xf32>
    %153 = vector.shape_cast %152 : vector<64xf32> to vector<1x64xf32>
    %154 = arith.addf %148, %153 : vector<1x64xf32>
    %155 = vector.broadcast %99 : vector<1x64xf32> to vector<2x64xf32>
    %156 = arith.subf %58, %155 : vector<2x64xf32>
    %157 = arith.mulf %156, %156 : vector<2x64xf32>
    %cst_77 = arith.constant dense<0.000000e+00> : vector<64xf32>
    %158 = vector.multi_reduction <add>, %157, %cst_77 [0] : vector<2x64xf32> to vector<64xf32>
    %159 = vector.shape_cast %158 : vector<64xf32> to vector<1x64xf32>
    %160 = arith.addf %154, %159 : vector<1x64xf32>
    %161 = vector.broadcast %99 : vector<1x64xf32> to vector<2x64xf32>
    %162 = arith.subf %64, %161 : vector<2x64xf32>
    %163 = arith.mulf %162, %162 : vector<2x64xf32>
    %cst_78 = arith.constant dense<0.000000e+00> : vector<64xf32>
    %164 = vector.multi_reduction <add>, %163, %cst_78 [0] : vector<2x64xf32> to vector<64xf32>
    %165 = vector.shape_cast %164 : vector<64xf32> to vector<1x64xf32>
    %166 = arith.addf %160, %165 : vector<1x64xf32>
    %167 = vector.broadcast %99 : vector<1x64xf32> to vector<2x64xf32>
    %168 = arith.subf %70, %167 : vector<2x64xf32>
    %169 = arith.mulf %168, %168 : vector<2x64xf32>
    %cst_79 = arith.constant dense<0.000000e+00> : vector<64xf32>
    %170 = vector.multi_reduction <add>, %169, %cst_79 [0] : vector<2x64xf32> to vector<64xf32>
    %171 = vector.shape_cast %170 : vector<64xf32> to vector<1x64xf32>
    %172 = arith.addf %166, %171 : vector<1x64xf32>
    %173 = vector.broadcast %99 : vector<1x64xf32> to vector<2x64xf32>
    %174 = arith.subf %76, %173 : vector<2x64xf32>
    %175 = arith.mulf %174, %174 : vector<2x64xf32>
    %cst_80 = arith.constant dense<0.000000e+00> : vector<64xf32>
    %176 = vector.multi_reduction <add>, %175, %cst_80 [0] : vector<2x64xf32> to vector<64xf32>
    %177 = vector.shape_cast %176 : vector<64xf32> to vector<1x64xf32>
    %178 = arith.addf %172, %177 : vector<1x64xf32>
    %179 = vector.broadcast %99 : vector<1x64xf32> to vector<2x64xf32>
    %180 = arith.subf %82, %179 : vector<2x64xf32>
    %181 = arith.mulf %180, %180 : vector<2x64xf32>
    %cst_81 = arith.constant dense<0.000000e+00> : vector<64xf32>
    %182 = vector.multi_reduction <add>, %181, %cst_81 [0] : vector<2x64xf32> to vector<64xf32>
    %183 = vector.shape_cast %182 : vector<64xf32> to vector<1x64xf32>
    %184 = arith.addf %178, %183 : vector<1x64xf32>
    %185 = vector.broadcast %99 : vector<1x64xf32> to vector<2x64xf32>
    %186 = arith.subf %88, %185 : vector<2x64xf32>
    %187 = arith.mulf %186, %186 : vector<2x64xf32>
    %cst_82 = arith.constant dense<0.000000e+00> : vector<64xf32>
    %188 = vector.multi_reduction <add>, %187, %cst_82 [0] : vector<2x64xf32> to vector<64xf32>
    %189 = vector.shape_cast %188 : vector<64xf32> to vector<1x64xf32>
    %190 = arith.addf %184, %189 : vector<1x64xf32>
    %191 = vector.broadcast %99 : vector<1x64xf32> to vector<2x64xf32>
    %192 = arith.subf %94, %191 : vector<2x64xf32>
    %193 = arith.mulf %192, %192 : vector<2x64xf32>
    %cst_83 = arith.constant dense<0.000000e+00> : vector<64xf32>
    %194 = vector.multi_reduction <add>, %193, %cst_83 [0] : vector<2x64xf32> to vector<64xf32>
    %195 = vector.shape_cast %194 : vector<64xf32> to vector<1x64xf32>
    %196 = arith.addf %190, %195 : vector<1x64xf32>
    %cst_84 = arith.constant 3.125000e-02 : f32
    %197 = vector.broadcast %cst_84 : f32 to vector<1x64xf32>
    %198 = arith.mulf %196, %197 : vector<1x64xf32>
    %cst_85 = arith.constant 9.99999974E-6 : f32
    %199 = vector.broadcast %cst_85 : f32 to vector<1x64xf32>
    %200 = arith.addf %198, %199 : vector<1x64xf32>
    %201 = math.rsqrt %200 : vector<1x64xf32>
    %c0_86 = arith.constant 0 : index
    %c0_87 = arith.constant 0 : index
    %202 = vector.load %arg2[%c0_86, %c0_87] : memref<1x64xf32, #tpu.memory_space<vmem>>, vector<1x64xf32>
    %203 = arith.mulf %202, %201 : vector<1x64xf32>
    %c0_88 = arith.constant 0 : index
    %c0_89 = arith.constant 0 : index
    %204 = vector.load %arg3[%c0_88, %c0_89] : memref<1x64xf32, #tpu.memory_space<vmem>>, vector<1x64xf32>
    %205 = arith.mulf %99, %203 : vector<1x64xf32>
    %206 = arith.subf %204, %205 : vector<1x64xf32>
    %207 = vector.broadcast %203 : vector<1x64xf32> to vector<2x64xf32>
    %208 = arith.mulf %4, %207 : vector<2x64xf32>
    %209 = vector.broadcast %206 : vector<1x64xf32> to vector<2x64xf32>
    %210 = arith.addf %208, %209 : vector<2x64xf32>
    %cst_90 = arith.constant 0.000000e+00 : f32
    %211 = vector.broadcast %cst_90 : f32 to vector<2x64xf32>
    %212 = arith.maximumf %210, %211 : vector<2x64xf32>
    %213 = arith.truncf %212 : vector<2x64xf32> to vector<2x64xbf16>
    %c0_91 = arith.constant 0 : index
    %c0_92 = arith.constant 0 : index
    %c0_93 = arith.constant 0 : index
    %214 = vector.load %arg4[%c0_91, %c0_92, %c0_93] : memref<16x2x64xbf16, #tpu.memory_space<vmem>>, vector<1x2x64xbf16>
    %215 = vector.shape_cast %214 : vector<1x2x64xbf16> to vector<2x64xbf16>
    %216 = vector.shape_cast %213 : vector<2x64xbf16> to vector<1x2x64xbf16>
    tpu.vector_store %arg4[%c0_91, %c0_92, %c0_93], %216 {strides = array<i32>} : memref<16x2x64xbf16, #tpu.memory_space<vmem>>, vector<1x2x64xbf16>,
    %217 = vector.broadcast %203 : vector<1x64xf32> to vector<2x64xf32>
    %218 = arith.mulf %10, %217 : vector<2x64xf32>
    %219 = vector.broadcast %206 : vector<1x64xf32> to vector<2x64xf32>
    %220 = arith.addf %218, %219 : vector<2x64xf32>
    %cst_94 = arith.constant 0.000000e+00 : f32
    %221 = vector.broadcast %cst_94 : f32 to vector<2x64xf32>
    %222 = arith.maximumf %220, %221 : vector<2x64xf32>
    %223 = arith.truncf %222 : vector<2x64xf32> to vector<2x64xbf16>
    %c1_95 = arith.constant 1 : index
    %c0_96 = arith.constant 0 : index
    %c0_97 = arith.constant 0 : index
    %224 = vector.load %arg4[%c1_95, %c0_96, %c0_97] : memref<16x2x64xbf16, #tpu.memory_space<vmem>>, vector<1x2x64xbf16>
    %225 = vector.shape_cast %224 : vector<1x2x64xbf16> to vector<2x64xbf16>
    %226 = vector.shape_cast %223 : vector<2x64xbf16> to vector<1x2x64xbf16>
    tpu.vector_store %arg4[%c1_95, %c0_96, %c0_97], %226 {strides = array<i32>} : memref<16x2x64xbf16, #tpu.memory_space<vmem>>, vector<1x2x64xbf16>,
    %227 = vector.broadcast %203 : vector<1x64xf32> to vector<2x64xf32>
    %228 = arith.mulf %16, %227 : vector<2x64xf32>
    %229 = vector.broadcast %206 : vector<1x64xf32> to vector<2x64xf32>
    %230 = arith.addf %228, %229 : vector<2x64xf32>
    %cst_98 = arith.constant 0.000000e+00 : f32
    %231 = vector.broadcast %cst_98 : f32 to vector<2x64xf32>
    %232 = arith.maximumf %230, %231 : vector<2x64xf32>
    %233 = arith.truncf %232 : vector<2x64xf32> to vector<2x64xbf16>
    %c2_99 = arith.constant 2 : index
    %c0_100 = arith.constant 0 : index
    %c0_101 = arith.constant 0 : index
    %234 = vector.load %arg4[%c2_99, %c0_100, %c0_101] : memref<16x2x64xbf16, #tpu.memory_space<vmem>>, vector<1x2x64xbf16>
    %235 = vector.shape_cast %234 : vector<1x2x64xbf16> to vector<2x64xbf16>
    %236 = vector.shape_cast %233 : vector<2x64xbf16> to vector<1x2x64xbf16>
    tpu.vector_store %arg4[%c2_99, %c0_100, %c0_101], %236 {strides = array<i32>} : memref<16x2x64xbf16, #tpu.memory_space<vmem>>, vector<1x2x64xbf16>,
    %237 = vector.broadcast %203 : vector<1x64xf32> to vector<2x64xf32>
    %238 = arith.mulf %22, %237 : vector<2x64xf32>
    %239 = vector.broadcast %206 : vector<1x64xf32> to vector<2x64xf32>
    %240 = arith.addf %238, %239 : vector<2x64xf32>
    %cst_102 = arith.constant 0.000000e+00 : f32
    %241 = vector.broadcast %cst_102 : f32 to vector<2x64xf32>
    %242 = arith.maximumf %240, %241 : vector<2x64xf32>
    %243 = arith.truncf %242 : vector<2x64xf32> to vector<2x64xbf16>
    %c3_103 = arith.constant 3 : index
    %c0_104 = arith.constant 0 : index
    %c0_105 = arith.constant 0 : index
    %244 = vector.load %arg4[%c3_103, %c0_104, %c0_105] : memref<16x2x64xbf16, #tpu.memory_space<vmem>>, vector<1x2x64xbf16>
    %245 = vector.shape_cast %244 : vector<1x2x64xbf16> to vector<2x64xbf16>
    %246 = vector.shape_cast %243 : vector<2x64xbf16> to vector<1x2x64xbf16>
    tpu.vector_store %arg4[%c3_103, %c0_104, %c0_105], %246 {strides = array<i32>} : memref<16x2x64xbf16, #tpu.memory_space<vmem>>, vector<1x2x64xbf16>,
    %247 = vector.broadcast %203 : vector<1x64xf32> to vector<2x64xf32>
    %248 = arith.mulf %28, %247 : vector<2x64xf32>
    %249 = vector.broadcast %206 : vector<1x64xf32> to vector<2x64xf32>
    %250 = arith.addf %248, %249 : vector<2x64xf32>
    %cst_106 = arith.constant 0.000000e+00 : f32
    %251 = vector.broadcast %cst_106 : f32 to vector<2x64xf32>
    %252 = arith.maximumf %250, %251 : vector<2x64xf32>
    %253 = arith.truncf %252 : vector<2x64xf32> to vector<2x64xbf16>
    %c4_107 = arith.constant 4 : index
    %c0_108 = arith.constant 0 : index
    %c0_109 = arith.constant 0 : index
    %254 = vector.load %arg4[%c4_107, %c0_108, %c0_109] : memref<16x2x64xbf16, #tpu.memory_space<vmem>>, vector<1x2x64xbf16>
    %255 = vector.shape_cast %254 : vector<1x2x64xbf16> to vector<2x64xbf16>
    %256 = vector.shape_cast %253 : vector<2x64xbf16> to vector<1x2x64xbf16>
    tpu.vector_store %arg4[%c4_107, %c0_108, %c0_109], %256 {strides = array<i32>} : memref<16x2x64xbf16, #tpu.memory_space<vmem>>, vector<1x2x64xbf16>,
    %257 = vector.broadcast %203 : vector<1x64xf32> to vector<2x64xf32>
    %258 = arith.mulf %34, %257 : vector<2x64xf32>
    %259 = vector.broadcast %206 : vector<1x64xf32> to vector<2x64xf32>
    %260 = arith.addf %258, %259 : vector<2x64xf32>
    %cst_110 = arith.constant 0.000000e+00 : f32
    %261 = vector.broadcast %cst_110 : f32 to vector<2x64xf32>
    %262 = arith.maximumf %260, %261 : vector<2x64xf32>
    %263 = arith.truncf %262 : vector<2x64xf32> to vector<2x64xbf16>
    %c5_111 = arith.constant 5 : index
    %c0_112 = arith.constant 0 : index
    %c0_113 = arith.constant 0 : index
    %264 = vector.load %arg4[%c5_111, %c0_112, %c0_113] : memref<16x2x64xbf16, #tpu.memory_space<vmem>>, vector<1x2x64xbf16>
    %265 = vector.shape_cast %264 : vector<1x2x64xbf16> to vector<2x64xbf16>
    %266 = vector.shape_cast %263 : vector<2x64xbf16> to vector<1x2x64xbf16>
    tpu.vector_store %arg4[%c5_111, %c0_112, %c0_113], %266 {strides = array<i32>} : memref<16x2x64xbf16, #tpu.memory_space<vmem>>, vector<1x2x64xbf16>,
    %267 = vector.broadcast %203 : vector<1x64xf32> to vector<2x64xf32>
    %268 = arith.mulf %40, %267 : vector<2x64xf32>
    %269 = vector.broadcast %206 : vector<1x64xf32> to vector<2x64xf32>
    %270 = arith.addf %268, %269 : vector<2x64xf32>
    %cst_114 = arith.constant 0.000000e+00 : f32
    %271 = vector.broadcast %cst_114 : f32 to vector<2x64xf32>
    %272 = arith.maximumf %270, %271 : vector<2x64xf32>
    %273 = arith.truncf %272 : vector<2x64xf32> to vector<2x64xbf16>
    %c6_115 = arith.constant 6 : index
    %c0_116 = arith.constant 0 : index
    %c0_117 = arith.constant 0 : index
    %274 = vector.load %arg4[%c6_115, %c0_116, %c0_117] : memref<16x2x64xbf16, #tpu.memory_space<vmem>>, vector<1x2x64xbf16>
    %275 = vector.shape_cast %274 : vector<1x2x64xbf16> to vector<2x64xbf16>
    %276 = vector.shape_cast %273 : vector<2x64xbf16> to vector<1x2x64xbf16>
    tpu.vector_store %arg4[%c6_115, %c0_116, %c0_117], %276 {strides = array<i32>} : memref<16x2x64xbf16, #tpu.memory_space<vmem>>, vector<1x2x64xbf16>,
    %277 = vector.broadcast %203 : vector<1x64xf32> to vector<2x64xf32>
    %278 = arith.mulf %46, %277 : vector<2x64xf32>
    %279 = vector.broadcast %206 : vector<1x64xf32> to vector<2x64xf32>
    %280 = arith.addf %278, %279 : vector<2x64xf32>
    %cst_118 = arith.constant 0.000000e+00 : f32
    %281 = vector.broadcast %cst_118 : f32 to vector<2x64xf32>
    %282 = arith.maximumf %280, %281 : vector<2x64xf32>
    %283 = arith.truncf %282 : vector<2x64xf32> to vector<2x64xbf16>
    %c7_119 = arith.constant 7 : index
    %c0_120 = arith.constant 0 : index
    %c0_121 = arith.constant 0 : index
    %284 = vector.load %arg4[%c7_119, %c0_120, %c0_121] : memref<16x2x64xbf16, #tpu.memory_space<vmem>>, vector<1x2x64xbf16>
    %285 = vector.shape_cast %284 : vector<1x2x64xbf16> to vector<2x64xbf16>
    %286 = vector.shape_cast %283 : vector<2x64xbf16> to vector<1x2x64xbf16>
    tpu.vector_store %arg4[%c7_119, %c0_120, %c0_121], %286 {strides = array<i32>} : memref<16x2x64xbf16, #tpu.memory_space<vmem>>, vector<1x2x64xbf16>,
    %287 = vector.broadcast %203 : vector<1x64xf32> to vector<2x64xf32>
    %288 = arith.mulf %52, %287 : vector<2x64xf32>
    %289 = vector.broadcast %206 : vector<1x64xf32> to vector<2x64xf32>
    %290 = arith.addf %288, %289 : vector<2x64xf32>
    %cst_122 = arith.constant 0.000000e+00 : f32
    %291 = vector.broadcast %cst_122 : f32 to vector<2x64xf32>
    %292 = arith.maximumf %290, %291 : vector<2x64xf32>
    %293 = arith.truncf %292 : vector<2x64xf32> to vector<2x64xbf16>
    %c8_123 = arith.constant 8 : index
    %c0_124 = arith.constant 0 : index
    %c0_125 = arith.constant 0 : index
    %294 = vector.load %arg4[%c8_123, %c0_124, %c0_125] : memref<16x2x64xbf16, #tpu.memory_space<vmem>>, vector<1x2x64xbf16>
    %295 = vector.shape_cast %294 : vector<1x2x64xbf16> to vector<2x64xbf16>
    %296 = vector.shape_cast %293 : vector<2x64xbf16> to vector<1x2x64xbf16>
    tpu.vector_store %arg4[%c8_123, %c0_124, %c0_125], %296 {strides = array<i32>} : memref<16x2x64xbf16, #tpu.memory_space<vmem>>, vector<1x2x64xbf16>,
    %297 = vector.broadcast %203 : vector<1x64xf32> to vector<2x64xf32>
    %298 = arith.mulf %58, %297 : vector<2x64xf32>
    %299 = vector.broadcast %206 : vector<1x64xf32> to vector<2x64xf32>
    %300 = arith.addf %298, %299 : vector<2x64xf32>
    %cst_126 = arith.constant 0.000000e+00 : f32
    %301 = vector.broadcast %cst_126 : f32 to vector<2x64xf32>
    %302 = arith.maximumf %300, %301 : vector<2x64xf32>
    %303 = arith.truncf %302 : vector<2x64xf32> to vector<2x64xbf16>
    %c9_127 = arith.constant 9 : index
    %c0_128 = arith.constant 0 : index
    %c0_129 = arith.constant 0 : index
    %304 = vector.load %arg4[%c9_127, %c0_128, %c0_129] : memref<16x2x64xbf16, #tpu.memory_space<vmem>>, vector<1x2x64xbf16>
    %305 = vector.shape_cast %304 : vector<1x2x64xbf16> to vector<2x64xbf16>
    %306 = vector.shape_cast %303 : vector<2x64xbf16> to vector<1x2x64xbf16>
    tpu.vector_store %arg4[%c9_127, %c0_128, %c0_129], %306 {strides = array<i32>} : memref<16x2x64xbf16, #tpu.memory_space<vmem>>, vector<1x2x64xbf16>,
    %307 = vector.broadcast %203 : vector<1x64xf32> to vector<2x64xf32>
    %308 = arith.mulf %64, %307 : vector<2x64xf32>
    %309 = vector.broadcast %206 : vector<1x64xf32> to vector<2x64xf32>
    %310 = arith.addf %308, %309 : vector<2x64xf32>
    %cst_130 = arith.constant 0.000000e+00 : f32
    %311 = vector.broadcast %cst_130 : f32 to vector<2x64xf32>
    %312 = arith.maximumf %310, %311 : vector<2x64xf32>
    %313 = arith.truncf %312 : vector<2x64xf32> to vector<2x64xbf16>
    %c10_131 = arith.constant 10 : index
    %c0_132 = arith.constant 0 : index
    %c0_133 = arith.constant 0 : index
    %314 = vector.load %arg4[%c10_131, %c0_132, %c0_133] : memref<16x2x64xbf16, #tpu.memory_space<vmem>>, vector<1x2x64xbf16>
    %315 = vector.shape_cast %314 : vector<1x2x64xbf16> to vector<2x64xbf16>
    %316 = vector.shape_cast %313 : vector<2x64xbf16> to vector<1x2x64xbf16>
    tpu.vector_store %arg4[%c10_131, %c0_132, %c0_133], %316 {strides = array<i32>} : memref<16x2x64xbf16, #tpu.memory_space<vmem>>, vector<1x2x64xbf16>,
    %317 = vector.broadcast %203 : vector<1x64xf32> to vector<2x64xf32>
    %318 = arith.mulf %70, %317 : vector<2x64xf32>
    %319 = vector.broadcast %206 : vector<1x64xf32> to vector<2x64xf32>
    %320 = arith.addf %318, %319 : vector<2x64xf32>
    %cst_134 = arith.constant 0.000000e+00 : f32
    %321 = vector.broadcast %cst_134 : f32 to vector<2x64xf32>
    %322 = arith.maximumf %320, %321 : vector<2x64xf32>
    %323 = arith.truncf %322 : vector<2x64xf32> to vector<2x64xbf16>
    %c11_135 = arith.constant 11 : index
    %c0_136 = arith.constant 0 : index
    %c0_137 = arith.constant 0 : index
    %324 = vector.load %arg4[%c11_135, %c0_136, %c0_137] : memref<16x2x64xbf16, #tpu.memory_space<vmem>>, vector<1x2x64xbf16>
    %325 = vector.shape_cast %324 : vector<1x2x64xbf16> to vector<2x64xbf16>
    %326 = vector.shape_cast %323 : vector<2x64xbf16> to vector<1x2x64xbf16>
    tpu.vector_store %arg4[%c11_135, %c0_136, %c0_137], %326 {strides = array<i32>} : memref<16x2x64xbf16, #tpu.memory_space<vmem>>, vector<1x2x64xbf16>,
    %327 = vector.broadcast %203 : vector<1x64xf32> to vector<2x64xf32>
    %328 = arith.mulf %76, %327 : vector<2x64xf32>
    %329 = vector.broadcast %206 : vector<1x64xf32> to vector<2x64xf32>
    %330 = arith.addf %328, %329 : vector<2x64xf32>
    %cst_138 = arith.constant 0.000000e+00 : f32
    %331 = vector.broadcast %cst_138 : f32 to vector<2x64xf32>
    %332 = arith.maximumf %330, %331 : vector<2x64xf32>
    %333 = arith.truncf %332 : vector<2x64xf32> to vector<2x64xbf16>
    %c12_139 = arith.constant 12 : index
    %c0_140 = arith.constant 0 : index
    %c0_141 = arith.constant 0 : index
    %334 = vector.load %arg4[%c12_139, %c0_140, %c0_141] : memref<16x2x64xbf16, #tpu.memory_space<vmem>>, vector<1x2x64xbf16>
    %335 = vector.shape_cast %334 : vector<1x2x64xbf16> to vector<2x64xbf16>
    %336 = vector.shape_cast %333 : vector<2x64xbf16> to vector<1x2x64xbf16>
    tpu.vector_store %arg4[%c12_139, %c0_140, %c0_141], %336 {strides = array<i32>} : memref<16x2x64xbf16, #tpu.memory_space<vmem>>, vector<1x2x64xbf16>,
    %337 = vector.broadcast %203 : vector<1x64xf32> to vector<2x64xf32>
    %338 = arith.mulf %82, %337 : vector<2x64xf32>
    %339 = vector.broadcast %206 : vector<1x64xf32> to vector<2x64xf32>
    %340 = arith.addf %338, %339 : vector<2x64xf32>
    %cst_142 = arith.constant 0.000000e+00 : f32
    %341 = vector.broadcast %cst_142 : f32 to vector<2x64xf32>
    %342 = arith.maximumf %340, %341 : vector<2x64xf32>
    %343 = arith.truncf %342 : vector<2x64xf32> to vector<2x64xbf16>
    %c13_143 = arith.constant 13 : index
    %c0_144 = arith.constant 0 : index
    %c0_145 = arith.constant 0 : index
    %344 = vector.load %arg4[%c13_143, %c0_144, %c0_145] : memref<16x2x64xbf16, #tpu.memory_space<vmem>>, vector<1x2x64xbf16>
    %345 = vector.shape_cast %344 : vector<1x2x64xbf16> to vector<2x64xbf16>
    %346 = vector.shape_cast %343 : vector<2x64xbf16> to vector<1x2x64xbf16>
    tpu.vector_store %arg4[%c13_143, %c0_144, %c0_145], %346 {strides = array<i32>} : memref<16x2x64xbf16, #tpu.memory_space<vmem>>, vector<1x2x64xbf16>,
    %347 = vector.broadcast %203 : vector<1x64xf32> to vector<2x64xf32>
    %348 = arith.mulf %88, %347 : vector<2x64xf32>
    %349 = vector.broadcast %206 : vector<1x64xf32> to vector<2x64xf32>
    %350 = arith.addf %348, %349 : vector<2x64xf32>
    %cst_146 = arith.constant 0.000000e+00 : f32
    %351 = vector.broadcast %cst_146 : f32 to vector<2x64xf32>
    %352 = arith.maximumf %350, %351 : vector<2x64xf32>
    %353 = arith.truncf %352 : vector<2x64xf32> to vector<2x64xbf16>
    %c14_147 = arith.constant 14 : index
    %c0_148 = arith.constant 0 : index
    %c0_149 = arith.constant 0 : index
    %354 = vector.load %arg4[%c14_147, %c0_148, %c0_149] : memref<16x2x64xbf16, #tpu.memory_space<vmem>>, vector<1x2x64xbf16>
    %355 = vector.shape_cast %354 : vector<1x2x64xbf16> to vector<2x64xbf16>
    %356 = vector.shape_cast %353 : vector<2x64xbf16> to vector<1x2x64xbf16>
    tpu.vector_store %arg4[%c14_147, %c0_148, %c0_149], %356 {strides = array<i32>} : memref<16x2x64xbf16, #tpu.memory_space<vmem>>, vector<1x2x64xbf16>,
    %357 = vector.broadcast %203 : vector<1x64xf32> to vector<2x64xf32>
    %358 = arith.mulf %94, %357 : vector<2x64xf32>
    %359 = vector.broadcast %206 : vector<1x64xf32> to vector<2x64xf32>
    %360 = arith.addf %358, %359 : vector<2x64xf32>
    %cst_150 = arith.constant 0.000000e+00 : f32
    %361 = vector.broadcast %cst_150 : f32 to vector<2x64xf32>
    %362 = arith.maximumf %360, %361 : vector<2x64xf32>
    %363 = arith.truncf %362 : vector<2x64xf32> to vector<2x64xbf16>
    %c15_151 = arith.constant 15 : index
    %c0_152 = arith.constant 0 : index
    %c0_153 = arith.constant 0 : index
    %364 = vector.load %arg4[%c15_151, %c0_152, %c0_153] : memref<16x2x64xbf16, #tpu.memory_space<vmem>>, vector<1x2x64xbf16>
    %365 = vector.shape_cast %364 : vector<1x2x64xbf16> to vector<2x64xbf16>
    %366 = vector.shape_cast %363 : vector<2x64xbf16> to vector<1x2x64xbf16>
    tpu.vector_store %arg4[%c15_151, %c0_152, %c0_153], %366 {strides = array<i32>} : memref<16x2x64xbf16, #tpu.memory_space<vmem>>, vector<1x2x64xbf16>,
    return
  }
}

module attributes {stable_mosaic.version = 11 : i64} {
  func.func @_up_bn_kernel(%arg0: memref<4x256x32xbf16, #tpu.memory_space<vmem>>, %arg1: memref<4x32x256xbf16, #tpu.memory_space<vmem>>, %arg2: memref<32x1xf32, #tpu.memory_space<vmem>>, %arg3: memref<32x1xf32, #tpu.memory_space<vmem>>, %arg4: memref<4x32x32xbf16, #tpu.memory_space<vmem>>, %arg5: memref<4x32x32xf32, #tpu.memory_space<vmem>>) attributes {dimension_semantics = [], scalar_prefetch = 0 : i64, scratch_operands = 1 : i64, tpu.core_type = #tpu.core_type<tc>} {
    %cst = arith.constant 0.000000e+00 : f32
    %0 = vector.broadcast %cst : f32 to vector<32x1xf32>
    %c0 = arith.constant 0 : index
    %c0_0 = arith.constant 0 : index
    %c0_1 = arith.constant 0 : index
    %1 = vector.load %arg1[%c0, %c0_0, %c0_1] : memref<4x32x256xbf16, #tpu.memory_space<vmem>>, vector<1x32x256xbf16>
    %2 = vector.shape_cast %1 : vector<1x32x256xbf16> to vector<32x256xbf16>
    %c0_2 = arith.constant 0 : index
    %c0_3 = arith.constant 0 : index
    %c0_4 = arith.constant 0 : index
    %3 = vector.load %arg0[%c0_2, %c0_3, %c0_4] : memref<4x256x32xbf16, #tpu.memory_space<vmem>>, vector<1x256x32xbf16>
    %4 = vector.shape_cast %3 : vector<1x256x32xbf16> to vector<256x32xbf16>
    %cst_5 = arith.constant dense<0.000000e+00> : vector<32x32xf32>
    %5 = tpu.matmul %2, %4, %cst_5 {dimension_numbers = #tpu.dot_dimension_numbers<[1], [0], [0], [1], [0, 0, 1, 1], [], []>} : vector<32x256xbf16>, vector<256x32xbf16>, vector<32x32xf32> -> vector<32x32xf32>
    %c0_6 = arith.constant 0 : index
    %c0_7 = arith.constant 0 : index
    %c0_8 = arith.constant 0 : index
    %6 = vector.load %arg5[%c0_6, %c0_7, %c0_8] : memref<4x32x32xf32, #tpu.memory_space<vmem>>, vector<1x32x32xf32>
    %7 = vector.shape_cast %6 : vector<1x32x32xf32> to vector<32x32xf32>
    %8 = vector.shape_cast %5 : vector<32x32xf32> to vector<1x32x32xf32>
    tpu.vector_store %arg5[%c0_6, %c0_7, %c0_8], %8 {strides = array<i32>} : memref<4x32x32xf32, #tpu.memory_space<vmem>>, vector<1x32x32xf32>,
    %cst_9 = arith.constant dense<0.000000e+00> : vector<32xf32>
    %9 = vector.multi_reduction <add>, %5, %cst_9 [1] : vector<32x32xf32> to vector<32xf32>
    %10 = vector.shape_cast %9 : vector<32xf32> to vector<32x1xf32>
    %11 = arith.addf %0, %10 : vector<32x1xf32>
    %c1 = arith.constant 1 : index
    %c0_10 = arith.constant 0 : index
    %c0_11 = arith.constant 0 : index
    %12 = vector.load %arg1[%c1, %c0_10, %c0_11] : memref<4x32x256xbf16, #tpu.memory_space<vmem>>, vector<1x32x256xbf16>
    %13 = vector.shape_cast %12 : vector<1x32x256xbf16> to vector<32x256xbf16>
    %c1_12 = arith.constant 1 : index
    %c0_13 = arith.constant 0 : index
    %c0_14 = arith.constant 0 : index
    %14 = vector.load %arg0[%c1_12, %c0_13, %c0_14] : memref<4x256x32xbf16, #tpu.memory_space<vmem>>, vector<1x256x32xbf16>
    %15 = vector.shape_cast %14 : vector<1x256x32xbf16> to vector<256x32xbf16>
    %cst_15 = arith.constant dense<0.000000e+00> : vector<32x32xf32>
    %16 = tpu.matmul %13, %15, %cst_15 {dimension_numbers = #tpu.dot_dimension_numbers<[1], [0], [0], [1], [0, 0, 1, 1], [], []>} : vector<32x256xbf16>, vector<256x32xbf16>, vector<32x32xf32> -> vector<32x32xf32>
    %c1_16 = arith.constant 1 : index
    %c0_17 = arith.constant 0 : index
    %c0_18 = arith.constant 0 : index
    %17 = vector.load %arg5[%c1_16, %c0_17, %c0_18] : memref<4x32x32xf32, #tpu.memory_space<vmem>>, vector<1x32x32xf32>
    %18 = vector.shape_cast %17 : vector<1x32x32xf32> to vector<32x32xf32>
    %19 = vector.shape_cast %16 : vector<32x32xf32> to vector<1x32x32xf32>
    tpu.vector_store %arg5[%c1_16, %c0_17, %c0_18], %19 {strides = array<i32>} : memref<4x32x32xf32, #tpu.memory_space<vmem>>, vector<1x32x32xf32>,
    %cst_19 = arith.constant dense<0.000000e+00> : vector<32xf32>
    %20 = vector.multi_reduction <add>, %16, %cst_19 [1] : vector<32x32xf32> to vector<32xf32>
    %21 = vector.shape_cast %20 : vector<32xf32> to vector<32x1xf32>
    %22 = arith.addf %11, %21 : vector<32x1xf32>
    %c2 = arith.constant 2 : index
    %c0_20 = arith.constant 0 : index
    %c0_21 = arith.constant 0 : index
    %23 = vector.load %arg1[%c2, %c0_20, %c0_21] : memref<4x32x256xbf16, #tpu.memory_space<vmem>>, vector<1x32x256xbf16>
    %24 = vector.shape_cast %23 : vector<1x32x256xbf16> to vector<32x256xbf16>
    %c2_22 = arith.constant 2 : index
    %c0_23 = arith.constant 0 : index
    %c0_24 = arith.constant 0 : index
    %25 = vector.load %arg0[%c2_22, %c0_23, %c0_24] : memref<4x256x32xbf16, #tpu.memory_space<vmem>>, vector<1x256x32xbf16>
    %26 = vector.shape_cast %25 : vector<1x256x32xbf16> to vector<256x32xbf16>
    %cst_25 = arith.constant dense<0.000000e+00> : vector<32x32xf32>
    %27 = tpu.matmul %24, %26, %cst_25 {dimension_numbers = #tpu.dot_dimension_numbers<[1], [0], [0], [1], [0, 0, 1, 1], [], []>} : vector<32x256xbf16>, vector<256x32xbf16>, vector<32x32xf32> -> vector<32x32xf32>
    %c2_26 = arith.constant 2 : index
    %c0_27 = arith.constant 0 : index
    %c0_28 = arith.constant 0 : index
    %28 = vector.load %arg5[%c2_26, %c0_27, %c0_28] : memref<4x32x32xf32, #tpu.memory_space<vmem>>, vector<1x32x32xf32>
    %29 = vector.shape_cast %28 : vector<1x32x32xf32> to vector<32x32xf32>
    %30 = vector.shape_cast %27 : vector<32x32xf32> to vector<1x32x32xf32>
    tpu.vector_store %arg5[%c2_26, %c0_27, %c0_28], %30 {strides = array<i32>} : memref<4x32x32xf32, #tpu.memory_space<vmem>>, vector<1x32x32xf32>,
    %cst_29 = arith.constant dense<0.000000e+00> : vector<32xf32>
    %31 = vector.multi_reduction <add>, %27, %cst_29 [1] : vector<32x32xf32> to vector<32xf32>
    %32 = vector.shape_cast %31 : vector<32xf32> to vector<32x1xf32>
    %33 = arith.addf %22, %32 : vector<32x1xf32>
    %c3 = arith.constant 3 : index
    %c0_30 = arith.constant 0 : index
    %c0_31 = arith.constant 0 : index
    %34 = vector.load %arg1[%c3, %c0_30, %c0_31] : memref<4x32x256xbf16, #tpu.memory_space<vmem>>, vector<1x32x256xbf16>
    %35 = vector.shape_cast %34 : vector<1x32x256xbf16> to vector<32x256xbf16>
    %c3_32 = arith.constant 3 : index
    %c0_33 = arith.constant 0 : index
    %c0_34 = arith.constant 0 : index
    %36 = vector.load %arg0[%c3_32, %c0_33, %c0_34] : memref<4x256x32xbf16, #tpu.memory_space<vmem>>, vector<1x256x32xbf16>
    %37 = vector.shape_cast %36 : vector<1x256x32xbf16> to vector<256x32xbf16>
    %cst_35 = arith.constant dense<0.000000e+00> : vector<32x32xf32>
    %38 = tpu.matmul %35, %37, %cst_35 {dimension_numbers = #tpu.dot_dimension_numbers<[1], [0], [0], [1], [0, 0, 1, 1], [], []>} : vector<32x256xbf16>, vector<256x32xbf16>, vector<32x32xf32> -> vector<32x32xf32>
    %c3_36 = arith.constant 3 : index
    %c0_37 = arith.constant 0 : index
    %c0_38 = arith.constant 0 : index
    %39 = vector.load %arg5[%c3_36, %c0_37, %c0_38] : memref<4x32x32xf32, #tpu.memory_space<vmem>>, vector<1x32x32xf32>
    %40 = vector.shape_cast %39 : vector<1x32x32xf32> to vector<32x32xf32>
    %41 = vector.shape_cast %38 : vector<32x32xf32> to vector<1x32x32xf32>
    tpu.vector_store %arg5[%c3_36, %c0_37, %c0_38], %41 {strides = array<i32>} : memref<4x32x32xf32, #tpu.memory_space<vmem>>, vector<1x32x32xf32>,
    %cst_39 = arith.constant dense<0.000000e+00> : vector<32xf32>
    %42 = vector.multi_reduction <add>, %38, %cst_39 [1] : vector<32x32xf32> to vector<32xf32>
    %43 = vector.shape_cast %42 : vector<32xf32> to vector<32x1xf32>
    %44 = arith.addf %33, %43 : vector<32x1xf32>
    %cst_40 = arith.constant 7.812500e-03 : f32
    %45 = vector.broadcast %cst_40 : f32 to vector<32x1xf32>
    %46 = arith.mulf %44, %45 : vector<32x1xf32>
    %cst_41 = arith.constant 0.000000e+00 : f32
    %47 = vector.broadcast %cst_41 : f32 to vector<32x1xf32>
    %c0_42 = arith.constant 0 : index
    %c0_43 = arith.constant 0 : index
    %c0_44 = arith.constant 0 : index
    %48 = vector.load %arg5[%c0_42, %c0_43, %c0_44] : memref<4x32x32xf32, #tpu.memory_space<vmem>>, vector<1x32x32xf32>
    %49 = vector.shape_cast %48 : vector<1x32x32xf32> to vector<32x32xf32>
    %50 = vector.broadcast %46 : vector<32x1xf32> to vector<32x32xf32>
    %51 = arith.subf %49, %50 : vector<32x32xf32>
    %52 = arith.mulf %51, %51 : vector<32x32xf32>
    %cst_45 = arith.constant dense<0.000000e+00> : vector<32xf32>
    %53 = vector.multi_reduction <add>, %52, %cst_45 [1] : vector<32x32xf32> to vector<32xf32>
    %54 = vector.shape_cast %53 : vector<32xf32> to vector<32x1xf32>
    %55 = arith.addf %47, %54 : vector<32x1xf32>
    %c1_46 = arith.constant 1 : index
    %c0_47 = arith.constant 0 : index
    %c0_48 = arith.constant 0 : index
    %56 = vector.load %arg5[%c1_46, %c0_47, %c0_48] : memref<4x32x32xf32, #tpu.memory_space<vmem>>, vector<1x32x32xf32>
    %57 = vector.shape_cast %56 : vector<1x32x32xf32> to vector<32x32xf32>
    %58 = vector.broadcast %46 : vector<32x1xf32> to vector<32x32xf32>
    %59 = arith.subf %57, %58 : vector<32x32xf32>
    %60 = arith.mulf %59, %59 : vector<32x32xf32>
    %cst_49 = arith.constant dense<0.000000e+00> : vector<32xf32>
    %61 = vector.multi_reduction <add>, %60, %cst_49 [1] : vector<32x32xf32> to vector<32xf32>
    %62 = vector.shape_cast %61 : vector<32xf32> to vector<32x1xf32>
    %63 = arith.addf %55, %62 : vector<32x1xf32>
    %c2_50 = arith.constant 2 : index
    %c0_51 = arith.constant 0 : index
    %c0_52 = arith.constant 0 : index
    %64 = vector.load %arg5[%c2_50, %c0_51, %c0_52] : memref<4x32x32xf32, #tpu.memory_space<vmem>>, vector<1x32x32xf32>
    %65 = vector.shape_cast %64 : vector<1x32x32xf32> to vector<32x32xf32>
    %66 = vector.broadcast %46 : vector<32x1xf32> to vector<32x32xf32>
    %67 = arith.subf %65, %66 : vector<32x32xf32>
    %68 = arith.mulf %67, %67 : vector<32x32xf32>
    %cst_53 = arith.constant dense<0.000000e+00> : vector<32xf32>
    %69 = vector.multi_reduction <add>, %68, %cst_53 [1] : vector<32x32xf32> to vector<32xf32>
    %70 = vector.shape_cast %69 : vector<32xf32> to vector<32x1xf32>
    %71 = arith.addf %63, %70 : vector<32x1xf32>
    %c3_54 = arith.constant 3 : index
    %c0_55 = arith.constant 0 : index
    %c0_56 = arith.constant 0 : index
    %72 = vector.load %arg5[%c3_54, %c0_55, %c0_56] : memref<4x32x32xf32, #tpu.memory_space<vmem>>, vector<1x32x32xf32>
    %73 = vector.shape_cast %72 : vector<1x32x32xf32> to vector<32x32xf32>
    %74 = vector.broadcast %46 : vector<32x1xf32> to vector<32x32xf32>
    %75 = arith.subf %73, %74 : vector<32x32xf32>
    %76 = arith.mulf %75, %75 : vector<32x32xf32>
    %cst_57 = arith.constant dense<0.000000e+00> : vector<32xf32>
    %77 = vector.multi_reduction <add>, %76, %cst_57 [1] : vector<32x32xf32> to vector<32xf32>
    %78 = vector.shape_cast %77 : vector<32xf32> to vector<32x1xf32>
    %79 = arith.addf %71, %78 : vector<32x1xf32>
    %cst_58 = arith.constant 7.812500e-03 : f32
    %80 = vector.broadcast %cst_58 : f32 to vector<32x1xf32>
    %81 = arith.mulf %79, %80 : vector<32x1xf32>
    %cst_59 = arith.constant 9.99999974E-6 : f32
    %82 = vector.broadcast %cst_59 : f32 to vector<32x1xf32>
    %83 = arith.addf %81, %82 : vector<32x1xf32>
    %84 = math.rsqrt %83 : vector<32x1xf32>
    %c0_60 = arith.constant 0 : index
    %c0_61 = arith.constant 0 : index
    %85 = vector.load %arg2[%c0_60, %c0_61] : memref<32x1xf32, #tpu.memory_space<vmem>>, vector<32x1xf32>
    %86 = arith.mulf %85, %84 : vector<32x1xf32>
    %c0_62 = arith.constant 0 : index
    %c0_63 = arith.constant 0 : index
    %87 = vector.load %arg3[%c0_62, %c0_63] : memref<32x1xf32, #tpu.memory_space<vmem>>, vector<32x1xf32>
    %88 = arith.mulf %46, %86 : vector<32x1xf32>
    %89 = arith.subf %87, %88 : vector<32x1xf32>
    %c0_64 = arith.constant 0 : index
    %c0_65 = arith.constant 0 : index
    %c0_66 = arith.constant 0 : index
    %90 = vector.load %arg5[%c0_64, %c0_65, %c0_66] : memref<4x32x32xf32, #tpu.memory_space<vmem>>, vector<1x32x32xf32>
    %91 = vector.shape_cast %90 : vector<1x32x32xf32> to vector<32x32xf32>
    %92 = vector.broadcast %86 : vector<32x1xf32> to vector<32x32xf32>
    %93 = arith.mulf %91, %92 : vector<32x32xf32>
    %94 = vector.broadcast %89 : vector<32x1xf32> to vector<32x32xf32>
    %95 = arith.addf %93, %94 : vector<32x32xf32>
    %cst_67 = arith.constant 0.000000e+00 : f32
    %96 = vector.broadcast %cst_67 : f32 to vector<32x32xf32>
    %97 = arith.maximumf %95, %96 : vector<32x32xf32>
    %98 = arith.truncf %97 : vector<32x32xf32> to vector<32x32xbf16>
    %c0_68 = arith.constant 0 : index
    %c0_69 = arith.constant 0 : index
    %c0_70 = arith.constant 0 : index
    %99 = vector.load %arg4[%c0_68, %c0_69, %c0_70] : memref<4x32x32xbf16, #tpu.memory_space<vmem>>, vector<1x32x32xbf16>
    %100 = vector.shape_cast %99 : vector<1x32x32xbf16> to vector<32x32xbf16>
    %101 = vector.shape_cast %98 : vector<32x32xbf16> to vector<1x32x32xbf16>
    tpu.vector_store %arg4[%c0_68, %c0_69, %c0_70], %101 {strides = array<i32>} : memref<4x32x32xbf16, #tpu.memory_space<vmem>>, vector<1x32x32xbf16>,
    %c1_71 = arith.constant 1 : index
    %c0_72 = arith.constant 0 : index
    %c0_73 = arith.constant 0 : index
    %102 = vector.load %arg5[%c1_71, %c0_72, %c0_73] : memref<4x32x32xf32, #tpu.memory_space<vmem>>, vector<1x32x32xf32>
    %103 = vector.shape_cast %102 : vector<1x32x32xf32> to vector<32x32xf32>
    %104 = vector.broadcast %86 : vector<32x1xf32> to vector<32x32xf32>
    %105 = arith.mulf %103, %104 : vector<32x32xf32>
    %106 = vector.broadcast %89 : vector<32x1xf32> to vector<32x32xf32>
    %107 = arith.addf %105, %106 : vector<32x32xf32>
    %cst_74 = arith.constant 0.000000e+00 : f32
    %108 = vector.broadcast %cst_74 : f32 to vector<32x32xf32>
    %109 = arith.maximumf %107, %108 : vector<32x32xf32>
    %110 = arith.truncf %109 : vector<32x32xf32> to vector<32x32xbf16>
    %c1_75 = arith.constant 1 : index
    %c0_76 = arith.constant 0 : index
    %c0_77 = arith.constant 0 : index
    %111 = vector.load %arg4[%c1_75, %c0_76, %c0_77] : memref<4x32x32xbf16, #tpu.memory_space<vmem>>, vector<1x32x32xbf16>
    %112 = vector.shape_cast %111 : vector<1x32x32xbf16> to vector<32x32xbf16>
    %113 = vector.shape_cast %110 : vector<32x32xbf16> to vector<1x32x32xbf16>
    tpu.vector_store %arg4[%c1_75, %c0_76, %c0_77], %113 {strides = array<i32>} : memref<4x32x32xbf16, #tpu.memory_space<vmem>>, vector<1x32x32xbf16>,
    %c2_78 = arith.constant 2 : index
    %c0_79 = arith.constant 0 : index
    %c0_80 = arith.constant 0 : index
    %114 = vector.load %arg5[%c2_78, %c0_79, %c0_80] : memref<4x32x32xf32, #tpu.memory_space<vmem>>, vector<1x32x32xf32>
    %115 = vector.shape_cast %114 : vector<1x32x32xf32> to vector<32x32xf32>
    %116 = vector.broadcast %86 : vector<32x1xf32> to vector<32x32xf32>
    %117 = arith.mulf %115, %116 : vector<32x32xf32>
    %118 = vector.broadcast %89 : vector<32x1xf32> to vector<32x32xf32>
    %119 = arith.addf %117, %118 : vector<32x32xf32>
    %cst_81 = arith.constant 0.000000e+00 : f32
    %120 = vector.broadcast %cst_81 : f32 to vector<32x32xf32>
    %121 = arith.maximumf %119, %120 : vector<32x32xf32>
    %122 = arith.truncf %121 : vector<32x32xf32> to vector<32x32xbf16>
    %c2_82 = arith.constant 2 : index
    %c0_83 = arith.constant 0 : index
    %c0_84 = arith.constant 0 : index
    %123 = vector.load %arg4[%c2_82, %c0_83, %c0_84] : memref<4x32x32xbf16, #tpu.memory_space<vmem>>, vector<1x32x32xbf16>
    %124 = vector.shape_cast %123 : vector<1x32x32xbf16> to vector<32x32xbf16>
    %125 = vector.shape_cast %122 : vector<32x32xbf16> to vector<1x32x32xbf16>
    tpu.vector_store %arg4[%c2_82, %c0_83, %c0_84], %125 {strides = array<i32>} : memref<4x32x32xbf16, #tpu.memory_space<vmem>>, vector<1x32x32xbf16>,
    %c3_85 = arith.constant 3 : index
    %c0_86 = arith.constant 0 : index
    %c0_87 = arith.constant 0 : index
    %126 = vector.load %arg5[%c3_85, %c0_86, %c0_87] : memref<4x32x32xf32, #tpu.memory_space<vmem>>, vector<1x32x32xf32>
    %127 = vector.shape_cast %126 : vector<1x32x32xf32> to vector<32x32xf32>
    %128 = vector.broadcast %86 : vector<32x1xf32> to vector<32x32xf32>
    %129 = arith.mulf %127, %128 : vector<32x32xf32>
    %130 = vector.broadcast %89 : vector<32x1xf32> to vector<32x32xf32>
    %131 = arith.addf %129, %130 : vector<32x32xf32>
    %cst_88 = arith.constant 0.000000e+00 : f32
    %132 = vector.broadcast %cst_88 : f32 to vector<32x32xf32>
    %133 = arith.maximumf %131, %132 : vector<32x32xf32>
    %134 = arith.truncf %133 : vector<32x32xf32> to vector<32x32xbf16>
    %c3_89 = arith.constant 3 : index
    %c0_90 = arith.constant 0 : index
    %c0_91 = arith.constant 0 : index
    %135 = vector.load %arg4[%c3_89, %c0_90, %c0_91] : memref<4x32x32xbf16, #tpu.memory_space<vmem>>, vector<1x32x32xbf16>
    %136 = vector.shape_cast %135 : vector<1x32x32xbf16> to vector<32x32xbf16>
    %137 = vector.shape_cast %134 : vector<32x32xbf16> to vector<1x32x32xbf16>
    tpu.vector_store %arg4[%c3_89, %c0_90, %c0_91], %137 {strides = array<i32>} : memref<4x32x32xbf16, #tpu.memory_space<vmem>>, vector<1x32x32xbf16>,
    return
  }
}

module attributes {stable_mosaic.version = 11 : i64} {
  func.func @_up_bn_kernel(%arg0: memref<4x128x128xbf16, #tpu.memory_space<vmem>>, %arg1: memref<4x16x128xbf16, #tpu.memory_space<vmem>>, %arg2: memref<16x1xf32, #tpu.memory_space<vmem>>, %arg3: memref<16x1xf32, #tpu.memory_space<vmem>>, %arg4: memref<4x16x128xbf16, #tpu.memory_space<vmem>>, %arg5: memref<4x16x128xf32, #tpu.memory_space<vmem>>) attributes {dimension_semantics = [], scalar_prefetch = 0 : i64, scratch_operands = 1 : i64, tpu.core_type = #tpu.core_type<tc>} {
    %cst = arith.constant 0.000000e+00 : f32
    %0 = vector.broadcast %cst : f32 to vector<16x1xf32>
    %c0 = arith.constant 0 : index
    %c0_0 = arith.constant 0 : index
    %c0_1 = arith.constant 0 : index
    %1 = vector.load %arg1[%c0, %c0_0, %c0_1] : memref<4x16x128xbf16, #tpu.memory_space<vmem>>, vector<1x16x128xbf16>
    %2 = vector.shape_cast %1 : vector<1x16x128xbf16> to vector<16x128xbf16>
    %c0_2 = arith.constant 0 : index
    %c0_3 = arith.constant 0 : index
    %c0_4 = arith.constant 0 : index
    %3 = vector.load %arg0[%c0_2, %c0_3, %c0_4] : memref<4x128x128xbf16, #tpu.memory_space<vmem>>, vector<1x128x128xbf16>
    %4 = vector.shape_cast %3 : vector<1x128x128xbf16> to vector<128x128xbf16>
    %cst_5 = arith.constant dense<0.000000e+00> : vector<16x128xf32>
    %5 = tpu.matmul %2, %4, %cst_5 {dimension_numbers = #tpu.dot_dimension_numbers<[1], [0], [0], [1], [0, 0, 1, 1], [], []>} : vector<16x128xbf16>, vector<128x128xbf16>, vector<16x128xf32> -> vector<16x128xf32>
    %c0_6 = arith.constant 0 : index
    %c0_7 = arith.constant 0 : index
    %c0_8 = arith.constant 0 : index
    %6 = vector.load %arg5[%c0_6, %c0_7, %c0_8] : memref<4x16x128xf32, #tpu.memory_space<vmem>>, vector<1x16x128xf32>
    %7 = vector.shape_cast %6 : vector<1x16x128xf32> to vector<16x128xf32>
    %8 = vector.shape_cast %5 : vector<16x128xf32> to vector<1x16x128xf32>
    tpu.vector_store %arg5[%c0_6, %c0_7, %c0_8], %8 {strides = array<i32>} : memref<4x16x128xf32, #tpu.memory_space<vmem>>, vector<1x16x128xf32>,
    %cst_9 = arith.constant dense<0.000000e+00> : vector<16xf32>
    %9 = vector.multi_reduction <add>, %5, %cst_9 [1] : vector<16x128xf32> to vector<16xf32>
    %10 = vector.shape_cast %9 : vector<16xf32> to vector<16x1xf32>
    %11 = arith.addf %0, %10 : vector<16x1xf32>
    %c1 = arith.constant 1 : index
    %c0_10 = arith.constant 0 : index
    %c0_11 = arith.constant 0 : index
    %12 = vector.load %arg1[%c1, %c0_10, %c0_11] : memref<4x16x128xbf16, #tpu.memory_space<vmem>>, vector<1x16x128xbf16>
    %13 = vector.shape_cast %12 : vector<1x16x128xbf16> to vector<16x128xbf16>
    %c1_12 = arith.constant 1 : index
    %c0_13 = arith.constant 0 : index
    %c0_14 = arith.constant 0 : index
    %14 = vector.load %arg0[%c1_12, %c0_13, %c0_14] : memref<4x128x128xbf16, #tpu.memory_space<vmem>>, vector<1x128x128xbf16>
    %15 = vector.shape_cast %14 : vector<1x128x128xbf16> to vector<128x128xbf16>
    %cst_15 = arith.constant dense<0.000000e+00> : vector<16x128xf32>
    %16 = tpu.matmul %13, %15, %cst_15 {dimension_numbers = #tpu.dot_dimension_numbers<[1], [0], [0], [1], [0, 0, 1, 1], [], []>} : vector<16x128xbf16>, vector<128x128xbf16>, vector<16x128xf32> -> vector<16x128xf32>
    %c1_16 = arith.constant 1 : index
    %c0_17 = arith.constant 0 : index
    %c0_18 = arith.constant 0 : index
    %17 = vector.load %arg5[%c1_16, %c0_17, %c0_18] : memref<4x16x128xf32, #tpu.memory_space<vmem>>, vector<1x16x128xf32>
    %18 = vector.shape_cast %17 : vector<1x16x128xf32> to vector<16x128xf32>
    %19 = vector.shape_cast %16 : vector<16x128xf32> to vector<1x16x128xf32>
    tpu.vector_store %arg5[%c1_16, %c0_17, %c0_18], %19 {strides = array<i32>} : memref<4x16x128xf32, #tpu.memory_space<vmem>>, vector<1x16x128xf32>,
    %cst_19 = arith.constant dense<0.000000e+00> : vector<16xf32>
    %20 = vector.multi_reduction <add>, %16, %cst_19 [1] : vector<16x128xf32> to vector<16xf32>
    %21 = vector.shape_cast %20 : vector<16xf32> to vector<16x1xf32>
    %22 = arith.addf %11, %21 : vector<16x1xf32>
    %c2 = arith.constant 2 : index
    %c0_20 = arith.constant 0 : index
    %c0_21 = arith.constant 0 : index
    %23 = vector.load %arg1[%c2, %c0_20, %c0_21] : memref<4x16x128xbf16, #tpu.memory_space<vmem>>, vector<1x16x128xbf16>
    %24 = vector.shape_cast %23 : vector<1x16x128xbf16> to vector<16x128xbf16>
    %c2_22 = arith.constant 2 : index
    %c0_23 = arith.constant 0 : index
    %c0_24 = arith.constant 0 : index
    %25 = vector.load %arg0[%c2_22, %c0_23, %c0_24] : memref<4x128x128xbf16, #tpu.memory_space<vmem>>, vector<1x128x128xbf16>
    %26 = vector.shape_cast %25 : vector<1x128x128xbf16> to vector<128x128xbf16>
    %cst_25 = arith.constant dense<0.000000e+00> : vector<16x128xf32>
    %27 = tpu.matmul %24, %26, %cst_25 {dimension_numbers = #tpu.dot_dimension_numbers<[1], [0], [0], [1], [0, 0, 1, 1], [], []>} : vector<16x128xbf16>, vector<128x128xbf16>, vector<16x128xf32> -> vector<16x128xf32>
    %c2_26 = arith.constant 2 : index
    %c0_27 = arith.constant 0 : index
    %c0_28 = arith.constant 0 : index
    %28 = vector.load %arg5[%c2_26, %c0_27, %c0_28] : memref<4x16x128xf32, #tpu.memory_space<vmem>>, vector<1x16x128xf32>
    %29 = vector.shape_cast %28 : vector<1x16x128xf32> to vector<16x128xf32>
    %30 = vector.shape_cast %27 : vector<16x128xf32> to vector<1x16x128xf32>
    tpu.vector_store %arg5[%c2_26, %c0_27, %c0_28], %30 {strides = array<i32>} : memref<4x16x128xf32, #tpu.memory_space<vmem>>, vector<1x16x128xf32>,
    %cst_29 = arith.constant dense<0.000000e+00> : vector<16xf32>
    %31 = vector.multi_reduction <add>, %27, %cst_29 [1] : vector<16x128xf32> to vector<16xf32>
    %32 = vector.shape_cast %31 : vector<16xf32> to vector<16x1xf32>
    %33 = arith.addf %22, %32 : vector<16x1xf32>
    %c3 = arith.constant 3 : index
    %c0_30 = arith.constant 0 : index
    %c0_31 = arith.constant 0 : index
    %34 = vector.load %arg1[%c3, %c0_30, %c0_31] : memref<4x16x128xbf16, #tpu.memory_space<vmem>>, vector<1x16x128xbf16>
    %35 = vector.shape_cast %34 : vector<1x16x128xbf16> to vector<16x128xbf16>
    %c3_32 = arith.constant 3 : index
    %c0_33 = arith.constant 0 : index
    %c0_34 = arith.constant 0 : index
    %36 = vector.load %arg0[%c3_32, %c0_33, %c0_34] : memref<4x128x128xbf16, #tpu.memory_space<vmem>>, vector<1x128x128xbf16>
    %37 = vector.shape_cast %36 : vector<1x128x128xbf16> to vector<128x128xbf16>
    %cst_35 = arith.constant dense<0.000000e+00> : vector<16x128xf32>
    %38 = tpu.matmul %35, %37, %cst_35 {dimension_numbers = #tpu.dot_dimension_numbers<[1], [0], [0], [1], [0, 0, 1, 1], [], []>} : vector<16x128xbf16>, vector<128x128xbf16>, vector<16x128xf32> -> vector<16x128xf32>
    %c3_36 = arith.constant 3 : index
    %c0_37 = arith.constant 0 : index
    %c0_38 = arith.constant 0 : index
    %39 = vector.load %arg5[%c3_36, %c0_37, %c0_38] : memref<4x16x128xf32, #tpu.memory_space<vmem>>, vector<1x16x128xf32>
    %40 = vector.shape_cast %39 : vector<1x16x128xf32> to vector<16x128xf32>
    %41 = vector.shape_cast %38 : vector<16x128xf32> to vector<1x16x128xf32>
    tpu.vector_store %arg5[%c3_36, %c0_37, %c0_38], %41 {strides = array<i32>} : memref<4x16x128xf32, #tpu.memory_space<vmem>>, vector<1x16x128xf32>,
    %cst_39 = arith.constant dense<0.000000e+00> : vector<16xf32>
    %42 = vector.multi_reduction <add>, %38, %cst_39 [1] : vector<16x128xf32> to vector<16xf32>
    %43 = vector.shape_cast %42 : vector<16xf32> to vector<16x1xf32>
    %44 = arith.addf %33, %43 : vector<16x1xf32>
    %cst_40 = arith.constant 0.001953125 : f32
    %45 = vector.broadcast %cst_40 : f32 to vector<16x1xf32>
    %46 = arith.mulf %44, %45 : vector<16x1xf32>
    %cst_41 = arith.constant 0.000000e+00 : f32
    %47 = vector.broadcast %cst_41 : f32 to vector<16x1xf32>
    %c0_42 = arith.constant 0 : index
    %c0_43 = arith.constant 0 : index
    %c0_44 = arith.constant 0 : index
    %48 = vector.load %arg5[%c0_42, %c0_43, %c0_44] : memref<4x16x128xf32, #tpu.memory_space<vmem>>, vector<1x16x128xf32>
    %49 = vector.shape_cast %48 : vector<1x16x128xf32> to vector<16x128xf32>
    %50 = vector.broadcast %46 : vector<16x1xf32> to vector<16x128xf32>
    %51 = arith.subf %49, %50 : vector<16x128xf32>
    %52 = arith.mulf %51, %51 : vector<16x128xf32>
    %cst_45 = arith.constant dense<0.000000e+00> : vector<16xf32>
    %53 = vector.multi_reduction <add>, %52, %cst_45 [1] : vector<16x128xf32> to vector<16xf32>
    %54 = vector.shape_cast %53 : vector<16xf32> to vector<16x1xf32>
    %55 = arith.addf %47, %54 : vector<16x1xf32>
    %c1_46 = arith.constant 1 : index
    %c0_47 = arith.constant 0 : index
    %c0_48 = arith.constant 0 : index
    %56 = vector.load %arg5[%c1_46, %c0_47, %c0_48] : memref<4x16x128xf32, #tpu.memory_space<vmem>>, vector<1x16x128xf32>
    %57 = vector.shape_cast %56 : vector<1x16x128xf32> to vector<16x128xf32>
    %58 = vector.broadcast %46 : vector<16x1xf32> to vector<16x128xf32>
    %59 = arith.subf %57, %58 : vector<16x128xf32>
    %60 = arith.mulf %59, %59 : vector<16x128xf32>
    %cst_49 = arith.constant dense<0.000000e+00> : vector<16xf32>
    %61 = vector.multi_reduction <add>, %60, %cst_49 [1] : vector<16x128xf32> to vector<16xf32>
    %62 = vector.shape_cast %61 : vector<16xf32> to vector<16x1xf32>
    %63 = arith.addf %55, %62 : vector<16x1xf32>
    %c2_50 = arith.constant 2 : index
    %c0_51 = arith.constant 0 : index
    %c0_52 = arith.constant 0 : index
    %64 = vector.load %arg5[%c2_50, %c0_51, %c0_52] : memref<4x16x128xf32, #tpu.memory_space<vmem>>, vector<1x16x128xf32>
    %65 = vector.shape_cast %64 : vector<1x16x128xf32> to vector<16x128xf32>
    %66 = vector.broadcast %46 : vector<16x1xf32> to vector<16x128xf32>
    %67 = arith.subf %65, %66 : vector<16x128xf32>
    %68 = arith.mulf %67, %67 : vector<16x128xf32>
    %cst_53 = arith.constant dense<0.000000e+00> : vector<16xf32>
    %69 = vector.multi_reduction <add>, %68, %cst_53 [1] : vector<16x128xf32> to vector<16xf32>
    %70 = vector.shape_cast %69 : vector<16xf32> to vector<16x1xf32>
    %71 = arith.addf %63, %70 : vector<16x1xf32>
    %c3_54 = arith.constant 3 : index
    %c0_55 = arith.constant 0 : index
    %c0_56 = arith.constant 0 : index
    %72 = vector.load %arg5[%c3_54, %c0_55, %c0_56] : memref<4x16x128xf32, #tpu.memory_space<vmem>>, vector<1x16x128xf32>
    %73 = vector.shape_cast %72 : vector<1x16x128xf32> to vector<16x128xf32>
    %74 = vector.broadcast %46 : vector<16x1xf32> to vector<16x128xf32>
    %75 = arith.subf %73, %74 : vector<16x128xf32>
    %76 = arith.mulf %75, %75 : vector<16x128xf32>
    %cst_57 = arith.constant dense<0.000000e+00> : vector<16xf32>
    %77 = vector.multi_reduction <add>, %76, %cst_57 [1] : vector<16x128xf32> to vector<16xf32>
    %78 = vector.shape_cast %77 : vector<16xf32> to vector<16x1xf32>
    %79 = arith.addf %71, %78 : vector<16x1xf32>
    %cst_58 = arith.constant 0.001953125 : f32
    %80 = vector.broadcast %cst_58 : f32 to vector<16x1xf32>
    %81 = arith.mulf %79, %80 : vector<16x1xf32>
    %cst_59 = arith.constant 9.99999974E-6 : f32
    %82 = vector.broadcast %cst_59 : f32 to vector<16x1xf32>
    %83 = arith.addf %81, %82 : vector<16x1xf32>
    %84 = math.rsqrt %83 : vector<16x1xf32>
    %c0_60 = arith.constant 0 : index
    %c0_61 = arith.constant 0 : index
    %85 = vector.load %arg2[%c0_60, %c0_61] : memref<16x1xf32, #tpu.memory_space<vmem>>, vector<16x1xf32>
    %86 = arith.mulf %85, %84 : vector<16x1xf32>
    %c0_62 = arith.constant 0 : index
    %c0_63 = arith.constant 0 : index
    %87 = vector.load %arg3[%c0_62, %c0_63] : memref<16x1xf32, #tpu.memory_space<vmem>>, vector<16x1xf32>
    %88 = arith.mulf %46, %86 : vector<16x1xf32>
    %89 = arith.subf %87, %88 : vector<16x1xf32>
    %c0_64 = arith.constant 0 : index
    %c0_65 = arith.constant 0 : index
    %c0_66 = arith.constant 0 : index
    %90 = vector.load %arg5[%c0_64, %c0_65, %c0_66] : memref<4x16x128xf32, #tpu.memory_space<vmem>>, vector<1x16x128xf32>
    %91 = vector.shape_cast %90 : vector<1x16x128xf32> to vector<16x128xf32>
    %92 = vector.broadcast %86 : vector<16x1xf32> to vector<16x128xf32>
    %93 = arith.mulf %91, %92 : vector<16x128xf32>
    %94 = vector.broadcast %89 : vector<16x1xf32> to vector<16x128xf32>
    %95 = arith.addf %93, %94 : vector<16x128xf32>
    %cst_67 = arith.constant 0.000000e+00 : f32
    %96 = vector.broadcast %cst_67 : f32 to vector<16x128xf32>
    %97 = arith.maximumf %95, %96 : vector<16x128xf32>
    %98 = arith.truncf %97 : vector<16x128xf32> to vector<16x128xbf16>
    %c0_68 = arith.constant 0 : index
    %c0_69 = arith.constant 0 : index
    %c0_70 = arith.constant 0 : index
    %99 = vector.load %arg4[%c0_68, %c0_69, %c0_70] : memref<4x16x128xbf16, #tpu.memory_space<vmem>>, vector<1x16x128xbf16>
    %100 = vector.shape_cast %99 : vector<1x16x128xbf16> to vector<16x128xbf16>
    %101 = vector.shape_cast %98 : vector<16x128xbf16> to vector<1x16x128xbf16>
    tpu.vector_store %arg4[%c0_68, %c0_69, %c0_70], %101 {strides = array<i32>} : memref<4x16x128xbf16, #tpu.memory_space<vmem>>, vector<1x16x128xbf16>,
    %c1_71 = arith.constant 1 : index
    %c0_72 = arith.constant 0 : index
    %c0_73 = arith.constant 0 : index
    %102 = vector.load %arg5[%c1_71, %c0_72, %c0_73] : memref<4x16x128xf32, #tpu.memory_space<vmem>>, vector<1x16x128xf32>
    %103 = vector.shape_cast %102 : vector<1x16x128xf32> to vector<16x128xf32>
    %104 = vector.broadcast %86 : vector<16x1xf32> to vector<16x128xf32>
    %105 = arith.mulf %103, %104 : vector<16x128xf32>
    %106 = vector.broadcast %89 : vector<16x1xf32> to vector<16x128xf32>
    %107 = arith.addf %105, %106 : vector<16x128xf32>
    %cst_74 = arith.constant 0.000000e+00 : f32
    %108 = vector.broadcast %cst_74 : f32 to vector<16x128xf32>
    %109 = arith.maximumf %107, %108 : vector<16x128xf32>
    %110 = arith.truncf %109 : vector<16x128xf32> to vector<16x128xbf16>
    %c1_75 = arith.constant 1 : index
    %c0_76 = arith.constant 0 : index
    %c0_77 = arith.constant 0 : index
    %111 = vector.load %arg4[%c1_75, %c0_76, %c0_77] : memref<4x16x128xbf16, #tpu.memory_space<vmem>>, vector<1x16x128xbf16>
    %112 = vector.shape_cast %111 : vector<1x16x128xbf16> to vector<16x128xbf16>
    %113 = vector.shape_cast %110 : vector<16x128xbf16> to vector<1x16x128xbf16>
    tpu.vector_store %arg4[%c1_75, %c0_76, %c0_77], %113 {strides = array<i32>} : memref<4x16x128xbf16, #tpu.memory_space<vmem>>, vector<1x16x128xbf16>,
    %c2_78 = arith.constant 2 : index
    %c0_79 = arith.constant 0 : index
    %c0_80 = arith.constant 0 : index
    %114 = vector.load %arg5[%c2_78, %c0_79, %c0_80] : memref<4x16x128xf32, #tpu.memory_space<vmem>>, vector<1x16x128xf32>
    %115 = vector.shape_cast %114 : vector<1x16x128xf32> to vector<16x128xf32>
    %116 = vector.broadcast %86 : vector<16x1xf32> to vector<16x128xf32>
    %117 = arith.mulf %115, %116 : vector<16x128xf32>
    %118 = vector.broadcast %89 : vector<16x1xf32> to vector<16x128xf32>
    %119 = arith.addf %117, %118 : vector<16x128xf32>
    %cst_81 = arith.constant 0.000000e+00 : f32
    %120 = vector.broadcast %cst_81 : f32 to vector<16x128xf32>
    %121 = arith.maximumf %119, %120 : vector<16x128xf32>
    %122 = arith.truncf %121 : vector<16x128xf32> to vector<16x128xbf16>
    %c2_82 = arith.constant 2 : index
    %c0_83 = arith.constant 0 : index
    %c0_84 = arith.constant 0 : index
    %123 = vector.load %arg4[%c2_82, %c0_83, %c0_84] : memref<4x16x128xbf16, #tpu.memory_space<vmem>>, vector<1x16x128xbf16>
    %124 = vector.shape_cast %123 : vector<1x16x128xbf16> to vector<16x128xbf16>
    %125 = vector.shape_cast %122 : vector<16x128xbf16> to vector<1x16x128xbf16>
    tpu.vector_store %arg4[%c2_82, %c0_83, %c0_84], %125 {strides = array<i32>} : memref<4x16x128xbf16, #tpu.memory_space<vmem>>, vector<1x16x128xbf16>,
    %c3_85 = arith.constant 3 : index
    %c0_86 = arith.constant 0 : index
    %c0_87 = arith.constant 0 : index
    %126 = vector.load %arg5[%c3_85, %c0_86, %c0_87] : memref<4x16x128xf32, #tpu.memory_space<vmem>>, vector<1x16x128xf32>
    %127 = vector.shape_cast %126 : vector<1x16x128xf32> to vector<16x128xf32>
    %128 = vector.broadcast %86 : vector<16x1xf32> to vector<16x128xf32>
    %129 = arith.mulf %127, %128 : vector<16x128xf32>
    %130 = vector.broadcast %89 : vector<16x1xf32> to vector<16x128xf32>
    %131 = arith.addf %129, %130 : vector<16x128xf32>
    %cst_88 = arith.constant 0.000000e+00 : f32
    %132 = vector.broadcast %cst_88 : f32 to vector<16x128xf32>
    %133 = arith.maximumf %131, %132 : vector<16x128xf32>
    %134 = arith.truncf %133 : vector<16x128xf32> to vector<16x128xbf16>
    %c3_89 = arith.constant 3 : index
    %c0_90 = arith.constant 0 : index
    %c0_91 = arith.constant 0 : index
    %135 = vector.load %arg4[%c3_89, %c0_90, %c0_91] : memref<4x16x128xbf16, #tpu.memory_space<vmem>>, vector<1x16x128xbf16>
    %136 = vector.shape_cast %135 : vector<1x16x128xbf16> to vector<16x128xbf16>
    %137 = vector.shape_cast %134 : vector<16x128xbf16> to vector<1x16x128xbf16>
    tpu.vector_store %arg4[%c3_89, %c0_90, %c0_91], %137 {strides = array<i32>} : memref<4x16x128xbf16, #tpu.memory_space<vmem>>, vector<1x16x128xbf16>,
    return
  }
}

module attributes {stable_mosaic.version = 11 : i64} {
  func.func @_up_bn_kernel(%arg0: memref<4x64x512xbf16, #tpu.memory_space<vmem>>, %arg1: memref<4x8x64xbf16, #tpu.memory_space<vmem>>, %arg2: memref<8x1xf32, #tpu.memory_space<vmem>>, %arg3: memref<8x1xf32, #tpu.memory_space<vmem>>, %arg4: memref<4x8x512xbf16, #tpu.memory_space<vmem>>, %arg5: memref<4x8x512xf32, #tpu.memory_space<vmem>>) attributes {dimension_semantics = [], scalar_prefetch = 0 : i64, scratch_operands = 1 : i64, tpu.core_type = #tpu.core_type<tc>} {
    %cst = arith.constant 0.000000e+00 : f32
    %0 = vector.broadcast %cst : f32 to vector<8x1xf32>
    %c0 = arith.constant 0 : index
    %c0_0 = arith.constant 0 : index
    %c0_1 = arith.constant 0 : index
    %1 = vector.load %arg1[%c0, %c0_0, %c0_1] : memref<4x8x64xbf16, #tpu.memory_space<vmem>>, vector<1x8x64xbf16>
    %2 = vector.shape_cast %1 : vector<1x8x64xbf16> to vector<8x64xbf16>
    %c0_2 = arith.constant 0 : index
    %c0_3 = arith.constant 0 : index
    %c0_4 = arith.constant 0 : index
    %3 = vector.load %arg0[%c0_2, %c0_3, %c0_4] : memref<4x64x512xbf16, #tpu.memory_space<vmem>>, vector<1x64x512xbf16>
    %4 = vector.shape_cast %3 : vector<1x64x512xbf16> to vector<64x512xbf16>
    %cst_5 = arith.constant dense<0.000000e+00> : vector<8x512xf32>
    %5 = tpu.matmul %2, %4, %cst_5 {dimension_numbers = #tpu.dot_dimension_numbers<[1], [0], [0], [1], [0, 0, 1, 1], [], []>} : vector<8x64xbf16>, vector<64x512xbf16>, vector<8x512xf32> -> vector<8x512xf32>
    %c0_6 = arith.constant 0 : index
    %c0_7 = arith.constant 0 : index
    %c0_8 = arith.constant 0 : index
    %6 = vector.load %arg5[%c0_6, %c0_7, %c0_8] : memref<4x8x512xf32, #tpu.memory_space<vmem>>, vector<1x8x512xf32>
    %7 = vector.shape_cast %6 : vector<1x8x512xf32> to vector<8x512xf32>
    %8 = vector.shape_cast %5 : vector<8x512xf32> to vector<1x8x512xf32>
    tpu.vector_store %arg5[%c0_6, %c0_7, %c0_8], %8 {strides = array<i32>} : memref<4x8x512xf32, #tpu.memory_space<vmem>>, vector<1x8x512xf32>,
    %cst_9 = arith.constant dense<0.000000e+00> : vector<8xf32>
    %9 = vector.multi_reduction <add>, %5, %cst_9 [1] : vector<8x512xf32> to vector<8xf32>
    %10 = vector.shape_cast %9 : vector<8xf32> to vector<8x1xf32>
    %11 = arith.addf %0, %10 : vector<8x1xf32>
    %c1 = arith.constant 1 : index
    %c0_10 = arith.constant 0 : index
    %c0_11 = arith.constant 0 : index
    %12 = vector.load %arg1[%c1, %c0_10, %c0_11] : memref<4x8x64xbf16, #tpu.memory_space<vmem>>, vector<1x8x64xbf16>
    %13 = vector.shape_cast %12 : vector<1x8x64xbf16> to vector<8x64xbf16>
    %c1_12 = arith.constant 1 : index
    %c0_13 = arith.constant 0 : index
    %c0_14 = arith.constant 0 : index
    %14 = vector.load %arg0[%c1_12, %c0_13, %c0_14] : memref<4x64x512xbf16, #tpu.memory_space<vmem>>, vector<1x64x512xbf16>
    %15 = vector.shape_cast %14 : vector<1x64x512xbf16> to vector<64x512xbf16>
    %cst_15 = arith.constant dense<0.000000e+00> : vector<8x512xf32>
    %16 = tpu.matmul %13, %15, %cst_15 {dimension_numbers = #tpu.dot_dimension_numbers<[1], [0], [0], [1], [0, 0, 1, 1], [], []>} : vector<8x64xbf16>, vector<64x512xbf16>, vector<8x512xf32> -> vector<8x512xf32>
    %c1_16 = arith.constant 1 : index
    %c0_17 = arith.constant 0 : index
    %c0_18 = arith.constant 0 : index
    %17 = vector.load %arg5[%c1_16, %c0_17, %c0_18] : memref<4x8x512xf32, #tpu.memory_space<vmem>>, vector<1x8x512xf32>
    %18 = vector.shape_cast %17 : vector<1x8x512xf32> to vector<8x512xf32>
    %19 = vector.shape_cast %16 : vector<8x512xf32> to vector<1x8x512xf32>
    tpu.vector_store %arg5[%c1_16, %c0_17, %c0_18], %19 {strides = array<i32>} : memref<4x8x512xf32, #tpu.memory_space<vmem>>, vector<1x8x512xf32>,
    %cst_19 = arith.constant dense<0.000000e+00> : vector<8xf32>
    %20 = vector.multi_reduction <add>, %16, %cst_19 [1] : vector<8x512xf32> to vector<8xf32>
    %21 = vector.shape_cast %20 : vector<8xf32> to vector<8x1xf32>
    %22 = arith.addf %11, %21 : vector<8x1xf32>
    %c2 = arith.constant 2 : index
    %c0_20 = arith.constant 0 : index
    %c0_21 = arith.constant 0 : index
    %23 = vector.load %arg1[%c2, %c0_20, %c0_21] : memref<4x8x64xbf16, #tpu.memory_space<vmem>>, vector<1x8x64xbf16>
    %24 = vector.shape_cast %23 : vector<1x8x64xbf16> to vector<8x64xbf16>
    %c2_22 = arith.constant 2 : index
    %c0_23 = arith.constant 0 : index
    %c0_24 = arith.constant 0 : index
    %25 = vector.load %arg0[%c2_22, %c0_23, %c0_24] : memref<4x64x512xbf16, #tpu.memory_space<vmem>>, vector<1x64x512xbf16>
    %26 = vector.shape_cast %25 : vector<1x64x512xbf16> to vector<64x512xbf16>
    %cst_25 = arith.constant dense<0.000000e+00> : vector<8x512xf32>
    %27 = tpu.matmul %24, %26, %cst_25 {dimension_numbers = #tpu.dot_dimension_numbers<[1], [0], [0], [1], [0, 0, 1, 1], [], []>} : vector<8x64xbf16>, vector<64x512xbf16>, vector<8x512xf32> -> vector<8x512xf32>
    %c2_26 = arith.constant 2 : index
    %c0_27 = arith.constant 0 : index
    %c0_28 = arith.constant 0 : index
    %28 = vector.load %arg5[%c2_26, %c0_27, %c0_28] : memref<4x8x512xf32, #tpu.memory_space<vmem>>, vector<1x8x512xf32>
    %29 = vector.shape_cast %28 : vector<1x8x512xf32> to vector<8x512xf32>
    %30 = vector.shape_cast %27 : vector<8x512xf32> to vector<1x8x512xf32>
    tpu.vector_store %arg5[%c2_26, %c0_27, %c0_28], %30 {strides = array<i32>} : memref<4x8x512xf32, #tpu.memory_space<vmem>>, vector<1x8x512xf32>,
    %cst_29 = arith.constant dense<0.000000e+00> : vector<8xf32>
    %31 = vector.multi_reduction <add>, %27, %cst_29 [1] : vector<8x512xf32> to vector<8xf32>
    %32 = vector.shape_cast %31 : vector<8xf32> to vector<8x1xf32>
    %33 = arith.addf %22, %32 : vector<8x1xf32>
    %c3 = arith.constant 3 : index
    %c0_30 = arith.constant 0 : index
    %c0_31 = arith.constant 0 : index
    %34 = vector.load %arg1[%c3, %c0_30, %c0_31] : memref<4x8x64xbf16, #tpu.memory_space<vmem>>, vector<1x8x64xbf16>
    %35 = vector.shape_cast %34 : vector<1x8x64xbf16> to vector<8x64xbf16>
    %c3_32 = arith.constant 3 : index
    %c0_33 = arith.constant 0 : index
    %c0_34 = arith.constant 0 : index
    %36 = vector.load %arg0[%c3_32, %c0_33, %c0_34] : memref<4x64x512xbf16, #tpu.memory_space<vmem>>, vector<1x64x512xbf16>
    %37 = vector.shape_cast %36 : vector<1x64x512xbf16> to vector<64x512xbf16>
    %cst_35 = arith.constant dense<0.000000e+00> : vector<8x512xf32>
    %38 = tpu.matmul %35, %37, %cst_35 {dimension_numbers = #tpu.dot_dimension_numbers<[1], [0], [0], [1], [0, 0, 1, 1], [], []>} : vector<8x64xbf16>, vector<64x512xbf16>, vector<8x512xf32> -> vector<8x512xf32>
    %c3_36 = arith.constant 3 : index
    %c0_37 = arith.constant 0 : index
    %c0_38 = arith.constant 0 : index
    %39 = vector.load %arg5[%c3_36, %c0_37, %c0_38] : memref<4x8x512xf32, #tpu.memory_space<vmem>>, vector<1x8x512xf32>
    %40 = vector.shape_cast %39 : vector<1x8x512xf32> to vector<8x512xf32>
    %41 = vector.shape_cast %38 : vector<8x512xf32> to vector<1x8x512xf32>
    tpu.vector_store %arg5[%c3_36, %c0_37, %c0_38], %41 {strides = array<i32>} : memref<4x8x512xf32, #tpu.memory_space<vmem>>, vector<1x8x512xf32>,
    %cst_39 = arith.constant dense<0.000000e+00> : vector<8xf32>
    %42 = vector.multi_reduction <add>, %38, %cst_39 [1] : vector<8x512xf32> to vector<8xf32>
    %43 = vector.shape_cast %42 : vector<8xf32> to vector<8x1xf32>
    %44 = arith.addf %33, %43 : vector<8x1xf32>
    %cst_40 = arith.constant 4.8828125E-4 : f32
    %45 = vector.broadcast %cst_40 : f32 to vector<8x1xf32>
    %46 = arith.mulf %44, %45 : vector<8x1xf32>
    %cst_41 = arith.constant 0.000000e+00 : f32
    %47 = vector.broadcast %cst_41 : f32 to vector<8x1xf32>
    %c0_42 = arith.constant 0 : index
    %c0_43 = arith.constant 0 : index
    %c0_44 = arith.constant 0 : index
    %48 = vector.load %arg5[%c0_42, %c0_43, %c0_44] : memref<4x8x512xf32, #tpu.memory_space<vmem>>, vector<1x8x512xf32>
    %49 = vector.shape_cast %48 : vector<1x8x512xf32> to vector<8x512xf32>
    %50 = vector.broadcast %46 : vector<8x1xf32> to vector<8x512xf32>
    %51 = arith.subf %49, %50 : vector<8x512xf32>
    %52 = arith.mulf %51, %51 : vector<8x512xf32>
    %cst_45 = arith.constant dense<0.000000e+00> : vector<8xf32>
    %53 = vector.multi_reduction <add>, %52, %cst_45 [1] : vector<8x512xf32> to vector<8xf32>
    %54 = vector.shape_cast %53 : vector<8xf32> to vector<8x1xf32>
    %55 = arith.addf %47, %54 : vector<8x1xf32>
    %c1_46 = arith.constant 1 : index
    %c0_47 = arith.constant 0 : index
    %c0_48 = arith.constant 0 : index
    %56 = vector.load %arg5[%c1_46, %c0_47, %c0_48] : memref<4x8x512xf32, #tpu.memory_space<vmem>>, vector<1x8x512xf32>
    %57 = vector.shape_cast %56 : vector<1x8x512xf32> to vector<8x512xf32>
    %58 = vector.broadcast %46 : vector<8x1xf32> to vector<8x512xf32>
    %59 = arith.subf %57, %58 : vector<8x512xf32>
    %60 = arith.mulf %59, %59 : vector<8x512xf32>
    %cst_49 = arith.constant dense<0.000000e+00> : vector<8xf32>
    %61 = vector.multi_reduction <add>, %60, %cst_49 [1] : vector<8x512xf32> to vector<8xf32>
    %62 = vector.shape_cast %61 : vector<8xf32> to vector<8x1xf32>
    %63 = arith.addf %55, %62 : vector<8x1xf32>
    %c2_50 = arith.constant 2 : index
    %c0_51 = arith.constant 0 : index
    %c0_52 = arith.constant 0 : index
    %64 = vector.load %arg5[%c2_50, %c0_51, %c0_52] : memref<4x8x512xf32, #tpu.memory_space<vmem>>, vector<1x8x512xf32>
    %65 = vector.shape_cast %64 : vector<1x8x512xf32> to vector<8x512xf32>
    %66 = vector.broadcast %46 : vector<8x1xf32> to vector<8x512xf32>
    %67 = arith.subf %65, %66 : vector<8x512xf32>
    %68 = arith.mulf %67, %67 : vector<8x512xf32>
    %cst_53 = arith.constant dense<0.000000e+00> : vector<8xf32>
    %69 = vector.multi_reduction <add>, %68, %cst_53 [1] : vector<8x512xf32> to vector<8xf32>
    %70 = vector.shape_cast %69 : vector<8xf32> to vector<8x1xf32>
    %71 = arith.addf %63, %70 : vector<8x1xf32>
    %c3_54 = arith.constant 3 : index
    %c0_55 = arith.constant 0 : index
    %c0_56 = arith.constant 0 : index
    %72 = vector.load %arg5[%c3_54, %c0_55, %c0_56] : memref<4x8x512xf32, #tpu.memory_space<vmem>>, vector<1x8x512xf32>
    %73 = vector.shape_cast %72 : vector<1x8x512xf32> to vector<8x512xf32>
    %74 = vector.broadcast %46 : vector<8x1xf32> to vector<8x512xf32>
    %75 = arith.subf %73, %74 : vector<8x512xf32>
    %76 = arith.mulf %75, %75 : vector<8x512xf32>
    %cst_57 = arith.constant dense<0.000000e+00> : vector<8xf32>
    %77 = vector.multi_reduction <add>, %76, %cst_57 [1] : vector<8x512xf32> to vector<8xf32>
    %78 = vector.shape_cast %77 : vector<8xf32> to vector<8x1xf32>
    %79 = arith.addf %71, %78 : vector<8x1xf32>
    %cst_58 = arith.constant 4.8828125E-4 : f32
    %80 = vector.broadcast %cst_58 : f32 to vector<8x1xf32>
    %81 = arith.mulf %79, %80 : vector<8x1xf32>
    %cst_59 = arith.constant 9.99999974E-6 : f32
    %82 = vector.broadcast %cst_59 : f32 to vector<8x1xf32>
    %83 = arith.addf %81, %82 : vector<8x1xf32>
    %84 = math.rsqrt %83 : vector<8x1xf32>
    %c0_60 = arith.constant 0 : index
    %c0_61 = arith.constant 0 : index
    %85 = vector.load %arg2[%c0_60, %c0_61] : memref<8x1xf32, #tpu.memory_space<vmem>>, vector<8x1xf32>
    %86 = arith.mulf %85, %84 : vector<8x1xf32>
    %c0_62 = arith.constant 0 : index
    %c0_63 = arith.constant 0 : index
    %87 = vector.load %arg3[%c0_62, %c0_63] : memref<8x1xf32, #tpu.memory_space<vmem>>, vector<8x1xf32>
    %88 = arith.mulf %46, %86 : vector<8x1xf32>
    %89 = arith.subf %87, %88 : vector<8x1xf32>
    %c0_64 = arith.constant 0 : index
    %c0_65 = arith.constant 0 : index
    %c0_66 = arith.constant 0 : index
    %90 = vector.load %arg5[%c0_64, %c0_65, %c0_66] : memref<4x8x512xf32, #tpu.memory_space<vmem>>, vector<1x8x512xf32>
    %91 = vector.shape_cast %90 : vector<1x8x512xf32> to vector<8x512xf32>
    %92 = vector.broadcast %86 : vector<8x1xf32> to vector<8x512xf32>
    %93 = arith.mulf %91, %92 : vector<8x512xf32>
    %94 = vector.broadcast %89 : vector<8x1xf32> to vector<8x512xf32>
    %95 = arith.addf %93, %94 : vector<8x512xf32>
    %cst_67 = arith.constant 0.000000e+00 : f32
    %96 = vector.broadcast %cst_67 : f32 to vector<8x512xf32>
    %97 = arith.maximumf %95, %96 : vector<8x512xf32>
    %98 = arith.truncf %97 : vector<8x512xf32> to vector<8x512xbf16>
    %c0_68 = arith.constant 0 : index
    %c0_69 = arith.constant 0 : index
    %c0_70 = arith.constant 0 : index
    %99 = vector.load %arg4[%c0_68, %c0_69, %c0_70] : memref<4x8x512xbf16, #tpu.memory_space<vmem>>, vector<1x8x512xbf16>
    %100 = vector.shape_cast %99 : vector<1x8x512xbf16> to vector<8x512xbf16>
    %101 = vector.shape_cast %98 : vector<8x512xbf16> to vector<1x8x512xbf16>
    tpu.vector_store %arg4[%c0_68, %c0_69, %c0_70], %101 {strides = array<i32>} : memref<4x8x512xbf16, #tpu.memory_space<vmem>>, vector<1x8x512xbf16>,
    %c1_71 = arith.constant 1 : index
    %c0_72 = arith.constant 0 : index
    %c0_73 = arith.constant 0 : index
    %102 = vector.load %arg5[%c1_71, %c0_72, %c0_73] : memref<4x8x512xf32, #tpu.memory_space<vmem>>, vector<1x8x512xf32>
    %103 = vector.shape_cast %102 : vector<1x8x512xf32> to vector<8x512xf32>
    %104 = vector.broadcast %86 : vector<8x1xf32> to vector<8x512xf32>
    %105 = arith.mulf %103, %104 : vector<8x512xf32>
    %106 = vector.broadcast %89 : vector<8x1xf32> to vector<8x512xf32>
    %107 = arith.addf %105, %106 : vector<8x512xf32>
    %cst_74 = arith.constant 0.000000e+00 : f32
    %108 = vector.broadcast %cst_74 : f32 to vector<8x512xf32>
    %109 = arith.maximumf %107, %108 : vector<8x512xf32>
    %110 = arith.truncf %109 : vector<8x512xf32> to vector<8x512xbf16>
    %c1_75 = arith.constant 1 : index
    %c0_76 = arith.constant 0 : index
    %c0_77 = arith.constant 0 : index
    %111 = vector.load %arg4[%c1_75, %c0_76, %c0_77] : memref<4x8x512xbf16, #tpu.memory_space<vmem>>, vector<1x8x512xbf16>
    %112 = vector.shape_cast %111 : vector<1x8x512xbf16> to vector<8x512xbf16>
    %113 = vector.shape_cast %110 : vector<8x512xbf16> to vector<1x8x512xbf16>
    tpu.vector_store %arg4[%c1_75, %c0_76, %c0_77], %113 {strides = array<i32>} : memref<4x8x512xbf16, #tpu.memory_space<vmem>>, vector<1x8x512xbf16>,
    %c2_78 = arith.constant 2 : index
    %c0_79 = arith.constant 0 : index
    %c0_80 = arith.constant 0 : index
    %114 = vector.load %arg5[%c2_78, %c0_79, %c0_80] : memref<4x8x512xf32, #tpu.memory_space<vmem>>, vector<1x8x512xf32>
    %115 = vector.shape_cast %114 : vector<1x8x512xf32> to vector<8x512xf32>
    %116 = vector.broadcast %86 : vector<8x1xf32> to vector<8x512xf32>
    %117 = arith.mulf %115, %116 : vector<8x512xf32>
    %118 = vector.broadcast %89 : vector<8x1xf32> to vector<8x512xf32>
    %119 = arith.addf %117, %118 : vector<8x512xf32>
    %cst_81 = arith.constant 0.000000e+00 : f32
    %120 = vector.broadcast %cst_81 : f32 to vector<8x512xf32>
    %121 = arith.maximumf %119, %120 : vector<8x512xf32>
    %122 = arith.truncf %121 : vector<8x512xf32> to vector<8x512xbf16>
    %c2_82 = arith.constant 2 : index
    %c0_83 = arith.constant 0 : index
    %c0_84 = arith.constant 0 : index
    %123 = vector.load %arg4[%c2_82, %c0_83, %c0_84] : memref<4x8x512xbf16, #tpu.memory_space<vmem>>, vector<1x8x512xbf16>
    %124 = vector.shape_cast %123 : vector<1x8x512xbf16> to vector<8x512xbf16>
    %125 = vector.shape_cast %122 : vector<8x512xbf16> to vector<1x8x512xbf16>
    tpu.vector_store %arg4[%c2_82, %c0_83, %c0_84], %125 {strides = array<i32>} : memref<4x8x512xbf16, #tpu.memory_space<vmem>>, vector<1x8x512xbf16>,
    %c3_85 = arith.constant 3 : index
    %c0_86 = arith.constant 0 : index
    %c0_87 = arith.constant 0 : index
    %126 = vector.load %arg5[%c3_85, %c0_86, %c0_87] : memref<4x8x512xf32, #tpu.memory_space<vmem>>, vector<1x8x512xf32>
    %127 = vector.shape_cast %126 : vector<1x8x512xf32> to vector<8x512xf32>
    %128 = vector.broadcast %86 : vector<8x1xf32> to vector<8x512xf32>
    %129 = arith.mulf %127, %128 : vector<8x512xf32>
    %130 = vector.broadcast %89 : vector<8x1xf32> to vector<8x512xf32>
    %131 = arith.addf %129, %130 : vector<8x512xf32>
    %cst_88 = arith.constant 0.000000e+00 : f32
    %132 = vector.broadcast %cst_88 : f32 to vector<8x512xf32>
    %133 = arith.maximumf %131, %132 : vector<8x512xf32>
    %134 = arith.truncf %133 : vector<8x512xf32> to vector<8x512xbf16>
    %c3_89 = arith.constant 3 : index
    %c0_90 = arith.constant 0 : index
    %c0_91 = arith.constant 0 : index
    %135 = vector.load %arg4[%c3_89, %c0_90, %c0_91] : memref<4x8x512xbf16, #tpu.memory_space<vmem>>, vector<1x8x512xbf16>
    %136 = vector.shape_cast %135 : vector<1x8x512xbf16> to vector<8x512xbf16>
    %137 = vector.shape_cast %134 : vector<8x512xbf16> to vector<1x8x512xbf16>
    tpu.vector_store %arg4[%c3_89, %c0_90, %c0_91], %137 {strides = array<i32>} : memref<4x8x512xbf16, #tpu.memory_space<vmem>>, vector<1x8x512xbf16>,
    return
  }
}

module attributes {stable_mosaic.version = 11 : i64} {
  func.func @_up_tanh_kernel(%arg0: memref<4x32x2048xbf16, #tpu.memory_space<vmem>>, %arg1: memref<4x3x32xbf16, #tpu.memory_space<vmem>>, %arg2: memref<3x1xf32, #tpu.memory_space<vmem>>, %arg3: memref<4x3x2048xf32, #tpu.memory_space<vmem>>) attributes {dimension_semantics = [], scalar_prefetch = 0 : i64, scratch_operands = 0 : i64, tpu.core_type = #tpu.core_type<tc>} {
    %c0 = arith.constant 0 : index
    %c0_0 = arith.constant 0 : index
    %c0_1 = arith.constant 0 : index
    %0 = vector.load %arg1[%c0, %c0_0, %c0_1] : memref<4x3x32xbf16, #tpu.memory_space<vmem>>, vector<1x3x32xbf16>
    %1 = vector.shape_cast %0 : vector<1x3x32xbf16> to vector<3x32xbf16>
    %c0_2 = arith.constant 0 : index
    %c0_3 = arith.constant 0 : index
    %c0_4 = arith.constant 0 : index
    %2 = vector.load %arg0[%c0_2, %c0_3, %c0_4] : memref<4x32x2048xbf16, #tpu.memory_space<vmem>>, vector<1x32x2048xbf16>
    %3 = vector.shape_cast %2 : vector<1x32x2048xbf16> to vector<32x2048xbf16>
    %cst = arith.constant dense<0.000000e+00> : vector<3x2048xf32>
    %4 = tpu.matmul %1, %3, %cst {dimension_numbers = #tpu.dot_dimension_numbers<[1], [0], [0], [1], [0, 0, 1, 1], [], []>} : vector<3x32xbf16>, vector<32x2048xbf16>, vector<3x2048xf32> -> vector<3x2048xf32>
    %c0_5 = arith.constant 0 : index
    %c0_6 = arith.constant 0 : index
    %5 = vector.load %arg2[%c0_5, %c0_6] : memref<3x1xf32, #tpu.memory_space<vmem>>, vector<3x1xf32>
    %6 = vector.broadcast %5 : vector<3x1xf32> to vector<3x2048xf32>
    %7 = arith.addf %4, %6 : vector<3x2048xf32>
    %8 = math.tanh %7 : vector<3x2048xf32>
    %c0_7 = arith.constant 0 : index
    %c0_8 = arith.constant 0 : index
    %c0_9 = arith.constant 0 : index
    %9 = vector.load %arg3[%c0_7, %c0_8, %c0_9] : memref<4x3x2048xf32, #tpu.memory_space<vmem>>, vector<1x3x2048xf32>
    %10 = vector.shape_cast %9 : vector<1x3x2048xf32> to vector<3x2048xf32>
    %11 = vector.shape_cast %8 : vector<3x2048xf32> to vector<1x3x2048xf32>
    tpu.vector_store %arg3[%c0_7, %c0_8, %c0_9], %11 {strides = array<i32>} : memref<4x3x2048xf32, #tpu.memory_space<vmem>>, vector<1x3x2048xf32>,
    %c1 = arith.constant 1 : index
    %c0_10 = arith.constant 0 : index
    %c0_11 = arith.constant 0 : index
    %12 = vector.load %arg1[%c1, %c0_10, %c0_11] : memref<4x3x32xbf16, #tpu.memory_space<vmem>>, vector<1x3x32xbf16>
    %13 = vector.shape_cast %12 : vector<1x3x32xbf16> to vector<3x32xbf16>
    %c1_12 = arith.constant 1 : index
    %c0_13 = arith.constant 0 : index
    %c0_14 = arith.constant 0 : index
    %14 = vector.load %arg0[%c1_12, %c0_13, %c0_14] : memref<4x32x2048xbf16, #tpu.memory_space<vmem>>, vector<1x32x2048xbf16>
    %15 = vector.shape_cast %14 : vector<1x32x2048xbf16> to vector<32x2048xbf16>
    %cst_15 = arith.constant dense<0.000000e+00> : vector<3x2048xf32>
    %16 = tpu.matmul %13, %15, %cst_15 {dimension_numbers = #tpu.dot_dimension_numbers<[1], [0], [0], [1], [0, 0, 1, 1], [], []>} : vector<3x32xbf16>, vector<32x2048xbf16>, vector<3x2048xf32> -> vector<3x2048xf32>
    %c0_16 = arith.constant 0 : index
    %c0_17 = arith.constant 0 : index
    %17 = vector.load %arg2[%c0_16, %c0_17] : memref<3x1xf32, #tpu.memory_space<vmem>>, vector<3x1xf32>
    %18 = vector.broadcast %17 : vector<3x1xf32> to vector<3x2048xf32>
    %19 = arith.addf %16, %18 : vector<3x2048xf32>
    %20 = math.tanh %19 : vector<3x2048xf32>
    %c1_18 = arith.constant 1 : index
    %c0_19 = arith.constant 0 : index
    %c0_20 = arith.constant 0 : index
    %21 = vector.load %arg3[%c1_18, %c0_19, %c0_20] : memref<4x3x2048xf32, #tpu.memory_space<vmem>>, vector<1x3x2048xf32>
    %22 = vector.shape_cast %21 : vector<1x3x2048xf32> to vector<3x2048xf32>
    %23 = vector.shape_cast %20 : vector<3x2048xf32> to vector<1x3x2048xf32>
    tpu.vector_store %arg3[%c1_18, %c0_19, %c0_20], %23 {strides = array<i32>} : memref<4x3x2048xf32, #tpu.memory_space<vmem>>, vector<1x3x2048xf32>,
    %c2 = arith.constant 2 : index
    %c0_21 = arith.constant 0 : index
    %c0_22 = arith.constant 0 : index
    %24 = vector.load %arg1[%c2, %c0_21, %c0_22] : memref<4x3x32xbf16, #tpu.memory_space<vmem>>, vector<1x3x32xbf16>
    %25 = vector.shape_cast %24 : vector<1x3x32xbf16> to vector<3x32xbf16>
    %c2_23 = arith.constant 2 : index
    %c0_24 = arith.constant 0 : index
    %c0_25 = arith.constant 0 : index
    %26 = vector.load %arg0[%c2_23, %c0_24, %c0_25] : memref<4x32x2048xbf16, #tpu.memory_space<vmem>>, vector<1x32x2048xbf16>
    %27 = vector.shape_cast %26 : vector<1x32x2048xbf16> to vector<32x2048xbf16>
    %cst_26 = arith.constant dense<0.000000e+00> : vector<3x2048xf32>
    %28 = tpu.matmul %25, %27, %cst_26 {dimension_numbers = #tpu.dot_dimension_numbers<[1], [0], [0], [1], [0, 0, 1, 1], [], []>} : vector<3x32xbf16>, vector<32x2048xbf16>, vector<3x2048xf32> -> vector<3x2048xf32>
    %c0_27 = arith.constant 0 : index
    %c0_28 = arith.constant 0 : index
    %29 = vector.load %arg2[%c0_27, %c0_28] : memref<3x1xf32, #tpu.memory_space<vmem>>, vector<3x1xf32>
    %30 = vector.broadcast %29 : vector<3x1xf32> to vector<3x2048xf32>
    %31 = arith.addf %28, %30 : vector<3x2048xf32>
    %32 = math.tanh %31 : vector<3x2048xf32>
    %c2_29 = arith.constant 2 : index
    %c0_30 = arith.constant 0 : index
    %c0_31 = arith.constant 0 : index
    %33 = vector.load %arg3[%c2_29, %c0_30, %c0_31] : memref<4x3x2048xf32, #tpu.memory_space<vmem>>, vector<1x3x2048xf32>
    %34 = vector.shape_cast %33 : vector<1x3x2048xf32> to vector<3x2048xf32>
    %35 = vector.shape_cast %32 : vector<3x2048xf32> to vector<1x3x2048xf32>
    tpu.vector_store %arg3[%c2_29, %c0_30, %c0_31], %35 {strides = array<i32>} : memref<4x3x2048xf32, #tpu.memory_space<vmem>>, vector<1x3x2048xf32>,
    %c3 = arith.constant 3 : index
    %c0_32 = arith.constant 0 : index
    %c0_33 = arith.constant 0 : index
    %36 = vector.load %arg1[%c3, %c0_32, %c0_33] : memref<4x3x32xbf16, #tpu.memory_space<vmem>>, vector<1x3x32xbf16>
    %37 = vector.shape_cast %36 : vector<1x3x32xbf16> to vector<3x32xbf16>
    %c3_34 = arith.constant 3 : index
    %c0_35 = arith.constant 0 : index
    %c0_36 = arith.constant 0 : index
    %38 = vector.load %arg0[%c3_34, %c0_35, %c0_36] : memref<4x32x2048xbf16, #tpu.memory_space<vmem>>, vector<1x32x2048xbf16>
    %39 = vector.shape_cast %38 : vector<1x32x2048xbf16> to vector<32x2048xbf16>
    %cst_37 = arith.constant dense<0.000000e+00> : vector<3x2048xf32>
    %40 = tpu.matmul %37, %39, %cst_37 {dimension_numbers = #tpu.dot_dimension_numbers<[1], [0], [0], [1], [0, 0, 1, 1], [], []>} : vector<3x32xbf16>, vector<32x2048xbf16>, vector<3x2048xf32> -> vector<3x2048xf32>
    %c0_38 = arith.constant 0 : index
    %c0_39 = arith.constant 0 : index
    %41 = vector.load %arg2[%c0_38, %c0_39] : memref<3x1xf32, #tpu.memory_space<vmem>>, vector<3x1xf32>
    %42 = vector.broadcast %41 : vector<3x1xf32> to vector<3x2048xf32>
    %43 = arith.addf %40, %42 : vector<3x2048xf32>
    %44 = math.tanh %43 : vector<3x2048xf32>
    %c3_40 = arith.constant 3 : index
    %c0_41 = arith.constant 0 : index
    %c0_42 = arith.constant 0 : index
    %45 = vector.load %arg3[%c3_40, %c0_41, %c0_42] : memref<4x3x2048xf32, #tpu.memory_space<vmem>>, vector<1x3x2048xf32>
    %46 = vector.shape_cast %45 : vector<1x3x2048xf32> to vector<3x2048xf32>
    %47 = vector.shape_cast %44 : vector<3x2048xf32> to vector<1x3x2048xf32>
    tpu.vector_store %arg3[%c3_40, %c0_41, %c0_42], %47 {strides = array<i32>} : memref<4x3x2048xf32, #tpu.memory_space<vmem>>, vector<1x3x2048xf32>,
    return
  }
}

</mosaic_0001>

<llo_original>
// kernel: generator_forward.5
$region0: #{generator_forward.5}
  #allocation0 [shape = 'u32[]', space=smem, size = 0x4, offset = 0x4, fixed_abs, tag = 'smem constant byte address 0x4 - core index']
  #allocation1 [shape = 'u32[144,128]{1,0:T(1,128)}', space=vmem, size = 0x12000, scoped, tag = 'internal scratch']
  %s0 = inlined_call_operand.vmem [shape: bf16[2,40], index: 0, kind: input, shape index: {}]
  %s1 = inlined_call_operand.hbm [shape: bf16[16,40,64], index: 1, kind: input, shape index: {}]
  %s2 = inlined_call_operand.hbm [shape: f32[1,64], index: 2, kind: input, shape index: {}]
  %s3 = inlined_call_operand.hbm [shape: f32[1,64], index: 3, kind: input, shape index: {}]
  %s4 = inlined_call_operand.vmem [shape: bf16[16,2,64], index: 4, kind: output, shape index: {}]
  %s5 = sld [smem:[#allocation0]]
  $region38: #{generator_forward.5} parent=0
    _
  %s7 = ssub.s32 1, %s5
  %s8 = scalar_select 0, %s7, %s5
  $region1: #{generator_forward.5} parent=0
    #allocation2 [shape = 'u8[163840]{0}', space=vmem, size = 0x28000, scoped, tag = 'input window, operand 1, single buffered']
    #allocation3 [shape = 's32[1]{0}', space=sflag, size = 0x4, scoped, tag = 'scoped memory for generator_forward.5']
    #allocation4 [shape = 'u8[512]{0}', space=vmem, size = 0x400, scoped, tag = 'input window, operand 2, single buffered']
    #allocation5 [shape = 's32[1]{0}', space=sflag, size = 0x4, scoped, tag = 'scoped memory for generator_forward.5']
    #allocation6 [shape = 'u8[512]{0}', space=vmem, size = 0x400, scoped, tag = 'input window, operand 3, single buffered']
    %9 = vsyncpa [#allocation3], 0
    %10 = vsyncpa [#allocation5], 0
    // Predicated region
    $region2: #{generator_forward.5} parent=1 // pred_check
      _
    $region3: #{generator_forward.5} parent=1 // pred_check_branch
      %12 = sbr.rel (0) target = $region5
    $region4: #{generator_forward.5} parent=1 // pred_region
      _
    $region5: #{generator_forward.5} parent=1 // pred_fallthru
      _
    // Predicated region
    $region6: #{generator_forward.5} parent=1 // pred_check
      _
    $region7: #{generator_forward.5} parent=1 // pred_check_branch
      %14 = sbr.rel (0) target = $region9
    $region8: #{generator_forward.5} parent=1 // pred_region
      %s16 = ssub.s32 5120, 5120
      %17 = vsyncadd [#allocation3], %s16
      %s18 = sshll.u32 [#allocation2], 4
      %s19 = int_to_ptr.vmem [resolvable:$true] %s18
      %24 = dma.hbm_to_vmem [thread:$0]  %s1, 5120, %s19, [#allocation3], 64, 64, 4
    $region9: #{generator_forward.5} parent=1 // pred_fallthru
      _
    // Predicated region
    $region10: #{generator_forward.5} parent=1 // pred_check
      _
    $region11: #{generator_forward.5} parent=1 // pred_check_branch
      %26 = sbr.rel (0) target = $region13
    $region12: #{generator_forward.5} parent=1 // pred_region
      %s28 = ssub.s32 16, 16
      %29 = vsyncadd [#allocation5], %s28
      %s31 = sshll.u32 [#allocation4], 4
      %s32 = int_to_ptr.vmem [resolvable:$true] %s31
      %34 = dma.hbm_to_vmem [thread:$0]  %s2, 16, %s32, [#allocation5]
    $region13: #{generator_forward.5} parent=1 // pred_fallthru
      _
    // Predicated region
    $region14: #{generator_forward.5} parent=1 // pred_check
      _
    $region15: #{generator_forward.5} parent=1 // pred_check_branch
      %36 = sbr.rel (0) target = $region17
    $region16: #{generator_forward.5} parent=1 // pred_region
      %s38 = ssub.s32 16, 16
      %39 = vsyncadd [#allocation5], %s38
      %s41 = sshll.u32 [#allocation6], 4
      %s42 = int_to_ptr.vmem [resolvable:$true] %s41
      %44 = dma.hbm_to_vmem [thread:$0]  %s3, 16, %s42, [#allocation5]
    $region17: #{generator_forward.5} parent=1 // pred_fallthru
      _
    // Predicated region
    $region18: #{generator_forward.5} parent=1 // pred_check
      _
    $region19: #{generator_forward.5} parent=1 // pred_check_branch
      %46 = sbr.rel (0) target = $region21
    $region20: #{generator_forward.5} parent=1 // pred_region
      %47 = dma.done [#allocation3], 5120
    $region21: #{generator_forward.5} parent=1 // pred_fallthru
      _
    // Predicated region
    $region22: #{generator_forward.5} parent=1 // pred_check
      _
    $region23: #{generator_forward.5} parent=1 // pred_check_branch
      %49 = sbr.rel (0) target = $region25
    $region24: #{generator_forward.5} parent=1 // pred_region
      %50 = dma.done [#allocation5], 16
    $region25: #{generator_forward.5} parent=1 // pred_fallthru
      _
    // Predicated region
    $region26: #{generator_forward.5} parent=1 // pred_check
      _
    $region27: #{generator_forward.5} parent=1 // pred_check_branch
      %52 = sbr.rel (0) target = $region29
    $region28: #{generator_forward.5} parent=1 // pred_region
      %53 = dma.done [#allocation5], 16
    $region29: #{generator_forward.5} parent=1 // pred_fallthru
      _
    %v55 = vld [vmem:[%s0] sm:$0x1]
    %v56 = vld [vmem:[#allocation2] sm:$0xf]
    %v57 = vld [vmem:[#allocation2 + $0x4] sm:$0xf]
    %v58 = vld [vmem:[#allocation2 + $0x8] sm:$0xf]
    %v59 = vld [vmem:[#allocation2 + $0xc] sm:$0xf]
    %v60 = vld [vmem:[#allocation2 + $0x10] sm:$0xf]
    %v66 = vunpack.c.l.b16 %v56
    %v67 = vunpack.c.l.b16 %v57
    %v68 = vunpack.c.l.b16 %v58
    %v69 = vunpack.c.l.b16 %v59
    %v70 = vunpack.c.l.b16 %v60
    %v71 = vpack.c.b16 %v67, %v66
    %v72 = vpack.c.b16 %v69, %v68
    %v73 = vpack.c.b16 %v70, %v70
    %vm76 = vcmask 326656
    %v78 = vsel %vm76, %v55, 0
    %vm80 = vcmask 1043456
    %v82 = vsel %vm80, %v73, 0
    %84 = vmatprep.subr.bf16.mxu0 0
    %85 = vmatpush1.bf16.msra.mxu0 %v71
    %86 = vmatprep.subr.bf16.mxu0 0
    %87 = vmatpush1.bf16.msra.mxu0 %v72
    %88 = vmatprep.subr.bf16.mxu0 0
    %89 = vmatpush1.bf16.msra.mxu0 %v82
    %90 = vmatprep.subr.bf16.mxu0 0
    %91 = vmatpush1.bf16.msra.mxu0 0
    %92 = vmatprep.subr.bf16.mxu0 0
    %93 = vmatpush1.bf16.msra.mxu0 0
    %94 = vmatprep.subr.bf16.mxu0 0
    %95 = vmatpush1.bf16.msra.mxu0 0
    %96 = vmatprep.subr.bf16.mxu0 0
    %97 = vmatpush1.bf16.msra.mxu0 0
    %98 = vmatprep.subr.bf16.mxu0 0
    %99 = vmatpush1.bf16.msra.mxu0 0
    %100 = vmatprep.subr.bf16.mxu0 0
    %101 = vmatpush1.bf16.msra.mxu0 0
    %102 = vmatprep.subr.bf16.mxu0 0
    %103 = vmatpush1.bf16.msra.mxu0 0
    %104 = vmatprep.subr.bf16.mxu0 0
    %105 = vmatpush1.bf16.msra.mxu0 0
    %106 = vmatprep.subr.bf16.mxu0 0
    %107 = vmatpush1.bf16.msra.mxu0 0
    %108 = vmatprep.subr.bf16.mxu0 0
    %109 = vmatpush1.bf16.msra.mxu0 0
    %110 = vmatprep.subr.bf16.mxu0 0
    %111 = vmatpush1.bf16.msra.mxu0 0
    %112 = vmatprep.subr.bf16.mxu0 0
    %113 = vmatpush1.bf16.msra.mxu0 0
    %114 = vmatprep.subr.bf16.mxu0 0
    %115 = vmatpush1.bf16.msra.mxu0 0
    %116 = vmatprep.mubr.bf16.mxu0 0
    %117 = vmatmul.mubr.bf16.gmra.mrb[0].mxu0 %v78
    %v118 = vpop.f32.mrb[0].mxu0
    %v119 = vadd.f32 0.0, %v118
    %v120 = vpop.f32.mrb[0].mxu0
    %v121 = vpop.f32.mrb[0].mxu0
    %v122 = vpop.f32.mrb[0].mxu0
    %123 = vdwg.mxu0
    %vm124 = vcmask 517120
    %v125 = vsel %vm124, %v119, 0.0
    %v126 = vrot.slane %v125, 4
    %v127 = vadd.f32 %v125, %v126
    %v128 = vrot.slane %v127, 2
    %v129 = vadd.f32 %v127, %v128
    %v130 = vrot.slane %v129, 1
    %v131 = vadd.f32 %v129, %v130
    %v132 = vadd.f32 %v131, 0.0
    %s133 = scalar_lea.vmem [#allocation2], 20
    %v134 = vld [vmem:[%s133] sm:$0xf]
    %v135 = vld [vmem:[%s133 + $0x4] sm:$0xf]
    %v136 = vld [vmem:[%s133 + $0x8] sm:$0xf]
    %v137 = vld [vmem:[%s133 + $0xc] sm:$0xf]
    %v138 = vld [vmem:[%s133 + $0x10] sm:$0xf]
    %v144 = vunpack.c.l.b16 %v134
    %v145 = vunpack.c.l.b16 %v135
    %v146 = vunpack.c.l.b16 %v136
    %v147 = vunpack.c.l.b16 %v137
    %v148 = vunpack.c.l.b16 %v138
    %v149 = vpack.c.b16 %v145, %v144
    %v150 = vpack.c.b16 %v147, %v146
    %v151 = vpack.c.b16 %v148, %v148
    %v155 = vsel %vm80, %v151, 0
    %157 = vmatprep.subr.bf16.mxu0 0
    %158 = vmatpush1.bf16.msra.mxu0 %v149
    %159 = vmatprep.subr.bf16.mxu0 0
    %160 = vmatpush1.bf16.msra.mxu0 %v150
    %161 = vmatprep.subr.bf16.mxu0 0
    %162 = vmatpush1.bf16.msra.mxu0 %v155
    %163 = vmatprep.subr.bf16.mxu0 0
    %164 = vmatpush1.bf16.msra.mxu0 0
    %165 = vmatprep.subr.bf16.mxu0 0
    %166 = vmatpush1.bf16.msra.mxu0 0
    %167 = vmatprep.subr.bf16.mxu0 0
    %168 = vmatpush1.bf16.msra.mxu0 0
    %169 = vmatprep.subr.bf16.mxu0 0
    %170 = vmatpush1.bf16.msra.mxu0 0
    %171 = vmatprep.subr.bf16.mxu0 0
    %172 = vmatpush1.bf16.msra.mxu0 0
    %173 = vmatprep.subr.bf16.mxu0 0
    %174 = vmatpush1.bf16.msra.mxu0 0
    %175 = vmatprep.subr.bf16.mxu0 0
    %176 = vmatpush1.bf16.msra.mxu0 0
    %177 = vmatprep.subr.bf16.mxu0 0
    %178 = vmatpush1.bf16.msra.mxu0 0
    %179 = vmatprep.subr.bf16.mxu0 0
    %180 = vmatpush1.bf16.msra.mxu0 0
    %181 = vmatprep.subr.bf16.mxu0 0
    %182 = vmatpush1.bf16.msra.mxu0 0
    %183 = vmatprep.subr.bf16.mxu0 0
    %184 = vmatpush1.bf16.msra.mxu0 0
    %185 = vmatprep.subr.bf16.mxu0 0
    %186 = vmatpush1.bf16.msra.mxu0 0
    %187 = vmatprep.subr.bf16.mxu0 0
    %188 = vmatpush1.bf16.msra.mxu0 0
    %189 = vmatprep.mubr.bf16.mxu0 0
    %190 = vmatmul.mubr.bf16.gmra.mrb[0].mxu0 %v78
    %v191 = vpop.f32.mrb[0].mxu0
    %v192 = vadd.f32 0.0, %v191
    %v193 = vpop.f32.mrb[0].mxu0
    %v194 = vpop.f32.mrb[0].mxu0
    %v195 = vpop.f32.mrb[0].mxu0
    %196 = vdwg.mxu0
    %v197 = vsel %vm124, %v192, 0.0
    %v198 = vrot.slane %v197, 4
    %v199 = vadd.f32 %v197, %v198
    %v200 = vrot.slane %v199, 2
    %v201 = vadd.f32 %v199, %v200
    %v202 = vrot.slane %v201, 1
    %v203 = vadd.f32 %v201, %v202
    %v204 = vadd.f32 %v132, %v203
    %s205 = scalar_lea.vmem [#allocation2], 40
    %v206 = vld [vmem:[%s205] sm:$0xf]
    %v207 = vld [vmem:[%s205 + $0x4] sm:$0xf]
    %v208 = vld [vmem:[%s205 + $0x8] sm:$0xf]
    %v209 = vld [vmem:[%s205 + $0xc] sm:$0xf]
    %v210 = vld [vmem:[%s205 + $0x10] sm:$0xf]
    %v216 = vunpack.c.l.b16 %v206
    %v217 = vunpack.c.l.b16 %v207
    %v218 = vunpack.c.l.b16 %v208
    %v219 = vunpack.c.l.b16 %v209
    %v220 = vunpack.c.l.b16 %v210
    %v221 = vpack.c.b16 %v217, %v216
    %v222 = vpack.c.b16 %v219, %v218
    %v223 = vpack.c.b16 %v220, %v220
    %v227 = vsel %vm80, %v223, 0
    %229 = vmatprep.subr.bf16.mxu0 0
    %230 = vmatpush1.bf16.msra.mxu0 %v221
    %231 = vmatprep.subr.bf16.mxu0 0
    %232 = vmatpush1.bf16.msra.mxu0 %v222
    %233 = vmatprep.subr.bf16.mxu0 0
    %234 = vmatpush1.bf16.msra.mxu0 %v227
    %235 = vmatprep.subr.bf16.mxu0 0
    %236 = vmatpush1.bf16.msra.mxu0 0
    %237 = vmatprep.subr.bf16.mxu0 0
    %238 = vmatpush1.bf16.msra.mxu0 0
    %239 = vmatprep.subr.bf16.mxu0 0
    %240 = vmatpush1.bf16.msra.mxu0 0
    %241 = vmatprep.subr.bf16.mxu0 0
    %242 = vmatpush1.bf16.msra.mxu0 0
    %243 = vmatprep.subr.bf16.mxu0 0
    %244 = vmatpush1.bf16.msra.mxu0 0
    %245 = vmatprep.subr.bf16.mxu0 0
    %246 = vmatpush1.bf16.msra.mxu0 0
    %247 = vmatprep.subr.bf16.mxu0 0
    %248 = vmatpush1.bf16.msra.mxu0 0
    %249 = vmatprep.subr.bf16.mxu0 0
    %250 = vmatpush1.bf16.msra.mxu0 0
    %251 = vmatprep.subr.bf16.mxu0 0
    %252 = vmatpush1.bf16.msra.mxu0 0
    %253 = vmatprep.subr.bf16.mxu0 0
    %254 = vmatpush1.bf16.msra.mxu0 0
    %255 = vmatprep.subr.bf16.mxu0 0
    %256 = vmatpush1.bf16.msra.mxu0 0
    %257 = vmatprep.subr.bf16.mxu0 0
    %258 = vmatpush1.bf16.msra.mxu0 0
    %259 = vmatprep.subr.bf16.mxu0 0
    %260 = vmatpush1.bf16.msra.mxu0 0
    %261 = vmatprep.mubr.bf16.mxu0 0
    %262 = vmatmul.mubr.bf16.gmra.mrb[0].mxu0 %v78
    %v263 = vpop.f32.mrb[0].mxu0
    %v264 = vadd.f32 0.0, %v263
    %v265 = vpop.f32.mrb[0].mxu0
    %v266 = vpop.f32.mrb[0].mxu0
    %v267 = vpop.f32.mrb[0].mxu0
    %268 = vdwg.mxu0
    %v269 = vsel %vm124, %v264, 0.0
    %v270 = vrot.slane %v269, 4
    %v271 = vadd.f32 %v269, %v270
    %v272 = vrot.slane %v271, 2
    %v273 = vadd.f32 %v271, %v272
    %v274 = vrot.slane %v273, 1
    %v275 = vadd.f32 %v273, %v274
    %v276 = vadd.f32 %v204, %v275
    %s277 = scalar_lea.vmem [#allocation2], 60
    %v278 = vld [vmem:[%s277] sm:$0xf]
    %v279 = vld [vmem:[%s277 + $0x4] sm:$0xf]
    %v280 = vld [vmem:[%s277 + $0x8] sm:$0xf]
    %v281 = vld [vmem:[%s277 + $0xc] sm:$0xf]
    %v282 = vld [vmem:[%s277 + $0x10] sm:$0xf]
    %v288 = vunpack.c.l.b16 %v278
    %v289 = vunpack.c.l.b16 %v279
    %v290 = vunpack.c.l.b16 %v280
    %v291 = vunpack.c.l.b16 %v281
    %v292 = vunpack.c.l.b16 %v282
    %v293 = vpack.c.b16 %v289, %v288
    %v294 = vpack.c.b16 %v291, %v290
    %v295 = vpack.c.b16 %v292, %v292
    %v299 = vsel %vm80, %v295, 0
    %301 = vmatprep.subr.bf16.mxu0 0
    %302 = vmatpush1.bf16.msra.mxu0 %v293
    %303 = vmatprep.subr.bf16.mxu0 0
    %304 = vmatpush1.bf16.msra.mxu0 %v294
    %305 = vmatprep.subr.bf16.mxu0 0
    %306 = vmatpush1.bf16.msra.mxu0 %v299
    %307 = vmatprep.subr.bf16.mxu0 0
    %308 = vmatpush1.bf16.msra.mxu0 0
    %309 = vmatprep.subr.bf16.mxu0 0
    %310 = vmatpush1.bf16.msra.mxu0 0
    %311 = vmatprep.subr.bf16.mxu0 0
    %312 = vmatpush1.bf16.msra.mxu0 0
    %313 = vmatprep.subr.bf16.mxu0 0
    %314 = vmatpush1.bf16.msra.mxu0 0
    %315 = vmatprep.subr.bf16.mxu0 0
    %316 = vmatpush1.bf16.msra.mxu0 0
    %317 = vmatprep.subr.bf16.mxu0 0
    %318 = vmatpush1.bf16.msra.mxu0 0
    %319 = vmatprep.subr.bf16.mxu0 0
    %320 = vmatpush1.bf16.msra.mxu0 0
    %321 = vmatprep.subr.bf16.mxu0 0
    %322 = vmatpush1.bf16.msra.mxu0 0
    %323 = vmatprep.subr.bf16.mxu0 0
    %324 = vmatpush1.bf16.msra.mxu0 0
    %325 = vmatprep.subr.bf16.mxu0 0
    %326 = vmatpush1.bf16.msra.mxu0 0
    %327 = vmatprep.subr.bf16.mxu0 0
    %328 = vmatpush1.bf16.msra.mxu0 0
    %329 = vmatprep.subr.bf16.mxu0 0
    %330 = vmatpush1.bf16.msra.mxu0 0
    %331 = vmatprep.subr.bf16.mxu0 0
    %332 = vmatpush1.bf16.msra.mxu0 0
    %333 = vmatprep.mubr.bf16.mxu0 0
    %334 = vmatmul.mubr.bf16.gmra.mrb[0].mxu0 %v78
    %v335 = vpop.f32.mrb[0].mxu0
    %v336 = vadd.f32 0.0, %v335
    %v337 = vpop.f32.mrb[0].mxu0
    %v338 = vpop.f32.mrb[0].mxu0
    %v339 = vpop.f32.mrb[0].mxu0
    %340 = vdwg.mxu0
    %v341 = vsel %vm124, %v336, 0.0
    %v342 = vrot.slane %v341, 4
    %v343 = vadd.f32 %v341, %v342
    %v344 = vrot.slane %v343, 2
    %v345 = vadd.f32 %v343, %v344
    %v346 = vrot.slane %v345, 1
    %v347 = vadd.f32 %v345, %v346
    %v348 = vadd.f32 %v276, %v347
    %s349 = scalar_lea.vmem [#allocation2], 80
    %v350 = vld [vmem:[%s349] sm:$0xf]
    %v351 = vld [vmem:[%s349 + $0x4] sm:$0xf]
    %v352 = vld [vmem:[%s349 + $0x8] sm:$0xf]
    %v353 = vld [vmem:[%s349 + $0xc] sm:$0xf]
    %v354 = vld [vmem:[%s349 + $0x10] sm:$0xf]
    %v360 = vunpack.c.l.b16 %v350
    %v361 = vunpack.c.l.b16 %v351
    %v362 = vunpack.c.l.b16 %v352
    %v363 = vunpack.c.l.b16 %v353
    %v364 = vunpack.c.l.b16 %v354
    %v365 = vpack.c.b16 %v361, %v360
    %v366 = vpack.c.b16 %v363, %v362
    %v367 = vpack.c.b16 %v364, %v364
    %v371 = vsel %vm80, %v367, 0
    %373 = vmatprep.subr.bf16.mxu0 0
    %374 = vmatpush1.bf16.msra.mxu0 %v365
    %375 = vmatprep.subr.bf16.mxu0 0
    %376 = vmatpush1.bf16.msra.mxu0 %v366
    %377 = vmatprep.subr.bf16.mxu0 0
    %378 = vmatpush1.bf16.msra.mxu0 %v371
    %379 = vmatprep.subr.bf16.mxu0 0
    %380 = vmatpush1.bf16.msra.mxu0 0
    %381 = vmatprep.subr.bf16.mxu0 0
    %382 = vmatpush1.bf16.msra.mxu0 0
    %383 = vmatprep.subr.bf16.mxu0 0
    %384 = vmatpush1.bf16.msra.mxu0 0
    %385 = vmatprep.subr.bf16.mxu0 0
    %386 = vmatpush1.bf16.msra.mxu0 0
    %387 = vmatprep.subr.bf16.mxu0 0
    %388 = vmatpush1.bf16.msra.mxu0 0
    %389 = vmatprep.subr.bf16.mxu0 0
    %390 = vmatpush1.bf16.msra.mxu0 0
    %391 = vmatprep.subr.bf16.mxu0 0
    %392 = vmatpush1.bf16.msra.mxu0 0
    %393 = vmatprep.subr.bf16.mxu0 0
    %394 = vmatpush1.bf16.msra.mxu0 0
    %395 = vmatprep.subr.bf16.mxu0 0
    %396 = vmatpush1.bf16.msra.mxu0 0
    %397 = vmatprep.subr.bf16.mxu0 0
    %398 = vmatpush1.bf16.msra.mxu0 0
    %399 = vmatprep.subr.bf16.mxu0 0
    %400 = vmatpush1.bf16.msra.mxu0 0
    %401 = vmatprep.subr.bf16.mxu0 0
    %402 = vmatpush1.bf16.msra.mxu0 0
    %403 = vmatprep.subr.bf16.mxu0 0
    %404 = vmatpush1.bf16.msra.mxu0 0
    %405 = vmatprep.mubr.bf16.mxu0 0
    %406 = vmatmul.mubr.bf16.gmra.mrb[0].mxu0 %v78
    %v407 = vpop.f32.mrb[0].mxu0
    %v408 = vadd.f32 0.0, %v407
    %v409 = vpop.f32.mrb[0].mxu0
    %v410 = vpop.f32.mrb[0].mxu0
    %v411 = vpop.f32.mrb[0].mxu0
    %412 = vdwg.mxu0
    %v413 = vsel %vm124, %v408, 0.0
    %v414 = vrot.slane %v413, 4
    %v415 = vadd.f32 %v413, %v414
    %v416 = vrot.slane %v415, 2
    %v417 = vadd.f32 %v415, %v416
    %v418 = vrot.slane %v417, 1
    %v419 = vadd.f32 %v417, %v418
    %v420 = vadd.f32 %v348, %v419
    %s421 = scalar_lea.vmem [#allocation2], 100
    %v422 = vld [vmem:[%s421] sm:$0xf]
    %v423 = vld [vmem:[%s421 + $0x4] sm:$0xf]
    %v424 = vld [vmem:[%s421 + $0x8] sm:$0xf]
    %v425 = vld [vmem:[%s421 + $0xc] sm:$0xf]
    %v426 = vld [vmem:[%s421 + $0x10] sm:$0xf]
    %v432 = vunpack.c.l.b16 %v422
    %v433 = vunpack.c.l.b16 %v423
    %v434 = vunpack.c.l.b16 %v424
    %v435 = vunpack.c.l.b16 %v425
    %v436 = vunpack.c.l.b16 %v426
    %v437 = vpack.c.b16 %v433, %v432
    %v438 = vpack.c.b16 %v435, %v434
    %v439 = vpack.c.b16 %v436, %v436
    %v443 = vsel %vm80, %v439, 0
    %445 = vmatprep.subr.bf16.mxu0 0
    %446 = vmatpush1.bf16.msra.mxu0 %v437
    %447 = vmatprep.subr.bf16.mxu0 0
    %448 = vmatpush1.bf16.msra.mxu0 %v438
    %449 = vmatprep.subr.bf16.mxu0 0
    %450 = vmatpush1.bf16.msra.mxu0 %v443
    %451 = vmatprep.subr.bf16.mxu0 0
    %452 = vmatpush1.bf16.msra.mxu0 0
    %453 = vmatprep.subr.bf16.mxu0 0
    %454 = vmatpush1.bf16.msra.mxu0 0
    %455 = vmatprep.subr.bf16.mxu0 0
    %456 = vmatpush1.bf16.msra.mxu0 0
    %457 = vmatprep.subr.bf16.mxu0 0
    %458 = vmatpush1.bf16.msra.mxu0 0
    %459 = vmatprep.subr.bf16.mxu0 0
    %460 = vmatpush1.bf16.msra.mxu0 0
    %461 = vmatprep.subr.bf16.mxu0 0
    %462 = vmatpush1.bf16.msra.mxu0 0
    %463 = vmatprep.subr.bf16.mxu0 0
    %464 = vmatpush1.bf16.msra.mxu0 0
    %465 = vmatprep.subr.bf16.mxu0 0
    %466 = vmatpush1.bf16.msra.mxu0 0
    %467 = vmatprep.subr.bf16.mxu0 0
    %468 = vmatpush1.bf16.msra.mxu0 0
    %469 = vmatprep.subr.bf16.mxu0 0
    %470 = vmatpush1.bf16.msra.mxu0 0
    %471 = vmatprep.subr.bf16.mxu0 0
    %472 = vmatpush1.bf16.msra.mxu0 0
    %473 = vmatprep.subr.bf16.mxu0 0
    %474 = vmatpush1.bf16.msra.mxu0 0
    %475 = vmatprep.subr.bf16.mxu0 0
    %476 = vmatpush1.bf16.msra.mxu0 0
    %477 = vmatprep.mubr.bf16.mxu0 0
    %478 = vmatmul.mubr.bf16.gmra.mrb[0].mxu0 %v78
    %v479 = vpop.f32.mrb[0].mxu0
    %v480 = vadd.f32 0.0, %v479
    %v481 = vpop.f32.mrb[0].mxu0
    %v482 = vpop.f32.mrb[0].mxu0
    %v483 = vpop.f32.mrb[0].mxu0
    %484 = vdwg.mxu0
    %v485 = vsel %vm124, %v480, 0.0
    %v486 = vrot.slane %v485, 4
    %v487 = vadd.f32 %v485, %v486
    %v488 = vrot.slane %v487, 2
    %v489 = vadd.f32 %v487, %v488
    %v490 = vrot.slane %v489, 1
    %v491 = vadd.f32 %v489, %v490
    %v492 = vadd.f32 %v420, %v491
    %s493 = scalar_lea.vmem [#allocation2], 120
    %v494 = vld [vmem:[%s493] sm:$0xf]
    %v495 = vld [vmem:[%s493 + $0x4] sm:$0xf]
    %v496 = vld [vmem:[%s493 + $0x8] sm:$0xf]
    %v497 = vld [vmem:[%s493 + $0xc] sm:$0xf]
    %v498 = vld [vmem:[%s493 + $0x10] sm:$0xf]
    %v504 = vunpack.c.l.b16 %v494
    %v505 = vunpack.c.l.b16 %v495
    %v506 = vunpack.c.l.b16 %v496
    %v507 = vunpack.c.l.b16 %v497
    %v508 = vunpack.c.l.b16 %v498
    %v509 = vpack.c.b16 %v505, %v504
    %v510 = vpack.c.b16 %v507, %v506
    %v511 = vpack.c.b16 %v508, %v508
    %v515 = vsel %vm80, %v511, 0
    %517 = vmatprep.subr.bf16.mxu0 0
    %518 = vmatpush1.bf16.msra.mxu0 %v509
    %519 = vmatprep.subr.bf16.mxu0 0
    %520 = vmatpush1.bf16.msra.mxu0 %v510
    %521 = vmatprep.subr.bf16.mxu0 0
    %522 = vmatpush1.bf16.msra.mxu0 %v515
    %523 = vmatprep.subr.bf16.mxu0 0
    %524 = vmatpush1.bf16.msra.mxu0 0
    %525 = vmatprep.subr.bf16.mxu0 0
    %526 = vmatpush1.bf16.msra.mxu0 0
    %527 = vmatprep.subr.bf16.mxu0 0
    %528 = vmatpush1.bf16.msra.mxu0 0
    %529 = vmatprep.subr.bf16.mxu0 0
    %530 = vmatpush1.bf16.msra.mxu0 0
    %531 = vmatprep.subr.bf16.mxu0 0
    %532 = vmatpush1.bf16.msra.mxu0 0
    %533 = vmatprep.subr.bf16.mxu0 0
    %534 = vmatpush1.bf16.msra.mxu0 0
    %535 = vmatprep.subr.bf16.mxu0 0
    %536 = vmatpush1.bf16.msra.mxu0 0
    %537 = vmatprep.subr.bf16.mxu0 0
    %538 = vmatpush1.bf16.msra.mxu0 0
    %539 = vmatprep.subr.bf16.mxu0 0
    %540 = vmatpush1.bf16.msra.mxu0 0
    %541 = vmatprep.subr.bf16.mxu0 0
    %542 = vmatpush1.bf16.msra.mxu0 0
    %543 = vmatprep.subr.bf16.mxu0 0
    %544 = vmatpush1.bf16.msra.mxu0 0
    %545 = vmatprep.subr.bf16.mxu0 0
    %546 = vmatpush1.bf16.msra.mxu0 0
    %547 = vmatprep.subr.bf16.mxu0 0
    %548 = vmatpush1.bf16.msra.mxu0 0
    %549 = vmatprep.mubr.bf16.mxu0 0
    %550 = vmatmul.mubr.bf16.gmra.mrb[0].mxu0 %v78
    %v551 = vpop.f32.mrb[0].mxu0
    %v552 = vadd.f32 0.0, %v551
    %v553 = vpop.f32.mrb[0].mxu0
    %v554 = vpop.f32.mrb[0].mxu0
    %v555 = vpop.f32.mrb[0].mxu0
    %556 = vdwg.mxu0
    %v557 = vsel %vm124, %v552, 0.0
    %v558 = vrot.slane %v557, 4
    %v559 = vadd.f32 %v557, %v558
    %v560 = vrot.slane %v559, 2
    %v561 = vadd.f32 %v559, %v560
    %v562 = vrot.slane %v561, 1
    %v563 = vadd.f32 %v561, %v562
    %v564 = vadd.f32 %v492, %v563
    %s565 = scalar_lea.vmem [#allocation2], 140
    %v566 = vld [vmem:[%s565] sm:$0xf]
    %v567 = vld [vmem:[%s565 + $0x4] sm:$0xf]
    %v568 = vld [vmem:[%s565 + $0x8] sm:$0xf]
    %v569 = vld [vmem:[%s565 + $0xc] sm:$0xf]
    %v570 = vld [vmem:[%s565 + $0x10] sm:$0xf]
    %v576 = vunpack.c.l.b16 %v566
    %v577 = vunpack.c.l.b16 %v567
    %v578 = vunpack.c.l.b16 %v568
    %v579 = vunpack.c.l.b16 %v569
    %v580 = vunpack.c.l.b16 %v570
    %v581 = vpack.c.b16 %v577, %v576
    %v582 = vpack.c.b16 %v579, %v578
    %v583 = vpack.c.b16 %v580, %v580
    %v587 = vsel %vm80, %v583, 0
    %589 = vmatprep.subr.bf16.mxu0 0
    %590 = vmatpush1.bf16.msra.mxu0 %v581
    %591 = vmatprep.subr.bf16.mxu0 0
    %592 = vmatpush1.bf16.msra.mxu0 %v582
    %593 = vmatprep.subr.bf16.mxu0 0
    %594 = vmatpush1.bf16.msra.mxu0 %v587
    %595 = vmatprep.subr.bf16.mxu0 0
    %596 = vmatpush1.bf16.msra.mxu0 0
    %597 = vmatprep.subr.bf16.mxu0 0
    %598 = vmatpush1.bf16.msra.mxu0 0
    %599 = vmatprep.subr.bf16.mxu0 0
    %600 = vmatpush1.bf16.msra.mxu0 0
    %601 = vmatprep.subr.bf16.mxu0 0
    %602 = vmatpush1.bf16.msra.mxu0 0
    %603 = vmatprep.subr.bf16.mxu0 0
    %604 = vmatpush1.bf16.msra.mxu0 0
    %605 = vmatprep.subr.bf16.mxu0 0
    %606 = vmatpush1.bf16.msra.mxu0 0
    %607 = vmatprep.subr.bf16.mxu0 0
    %608 = vmatpush1.bf16.msra.mxu0 0
    %609 = vmatprep.subr.bf16.mxu0 0
    %610 = vmatpush1.bf16.msra.mxu0 0
    %611 = vmatprep.subr.bf16.mxu0 0
    %612 = vmatpush1.bf16.msra.mxu0 0
    %613 = vmatprep.subr.bf16.mxu0 0
    %614 = vmatpush1.bf16.msra.mxu0 0
    %615 = vmatprep.subr.bf16.mxu0 0
    %616 = vmatpush1.bf16.msra.mxu0 0
    %617 = vmatprep.subr.bf16.mxu0 0
    %618 = vmatpush1.bf16.msra.mxu0 0
    %619 = vmatprep.subr.bf16.mxu0 0
    %620 = vmatpush1.bf16.msra.mxu0 0
    %621 = vmatprep.mubr.bf16.mxu0 0
    %622 = vmatmul.mubr.bf16.gmra.mrb[0].mxu0 %v78
    %v623 = vpop.f32.mrb[0].mxu0
    %v624 = vadd.f32 0.0, %v623
    %v625 = vpop.f32.mrb[0].mxu0
    %v626 = vpop.f32.mrb[0].mxu0
    %v627 = vpop.f32.mrb[0].mxu0
    %628 = vdwg.mxu0
    %v629 = vsel %vm124, %v624, 0.0
    %v630 = vrot.slane %v629, 4
    %v631 = vadd.f32 %v629, %v630
    %v632 = vrot.slane %v631, 2
    %v633 = vadd.f32 %v631, %v632
    %v634 = vrot.slane %v633, 1
    %v635 = vadd.f32 %v633, %v634
    %v636 = vadd.f32 %v564, %v635
    %s637 = scalar_lea.vmem [#allocation2], 160
    %v638 = vld [vmem:[%s637] sm:$0xf]
    %v639 = vld [vmem:[%s637 + $0x4] sm:$0xf]
    %v640 = vld [vmem:[%s637 + $0x8] sm:$0xf]
    %v641 = vld [vmem:[%s637 + $0xc] sm:$0xf]
    %v642 = vld [vmem:[%s637 + $0x10] sm:$0xf]
    %v648 = vunpack.c.l.b16 %v638
    %v649 = vunpack.c.l.b16 %v639
    %v650 = vunpack.c.l.b16 %v640
    %v651 = vunpack.c.l.b16 %v641
    %v652 = vunpack.c.l.b16 %v642
    %v653 = vpack.c.b16 %v649, %v648
    %v654 = vpack.c.b16 %v651, %v650
    %v655 = vpack.c.b16 %v652, %v652
    %v659 = vsel %vm80, %v655, 0
    %661 = vmatprep.subr.bf16.mxu0 0
    %662 = vmatpush1.bf16.msra.mxu0 %v653
    %663 = vmatprep.subr.bf16.mxu0 0
    %664 = vmatpush1.bf16.msra.mxu0 %v654
    %665 = vmatprep.subr.bf16.mxu0 0
    %666 = vmatpush1.bf16.msra.mxu0 %v659
    %667 = vmatprep.subr.bf16.mxu0 0
    %668 = vmatpush1.bf16.msra.mxu0 0
    %669 = vmatprep.subr.bf16.mxu0 0
    %670 = vmatpush1.bf16.msra.mxu0 0
    %671 = vmatprep.subr.bf16.mxu0 0
    %672 = vmatpush1.bf16.msra.mxu0 0
    %673 = vmatprep.subr.bf16.mxu0 0
    %674 = vmatpush1.bf16.msra.mxu0 0
    %675 = vmatprep.subr.bf16.mxu0 0
    %676 = vmatpush1.bf16.msra.mxu0 0
    %677 = vmatprep.subr.bf16.mxu0 0
    %678 = vmatpush1.bf16.msra.mxu0 0
    %679 = vmatprep.subr.bf16.mxu0 0
    %680 = vmatpush1.bf16.msra.mxu0 0
    %681 = vmatprep.subr.bf16.mxu0 0
    %682 = vmatpush1.bf16.msra.mxu0 0
    %683 = vmatprep.subr.bf16.mxu0 0
    %684 = vmatpush1.bf16.msra.mxu0 0
    %685 = vmatprep.subr.bf16.mxu0 0
    %686 = vmatpush1.bf16.msra.mxu0 0
    %687 = vmatprep.subr.bf16.mxu0 0
    %688 = vmatpush1.bf16.msra.mxu0 0
    %689 = vmatprep.subr.bf16.mxu0 0
    %690 = vmatpush1.bf16.msra.mxu0 0
    %691 = vmatprep.subr.bf16.mxu0 0
    %692 = vmatpush1.bf16.msra.mxu0 0
    %693 = vmatprep.mubr.bf16.mxu0 0
    %694 = vmatmul.mubr.bf16.gmra.mrb[0].mxu0 %v78
    %v695 = vpop.f32.mrb[0].mxu0
    %v696 = vadd.f32 0.0, %v695
    %v697 = vpop.f32.mrb[0].mxu0
    %v698 = vpop.f32.mrb[0].mxu0
    %v699 = vpop.f32.mrb[0].mxu0
    %700 = vdwg.mxu0
    %v701 = vsel %vm124, %v696, 0.0
    %v702 = vrot.slane %v701, 4
    %v703 = vadd.f32 %v701, %v702
    %v704 = vrot.slane %v703, 2
    %v705 = vadd.f32 %v703, %v704
    %v706 = vrot.slane %v705, 1
    %v707 = vadd.f32 %v705, %v706
    %v708 = vadd.f32 %v636, %v707
    %s709 = scalar_lea.vmem [#allocation2], 180
    %v710 = vld [vmem:[%s709] sm:$0xf]
    %v711 = vld [vmem:[%s709 + $0x4] sm:$0xf]
    %v712 = vld [vmem:[%s709 + $0x8] sm:$0xf]
    %v713 = vld [vmem:[%s709 + $0xc] sm:$0xf]
    %v714 = vld [vmem:[%s709 + $0x10] sm:$0xf]
    %v720 = vunpack.c.l.b16 %v710
    %v721 = vunpack.c.l.b16 %v711
    %v722 = vunpack.c.l.b16 %v712
    %v723 = vunpack.c.l.b16 %v713
    %v724 = vunpack.c.l.b16 %v714
    %v725 = vpack.c.b16 %v721, %v720
    %v726 = vpack.c.b16 %v723, %v722
    %v727 = vpack.c.b16 %v724, %v724
    %v731 = vsel %vm80, %v727, 0
    %733 = vmatprep.subr.bf16.mxu0 0
    %734 = vmatpush1.bf16.msra.mxu0 %v725
    %735 = vmatprep.subr.bf16.mxu0 0
    %736 = vmatpush1.bf16.msra.mxu0 %v726
    %737 = vmatprep.subr.bf16.mxu0 0
    %738 = vmatpush1.bf16.msra.mxu0 %v731
    %739 = vmatprep.subr.bf16.mxu0 0
    %740 = vmatpush1.bf16.msra.mxu0 0
    %741 = vmatprep.subr.bf16.mxu0 0
    %742 = vmatpush1.bf16.msra.mxu0 0
    %743 = vmatprep.subr.bf16.mxu0 0
    %744 = vmatpush1.bf16.msra.mxu0 0
    %745 = vmatprep.subr.bf16.mxu0 0
    %746 = vmatpush1.bf16.msra.mxu0 0
    %747 = vmatprep.subr.bf16.mxu0 0
    %748 = vmatpush1.bf16.msra.mxu0 0
    %749 = vmatprep.subr.bf16.mxu0 0
    %750 = vmatpush1.bf16.msra.mxu0 0
    %751 = vmatprep.subr.bf16.mxu0 0
    %752 = vmatpush1.bf16.msra.mxu0 0
    %753 = vmatprep.subr.bf16.mxu0 0
    %754 = vmatpush1.bf16.msra.mxu0 0
    %755 = vmatprep.subr.bf16.mxu0 0
    %756 = vmatpush1.bf16.msra.mxu0 0
    %757 = vmatprep.subr.bf16.mxu0 0
    %758 = vmatpush1.bf16.msra.mxu0 0
    %759 = vmatprep.subr.bf16.mxu0 0
    %760 = vmatpush1.bf16.msra.mxu0 0
    %761 = vmatprep.subr.bf16.mxu0 0
    %762 = vmatpush1.bf16.msra.mxu0 0
    %763 = vmatprep.subr.bf16.mxu0 0
    %764 = vmatpush1.bf16.msra.mxu0 0
    %765 = vmatprep.mubr.bf16.mxu0 0
    %766 = vmatmul.mubr.bf16.gmra.mrb[0].mxu0 %v78
    %v767 = vpop.f32.mrb[0].mxu0
    %v768 = vadd.f32 0.0, %v767
    %v769 = vpop.f32.mrb[0].mxu0
    %v770 = vpop.f32.mrb[0].mxu0
    %v771 = vpop.f32.mrb[0].mxu0
    %772 = vdwg.mxu0
    %v773 = vsel %vm124, %v768, 0.0
    %v774 = vrot.slane %v773, 4
    %v775 = vadd.f32 %v773, %v774
    %v776 = vrot.slane %v775, 2
    %v777 = vadd.f32 %v775, %v776
    %v778 = vrot.slane %v777, 1
    %v779 = vadd.f32 %v777, %v778
    %v780 = vadd.f32 %v708, %v779
    %s781 = scalar_lea.vmem [#allocation2], 200
    %v782 = vld [vmem:[%s781] sm:$0xf]
    %v783 = vld [vmem:[%s781 + $0x4] sm:$0xf]
    %v784 = vld [vmem:[%s781 + $0x8] sm:$0xf]
    %v785 = vld [vmem:[%s781 + $0xc] sm:$0xf]
    %v786 = vld [vmem:[%s781 + $0x10] sm:$0xf]
    %v792 = vunpack.c.l.b16 %v782
    %v793 = vunpack.c.l.b16 %v783
    %v794 = vunpack.c.l.b16 %v784
    %v795 = vunpack.c.l.b16 %v785
    %v796 = vunpack.c.l.b16 %v786
    %v797 = vpack.c.b16 %v793, %v792
    %v798 = vpack.c.b16 %v795, %v794
    %v799 = vpack.c.b16 %v796, %v796
    %v803 = vsel %vm80, %v799, 0
    %805 = vmatprep.subr.bf16.mxu0 0
    %806 = vmatpush1.bf16.msra.mxu0 %v797
    %807 = vmatprep.subr.bf16.mxu0 0
    %808 = vmatpush1.bf16.msra.mxu0 %v798
    %809 = vmatprep.subr.bf16.mxu0 0
    %810 = vmatpush1.bf16.msra.mxu0 %v803
    %811 = vmatprep.subr.bf16.mxu0 0
    %812 = vmatpush1.bf16.msra.mxu0 0
    %813 = vmatprep.subr.bf16.mxu0 0
    %814 = vmatpush1.bf16.msra.mxu0 0
    %815 = vmatprep.subr.bf16.mxu0 0
    %816 = vmatpush1.bf16.msra.mxu0 0
    %817 = vmatprep.subr.bf16.mxu0 0
    %818 = vmatpush1.bf16.msra.mxu0 0
    %819 = vmatprep.subr.bf16.mxu0 0
    %820 = vmatpush1.bf16.msra.mxu0 0
    %821 = vmatprep.subr.bf16.mxu0 0
    %822 = vmatpush1.bf16.msra.mxu0 0
    %823 = vmatprep.subr.bf16.mxu0 0
    %824 = vmatpush1.bf16.msra.mxu0 0
    %825 = vmatprep.subr.bf16.mxu0 0
    %826 = vmatpush1.bf16.msra.mxu0 0
    %827 = vmatprep.subr.bf16.mxu0 0
    %828 = vmatpush1.bf16.msra.mxu0 0
    %829 = vmatprep.subr.bf16.mxu0 0
    %830 = vmatpush1.bf16.msra.mxu0 0
    %831 = vmatprep.subr.bf16.mxu0 0
    %832 = vmatpush1.bf16.msra.mxu0 0
    %833 = vmatprep.subr.bf16.mxu0 0
    %834 = vmatpush1.bf16.msra.mxu0 0
    %835 = vmatprep.subr.bf16.mxu0 0
    %836 = vmatpush1.bf16.msra.mxu0 0
    %837 = vmatprep.mubr.bf16.mxu0 0
    %838 = vmatmul.mubr.bf16.gmra.mrb[0].mxu0 %v78
    %v839 = vpop.f32.mrb[0].mxu0
    %v840 = vadd.f32 0.0, %v839
    %v841 = vpop.f32.mrb[0].mxu0
    %v842 = vpop.f32.mrb[0].mxu0
    %v843 = vpop.f32.mrb[0].mxu0
    %844 = vdwg.mxu0
    %v845 = vsel %vm124, %v840, 0.0
    %v846 = vrot.slane %v845, 4
    %v847 = vadd.f32 %v845, %v846
    %v848 = vrot.slane %v847, 2
    %v849 = vadd.f32 %v847, %v848
    %v850 = vrot.slane %v849, 1
    %v851 = vadd.f32 %v849, %v850
    %v852 = vadd.f32 %v780, %v851
    %s853 = scalar_lea.vmem [#allocation2], 220
    %v854 = vld [vmem:[%s853] sm:$0xf]
    %v855 = vld [vmem:[%s853 + $0x4] sm:$0xf]
    %v856 = vld [vmem:[%s853 + $0x8] sm:$0xf]
    %v857 = vld [vmem:[%s853 + $0xc] sm:$0xf]
    %v858 = vld [vmem:[%s853 + $0x10] sm:$0xf]
    %v864 = vunpack.c.l.b16 %v854
    %v865 = vunpack.c.l.b16 %v855
    %v866 = vunpack.c.l.b16 %v856
    %v867 = vunpack.c.l.b16 %v857
    %v868 = vunpack.c.l.b16 %v858
    %v869 = vpack.c.b16 %v865, %v864
    %v870 = vpack.c.b16 %v867, %v866
    %v871 = vpack.c.b16 %v868, %v868
    %v875 = vsel %vm80, %v871, 0
    %877 = vmatprep.subr.bf16.mxu0 0
    %878 = vmatpush1.bf16.msra.mxu0 %v869
    %879 = vmatprep.subr.bf16.mxu0 0
    %880 = vmatpush1.bf16.msra.mxu0 %v870
    %881 = vmatprep.subr.bf16.mxu0 0
    %882 = vmatpush1.bf16.msra.mxu0 %v875
    %883 = vmatprep.subr.bf16.mxu0 0
    %884 = vmatpush1.bf16.msra.mxu0 0
    %885 = vmatprep.subr.bf16.mxu0 0
    %886 = vmatpush1.bf16.msra.mxu0 0
    %887 = vmatprep.subr.bf16.mxu0 0
    %888 = vmatpush1.bf16.msra.mxu0 0
    %889 = vmatprep.subr.bf16.mxu0 0
    %890 = vmatpush1.bf16.msra.mxu0 0
    %891 = vmatprep.subr.bf16.mxu0 0
    %892 = vmatpush1.bf16.msra.mxu0 0
    %893 = vmatprep.subr.bf16.mxu0 0
    %894 = vmatpush1.bf16.msra.mxu0 0
    %895 = vmatprep.subr.bf16.mxu0 0
    %896 = vmatpush1.bf16.msra.mxu0 0
    %897 = vmatprep.subr.bf16.mxu0 0
    %898 = vmatpush1.bf16.msra.mxu0 0
    %899 = vmatprep.subr.bf16.mxu0 0
    %900 = vmatpush1.bf16.msra.mxu0 0
    %901 = vmatprep.subr.bf16.mxu0 0
    %902 = vmatpush1.bf16.msra.mxu0 0
    %903 = vmatprep.subr.bf16.mxu0 0
    %904 = vmatpush1.bf16.msra.mxu0 0
    %905 = vmatprep.subr.bf16.mxu0 0
    %906 = vmatpush1.bf16.msra.mxu0 0
    %907 = vmatprep.subr.bf16.mxu0 0
    %908 = vmatpush1.bf16.msra.mxu0 0
    %909 = vmatprep.mubr.bf16.mxu0 0
    %910 = vmatmul.mubr.bf16.gmra.mrb[0].mxu0 %v78
    %v911 = vpop.f32.mrb[0].mxu0
    %v912 = vadd.f32 0.0, %v911
    %v913 = vpop.f32.mrb[0].mxu0
    %v914 = vpop.f32.mrb[0].mxu0
    %v915 = vpop.f32.mrb[0].mxu0
    %916 = vdwg.mxu0
    %v917 = vsel %vm124, %v912, 0.0
    %v918 = vrot.slane %v917, 4
    %v919 = vadd.f32 %v917, %v918
    %v920 = vrot.slane %v919, 2
    %v921 = vadd.f32 %v919, %v920
    %v922 = vrot.slane %v921, 1
    %v923 = vadd.f32 %v921, %v922
    %v924 = vadd.f32 %v852, %v923
    %s925 = scalar_lea.vmem [#allocation2], 240
    %v926 = vld [vmem:[%s925] sm:$0xf]
    %v927 = vld [vmem:[%s925 + $0x4] sm:$0xf]
    %v928 = vld [vmem:[%s925 + $0x8] sm:$0xf]
    %v929 = vld [vmem:[%s925 + $0xc] sm:$0xf]
    %v930 = vld [vmem:[%s925 + $0x10] sm:$0xf]
    %v936 = vunpack.c.l.b16 %v926
    %v937 = vunpack.c.l.b16 %v927
    %v938 = vunpack.c.l.b16 %v928
    %v939 = vunpack.c.l.b16 %v929
    %v940 = vunpack.c.l.b16 %v930
    %v941 = vpack.c.b16 %v937, %v936
    %v942 = vpack.c.b16 %v939, %v938
    %v943 = vpack.c.b16 %v940, %v940
    %v947 = vsel %vm80, %v943, 0
    %949 = vmatprep.subr.bf16.mxu0 0
    %950 = vmatpush1.bf16.msra.mxu0 %v941
    %951 = vmatprep.subr.bf16.mxu0 0
    %952 = vmatpush1.bf16.msra.mxu0 %v942
    %953 = vmatprep.subr.bf16.mxu0 0
    %954 = vmatpush1.bf16.msra.mxu0 %v947
    %955 = vmatprep.subr.bf16.mxu0 0
    %956 = vmatpush1.bf16.msra.mxu0 0
    %957 = vmatprep.subr.bf16.mxu0 0
    %958 = vmatpush1.bf16.msra.mxu0 0
    %959 = vmatprep.subr.bf16.mxu0 0
    %960 = vmatpush1.bf16.msra.mxu0 0
    %961 = vmatprep.subr.bf16.mxu0 0
    %962 = vmatpush1.bf16.msra.mxu0 0
    %963 = vmatprep.subr.bf16.mxu0 0
    %964 = vmatpush1.bf16.msra.mxu0 0
    %965 = vmatprep.subr.bf16.mxu0 0
    %966 = vmatpush1.bf16.msra.mxu0 0
    %967 = vmatprep.subr.bf16.mxu0 0
    %968 = vmatpush1.bf16.msra.mxu0 0
    %969 = vmatprep.subr.bf16.mxu0 0
    %970 = vmatpush1.bf16.msra.mxu0 0
    %971 = vmatprep.subr.bf16.mxu0 0
    %972 = vmatpush1.bf16.msra.mxu0 0
    %973 = vmatprep.subr.bf16.mxu0 0
    %974 = vmatpush1.bf16.msra.mxu0 0
    %975 = vmatprep.subr.bf16.mxu0 0
    %976 = vmatpush1.bf16.msra.mxu0 0
    %977 = vmatprep.subr.bf16.mxu0 0
    %978 = vmatpush1.bf16.msra.mxu0 0
    %979 = vmatprep.subr.bf16.mxu0 0
    %980 = vmatpush1.bf16.msra.mxu0 0
    %981 = vmatprep.mubr.bf16.mxu0 0
    %982 = vmatmul.mubr.bf16.gmra.mrb[0].mxu0 %v78
    %v983 = vpop.f32.mrb[0].mxu0
    %v984 = vadd.f32 0.0, %v983
    %v985 = vpop.f32.mrb[0].mxu0
    %v986 = vpop.f32.mrb[0].mxu0
    %v987 = vpop.f32.mrb[0].mxu0
    %988 = vdwg.mxu0
    %v989 = vsel %vm124, %v984, 0.0
    %v990 = vrot.slane %v989, 4
    %v991 = vadd.f32 %v989, %v990
    %v992 = vrot.slane %v991, 2
    %v993 = vadd.f32 %v991, %v992
    %v994 = vrot.slane %v993, 1
    %v995 = vadd.f32 %v993, %v994
    %v996 = vadd.f32 %v924, %v995
    %s997 = scalar_lea.vmem [#allocation2], 260
    %v998 = vld [vmem:[%s997] sm:$0xf]
    %v999 = vld [vmem:[%s997 + $0x4] sm:$0xf]
    %v1000 = vld [vmem:[%s997 + $0x8] sm:$0xf]
    %v1001 = vld [vmem:[%s997 + $0xc] sm:$0xf]
    %v1002 = vld [vmem:[%s997 + $0x10] sm:$0xf]
    %v1008 = vunpack.c.l.b16 %v998
    %v1009 = vunpack.c.l.b16 %v999
    %v1010 = vunpack.c.l.b16 %v1000
    %v1011 = vunpack.c.l.b16 %v1001
    %v1012 = vunpack.c.l.b16 %v1002
    %v1013 = vpack.c.b16 %v1009, %v1008
    %v1014 = vpack.c.b16 %v1011, %v1010
    %v1015 = vpack.c.b16 %v1012, %v1012
    %v1019 = vsel %vm80, %v1015, 0
    %1021 = vmatprep.subr.bf16.mxu0 0
    %1022 = vmatpush1.bf16.msra.mxu0 %v1013
    %1023 = vmatprep.subr.bf16.mxu0 0
    %1024 = vmatpush1.bf16.msra.mxu0 %v1014
    %1025 = vmatprep.subr.bf16.mxu0 0
    %1026 = vmatpush1.bf16.msra.mxu0 %v1019
    %1027 = vmatprep.subr.bf16.mxu0 0
    %1028 = vmatpush1.bf16.msra.mxu0 0
    %1029 = vmatprep.subr.bf16.mxu0 0
    %1030 = vmatpush1.bf16.msra.mxu0 0
    %1031 = vmatprep.subr.bf16.mxu0 0
    %1032 = vmatpush1.bf16.msra.mxu0 0
    %1033 = vmatprep.subr.bf16.mxu0 0
    %1034 = vmatpush1.bf16.msra.mxu0 0
    %1035 = vmatprep.subr.bf16.mxu0 0
    %1036 = vmatpush1.bf16.msra.mxu0 0
    %1037 = vmatprep.subr.bf16.mxu0 0
    %1038 = vmatpush1.bf16.msra.mxu0 0
    %1039 = vmatprep.subr.bf16.mxu0 0
    %1040 = vmatpush1.bf16.msra.mxu0 0
    %1041 = vmatprep.subr.bf16.mxu0 0
    %1042 = vmatpush1.bf16.msra.mxu0 0
    %1043 = vmatprep.subr.bf16.mxu0 0
    %1044 = vmatpush1.bf16.msra.mxu0 0
    %1045 = vmatprep.subr.bf16.mxu0 0
    %1046 = vmatpush1.bf16.msra.mxu0 0
    %1047 = vmatprep.subr.bf16.mxu0 0
    %1048 = vmatpush1.bf16.msra.mxu0 0
    %1049 = vmatprep.subr.bf16.mxu0 0
    %1050 = vmatpush1.bf16.msra.mxu0 0
    %1051 = vmatprep.subr.bf16.mxu0 0
    %1052 = vmatpush1.bf16.msra.mxu0 0
    %1053 = vmatprep.mubr.bf16.mxu0 0
    %1054 = vmatmul.mubr.bf16.gmra.mrb[0].mxu0 %v78
    %v1055 = vpop.f32.mrb[0].mxu0
    %v1056 = vadd.f32 0.0, %v1055
    %v1057 = vpop.f32.mrb[0].mxu0
    %v1058 = vpop.f32.mrb[0].mxu0
    %v1059 = vpop.f32.mrb[0].mxu0
    %1060 = vdwg.mxu0
    %v1061 = vsel %vm124, %v1056, 0.0
    %v1062 = vrot.slane %v1061, 4
    %v1063 = vadd.f32 %v1061, %v1062
    %v1064 = vrot.slane %v1063, 2
    %v1065 = vadd.f32 %v1063, %v1064
    %v1066 = vrot.slane %v1065, 1
    %v1067 = vadd.f32 %v1065, %v1066
    %v1068 = vadd.f32 %v996, %v1067
    %s1069 = scalar_lea.vmem [#allocation2], 280
    %v1070 = vld [vmem:[%s1069] sm:$0xf]
    %v1071 = vld [vmem:[%s1069 + $0x4] sm:$0xf]
    %v1072 = vld [vmem:[%s1069 + $0x8] sm:$0xf]
    %v1073 = vld [vmem:[%s1069 + $0xc] sm:$0xf]
    %v1074 = vld [vmem:[%s1069 + $0x10] sm:$0xf]
    %v1080 = vunpack.c.l.b16 %v1070
    %v1081 = vunpack.c.l.b16 %v1071
    %v1082 = vunpack.c.l.b16 %v1072
    %v1083 = vunpack.c.l.b16 %v1073
    %v1084 = vunpack.c.l.b16 %v1074
    %v1085 = vpack.c.b16 %v1081, %v1080
    %v1086 = vpack.c.b16 %v1083, %v1082
    %v1087 = vpack.c.b16 %v1084, %v1084
    %v1091 = vsel %vm80, %v1087, 0
    %1093 = vmatprep.subr.bf16.mxu0 0
    %1094 = vmatpush1.bf16.msra.mxu0 %v1085
    %1095 = vmatprep.subr.bf16.mxu0 0
    %1096 = vmatpush1.bf16.msra.mxu0 %v1086
    %1097 = vmatprep.subr.bf16.mxu0 0
    %1098 = vmatpush1.bf16.msra.mxu0 %v1091
    %1099 = vmatprep.subr.bf16.mxu0 0
    %1100 = vmatpush1.bf16.msra.mxu0 0
    %1101 = vmatprep.subr.bf16.mxu0 0
    %1102 = vmatpush1.bf16.msra.mxu0 0
    %1103 = vmatprep.subr.bf16.mxu0 0
    %1104 = vmatpush1.bf16.msra.mxu0 0
    %1105 = vmatprep.subr.bf16.mxu0 0
    %1106 = vmatpush1.bf16.msra.mxu0 0
    %1107 = vmatprep.subr.bf16.mxu0 0
    %1108 = vmatpush1.bf16.msra.mxu0 0
    %1109 = vmatprep.subr.bf16.mxu0 0
    %1110 = vmatpush1.bf16.msra.mxu0 0
    %1111 = vmatprep.subr.bf16.mxu0 0
    %1112 = vmatpush1.bf16.msra.mxu0 0
    %1113 = vmatprep.subr.bf16.mxu0 0
    %1114 = vmatpush1.bf16.msra.mxu0 0
    %1115 = vmatprep.subr.bf16.mxu0 0
    %1116 = vmatpush1.bf16.msra.mxu0 0
    %1117 = vmatprep.subr.bf16.mxu0 0
    %1118 = vmatpush1.bf16.msra.mxu0 0
    %1119 = vmatprep.subr.bf16.mxu0 0
    %1120 = vmatpush1.bf16.msra.mxu0 0
    %1121 = vmatprep.subr.bf16.mxu0 0
    %1122 = vmatpush1.bf16.msra.mxu0 0
    %1123 = vmatprep.subr.bf16.mxu0 0
    %1124 = vmatpush1.bf16.msra.mxu0 0
    %1125 = vmatprep.mubr.bf16.mxu0 0
    %1126 = vmatmul.mubr.bf16.gmra.mrb[0].mxu0 %v78
    %v1127 = vpop.f32.mrb[0].mxu0
    %v1128 = vadd.f32 0.0, %v1127
    %v1129 = vpop.f32.mrb[0].mxu0
    %v1130 = vpop.f32.mrb[0].mxu0
    %v1131 = vpop.f32.mrb[0].mxu0
    %1132 = vdwg.mxu0
    %v1133 = vsel %vm124, %v1128, 0.0
    %v1134 = vrot.slane %v1133, 4
    %v1135 = vadd.f32 %v1133, %v1134
    %v1136 = vrot.slane %v1135, 2
    %v1137 = vadd.f32 %v1135, %v1136
    %v1138 = vrot.slane %v1137, 1
    %v1139 = vadd.f32 %v1137, %v1138
    %v1140 = vadd.f32 %v1068, %v1139
    %s1141 = scalar_lea.vmem [#allocation2], 300
    %v1142 = vld [vmem:[%s1141] sm:$0xf]
    %v1143 = vld [vmem:[%s1141 + $0x4] sm:$0xf]
    %v1144 = vld [vmem:[%s1141 + $0x8] sm:$0xf]
    %v1145 = vld [vmem:[%s1141 + $0xc] sm:$0xf]
    %v1146 = vld [vmem:[%s1141 + $0x10] sm:$0xf]
    %v1152 = vunpack.c.l.b16 %v1142
    %v1153 = vunpack.c.l.b16 %v1143
    %v1154 = vunpack.c.l.b16 %v1144
    %v1155 = vunpack.c.l.b16 %v1145
    %v1156 = vunpack.c.l.b16 %v1146
    %v1157 = vpack.c.b16 %v1153, %v1152
    %v1158 = vpack.c.b16 %v1155, %v1154
    %v1159 = vpack.c.b16 %v1156, %v1156
    %v1163 = vsel %vm80, %v1159, 0
    %1165 = vmatprep.subr.bf16.mxu0 0
    %1166 = vmatpush1.bf16.msra.mxu0 %v1157
    %1167 = vmatprep.subr.bf16.mxu0 0
    %1168 = vmatpush1.bf16.msra.mxu0 %v1158
    %1169 = vmatprep.subr.bf16.mxu0 0
    %1170 = vmatpush1.bf16.msra.mxu0 %v1163
    %1171 = vmatprep.subr.bf16.mxu0 0
    %1172 = vmatpush1.bf16.msra.mxu0 0
    %1173 = vmatprep.subr.bf16.mxu0 0
    %1174 = vmatpush1.bf16.msra.mxu0 0
    %1175 = vmatprep.subr.bf16.mxu0 0
    %1176 = vmatpush1.bf16.msra.mxu0 0
    %1177 = vmatprep.subr.bf16.mxu0 0
    %1178 = vmatpush1.bf16.msra.mxu0 0
    %1179 = vmatprep.subr.bf16.mxu0 0
    %1180 = vmatpush1.bf16.msra.mxu0 0
    %1181 = vmatprep.subr.bf16.mxu0 0
    %1182 = vmatpush1.bf16.msra.mxu0 0
    %1183 = vmatprep.subr.bf16.mxu0 0
    %1184 = vmatpush1.bf16.msra.mxu0 0
    %1185 = vmatprep.subr.bf16.mxu0 0
    %1186 = vmatpush1.bf16.msra.mxu0 0
    %1187 = vmatprep.subr.bf16.mxu0 0
    %1188 = vmatpush1.bf16.msra.mxu0 0
    %1189 = vmatprep.subr.bf16.mxu0 0
    %1190 = vmatpush1.bf16.msra.mxu0 0
    %1191 = vmatprep.subr.bf16.mxu0 0
    %1192 = vmatpush1.bf16.msra.mxu0 0
    %1193 = vmatprep.subr.bf16.mxu0 0
    %1194 = vmatpush1.bf16.msra.mxu0 0
    %1195 = vmatprep.subr.bf16.mxu0 0
    %1196 = vmatpush1.bf16.msra.mxu0 0
    %1197 = vmatprep.mubr.bf16.mxu0 0
    %1198 = vmatmul.mubr.bf16.gmra.mrb[0].mxu0 %v78
    %v1199 = vpop.f32.mrb[0].mxu0
    %v1200 = vadd.f32 0.0, %v1199
    %v1201 = vpop.f32.mrb[0].mxu0
    %v1202 = vpop.f32.mrb[0].mxu0
    %v1203 = vpop.f32.mrb[0].mxu0
    %1204 = vdwg.mxu0
    %v1205 = vsel %vm124, %v1200, 0.0
    %v1206 = vrot.slane %v1205, 4
    %v1207 = vadd.f32 %v1205, %v1206
    %v1208 = vrot.slane %v1207, 2
    %v1209 = vadd.f32 %v1207, %v1208
    %v1210 = vrot.slane %v1209, 1
    %v1211 = vadd.f32 %v1209, %v1210
    %v1212 = vadd.f32 %v1140, %v1211
    %v1213 = vmul.f32 %v1212, 0.03125
    %v1214 = vsub.f32 %v119, %v1213
    %v1215 = vmul.f32 %v1214, %v1214
    %v1216 = vsel %vm124, %v1215, 0.0
    %v1217 = vrot.slane %v1216, 4
    %v1218 = vadd.f32 %v1216, %v1217
    %v1219 = vrot.slane %v1218, 2
    %v1220 = vadd.f32 %v1218, %v1219
    %v1221 = vrot.slane %v1220, 1
    %v1222 = vadd.f32 %v1220, %v1221
    %v1223 = vadd.f32 %v1222, 0.0
    %v1224 = vsub.f32 %v192, %v1213
    %v1225 = vmul.f32 %v1224, %v1224
    %v1226 = vsel %vm124, %v1225, 0.0
    %v1227 = vrot.slane %v1226, 4
    %v1228 = vadd.f32 %v1226, %v1227
    %v1229 = vrot.slane %v1228, 2
    %v1230 = vadd.f32 %v1228, %v1229
    %v1231 = vrot.slane %v1230, 1
    %v1232 = vadd.f32 %v1230, %v1231
    %v1233 = vadd.f32 %v1223, %v1232
    %v1234 = vsub.f32 %v264, %v1213
    %v1235 = vmul.f32 %v1234, %v1234
    %v1236 = vsel %vm124, %v1235, 0.0
    %v1237 = vrot.slane %v1236, 4
    %v1238 = vadd.f32 %v1236, %v1237
    %v1239 = vrot.slane %v1238, 2
    %v1240 = vadd.f32 %v1238, %v1239
    %v1241 = vrot.slane %v1240, 1
    %v1242 = vadd.f32 %v1240, %v1241
    %v1243 = vadd.f32 %v1233, %v1242
    %v1244 = vsub.f32 %v336, %v1213
    %v1245 = vmul.f32 %v1244, %v1244
    %v1246 = vsel %vm124, %v1245, 0.0
    %v1247 = vrot.slane %v1246, 4
    %v1248 = vadd.f32 %v1246, %v1247
    %v1249 = vrot.slane %v1248, 2
    %v1250 = vadd.f32 %v1248, %v1249
    %v1251 = vrot.slane %v1250, 1
    %v1252 = vadd.f32 %v1250, %v1251
    %v1253 = vadd.f32 %v1243, %v1252
    %v1254 = vsub.f32 %v408, %v1213
    %v1255 = vmul.f32 %v1254, %v1254
    %v1256 = vsel %vm124, %v1255, 0.0
    %v1257 = vrot.slane %v1256, 4
    %v1258 = vadd.f32 %v1256, %v1257
    %v1259 = vrot.slane %v1258, 2
    %v1260 = vadd.f32 %v1258, %v1259
    %v1261 = vrot.slane %v1260, 1
    %v1262 = vadd.f32 %v1260, %v1261
    %v1263 = vadd.f32 %v1253, %v1262
    %v1264 = vsub.f32 %v480, %v1213
    %v1265 = vmul.f32 %v1264, %v1264
    %v1266 = vsel %vm124, %v1265, 0.0
    %v1267 = vrot.slane %v1266, 4
    %v1268 = vadd.f32 %v1266, %v1267
    %v1269 = vrot.slane %v1268, 2
    %v1270 = vadd.f32 %v1268, %v1269
    %v1271 = vrot.slane %v1270, 1
    %v1272 = vadd.f32 %v1270, %v1271
    %v1273 = vadd.f32 %v1263, %v1272
    %v1274 = vsub.f32 %v552, %v1213
    %v1275 = vmul.f32 %v1274, %v1274
    %v1276 = vsel %vm124, %v1275, 0.0
    %v1277 = vrot.slane %v1276, 4
    %v1278 = vadd.f32 %v1276, %v1277
    %v1279 = vrot.slane %v1278, 2
    %v1280 = vadd.f32 %v1278, %v1279
    %v1281 = vrot.slane %v1280, 1
    %v1282 = vadd.f32 %v1280, %v1281
    %v1283 = vadd.f32 %v1273, %v1282
    %v1284 = vsub.f32 %v624, %v1213
    %v1285 = vmul.f32 %v1284, %v1284
    %v1286 = vsel %vm124, %v1285, 0.0
    %v1287 = vrot.slane %v1286, 4
    %v1288 = vadd.f32 %v1286, %v1287
    %v1289 = vrot.slane %v1288, 2
    %v1290 = vadd.f32 %v1288, %v1289
    %v1291 = vrot.slane %v1290, 1
    %v1292 = vadd.f32 %v1290, %v1291
    %v1293 = vadd.f32 %v1283, %v1292
    %v1294 = vsub.f32 %v696, %v1213
    %v1295 = vmul.f32 %v1294, %v1294
    %v1296 = vsel %vm124, %v1295, 0.0
    %v1297 = vrot.slane %v1296, 4
    %v1298 = vadd.f32 %v1296, %v1297
    %v1299 = vrot.slane %v1298, 2
    %v1300 = vadd.f32 %v1298, %v1299
    %v1301 = vrot.slane %v1300, 1
    %v1302 = vadd.f32 %v1300, %v1301
    %v1303 = vadd.f32 %v1293, %v1302
    %v1304 = vsub.f32 %v768, %v1213
    %v1305 = vmul.f32 %v1304, %v1304
    %v1306 = vsel %vm124, %v1305, 0.0
    %v1307 = vrot.slane %v1306, 4
    %v1308 = vadd.f32 %v1306, %v1307
    %v1309 = vrot.slane %v1308, 2
    %v1310 = vadd.f32 %v1308, %v1309
    %v1311 = vrot.slane %v1310, 1
    %v1312 = vadd.f32 %v1310, %v1311
    %v1313 = vadd.f32 %v1303, %v1312
    %v1314 = vsub.f32 %v840, %v1213
    %v1315 = vmul.f32 %v1314, %v1314
    %v1316 = vsel %vm124, %v1315, 0.0
    %v1317 = vrot.slane %v1316, 4
    %v1318 = vadd.f32 %v1316, %v1317
    %v1319 = vrot.slane %v1318, 2
    %v1320 = vadd.f32 %v1318, %v1319
    %v1321 = vrot.slane %v1320, 1
    %v1322 = vadd.f32 %v1320, %v1321
    %v1323 = vadd.f32 %v1313, %v1322
    %v1324 = vsub.f32 %v912, %v1213
    %v1325 = vmul.f32 %v1324, %v1324
    %v1326 = vsel %vm124, %v1325, 0.0
    %v1327 = vrot.slane %v1326, 4
    %v1328 = vadd.f32 %v1326, %v1327
    %v1329 = vrot.slane %v1328, 2
    %v1330 = vadd.f32 %v1328, %v1329
    %v1331 = vrot.slane %v1330, 1
    %v1332 = vadd.f32 %v1330, %v1331
    %v1333 = vadd.f32 %v1323, %v1332
    %v1334 = vsub.f32 %v984, %v1213
    %v1335 = vmul.f32 %v1334, %v1334
    %v1336 = vsel %vm124, %v1335, 0.0
    %v1337 = vrot.slane %v1336, 4
    %v1338 = vadd.f32 %v1336, %v1337
    %v1339 = vrot.slane %v1338, 2
    %v1340 = vadd.f32 %v1338, %v1339
    %v1341 = vrot.slane %v1340, 1
    %v1342 = vadd.f32 %v1340, %v1341
    %v1343 = vadd.f32 %v1333, %v1342
    %v1344 = vsub.f32 %v1056, %v1213
    %v1345 = vmul.f32 %v1344, %v1344
    %v1346 = vsel %vm124, %v1345, 0.0
    %v1347 = vrot.slane %v1346, 4
    %v1348 = vadd.f32 %v1346, %v1347
    %v1349 = vrot.slane %v1348, 2
    %v1350 = vadd.f32 %v1348, %v1349
    %v1351 = vrot.slane %v1350, 1
    %v1352 = vadd.f32 %v1350, %v1351
    %v1353 = vadd.f32 %v1343, %v1352
    %v1354 = vsub.f32 %v1128, %v1213
    %v1355 = vmul.f32 %v1354, %v1354
    %v1356 = vsel %vm124, %v1355, 0.0
    %v1357 = vrot.slane %v1356, 4
    %v1358 = vadd.f32 %v1356, %v1357
    %v1359 = vrot.slane %v1358, 2
    %v1360 = vadd.f32 %v1358, %v1359
    %v1361 = vrot.slane %v1360, 1
    %v1362 = vadd.f32 %v1360, %v1361
    %v1363 = vadd.f32 %v1353, %v1362
    %v1364 = vsub.f32 %v1200, %v1213
    %v1365 = vmul.f32 %v1364, %v1364
    %v1366 = vsel %vm124, %v1365, 0.0
    %v1367 = vrot.slane %v1366, 4
    %v1368 = vadd.f32 %v1366, %v1367
    %v1369 = vrot.slane %v1368, 2
    %v1370 = vadd.f32 %v1368, %v1369
    %v1371 = vrot.slane %v1370, 1
    %v1372 = vadd.f32 %v1370, %v1371
    %v1373 = vadd.f32 %v1363, %v1372
    %v1374 = vmul.f32 %v1373, 0.03125
    %v1375 = vadd.f32 %v1374, 1e-05
    %v1376 = vrsqrt.pop %v1375
    %v1377 = vld [vmem:[#allocation4] sm:$0x1]
    %v1378 = vmul.f32 %v1377, %v1376
    %v1379 = vld [vmem:[#allocation6] sm:$0x1]
    %v1380 = vmul.f32 %v1213, %v1378
    %v1381 = vsub.f32 %v1379, %v1380
    %v1383 = vlaneseq
    %v1384 = vshrl.u32 %v1383, 7
    %v1385 = vsub.s32 0, %v1384
    %v1386 = vrot.slane %v1378, %v1385
    %v1388 = vmul.f32 %v119, %v1386
    %v1390 = vlaneseq
    %v1391 = vshrl.u32 %v1390, 7
    %v1392 = vsub.s32 0, %v1391
    %v1393 = vrot.slane %v1381, %v1392
    %v1395 = vadd.f32 %v1388, %v1393
    %v1396 = vmax.f32 %v1395, 0.0
    %v1397 = vpack.c.bf16 %v1396, %v1396
    %vm1398 = vcmask 516096
    %1399 = vst.msk [vmem:[%s4] sm:$0x1] %vm1398, %v1397
    %v1400 = vmul.f32 %v192, %v1386
    %v1401 = vadd.f32 %v1400, %v1393
    %v1402 = vmax.f32 %v1401, 0.0
    %v1403 = vpack.c.bf16 %v1402, %v1402
    %s1404 = scalar_lea.vmem %s4, 1
    %1405 = vst.msk [vmem:[%s1404] sm:$0x1] %vm1398, %v1403
    %v1406 = vmul.f32 %v264, %v1386
    %v1407 = vadd.f32 %v1406, %v1393
    %v1408 = vmax.f32 %v1407, 0.0
    %v1409 = vpack.c.bf16 %v1408, %v1408
    %s1410 = scalar_lea.vmem %s4, 2
    %1411 = vst.msk [vmem:[%s1410] sm:$0x1] %vm1398, %v1409
    %v1412 = vmul.f32 %v336, %v1386
    %v1413 = vadd.f32 %v1412, %v1393
    %v1414 = vmax.f32 %v1413, 0.0
    %v1415 = vpack.c.bf16 %v1414, %v1414
    %s1416 = scalar_lea.vmem %s4, 3
    %1417 = vst.msk [vmem:[%s1416] sm:$0x1] %vm1398, %v1415
    %v1418 = vmul.f32 %v408, %v1386
    %v1419 = vadd.f32 %v1418, %v1393
    %v1420 = vmax.f32 %v1419, 0.0
    %v1421 = vpack.c.bf16 %v1420, %v1420
    %s1422 = scalar_lea.vmem %s4, 4
    %1423 = vst.msk [vmem:[%s1422] sm:$0x1] %vm1398, %v1421
    %v1424 = vmul.f32 %v480, %v1386
    %v1425 = vadd.f32 %v1424, %v1393
    %v1426 = vmax.f32 %v1425, 0.0
    %v1427 = vpack.c.bf16 %v1426, %v1426
    %s1428 = scalar_lea.vmem %s4, 5
    %1429 = vst.msk [vmem:[%s1428] sm:$0x1] %vm1398, %v1427
    %v1430 = vmul.f32 %v552, %v1386
    %v1431 = vadd.f32 %v1430, %v1393
    %v1432 = vmax.f32 %v1431, 0.0
    %v1433 = vpack.c.bf16 %v1432, %v1432
    %s1434 = scalar_lea.vmem %s4, 6
    %1435 = vst.msk [vmem:[%s1434] sm:$0x1] %vm1398, %v1433
    %v1436 = vmul.f32 %v624, %v1386
    %v1437 = vadd.f32 %v1436, %v1393
    %v1438 = vmax.f32 %v1437, 0.0
    %v1439 = vpack.c.bf16 %v1438, %v1438
    %s1440 = scalar_lea.vmem %s4, 7
    %1441 = vst.msk [vmem:[%s1440] sm:$0x1] %vm1398, %v1439
    %v1442 = vmul.f32 %v696, %v1386
    %v1443 = vadd.f32 %v1442, %v1393
    %v1444 = vmax.f32 %v1443, 0.0
    %v1445 = vpack.c.bf16 %v1444, %v1444
    %s1446 = scalar_lea.vmem %s4, 8
    %1447 = vst.msk [vmem:[%s1446] sm:$0x1] %vm1398, %v1445
    %v1448 = vmul.f32 %v768, %v1386
    %v1449 = vadd.f32 %v1448, %v1393
    %v1450 = vmax.f32 %v1449, 0.0
    %v1451 = vpack.c.bf16 %v1450, %v1450
    %s1452 = scalar_lea.vmem %s4, 9
    %1453 = vst.msk [vmem:[%s1452] sm:$0x1] %vm1398, %v1451
    %v1454 = vmul.f32 %v840, %v1386
    %v1455 = vadd.f32 %v1454, %v1393
    %v1456 = vmax.f32 %v1455, 0.0
    %v1457 = vpack.c.bf16 %v1456, %v1456
    %s1458 = scalar_lea.vmem %s4, 10
    %1459 = vst.msk [vmem:[%s1458] sm:$0x1] %vm1398, %v1457
    %v1460 = vmul.f32 %v912, %v1386
    %v1461 = vadd.f32 %v1460, %v1393
    %v1462 = vmax.f32 %v1461, 0.0
    %v1463 = vpack.c.bf16 %v1462, %v1462
    %s1464 = scalar_lea.vmem %s4, 11
    %1465 = vst.msk [vmem:[%s1464] sm:$0x1] %vm1398, %v1463
    %v1466 = vmul.f32 %v984, %v1386
    %v1467 = vadd.f32 %v1466, %v1393
    %v1468 = vmax.f32 %v1467, 0.0
    %v1469 = vpack.c.bf16 %v1468, %v1468
    %s1470 = scalar_lea.vmem %s4, 12
    %1471 = vst.msk [vmem:[%s1470] sm:$0x1] %vm1398, %v1469
    %v1472 = vmul.f32 %v1056, %v1386
    %v1473 = vadd.f32 %v1472, %v1393
    %v1474 = vmax.f32 %v1473, 0.0
    %v1475 = vpack.c.bf16 %v1474, %v1474
    %s1476 = scalar_lea.vmem %s4, 13
    %1477 = vst.msk [vmem:[%s1476] sm:$0x1] %vm1398, %v1475
    %v1478 = vmul.f32 %v1128, %v1386
    %v1479 = vadd.f32 %v1478, %v1393
    %v1480 = vmax.f32 %v1479, 0.0
    %v1481 = vpack.c.bf16 %v1480, %v1480
    %s1482 = scalar_lea.vmem %s4, 14
    %1483 = vst.msk [vmem:[%s1482] sm:$0x1] %vm1398, %v1481
    %v1484 = vmul.f32 %v1200, %v1386
    %v1485 = vadd.f32 %v1484, %v1393
    %v1486 = vmax.f32 %v1485, 0.0
    %v1487 = vpack.c.bf16 %v1486, %v1486
    %s1488 = scalar_lea.vmem %s4, 15
    %1489 = vst.msk [vmem:[%s1488] sm:$0x1] %vm1398, %v1487
    // Predicated region
    $region30: #{generator_forward.5} parent=1 // pred_check
      _
    $region31: #{generator_forward.5} parent=1 // pred_check_branch
      %1491 = sbr.rel (0) target = $region33
    $region32: #{generator_forward.5} parent=1 // pred_region
      _
    $region33: #{generator_forward.5} parent=1 // pred_fallthru
      _
    // Predicated region
    $region34: #{generator_forward.5} parent=1 // pred_check
      _
    $region35: #{generator_forward.5} parent=1 // pred_check_branch
      %1493 = sbr.rel (0) target = $region37
    $region36: #{generator_forward.5} parent=1 // pred_region
      _
    $region37: #{generator_forward.5} parent=1 // pred_fallthru
      _
    %1494 = vsyncpa [#allocation3], 1
    %1495 = vsyncpa [#allocation5], 1

// kernel: generator_forward.6
$region0: #{generator_forward.6}
  #allocation0 [shape = 'u32[]', space=smem, size = 0x4, offset = 0x4, fixed_abs, tag = 'smem constant byte address 0x4 - core index']
  #allocation1 [shape = 'u32[144,128]{1,0:T(1,128)}', space=vmem, size = 0x12000, scoped, tag = 'internal scratch']
  #allocation2 [shape = 'f32[4,32,32]{2,1,0:T(8,128)}', space=vmem, size = 0x10000, scoped, tag = 'scratch operand']
  %s0 = inlined_call_operand.vmem [shape: bf16[4,256,32], index: 0, kind: input, shape index: {}]
  %s1 = inlined_call_operand.hbm [shape: bf16[4,32,256], index: 1, kind: input, shape index: {}]
  %s2 = inlined_call_operand.vmem [shape: f32[32,1], index: 2, kind: input, shape index: {}]
  %s3 = inlined_call_operand.vmem [shape: f32[32,1], index: 3, kind: input, shape index: {}]
  %s4 = inlined_call_operand.vmem [shape: bf16[4,32,32], index: 4, kind: output, shape index: {}]
  %s5 = sld [smem:[#allocation0]]
  $region30: #{generator_forward.6} parent=0
    _
  %s7 = ssub.s32 1, %s5
  %s8 = scalar_select 0, %s7, %s5
  $region1: #{generator_forward.6} parent=0
    #allocation3 [shape = 'u8[65536]{0}', space=vmem, size = 0x10000, scoped, tag = 'input window, operand 1, single buffered']
    #allocation4 [shape = 's32[1]{0}', space=sflag, size = 0x4, scoped, tag = 'scoped memory for generator_forward.6']
    %9 = vsyncpa [#allocation4], 0
    // Predicated region
    $region2: #{generator_forward.6} parent=1 // pred_check
      _
    $region3: #{generator_forward.6} parent=1 // pred_check_branch
      %11 = sbr.rel (0) target = $region5
    $region4: #{generator_forward.6} parent=1 // pred_region
      _
    $region5: #{generator_forward.6} parent=1 // pred_fallthru
      _
    // Predicated region
    $region6: #{generator_forward.6} parent=1 // pred_check
      _
    $region7: #{generator_forward.6} parent=1 // pred_check_branch
      %13 = sbr.rel (0) target = $region9
    $region8: #{generator_forward.6} parent=1 // pred_region
      %s15 = ssub.s32 2048, 2048
      %16 = vsyncadd [#allocation4], %s15
      %s17 = sshll.u32 [#allocation3], 4
      %s18 = int_to_ptr.vmem [resolvable:$true] %s17
      %23 = dma.hbm_to_vmem [thread:$0]  %s1, 2048, %s18, [#allocation4], 128, 128, 8
    $region9: #{generator_forward.6} parent=1 // pred_fallthru
      _
    // Predicated region
    $region10: #{generator_forward.6} parent=1 // pred_check
      _
    $region11: #{generator_forward.6} parent=1 // pred_check_branch
      %25 = sbr.rel (0) target = $region13
    $region12: #{generator_forward.6} parent=1 // pred_region
      _
    $region13: #{generator_forward.6} parent=1 // pred_fallthru
      _
    // Predicated region
    $region14: #{generator_forward.6} parent=1 // pred_check
      _
    $region15: #{generator_forward.6} parent=1 // pred_check_branch
      %27 = sbr.rel (0) target = $region17
    $region16: #{generator_forward.6} parent=1 // pred_region
      _
    $region17: #{generator_forward.6} parent=1 // pred_fallthru
      _
    // Predicated region
    $region18: #{generator_forward.6} parent=1 // pred_check
      _
    $region19: #{generator_forward.6} parent=1 // pred_check_branch
      %29 = sbr.rel (0) target = $region21
    $region20: #{generator_forward.6} parent=1 // pred_region
      %30 = dma.done [#allocation4], 2048
    $region21: #{generator_forward.6} parent=1 // pred_fallthru
      _
    %v32 = vld [vmem:[#allocation3] sm:$0xff]
    %v33 = vld [vmem:[#allocation3 + $0x8] sm:$0xff]
    %v34 = vld [vmem:[#allocation3 + $0x10] sm:$0xff]
    %v35 = vld [vmem:[#allocation3 + $0x18] sm:$0xff]
    %v36 = vld [vmem:[%s0] sm:$0xf]
    %v37 = vld [vmem:[%s0 + $0x4] sm:$0xf]
    %v38 = vld [vmem:[%s0 + $0x8] sm:$0xf]
    %v39 = vld [vmem:[%s0 + $0xc] sm:$0xf]
    %v40 = vld [vmem:[%s0 + $0x10] sm:$0xf]
    %v41 = vld [vmem:[%s0 + $0x14] sm:$0xf]
    %v42 = vld [vmem:[%s0 + $0x18] sm:$0xf]
    %v43 = vld [vmem:[%s0 + $0x1c] sm:$0xf]
    %v44 = vld [vmem:[%s0 + $0x20] sm:$0xf]
    %v45 = vld [vmem:[%s0 + $0x24] sm:$0xf]
    %v46 = vld [vmem:[%s0 + $0x28] sm:$0xf]
    %v47 = vld [vmem:[%s0 + $0x2c] sm:$0xf]
    %v48 = vld [vmem:[%s0 + $0x30] sm:$0xf]
    %v49 = vld [vmem:[%s0 + $0x34] sm:$0xf]
    %v50 = vld [vmem:[%s0 + $0x38] sm:$0xf]
    %v51 = vld [vmem:[%s0 + $0x3c] sm:$0xf]
    %v52 = vld [vmem:[%s0 + $0x40] sm:$0xf]
    %v53 = vld [vmem:[%s0 + $0x44] sm:$0xf]
    %v54 = vld [vmem:[%s0 + $0x48] sm:$0xf]
    %v55 = vld [vmem:[%s0 + $0x4c] sm:$0xf]
    %v56 = vld [vmem:[%s0 + $0x50] sm:$0xf]
    %v57 = vld [vmem:[%s0 + $0x54] sm:$0xf]
    %v58 = vld [vmem:[%s0 + $0x58] sm:$0xf]
    %v59 = vld [vmem:[%s0 + $0x5c] sm:$0xf]
    %v60 = vld [vmem:[%s0 + $0x60] sm:$0xf]
    %v61 = vld [vmem:[%s0 + $0x64] sm:$0xf]
    %v62 = vld [vmem:[%s0 + $0x68] sm:$0xf]
    %v63 = vld [vmem:[%s0 + $0x6c] sm:$0xf]
    %v64 = vld [vmem:[%s0 + $0x70] sm:$0xf]
    %v65 = vld [vmem:[%s0 + $0x74] sm:$0xf]
    %v66 = vld [vmem:[%s0 + $0x78] sm:$0xf]
    %v67 = vld [vmem:[%s0 + $0x7c] sm:$0xf]
    %v72 = vunpack.c.l.b16 %v32
    %v73 = vunpack.c.h.b16 %v32
    %v74 = vunpack.c.l.b16 %v33
    %v75 = vunpack.c.h.b16 %v33
    %v76 = vunpack.c.l.b16 %v34
    %v77 = vunpack.c.h.b16 %v34
    %v78 = vunpack.c.l.b16 %v35
    %v79 = vunpack.c.h.b16 %v35
    %v80 = vpack.c.b16 %v74, %v72
    %v81 = vpack.c.b16 %v75, %v73
    %v82 = vpack.c.b16 %v78, %v76
    %v83 = vpack.c.b16 %v79, %v77
    %v120 = vunpack.c.l.b16 %v36
    %v121 = vunpack.c.l.b16 %v37
    %v122 = vunpack.c.l.b16 %v38
    %v123 = vunpack.c.l.b16 %v39
    %v124 = vunpack.c.l.b16 %v40
    %v125 = vunpack.c.l.b16 %v41
    %v126 = vunpack.c.l.b16 %v42
    %v127 = vunpack.c.l.b16 %v43
    %v128 = vunpack.c.l.b16 %v44
    %v129 = vunpack.c.l.b16 %v45
    %v130 = vunpack.c.l.b16 %v46
    %v131 = vunpack.c.l.b16 %v47
    %v132 = vunpack.c.l.b16 %v48
    %v133 = vunpack.c.l.b16 %v49
    %v134 = vunpack.c.l.b16 %v50
    %v135 = vunpack.c.l.b16 %v51
    %v136 = vunpack.c.l.b16 %v52
    %v137 = vunpack.c.l.b16 %v53
    %v138 = vunpack.c.l.b16 %v54
    %v139 = vunpack.c.l.b16 %v55
    %v140 = vunpack.c.l.b16 %v56
    %v141 = vunpack.c.l.b16 %v57
    %v142 = vunpack.c.l.b16 %v58
    %v143 = vunpack.c.l.b16 %v59
    %v144 = vunpack.c.l.b16 %v60
    %v145 = vunpack.c.l.b16 %v61
    %v146 = vunpack.c.l.b16 %v62
    %v147 = vunpack.c.l.b16 %v63
    %v148 = vunpack.c.l.b16 %v64
    %v149 = vunpack.c.l.b16 %v65
    %v150 = vunpack.c.l.b16 %v66
    %v151 = vunpack.c.l.b16 %v67
    %v152 = vpack.c.b16 %v121, %v120
    %v153 = vpack.c.b16 %v123, %v122
    %v154 = vpack.c.b16 %v125, %v124
    %v155 = vpack.c.b16 %v127, %v126
    %v156 = vpack.c.b16 %v129, %v128
    %v157 = vpack.c.b16 %v131, %v130
    %v158 = vpack.c.b16 %v133, %v132
    %v159 = vpack.c.b16 %v135, %v134
    %v160 = vpack.c.b16 %v137, %v136
    %v161 = vpack.c.b16 %v139, %v138
    %v162 = vpack.c.b16 %v141, %v140
    %v163 = vpack.c.b16 %v143, %v142
    %v164 = vpack.c.b16 %v145, %v144
    %v165 = vpack.c.b16 %v147, %v146
    %v166 = vpack.c.b16 %v149, %v148
    %v167 = vpack.c.b16 %v151, %v150
    %184 = vmatprep.subr.bf16.mxu0 0
    %185 = vmatpush1.bf16.msra.mxu0 %v152
    %186 = vmatprep.subr.bf16.mxu0 0
    %187 = vmatpush1.bf16.msra.mxu0 %v153
    %188 = vmatprep.subr.bf16.mxu0 0
    %189 = vmatpush1.bf16.msra.mxu0 %v154
    %190 = vmatprep.subr.bf16.mxu0 0
    %191 = vmatpush1.bf16.msra.mxu0 %v155
    %192 = vmatprep.subr.bf16.mxu0 0
    %193 = vmatpush1.bf16.msra.mxu0 %v156
    %194 = vmatprep.subr.bf16.mxu0 0
    %195 = vmatpush1.bf16.msra.mxu0 %v157
    %196 = vmatprep.subr.bf16.mxu0 0
    %197 = vmatpush1.bf16.msra.mxu0 %v158
    %198 = vmatprep.subr.bf16.mxu0 0
    %199 = vmatpush1.bf16.msra.mxu0 %v159
    %200 = vmatprep.subr.bf16.mxu0 0
    %201 = vmatpush1.bf16.msra.mxu0 %v160
    %202 = vmatprep.subr.bf16.mxu0 0
    %203 = vmatpush1.bf16.msra.mxu0 %v161
    %204 = vmatprep.subr.bf16.mxu0 0
    %205 = vmatpush1.bf16.msra.mxu0 %v162
    %206 = vmatprep.subr.bf16.mxu0 0
    %207 = vmatpush1.bf16.msra.mxu0 %v163
    %208 = vmatprep.subr.bf16.mxu0 0
    %209 = vmatpush1.bf16.msra.mxu0 %v164
    %210 = vmatprep.subr.bf16.mxu0 0
    %211 = vmatpush1.bf16.msra.mxu0 %v165
    %212 = vmatprep.subr.bf16.mxu0 0
    %213 = vmatpush1.bf16.msra.mxu0 %v166
    %214 = vmatprep.subr.bf16.mxu0 0
    %215 = vmatpush1.bf16.msra.mxu0 %v167
    %216 = vmatprep.mubr.bf16.mxu0 %v81
    %217 = vmatmul.mubr.bf16.gmra.mrb[0].mxu0 %v80
    %v218 = vpop.f32.mrb[0].mxu0
    %v219 = vadd.f32 0.0, %v218
    %v220 = vpop.f32.mrb[0].mxu0
    %v221 = vpop.f32.mrb[0].mxu0
    %v222 = vadd.f32 0.0, %v221
    %v223 = vpop.f32.mrb[0].mxu0
    %224 = vmatprep.mubr.bf16.mxu0 %v83
    %225 = vmatmul.mubr.bf16.gmra.mrb[0].mxu0 %v82
    %v226 = vpop.f32.mrb[0].mxu0
    %v227 = vadd.f32 0.0, %v226
    %v228 = vpop.f32.mrb[0].mxu0
    %v229 = vpop.f32.mrb[0].mxu0
    %v230 = vadd.f32 0.0, %v229
    %v231 = vpop.f32.mrb[0].mxu0
    %232 = vdwg.mxu0
    %vm233 = vcmask 261120
    %234 = vst.msk [vmem:[#allocation2] sm:$0xff] %vm233, %v219
    %235 = vst.msk [vmem:[#allocation2 + $0x8] sm:$0xff] %vm233, %v222
    %236 = vst.msk [vmem:[#allocation2 + $0x10] sm:$0xff] %vm233, %v227
    %237 = vst.msk [vmem:[#allocation2 + $0x18] sm:$0xff] %vm233, %v230
    %v238 = vsel %vm233, %v219, 0.0
    %239 = vadd.xlane.f32.xlu0 %v238
    %v240 = vpop.xlane.xlu0 %239
    %v241 = vsel %vm233, %v222, 0.0
    %242 = vadd.xlane.f32.xlu0 %v241
    %v243 = vpop.xlane.xlu0 %242
    %v244 = vsel %vm233, %v227, 0.0
    %245 = vadd.xlane.f32.xlu0 %v244
    %v246 = vpop.xlane.xlu0 %245
    %v247 = vsel %vm233, %v230, 0.0
    %248 = vadd.xlane.f32.xlu0 %v247
    %v249 = vpop.xlane.xlu0 %248
    %v250 = vadd.f32 %v240, 0.0
    %v251 = vadd.f32 %v243, 0.0
    %v252 = vadd.f32 %v246, 0.0
    %v253 = vadd.f32 %v249, 0.0
    %s254 = scalar_lea.vmem [#allocation3], 32
    %v255 = vld [vmem:[%s254] sm:$0xff]
    %v256 = vld [vmem:[%s254 + $0x8] sm:$0xff]
    %v257 = vld [vmem:[%s254 + $0x10] sm:$0xff]
    %v258 = vld [vmem:[%s254 + $0x18] sm:$0xff]
    %s259 = scalar_lea.vmem %s0, 128
    %v260 = vld [vmem:[%s259] sm:$0xf]
    %v261 = vld [vmem:[%s259 + $0x4] sm:$0xf]
    %v262 = vld [vmem:[%s259 + $0x8] sm:$0xf]
    %v263 = vld [vmem:[%s259 + $0xc] sm:$0xf]
    %v264 = vld [vmem:[%s259 + $0x10] sm:$0xf]
    %v265 = vld [vmem:[%s259 + $0x14] sm:$0xf]
    %v266 = vld [vmem:[%s259 + $0x18] sm:$0xf]
    %v267 = vld [vmem:[%s259 + $0x1c] sm:$0xf]
    %v268 = vld [vmem:[%s259 + $0x20] sm:$0xf]
    %v269 = vld [vmem:[%s259 + $0x24] sm:$0xf]
    %v270 = vld [vmem:[%s259 + $0x28] sm:$0xf]
    %v271 = vld [vmem:[%s259 + $0x2c] sm:$0xf]
    %v272 = vld [vmem:[%s259 + $0x30] sm:$0xf]
    %v273 = vld [vmem:[%s259 + $0x34] sm:$0xf]
    %v274 = vld [vmem:[%s259 + $0x38] sm:$0xf]
    %v275 = vld [vmem:[%s259 + $0x3c] sm:$0xf]
    %v276 = vld [vmem:[%s259 + $0x40] sm:$0xf]
    %v277 = vld [vmem:[%s259 + $0x44] sm:$0xf]
    %v278 = vld [vmem:[%s259 + $0x48] sm:$0xf]
    %v279 = vld [vmem:[%s259 + $0x4c] sm:$0xf]
    %v280 = vld [vmem:[%s259 + $0x50] sm:$0xf]
    %v281 = vld [vmem:[%s259 + $0x54] sm:$0xf]
    %v282 = vld [vmem:[%s259 + $0x58] sm:$0xf]
    %v283 = vld [vmem:[%s259 + $0x5c] sm:$0xf]
    %v284 = vld [vmem:[%s259 + $0x60] sm:$0xf]
    %v285 = vld [vmem:[%s259 + $0x64] sm:$0xf]
    %v286 = vld [vmem:[%s259 + $0x68] sm:$0xf]
    %v287 = vld [vmem:[%s259 + $0x6c] sm:$0xf]
    %v288 = vld [vmem:[%s259 + $0x70] sm:$0xf]
    %v289 = vld [vmem:[%s259 + $0x74] sm:$0xf]
    %v290 = vld [vmem:[%s259 + $0x78] sm:$0xf]
    %v291 = vld [vmem:[%s259 + $0x7c] sm:$0xf]
    %v296 = vunpack.c.l.b16 %v255
    %v297 = vunpack.c.h.b16 %v255
    %v298 = vunpack.c.l.b16 %v256
    %v299 = vunpack.c.h.b16 %v256
    %v300 = vunpack.c.l.b16 %v257
    %v301 = vunpack.c.h.b16 %v257
    %v302 = vunpack.c.l.b16 %v258
    %v303 = vunpack.c.h.b16 %v258
    %v304 = vpack.c.b16 %v298, %v296
    %v305 = vpack.c.b16 %v299, %v297
    %v306 = vpack.c.b16 %v302, %v300
    %v307 = vpack.c.b16 %v303, %v301
    %v344 = vunpack.c.l.b16 %v260
    %v345 = vunpack.c.l.b16 %v261
    %v346 = vunpack.c.l.b16 %v262
    %v347 = vunpack.c.l.b16 %v263
    %v348 = vunpack.c.l.b16 %v264
    %v349 = vunpack.c.l.b16 %v265
    %v350 = vunpack.c.l.b16 %v266
    %v351 = vunpack.c.l.b16 %v267
    %v352 = vunpack.c.l.b16 %v268
    %v353 = vunpack.c.l.b16 %v269
    %v354 = vunpack.c.l.b16 %v270
    %v355 = vunpack.c.l.b16 %v271
    %v356 = vunpack.c.l.b16 %v272
    %v357 = vunpack.c.l.b16 %v273
    %v358 = vunpack.c.l.b16 %v274
    %v359 = vunpack.c.l.b16 %v275
    %v360 = vunpack.c.l.b16 %v276
    %v361 = vunpack.c.l.b16 %v277
    %v362 = vunpack.c.l.b16 %v278
    %v363 = vunpack.c.l.b16 %v279
    %v364 = vunpack.c.l.b16 %v280
    %v365 = vunpack.c.l.b16 %v281
    %v366 = vunpack.c.l.b16 %v282
    %v367 = vunpack.c.l.b16 %v283
    %v368 = vunpack.c.l.b16 %v284
    %v369 = vunpack.c.l.b16 %v285
    %v370 = vunpack.c.l.b16 %v286
    %v371 = vunpack.c.l.b16 %v287
    %v372 = vunpack.c.l.b16 %v288
    %v373 = vunpack.c.l.b16 %v289
    %v374 = vunpack.c.l.b16 %v290
    %v375 = vunpack.c.l.b16 %v291
    %v376 = vpack.c.b16 %v345, %v344
    %v377 = vpack.c.b16 %v347, %v346
    %v378 = vpack.c.b16 %v349, %v348
    %v379 = vpack.c.b16 %v351, %v350
    %v380 = vpack.c.b16 %v353, %v352
    %v381 = vpack.c.b16 %v355, %v354
    %v382 = vpack.c.b16 %v357, %v356
    %v383 = vpack.c.b16 %v359, %v358
    %v384 = vpack.c.b16 %v361, %v360
    %v385 = vpack.c.b16 %v363, %v362
    %v386 = vpack.c.b16 %v365, %v364
    %v387 = vpack.c.b16 %v367, %v366
    %v388 = vpack.c.b16 %v369, %v368
    %v389 = vpack.c.b16 %v371, %v370
    %v390 = vpack.c.b16 %v373, %v372
    %v391 = vpack.c.b16 %v375, %v374
    %408 = vmatprep.subr.bf16.mxu0 0
    %409 = vmatpush1.bf16.msra.mxu0 %v376
    %410 = vmatprep.subr.bf16.mxu0 0
    %411 = vmatpush1.bf16.msra.mxu0 %v377
    %412 = vmatprep.subr.bf16.mxu0 0
    %413 = vmatpush1.bf16.msra.mxu0 %v378
    %414 = vmatprep.subr.bf16.mxu0 0
    %415 = vmatpush1.bf16.msra.mxu0 %v379
    %416 = vmatprep.subr.bf16.mxu0 0
    %417 = vmatpush1.bf16.msra.mxu0 %v380
    %418 = vmatprep.subr.bf16.mxu0 0
    %419 = vmatpush1.bf16.msra.mxu0 %v381
    %420 = vmatprep.subr.bf16.mxu0 0
    %421 = vmatpush1.bf16.msra.mxu0 %v382
    %422 = vmatprep.subr.bf16.mxu0 0
    %423 = vmatpush1.bf16.msra.mxu0 %v383
    %424 = vmatprep.subr.bf16.mxu0 0
    %425 = vmatpush1.bf16.msra.mxu0 %v384
    %426 = vmatprep.subr.bf16.mxu0 0
    %427 = vmatpush1.bf16.msra.mxu0 %v385
    %428 = vmatprep.subr.bf16.mxu0 0
    %429 = vmatpush1.bf16.msra.mxu0 %v386
    %430 = vmatprep.subr.bf16.mxu0 0
    %431 = vmatpush1.bf16.msra.mxu0 %v387
    %432 = vmatprep.subr.bf16.mxu0 0
    %433 = vmatpush1.bf16.msra.mxu0 %v388
    %434 = vmatprep.subr.bf16.mxu0 0
    %435 = vmatpush1.bf16.msra.mxu0 %v389
    %436 = vmatprep.subr.bf16.mxu0 0
    %437 = vmatpush1.bf16.msra.mxu0 %v390
    %438 = vmatprep.subr.bf16.mxu0 0
    %439 = vmatpush1.bf16.msra.mxu0 %v391
    %440 = vmatprep.mubr.bf16.mxu0 %v305
    %441 = vmatmul.mubr.bf16.gmra.mrb[0].mxu0 %v304
    %v442 = vpop.f32.mrb[0].mxu0
    %v443 = vadd.f32 0.0, %v442
    %v444 = vpop.f32.mrb[0].mxu0
    %v445 = vpop.f32.mrb[0].mxu0
    %v446 = vadd.f32 0.0, %v445
    %v447 = vpop.f32.mrb[0].mxu0
    %448 = vmatprep.mubr.bf16.mxu0 %v307
    %449 = vmatmul.mubr.bf16.gmra.mrb[0].mxu0 %v306
    %v450 = vpop.f32.mrb[0].mxu0
    %v451 = vadd.f32 0.0, %v450
    %v452 = vpop.f32.mrb[0].mxu0
    %v453 = vpop.f32.mrb[0].mxu0
    %v454 = vadd.f32 0.0, %v453
    %v455 = vpop.f32.mrb[0].mxu0
    %456 = vdwg.mxu0
    %s457 = scalar_lea.vmem [#allocation2], 32
    %458 = vst.msk [vmem:[%s457] sm:$0xff] %vm233, %v443
    %459 = vst.msk [vmem:[%s457 + $0x8] sm:$0xff] %vm233, %v446
    %460 = vst.msk [vmem:[%s457 + $0x10] sm:$0xff] %vm233, %v451
    %461 = vst.msk [vmem:[%s457 + $0x18] sm:$0xff] %vm233, %v454
    %v462 = vsel %vm233, %v443, 0.0
    %463 = vadd.xlane.f32.xlu0 %v462
    %v464 = vpop.xlane.xlu0 %463
    %v465 = vsel %vm233, %v446, 0.0
    %466 = vadd.xlane.f32.xlu0 %v465
    %v467 = vpop.xlane.xlu0 %466
    %v468 = vsel %vm233, %v451, 0.0
    %469 = vadd.xlane.f32.xlu0 %v468
    %v470 = vpop.xlane.xlu0 %469
    %v471 = vsel %vm233, %v454, 0.0
    %472 = vadd.xlane.f32.xlu0 %v471
    %v473 = vpop.xlane.xlu0 %472
    %v474 = vadd.f32 %v250, %v464
    %v475 = vadd.f32 %v251, %v467
    %v476 = vadd.f32 %v252, %v470
    %v477 = vadd.f32 %v253, %v473
    %s478 = scalar_lea.vmem [#allocation3], 64
    %v479 = vld [vmem:[%s478] sm:$0xff]
    %v480 = vld [vmem:[%s478 + $0x8] sm:$0xff]
    %v481 = vld [vmem:[%s478 + $0x10] sm:$0xff]
    %v482 = vld [vmem:[%s478 + $0x18] sm:$0xff]
    %s483 = scalar_lea.vmem %s0, 256
    %v484 = vld [vmem:[%s483] sm:$0xf]
    %v485 = vld [vmem:[%s483 + $0x4] sm:$0xf]
    %v486 = vld [vmem:[%s483 + $0x8] sm:$0xf]
    %v487 = vld [vmem:[%s483 + $0xc] sm:$0xf]
    %v488 = vld [vmem:[%s483 + $0x10] sm:$0xf]
    %v489 = vld [vmem:[%s483 + $0x14] sm:$0xf]
    %v490 = vld [vmem:[%s483 + $0x18] sm:$0xf]
    %v491 = vld [vmem:[%s483 + $0x1c] sm:$0xf]
    %v492 = vld [vmem:[%s483 + $0x20] sm:$0xf]
    %v493 = vld [vmem:[%s483 + $0x24] sm:$0xf]
    %v494 = vld [vmem:[%s483 + $0x28] sm:$0xf]
    %v495 = vld [vmem:[%s483 + $0x2c] sm:$0xf]
    %v496 = vld [vmem:[%s483 + $0x30] sm:$0xf]
    %v497 = vld [vmem:[%s483 + $0x34] sm:$0xf]
    %v498 = vld [vmem:[%s483 + $0x38] sm:$0xf]
    %v499 = vld [vmem:[%s483 + $0x3c] sm:$0xf]
    %v500 = vld [vmem:[%s483 + $0x40] sm:$0xf]
    %v501 = vld [vmem:[%s483 + $0x44] sm:$0xf]
    %v502 = vld [vmem:[%s483 + $0x48] sm:$0xf]
    %v503 = vld [vmem:[%s483 + $0x4c] sm:$0xf]
    %v504 = vld [vmem:[%s483 + $0x50] sm:$0xf]
    %v505 = vld [vmem:[%s483 + $0x54] sm:$0xf]
    %v506 = vld [vmem:[%s483 + $0x58] sm:$0xf]
    %v507 = vld [vmem:[%s483 + $0x5c] sm:$0xf]
    %v508 = vld [vmem:[%s483 + $0x60] sm:$0xf]
    %v509 = vld [vmem:[%s483 + $0x64] sm:$0xf]
    %v510 = vld [vmem:[%s483 + $0x68] sm:$0xf]
    %v511 = vld [vmem:[%s483 + $0x6c] sm:$0xf]
    %v512 = vld [vmem:[%s483 + $0x70] sm:$0xf]
    %v513 = vld [vmem:[%s483 + $0x74] sm:$0xf]
    %v514 = vld [vmem:[%s483 + $0x78] sm:$0xf]
    %v515 = vld [vmem:[%s483 + $0x7c] sm:$0xf]
    %v520 = vunpack.c.l.b16 %v479
    %v521 = vunpack.c.h.b16 %v479
    %v522 = vunpack.c.l.b16 %v480
    %v523 = vunpack.c.h.b16 %v480
    %v524 = vunpack.c.l.b16 %v481
    %v525 = vunpack.c.h.b16 %v481
    %v526 = vunpack.c.l.b16 %v482
    %v527 = vunpack.c.h.b16 %v482
    %v528 = vpack.c.b16 %v522, %v520
    %v529 = vpack.c.b16 %v523, %v521
    %v530 = vpack.c.b16 %v526, %v524
    %v531 = vpack.c.b16 %v527, %v525
    %v568 = vunpack.c.l.b16 %v484
    %v569 = vunpack.c.l.b16 %v485
    %v570 = vunpack.c.l.b16 %v486
    %v571 = vunpack.c.l.b16 %v487
    %v572 = vunpack.c.l.b16 %v488
    %v573 = vunpack.c.l.b16 %v489
    %v574 = vunpack.c.l.b16 %v490
    %v575 = vunpack.c.l.b16 %v491
    %v576 = vunpack.c.l.b16 %v492
    %v577 = vunpack.c.l.b16 %v493
    %v578 = vunpack.c.l.b16 %v494
    %v579 = vunpack.c.l.b16 %v495
    %v580 = vunpack.c.l.b16 %v496
    %v581 = vunpack.c.l.b16 %v497
    %v582 = vunpack.c.l.b16 %v498
    %v583 = vunpack.c.l.b16 %v499
    %v584 = vunpack.c.l.b16 %v500
    %v585 = vunpack.c.l.b16 %v501
    %v586 = vunpack.c.l.b16 %v502
    %v587 = vunpack.c.l.b16 %v503
    %v588 = vunpack.c.l.b16 %v504
    %v589 = vunpack.c.l.b16 %v505
    %v590 = vunpack.c.l.b16 %v506
    %v591 = vunpack.c.l.b16 %v507
    %v592 = vunpack.c.l.b16 %v508
    %v593 = vunpack.c.l.b16 %v509
    %v594 = vunpack.c.l.b16 %v510
    %v595 = vunpack.c.l.b16 %v511
    %v596 = vunpack.c.l.b16 %v512
    %v597 = vunpack.c.l.b16 %v513
    %v598 = vunpack.c.l.b16 %v514
    %v599 = vunpack.c.l.b16 %v515
    %v600 = vpack.c.b16 %v569, %v568
    %v601 = vpack.c.b16 %v571, %v570
    %v602 = vpack.c.b16 %v573, %v572
    %v603 = vpack.c.b16 %v575, %v574
    %v604 = vpack.c.b16 %v577, %v576
    %v605 = vpack.c.b16 %v579, %v578
    %v606 = vpack.c.b16 %v581, %v580
    %v607 = vpack.c.b16 %v583, %v582
    %v608 = vpack.c.b16 %v585, %v584
    %v609 = vpack.c.b16 %v587, %v586
    %v610 = vpack.c.b16 %v589, %v588
    %v611 = vpack.c.b16 %v591, %v590
    %v612 = vpack.c.b16 %v593, %v592
    %v613 = vpack.c.b16 %v595, %v594
    %v614 = vpack.c.b16 %v597, %v596
    %v615 = vpack.c.b16 %v599, %v598
    %632 = vmatprep.subr.bf16.mxu0 0
    %633 = vmatpush1.bf16.msra.mxu0 %v600
    %634 = vmatprep.subr.bf16.mxu0 0
    %635 = vmatpush1.bf16.msra.mxu0 %v601
    %636 = vmatprep.subr.bf16.mxu0 0
    %637 = vmatpush1.bf16.msra.mxu0 %v602
    %638 = vmatprep.subr.bf16.mxu0 0
    %639 = vmatpush1.bf16.msra.mxu0 %v603
    %640 = vmatprep.subr.bf16.mxu0 0
    %641 = vmatpush1.bf16.msra.mxu0 %v604
    %642 = vmatprep.subr.bf16.mxu0 0
    %643 = vmatpush1.bf16.msra.mxu0 %v605
    %644 = vmatprep.subr.bf16.mxu0 0
    %645 = vmatpush1.bf16.msra.mxu0 %v606
    %646 = vmatprep.subr.bf16.mxu0 0
    %647 = vmatpush1.bf16.msra.mxu0 %v607
    %648 = vmatprep.subr.bf16.mxu0 0
    %649 = vmatpush1.bf16.msra.mxu0 %v608
    %650 = vmatprep.subr.bf16.mxu0 0
    %651 = vmatpush1.bf16.msra.mxu0 %v609
    %652 = vmatprep.subr.bf16.mxu0 0
    %653 = vmatpush1.bf16.msra.mxu0 %v610
    %654 = vmatprep.subr.bf16.mxu0 0
    %655 = vmatpush1.bf16.msra.mxu0 %v611
    %656 = vmatprep.subr.bf16.mxu0 0
    %657 = vmatpush1.bf16.msra.mxu0 %v612
    %658 = vmatprep.subr.bf16.mxu0 0
    %659 = vmatpush1.bf16.msra.mxu0 %v613
    %660 = vmatprep.subr.bf16.mxu0 0
    %661 = vmatpush1.bf16.msra.mxu0 %v614
    %662 = vmatprep.subr.bf16.mxu0 0
    %663 = vmatpush1.bf16.msra.mxu0 %v615
    %664 = vmatprep.mubr.bf16.mxu0 %v529
    %665 = vmatmul.mubr.bf16.gmra.mrb[0].mxu0 %v528
    %v666 = vpop.f32.mrb[0].mxu0
    %v667 = vadd.f32 0.0, %v666
    %v668 = vpop.f32.mrb[0].mxu0
    %v669 = vpop.f32.mrb[0].mxu0
    %v670 = vadd.f32 0.0, %v669
    %v671 = vpop.f32.mrb[0].mxu0
    %672 = vmatprep.mubr.bf16.mxu0 %v531
    %673 = vmatmul.mubr.bf16.gmra.mrb[0].mxu0 %v530
    %v674 = vpop.f32.mrb[0].mxu0
    %v675 = vadd.f32 0.0, %v674
    %v676 = vpop.f32.mrb[0].mxu0
    %v677 = vpop.f32.mrb[0].mxu0
    %v678 = vadd.f32 0.0, %v677
    %v679 = vpop.f32.mrb[0].mxu0
    %680 = vdwg.mxu0
    %s681 = scalar_lea.vmem [#allocation2], 64
    %682 = vst.msk [vmem:[%s681] sm:$0xff] %vm233, %v667
    %683 = vst.msk [vmem:[%s681 + $0x8] sm:$0xff] %vm233, %v670
    %684 = vst.msk [vmem:[%s681 + $0x10] sm:$0xff] %vm233, %v675
    %685 = vst.msk [vmem:[%s681 + $0x18] sm:$0xff] %vm233, %v678
    %v686 = vsel %vm233, %v667, 0.0
    %687 = vadd.xlane.f32.xlu0 %v686
    %v688 = vpop.xlane.xlu0 %687
    %v689 = vsel %vm233, %v670, 0.0
    %690 = vadd.xlane.f32.xlu0 %v689
    %v691 = vpop.xlane.xlu0 %690
    %v692 = vsel %vm233, %v675, 0.0
    %693 = vadd.xlane.f32.xlu0 %v692
    %v694 = vpop.xlane.xlu0 %693
    %v695 = vsel %vm233, %v678, 0.0
    %696 = vadd.xlane.f32.xlu0 %v695
    %v697 = vpop.xlane.xlu0 %696
    %v698 = vadd.f32 %v474, %v688
    %v699 = vadd.f32 %v475, %v691
    %v700 = vadd.f32 %v476, %v694
    %v701 = vadd.f32 %v477, %v697
    %s702 = scalar_lea.vmem [#allocation3], 96
    %v703 = vld [vmem:[%s702] sm:$0xff]
    %v704 = vld [vmem:[%s702 + $0x8] sm:$0xff]
    %v705 = vld [vmem:[%s702 + $0x10] sm:$0xff]
    %v706 = vld [vmem:[%s702 + $0x18] sm:$0xff]
    %s707 = scalar_lea.vmem %s0, 384
    %v708 = vld [vmem:[%s707] sm:$0xf]
    %v709 = vld [vmem:[%s707 + $0x4] sm:$0xf]
    %v710 = vld [vmem:[%s707 + $0x8] sm:$0xf]
    %v711 = vld [vmem:[%s707 + $0xc] sm:$0xf]
    %v712 = vld [vmem:[%s707 + $0x10] sm:$0xf]
    %v713 = vld [vmem:[%s707 + $0x14] sm:$0xf]
    %v714 = vld [vmem:[%s707 + $0x18] sm:$0xf]
    %v715 = vld [vmem:[%s707 + $0x1c] sm:$0xf]
    %v716 = vld [vmem:[%s707 + $0x20] sm:$0xf]
    %v717 = vld [vmem:[%s707 + $0x24] sm:$0xf]
    %v718 = vld [vmem:[%s707 + $0x28] sm:$0xf]
    %v719 = vld [vmem:[%s707 + $0x2c] sm:$0xf]
    %v720 = vld [vmem:[%s707 + $0x30] sm:$0xf]
    %v721 = vld [vmem:[%s707 + $0x34] sm:$0xf]
    %v722 = vld [vmem:[%s707 + $0x38] sm:$0xf]
    %v723 = vld [vmem:[%s707 + $0x3c] sm:$0xf]
    %v724 = vld [vmem:[%s707 + $0x40] sm:$0xf]
    %v725 = vld [vmem:[%s707 + $0x44] sm:$0xf]
    %v726 = vld [vmem:[%s707 + $0x48] sm:$0xf]
    %v727 = vld [vmem:[%s707 + $0x4c] sm:$0xf]
    %v728 = vld [vmem:[%s707 + $0x50] sm:$0xf]
    %v729 = vld [vmem:[%s707 + $0x54] sm:$0xf]
    %v730 = vld [vmem:[%s707 + $0x58] sm:$0xf]
    %v731 = vld [vmem:[%s707 + $0x5c] sm:$0xf]
    %v732 = vld [vmem:[%s707 + $0x60] sm:$0xf]
    %v733 = vld [vmem:[%s707 + $0x64] sm:$0xf]
    %v734 = vld [vmem:[%s707 + $0x68] sm:$0xf]
    %v735 = vld [vmem:[%s707 + $0x6c] sm:$0xf]
    %v736 = vld [vmem:[%s707 + $0x70] sm:$0xf]
    %v737 = vld [vmem:[%s707 + $0x74] sm:$0xf]
    %v738 = vld [vmem:[%s707 + $0x78] sm:$0xf]
    %v739 = vld [vmem:[%s707 + $0x7c] sm:$0xf]
    %v744 = vunpack.c.l.b16 %v703
    %v745 = vunpack.c.h.b16 %v703
    %v746 = vunpack.c.l.b16 %v704
    %v747 = vunpack.c.h.b16 %v704
    %v748 = vunpack.c.l.b16 %v705
    %v749 = vunpack.c.h.b16 %v705
    %v750 = vunpack.c.l.b16 %v706
    %v751 = vunpack.c.h.b16 %v706
    %v752 = vpack.c.b16 %v746, %v744
    %v753 = vpack.c.b16 %v747, %v745
    %v754 = vpack.c.b16 %v750, %v748
    %v755 = vpack.c.b16 %v751, %v749
    %v792 = vunpack.c.l.b16 %v708
    %v793 = vunpack.c.l.b16 %v709
    %v794 = vunpack.c.l.b16 %v710
    %v795 = vunpack.c.l.b16 %v711
    %v796 = vunpack.c.l.b16 %v712
    %v797 = vunpack.c.l.b16 %v713
    %v798 = vunpack.c.l.b16 %v714
    %v799 = vunpack.c.l.b16 %v715
    %v800 = vunpack.c.l.b16 %v716
    %v801 = vunpack.c.l.b16 %v717
    %v802 = vunpack.c.l.b16 %v718
    %v803 = vunpack.c.l.b16 %v719
    %v804 = vunpack.c.l.b16 %v720
    %v805 = vunpack.c.l.b16 %v721
    %v806 = vunpack.c.l.b16 %v722
    %v807 = vunpack.c.l.b16 %v723
    %v808 = vunpack.c.l.b16 %v724
    %v809 = vunpack.c.l.b16 %v725
    %v810 = vunpack.c.l.b16 %v726
    %v811 = vunpack.c.l.b16 %v727
    %v812 = vunpack.c.l.b16 %v728
    %v813 = vunpack.c.l.b16 %v729
    %v814 = vunpack.c.l.b16 %v730
    %v815 = vunpack.c.l.b16 %v731
    %v816 = vunpack.c.l.b16 %v732
    %v817 = vunpack.c.l.b16 %v733
    %v818 = vunpack.c.l.b16 %v734
    %v819 = vunpack.c.l.b16 %v735
    %v820 = vunpack.c.l.b16 %v736
    %v821 = vunpack.c.l.b16 %v737
    %v822 = vunpack.c.l.b16 %v738
    %v823 = vunpack.c.l.b16 %v739
    %v824 = vpack.c.b16 %v793, %v792
    %v825 = vpack.c.b16 %v795, %v794
    %v826 = vpack.c.b16 %v797, %v796
    %v827 = vpack.c.b16 %v799, %v798
    %v828 = vpack.c.b16 %v801, %v800
    %v829 = vpack.c.b16 %v803, %v802
    %v830 = vpack.c.b16 %v805, %v804
    %v831 = vpack.c.b16 %v807, %v806
    %v832 = vpack.c.b16 %v809, %v808
    %v833 = vpack.c.b16 %v811, %v810
    %v834 = vpack.c.b16 %v813, %v812
    %v835 = vpack.c.b16 %v815, %v814
    %v836 = vpack.c.b16 %v817, %v816
    %v837 = vpack.c.b16 %v819, %v818
    %v838 = vpack.c.b16 %v821, %v820
    %v839 = vpack.c.b16 %v823, %v822
    %856 = vmatprep.subr.bf16.mxu0 0
    %857 = vmatpush1.bf16.msra.mxu0 %v824
    %858 = vmatprep.subr.bf16.mxu0 0
    %859 = vmatpush1.bf16.msra.mxu0 %v825
    %860 = vmatprep.subr.bf16.mxu0 0
    %861 = vmatpush1.bf16.msra.mxu0 %v826
    %862 = vmatprep.subr.bf16.mxu0 0
    %863 = vmatpush1.bf16.msra.mxu0 %v827
    %864 = vmatprep.subr.bf16.mxu0 0
    %865 = vmatpush1.bf16.msra.mxu0 %v828
    %866 = vmatprep.subr.bf16.mxu0 0
    %867 = vmatpush1.bf16.msra.mxu0 %v829
    %868 = vmatprep.subr.bf16.mxu0 0
    %869 = vmatpush1.bf16.msra.mxu0 %v830
    %870 = vmatprep.subr.bf16.mxu0 0
    %871 = vmatpush1.bf16.msra.mxu0 %v831
    %872 = vmatprep.subr.bf16.mxu0 0
    %873 = vmatpush1.bf16.msra.mxu0 %v832
    %874 = vmatprep.subr.bf16.mxu0 0
    %875 = vmatpush1.bf16.msra.mxu0 %v833
    %876 = vmatprep.subr.bf16.mxu0 0
    %877 = vmatpush1.bf16.msra.mxu0 %v834
    %878 = vmatprep.subr.bf16.mxu0 0
    %879 = vmatpush1.bf16.msra.mxu0 %v835
    %880 = vmatprep.subr.bf16.mxu0 0
    %881 = vmatpush1.bf16.msra.mxu0 %v836
    %882 = vmatprep.subr.bf16.mxu0 0
    %883 = vmatpush1.bf16.msra.mxu0 %v837
    %884 = vmatprep.subr.bf16.mxu0 0
    %885 = vmatpush1.bf16.msra.mxu0 %v838
    %886 = vmatprep.subr.bf16.mxu0 0
    %887 = vmatpush1.bf16.msra.mxu0 %v839
    %888 = vmatprep.mubr.bf16.mxu0 %v753
    %889 = vmatmul.mubr.bf16.gmra.mrb[0].mxu0 %v752
    %v890 = vpop.f32.mrb[0].mxu0
    %v891 = vadd.f32 0.0, %v890
    %v892 = vpop.f32.mrb[0].mxu0
    %v893 = vpop.f32.mrb[0].mxu0
    %v894 = vadd.f32 0.0, %v893
    %v895 = vpop.f32.mrb[0].mxu0
    %896 = vmatprep.mubr.bf16.mxu0 %v755
    %897 = vmatmul.mubr.bf16.gmra.mrb[0].mxu0 %v754
    %v898 = vpop.f32.mrb[0].mxu0
    %v899 = vadd.f32 0.0, %v898
    %v900 = vpop.f32.mrb[0].mxu0
    %v901 = vpop.f32.mrb[0].mxu0
    %v902 = vadd.f32 0.0, %v901
    %v903 = vpop.f32.mrb[0].mxu0
    %904 = vdwg.mxu0
    %s905 = scalar_lea.vmem [#allocation2], 96
    %906 = vst.msk [vmem:[%s905] sm:$0xff] %vm233, %v891
    %907 = vst.msk [vmem:[%s905 + $0x8] sm:$0xff] %vm233, %v894
    %908 = vst.msk [vmem:[%s905 + $0x10] sm:$0xff] %vm233, %v899
    %909 = vst.msk [vmem:[%s905 + $0x18] sm:$0xff] %vm233, %v902
    %v910 = vsel %vm233, %v891, 0.0
    %911 = vadd.xlane.f32.xlu0 %v910
    %v912 = vpop.xlane.xlu0 %911
    %v913 = vsel %vm233, %v894, 0.0
    %914 = vadd.xlane.f32.xlu0 %v913
    %v915 = vpop.xlane.xlu0 %914
    %v916 = vsel %vm233, %v899, 0.0
    %917 = vadd.xlane.f32.xlu0 %v916
    %v918 = vpop.xlane.xlu0 %917
    %v919 = vsel %vm233, %v902, 0.0
    %920 = vadd.xlane.f32.xlu0 %v919
    %v921 = vpop.xlane.xlu0 %920
    %v922 = vadd.f32 %v698, %v912
    %v923 = vadd.f32 %v699, %v915
    %v924 = vadd.f32 %v700, %v918
    %v925 = vadd.f32 %v701, %v921
    %v926 = vmul.f32 %v922, 0.0078125
    %v927 = vmul.f32 %v923, 0.0078125
    %v928 = vmul.f32 %v924, 0.0078125
    %v929 = vmul.f32 %v925, 0.0078125
    %v930 = vld [vmem:[#allocation2] sm:$0xff]
    %v931 = vld [vmem:[#allocation2 + $0x8] sm:$0xff]
    %v932 = vld [vmem:[#allocation2 + $0x10] sm:$0xff]
    %v933 = vld [vmem:[#allocation2 + $0x18] sm:$0xff]
    %v934 = vsub.f32 %v930, %v926
    %v935 = vsub.f32 %v931, %v927
    %v936 = vsub.f32 %v932, %v928
    %v937 = vsub.f32 %v933, %v929
    %v938 = vmul.f32 %v934, %v934
    %v939 = vmul.f32 %v935, %v935
    %v940 = vmul.f32 %v936, %v936
    %v941 = vmul.f32 %v937, %v937
    %v942 = vsel %vm233, %v938, 0.0
    %943 = vadd.xlane.f32.xlu0 %v942
    %v944 = vpop.xlane.xlu0 %943
    %v945 = vsel %vm233, %v939, 0.0
    %946 = vadd.xlane.f32.xlu0 %v945
    %v947 = vpop.xlane.xlu0 %946
    %v948 = vsel %vm233, %v940, 0.0
    %949 = vadd.xlane.f32.xlu0 %v948
    %v950 = vpop.xlane.xlu0 %949
    %v951 = vsel %vm233, %v941, 0.0
    %952 = vadd.xlane.f32.xlu0 %v951
    %v953 = vpop.xlane.xlu0 %952
    %v954 = vadd.f32 %v944, 0.0
    %v955 = vadd.f32 %v947, 0.0
    %v956 = vadd.f32 %v950, 0.0
    %v957 = vadd.f32 %v953, 0.0
    %v958 = vld [vmem:[%s457] sm:$0xff]
    %v959 = vld [vmem:[%s457 + $0x8] sm:$0xff]
    %v960 = vld [vmem:[%s457 + $0x10] sm:$0xff]
    %v961 = vld [vmem:[%s457 + $0x18] sm:$0xff]
    %v962 = vsub.f32 %v958, %v926
    %v963 = vsub.f32 %v959, %v927
    %v964 = vsub.f32 %v960, %v928
    %v965 = vsub.f32 %v961, %v929
    %v966 = vmul.f32 %v962, %v962
    %v967 = vmul.f32 %v963, %v963
    %v968 = vmul.f32 %v964, %v964
    %v969 = vmul.f32 %v965, %v965
    %v970 = vsel %vm233, %v966, 0.0
    %971 = vadd.xlane.f32.xlu0 %v970
    %v972 = vpop.xlane.xlu0 %971
    %v973 = vsel %vm233, %v967, 0.0
    %974 = vadd.xlane.f32.xlu0 %v973
    %v975 = vpop.xlane.xlu0 %974
    %v976 = vsel %vm233, %v968, 0.0
    %977 = vadd.xlane.f32.xlu0 %v976
    %v978 = vpop.xlane.xlu0 %977
    %v979 = vsel %vm233, %v969, 0.0
    %980 = vadd.xlane.f32.xlu0 %v979
    %v981 = vpop.xlane.xlu0 %980
    %v982 = vadd.f32 %v954, %v972
    %v983 = vadd.f32 %v955, %v975
    %v984 = vadd.f32 %v956, %v978
    %v985 = vadd.f32 %v957, %v981
    %v986 = vld [vmem:[%s681] sm:$0xff]
    %v987 = vld [vmem:[%s681 + $0x8] sm:$0xff]
    %v988 = vld [vmem:[%s681 + $0x10] sm:$0xff]
    %v989 = vld [vmem:[%s681 + $0x18] sm:$0xff]
    %v990 = vsub.f32 %v986, %v926
    %v991 = vsub.f32 %v987, %v927
    %v992 = vsub.f32 %v988, %v928
    %v993 = vsub.f32 %v989, %v929
    %v994 = vmul.f32 %v990, %v990
    %v995 = vmul.f32 %v991, %v991
    %v996 = vmul.f32 %v992, %v992
    %v997 = vmul.f32 %v993, %v993
    %v998 = vsel %vm233, %v994, 0.0
    %999 = vadd.xlane.f32.xlu0 %v998
    %v1000 = vpop.xlane.xlu0 %999
    %v1001 = vsel %vm233, %v995, 0.0
    %1002 = vadd.xlane.f32.xlu0 %v1001
    %v1003 = vpop.xlane.xlu0 %1002
    %v1004 = vsel %vm233, %v996, 0.0
    %1005 = vadd.xlane.f32.xlu0 %v1004
    %v1006 = vpop.xlane.xlu0 %1005
    %v1007 = vsel %vm233, %v997, 0.0
    %1008 = vadd.xlane.f32.xlu0 %v1007
    %v1009 = vpop.xlane.xlu0 %1008
    %v1010 = vadd.f32 %v982, %v1000
    %v1011 = vadd.f32 %v983, %v1003
    %v1012 = vadd.f32 %v984, %v1006
    %v1013 = vadd.f32 %v985, %v1009
    %v1014 = vld [vmem:[%s905] sm:$0xff]
    %v1015 = vld [vmem:[%s905 + $0x8] sm:$0xff]
    %v1016 = vld [vmem:[%s905 + $0x10] sm:$0xff]
    %v1017 = vld [vmem:[%s905 + $0x18] sm:$0xff]
    %v1018 = vsub.f32 %v1014, %v926
    %v1019 = vsub.f32 %v1015, %v927
    %v1020 = vsub.f32 %v1016, %v928
    %v1021 = vsub.f32 %v1017, %v929
    %v1022 = vmul.f32 %v1018, %v1018
    %v1023 = vmul.f32 %v1019, %v1019
    %v1024 = vmul.f32 %v1020, %v1020
    %v1025 = vmul.f32 %v1021, %v1021
    %v1026 = vsel %vm233, %v1022, 0.0
    %1027 = vadd.xlane.f32.xlu0 %v1026
    %v1028 = vpop.xlane.xlu0 %1027
    %v1029 = vsel %vm233, %v1023, 0.0
    %1030 = vadd.xlane.f32.xlu0 %v1029
    %v1031 = vpop.xlane.xlu0 %1030
    %v1032 = vsel %vm233, %v1024, 0.0
    %1033 = vadd.xlane.f32.xlu0 %v1032
    %v1034 = vpop.xlane.xlu0 %1033
    %v1035 = vsel %vm233, %v1025, 0.0
    %1036 = vadd.xlane.f32.xlu0 %v1035
    %v1037 = vpop.xlane.xlu0 %1036
    %v1038 = vadd.f32 %v1010, %v1028
    %v1039 = vadd.f32 %v1011, %v1031
    %v1040 = vadd.f32 %v1012, %v1034
    %v1041 = vadd.f32 %v1013, %v1037
    %v1042 = vmul.f32 %v1038, 0.0078125
    %v1043 = vmul.f32 %v1039, 0.0078125
    %v1044 = vmul.f32 %v1040, 0.0078125
    %v1045 = vmul.f32 %v1041, 0.0078125
    %v1046 = vadd.f32 %v1042, 1e-05
    %v1047 = vadd.f32 %v1043, 1e-05
    %v1048 = vadd.f32 %v1044, 1e-05
    %v1049 = vadd.f32 %v1045, 1e-05
    %v1050 = vrsqrt.pop %v1046
    %v1051 = vrsqrt.pop %v1047
    %v1052 = vrsqrt.pop %v1048
    %v1053 = vrsqrt.pop %v1049
    %v1054 = vld [vmem:[%s2] sm:$0xff]
    %v1055 = vld [vmem:[%s2 + $0x8] sm:$0xff]
    %v1056 = vld [vmem:[%s2 + $0x10] sm:$0xff]
    %v1057 = vld [vmem:[%s2 + $0x18] sm:$0xff]
    %v1058 = vmul.f32 %v1054, %v1050
    %v1059 = vmul.f32 %v1055, %v1051
    %v1060 = vmul.f32 %v1056, %v1052
    %v1061 = vmul.f32 %v1057, %v1053
    %v1062 = vld [vmem:[%s3] sm:$0xff]
    %v1063 = vld [vmem:[%s3 + $0x8] sm:$0xff]
    %v1064 = vld [vmem:[%s3 + $0x10] sm:$0xff]
    %v1065 = vld [vmem:[%s3 + $0x18] sm:$0xff]
    %v1066 = vmul.f32 %v926, %v1058
    %v1067 = vmul.f32 %v927, %v1059
    %v1068 = vmul.f32 %v928, %v1060
    %v1069 = vmul.f32 %v929, %v1061
    %v1070 = vsub.f32 %v1062, %v1066
    %v1071 = vsub.f32 %v1063, %v1067
    %v1072 = vsub.f32 %v1064, %v1068
    %v1073 = vsub.f32 %v1065, %v1069
    %1075 = vset.pattern.permute.xlu0 0
    %1076 = vperm.xlu0 %1075, %v1058
    %v1077 = vpop.permute.xlu0 %1076
    %1080 = vset.pattern.permute.xlu0 0
    %1081 = vperm.xlu0 %1080, %v1059
    %v1082 = vpop.permute.xlu0 %1081
    %1085 = vset.pattern.permute.xlu0 0
    %1086 = vperm.xlu0 %1085, %v1060
    %v1087 = vpop.permute.xlu0 %1086
    %1090 = vset.pattern.permute.xlu0 0
    %1091 = vperm.xlu0 %1090, %v1061
    %v1092 = vpop.permute.xlu0 %1091
    %v1094 = vmul.f32 %v930, %v1077
    %v1095 = vmul.f32 %v931, %v1082
    %v1096 = vmul.f32 %v932, %v1087
    %v1097 = vmul.f32 %v933, %v1092
    %1099 = vset.pattern.permute.xlu0 0
    %1100 = vperm.xlu0 %1099, %v1070
    %v1101 = vpop.permute.xlu0 %1100
    %1104 = vset.pattern.permute.xlu0 0
    %1105 = vperm.xlu0 %1104, %v1071
    %v1106 = vpop.permute.xlu0 %1105
    %1109 = vset.pattern.permute.xlu0 0
    %1110 = vperm.xlu0 %1109, %v1072
    %v1111 = vpop.permute.xlu0 %1110
    %1114 = vset.pattern.permute.xlu0 0
    %1115 = vperm.xlu0 %1114, %v1073
    %v1116 = vpop.permute.xlu0 %1115
    %v1118 = vadd.f32 %v1094, %v1101
    %v1119 = vadd.f32 %v1095, %v1106
    %v1120 = vadd.f32 %v1096, %v1111
    %v1121 = vadd.f32 %v1097, %v1116
    %v1122 = vmax.f32 %v1118, 0.0
    %v1123 = vmax.f32 %v1119, 0.0
    %v1124 = vmax.f32 %v1120, 0.0
    %v1125 = vmax.f32 %v1121, 0.0
    %v1126 = vpack.c.bf16 %v1123, %v1122
    %v1127 = vpack.c.bf16 %v1125, %v1124
    %v1130 = vunpack.c.l.b16 %v1126
    %v1131 = vunpack.c.h.b16 %v1126
    %v1132 = vunpack.c.l.b16 %v1127
    %v1133 = vunpack.c.h.b16 %v1127
    %v1134 = vpack.c.b16 %v1130, %v1130
    %v1135 = vpack.c.b16 %v1131, %v1131
    %v1136 = vpack.c.b16 %v1132, %v1132
    %v1137 = vpack.c.b16 %v1133, %v1133
    %vm1142 = vcmask 257024
    %1143 = vst.msk [vmem:[%s4] sm:$0xf] %vm1142, %v1134
    %1144 = vst.msk [vmem:[%s4 + $0x4] sm:$0xf] %vm1142, %v1135
    %1145 = vst.msk [vmem:[%s4 + $0x8] sm:$0xf] %vm1142, %v1136
    %1146 = vst.msk [vmem:[%s4 + $0xc] sm:$0xf] %vm1142, %v1137
    %v1147 = vld [vmem:[%s457] sm:$0xff]
    %v1148 = vld [vmem:[%s457 + $0x8] sm:$0xff]
    %v1149 = vld [vmem:[%s457 + $0x10] sm:$0xff]
    %v1150 = vld [vmem:[%s457 + $0x18] sm:$0xff]
    %v1151 = vmul.f32 %v1147, %v1077
    %v1152 = vmul.f32 %v1148, %v1082
    %v1153 = vmul.f32 %v1149, %v1087
    %v1154 = vmul.f32 %v1150, %v1092
    %v1155 = vadd.f32 %v1151, %v1101
    %v1156 = vadd.f32 %v1152, %v1106
    %v1157 = vadd.f32 %v1153, %v1111
    %v1158 = vadd.f32 %v1154, %v1116
    %v1159 = vmax.f32 %v1155, 0.0
    %v1160 = vmax.f32 %v1156, 0.0
    %v1161 = vmax.f32 %v1157, 0.0
    %v1162 = vmax.f32 %v1158, 0.0
    %v1163 = vpack.c.bf16 %v1160, %v1159
    %v1164 = vpack.c.bf16 %v1162, %v1161
    %v1167 = vunpack.c.l.b16 %v1163
    %v1168 = vunpack.c.h.b16 %v1163
    %v1169 = vunpack.c.l.b16 %v1164
    %v1170 = vunpack.c.h.b16 %v1164
    %v1171 = vpack.c.b16 %v1167, %v1167
    %v1172 = vpack.c.b16 %v1168, %v1168
    %v1173 = vpack.c.b16 %v1169, %v1169
    %v1174 = vpack.c.b16 %v1170, %v1170
    %s1179 = scalar_lea.vmem %s4, 16
    %1180 = vst.msk [vmem:[%s1179] sm:$0xf] %vm1142, %v1171
    %1181 = vst.msk [vmem:[%s1179 + $0x4] sm:$0xf] %vm1142, %v1172
    %1182 = vst.msk [vmem:[%s1179 + $0x8] sm:$0xf] %vm1142, %v1173
    %1183 = vst.msk [vmem:[%s1179 + $0xc] sm:$0xf] %vm1142, %v1174
    %v1184 = vld [vmem:[%s681] sm:$0xff]
    %v1185 = vld [vmem:[%s681 + $0x8] sm:$0xff]
    %v1186 = vld [vmem:[%s681 + $0x10] sm:$0xff]
    %v1187 = vld [vmem:[%s681 + $0x18] sm:$0xff]
    %v1188 = vmul.f32 %v1184, %v1077
    %v1189 = vmul.f32 %v1185, %v1082
    %v1190 = vmul.f32 %v1186, %v1087
    %v1191 = vmul.f32 %v1187, %v1092
    %v1192 = vadd.f32 %v1188, %v1101
    %v1193 = vadd.f32 %v1189, %v1106
    %v1194 = vadd.f32 %v1190, %v1111
    %v1195 = vadd.f32 %v1191, %v1116
    %v1196 = vmax.f32 %v1192, 0.0
    %v1197 = vmax.f32 %v1193, 0.0
    %v1198 = vmax.f32 %v1194, 0.0
    %v1199 = vmax.f32 %v1195, 0.0
    %v1200 = vpack.c.bf16 %v1197, %v1196
    %v1201 = vpack.c.bf16 %v1199, %v1198
    %v1204 = vunpack.c.l.b16 %v1200
    %v1205 = vunpack.c.h.b16 %v1200
    %v1206 = vunpack.c.l.b16 %v1201
    %v1207 = vunpack.c.h.b16 %v1201
    %v1208 = vpack.c.b16 %v1204, %v1204
    %v1209 = vpack.c.b16 %v1205, %v1205
    %v1210 = vpack.c.b16 %v1206, %v1206
    %v1211 = vpack.c.b16 %v1207, %v1207
    %s1216 = scalar_lea.vmem %s4, 32
    %1217 = vst.msk [vmem:[%s1216] sm:$0xf] %vm1142, %v1208
    %1218 = vst.msk [vmem:[%s1216 + $0x4] sm:$0xf] %vm1142, %v1209
    %1219 = vst.msk [vmem:[%s1216 + $0x8] sm:$0xf] %vm1142, %v1210
    %1220 = vst.msk [vmem:[%s1216 + $0xc] sm:$0xf] %vm1142, %v1211
    %v1221 = vld [vmem:[%s905] sm:$0xff]
    %v1222 = vld [vmem:[%s905 + $0x8] sm:$0xff]
    %v1223 = vld [vmem:[%s905 + $0x10] sm:$0xff]
    %v1224 = vld [vmem:[%s905 + $0x18] sm:$0xff]
    %v1225 = vmul.f32 %v1221, %v1077
    %v1226 = vmul.f32 %v1222, %v1082
    %v1227 = vmul.f32 %v1223, %v1087
    %v1228 = vmul.f32 %v1224, %v1092
    %v1229 = vadd.f32 %v1225, %v1101
    %v1230 = vadd.f32 %v1226, %v1106
    %v1231 = vadd.f32 %v1227, %v1111
    %v1232 = vadd.f32 %v1228, %v1116
    %v1233 = vmax.f32 %v1229, 0.0
    %v1234 = vmax.f32 %v1230, 0.0
    %v1235 = vmax.f32 %v1231, 0.0
    %v1236 = vmax.f32 %v1232, 0.0
    %v1237 = vpack.c.bf16 %v1234, %v1233
    %v1238 = vpack.c.bf16 %v1236, %v1235
    %v1241 = vunpack.c.l.b16 %v1237
    %v1242 = vunpack.c.h.b16 %v1237
    %v1243 = vunpack.c.l.b16 %v1238
    %v1244 = vunpack.c.h.b16 %v1238
    %v1245 = vpack.c.b16 %v1241, %v1241
    %v1246 = vpack.c.b16 %v1242, %v1242
    %v1247 = vpack.c.b16 %v1243, %v1243
    %v1248 = vpack.c.b16 %v1244, %v1244
    %s1253 = scalar_lea.vmem %s4, 48
    %1254 = vst.msk [vmem:[%s1253] sm:$0xf] %vm1142, %v1245
    %1255 = vst.msk [vmem:[%s1253 + $0x4] sm:$0xf] %vm1142, %v1246
    %1256 = vst.msk [vmem:[%s1253 + $0x8] sm:$0xf] %vm1142, %v1247
    %1257 = vst.msk [vmem:[%s1253 + $0xc] sm:$0xf] %vm1142, %v1248
    // Predicated region
    $region22: #{generator_forward.6} parent=1 // pred_check
      _
    $region23: #{generator_forward.6} parent=1 // pred_check_branch
      %1259 = sbr.rel (0) target = $region25
    $region24: #{generator_forward.6} parent=1 // pred_region
      _
    $region25: #{generator_forward.6} parent=1 // pred_fallthru
      _
    // Predicated region
    $region26: #{generator_forward.6} parent=1 // pred_check
      _
    $region27: #{generator_forward.6} parent=1 // pred_check_branch
      %1261 = sbr.rel (0) target = $region29
    $region28: #{generator_forward.6} parent=1 // pred_region
      _
    $region29: #{generator_forward.6} parent=1 // pred_fallthru
      _
    %1262 = vsyncpa [#allocation4], 1

// kernel: generator_forward.7
$region0: #{generator_forward.7}
  #allocation0 [shape = 'u32[]', space=smem, size = 0x4, offset = 0x4, fixed_abs, tag = 'smem constant byte address 0x4 - core index']
  #allocation1 [shape = 'u32[144,128]{1,0:T(1,128)}', space=vmem, size = 0x12000, scoped, tag = 'internal scratch']
  #allocation2 [shape = 'f32[4,16,128]{2,1,0:T(8,128)}', space=vmem, size = 0x8000, scoped, tag = 'scratch operand']
  %s0 = inlined_call_operand.vmem [shape: bf16[4,128,128], index: 0, kind: input, shape index: {}]
  %s1 = inlined_call_operand.hbm [shape: bf16[4,16,128], index: 1, kind: input, shape index: {}]
  %s2 = inlined_call_operand.vmem [shape: f32[16,1], index: 2, kind: input, shape index: {}]
  %s3 = inlined_call_operand.vmem [shape: f32[16,1], index: 3, kind: input, shape index: {}]
  %s4 = inlined_call_operand.vmem [shape: bf16[4,16,128], index: 4, kind: output, shape index: {}]
  %s5 = sld [smem:[#allocation0]]
  $region30: #{generator_forward.7} parent=0
    _
  %s7 = ssub.s32 1, %s5
  %s8 = scalar_select 0, %s7, %s5
  $region1: #{generator_forward.7} parent=0
    #allocation3 [shape = 'u8[16384]{0}', space=vmem, size = 0x4000, scoped, tag = 'input window, operand 1, single buffered']
    #allocation4 [shape = 's32[1]{0}', space=sflag, size = 0x4, scoped, tag = 'scoped memory for generator_forward.7']
    %9 = vsyncpa [#allocation4], 0
    // Predicated region
    $region2: #{generator_forward.7} parent=1 // pred_check
      _
    $region3: #{generator_forward.7} parent=1 // pred_check_branch
      %11 = sbr.rel (0) target = $region5
    $region4: #{generator_forward.7} parent=1 // pred_region
      _
    $region5: #{generator_forward.7} parent=1 // pred_fallthru
      _
    // Predicated region
    $region6: #{generator_forward.7} parent=1 // pred_check
      _
    $region7: #{generator_forward.7} parent=1 // pred_check_branch
      %13 = sbr.rel (0) target = $region9
    $region8: #{generator_forward.7} parent=1 // pred_region
      %s15 = ssub.s32 512, 512
      %16 = vsyncadd [#allocation4], %s15
      %s17 = sshll.u32 [#allocation3], 4
      %s18 = int_to_ptr.vmem [resolvable:$true] %s17
      %23 = dma.hbm_to_vmem [thread:$0]  %s1, 512, %s18, [#allocation4], 64, 64, 4
    $region9: #{generator_forward.7} parent=1 // pred_fallthru
      _
    // Predicated region
    $region10: #{generator_forward.7} parent=1 // pred_check
      _
    $region11: #{generator_forward.7} parent=1 // pred_check_branch
      %25 = sbr.rel (0) target = $region13
    $region12: #{generator_forward.7} parent=1 // pred_region
      _
    $region13: #{generator_forward.7} parent=1 // pred_fallthru
      _
    // Predicated region
    $region14: #{generator_forward.7} parent=1 // pred_check
      _
    $region15: #{generator_forward.7} parent=1 // pred_check_branch
      %27 = sbr.rel (0) target = $region17
    $region16: #{generator_forward.7} parent=1 // pred_region
      _
    $region17: #{generator_forward.7} parent=1 // pred_fallthru
      _
    // Predicated region
    $region18: #{generator_forward.7} parent=1 // pred_check
      _
    $region19: #{generator_forward.7} parent=1 // pred_check_branch
      %29 = sbr.rel (0) target = $region21
    $region20: #{generator_forward.7} parent=1 // pred_region
      %30 = dma.done [#allocation4], 512
    $region21: #{generator_forward.7} parent=1 // pred_fallthru
      _
    %v32 = vld [vmem:[#allocation3] sm:$0xf]
    %v33 = vld [vmem:[#allocation3 + $0x4] sm:$0xf]
    %v34 = vld [vmem:[%s0] sm:$0xf]
    %v35 = vld [vmem:[%s0 + $0x4] sm:$0xf]
    %v36 = vld [vmem:[%s0 + $0x8] sm:$0xf]
    %v37 = vld [vmem:[%s0 + $0xc] sm:$0xf]
    %v38 = vld [vmem:[%s0 + $0x10] sm:$0xf]
    %v39 = vld [vmem:[%s0 + $0x14] sm:$0xf]
    %v40 = vld [vmem:[%s0 + $0x18] sm:$0xf]
    %v41 = vld [vmem:[%s0 + $0x1c] sm:$0xf]
    %v42 = vld [vmem:[%s0 + $0x20] sm:$0xf]
    %v43 = vld [vmem:[%s0 + $0x24] sm:$0xf]
    %v44 = vld [vmem:[%s0 + $0x28] sm:$0xf]
    %v45 = vld [vmem:[%s0 + $0x2c] sm:$0xf]
    %v46 = vld [vmem:[%s0 + $0x30] sm:$0xf]
    %v47 = vld [vmem:[%s0 + $0x34] sm:$0xf]
    %v48 = vld [vmem:[%s0 + $0x38] sm:$0xf]
    %v49 = vld [vmem:[%s0 + $0x3c] sm:$0xf]
    %v52 = vunpack.c.l.b16 %v32
    %v53 = vunpack.c.l.b16 %v33
    %v54 = vpack.c.b16 %v53, %v52
    %v72 = vunpack.c.l.b16 %v34
    %v73 = vunpack.c.l.b16 %v35
    %v74 = vunpack.c.l.b16 %v36
    %v75 = vunpack.c.l.b16 %v37
    %v76 = vunpack.c.l.b16 %v38
    %v77 = vunpack.c.l.b16 %v39
    %v78 = vunpack.c.l.b16 %v40
    %v79 = vunpack.c.l.b16 %v41
    %v80 = vunpack.c.l.b16 %v42
    %v81 = vunpack.c.l.b16 %v43
    %v82 = vunpack.c.l.b16 %v44
    %v83 = vunpack.c.l.b16 %v45
    %v84 = vunpack.c.l.b16 %v46
    %v85 = vunpack.c.l.b16 %v47
    %v86 = vunpack.c.l.b16 %v48
    %v87 = vunpack.c.l.b16 %v49
    %v88 = vpack.c.b16 %v73, %v72
    %v89 = vpack.c.b16 %v75, %v74
    %v90 = vpack.c.b16 %v77, %v76
    %v91 = vpack.c.b16 %v79, %v78
    %v92 = vpack.c.b16 %v81, %v80
    %v93 = vpack.c.b16 %v83, %v82
    %v94 = vpack.c.b16 %v85, %v84
    %v95 = vpack.c.b16 %v87, %v86
    %104 = vmatprep.subr.bf16.mxu0 0
    %105 = vmatpush1.bf16.msra.mxu0 %v88
    %106 = vmatprep.subr.bf16.mxu0 0
    %107 = vmatpush1.bf16.msra.mxu0 %v89
    %108 = vmatprep.subr.bf16.mxu0 0
    %109 = vmatpush1.bf16.msra.mxu0 %v90
    %110 = vmatprep.subr.bf16.mxu0 0
    %111 = vmatpush1.bf16.msra.mxu0 %v91
    %112 = vmatprep.subr.bf16.mxu0 0
    %113 = vmatpush1.bf16.msra.mxu0 %v92
    %114 = vmatprep.subr.bf16.mxu0 0
    %115 = vmatpush1.bf16.msra.mxu0 %v93
    %116 = vmatprep.subr.bf16.mxu0 0
    %117 = vmatpush1.bf16.msra.mxu0 %v94
    %118 = vmatprep.subr.bf16.mxu0 0
    %119 = vmatpush1.bf16.msra.mxu0 %v95
    %120 = vmatprep.subr.bf16.mxu0 0
    %121 = vmatpush1.bf16.msra.mxu0 0
    %122 = vmatprep.subr.bf16.mxu0 0
    %123 = vmatpush1.bf16.msra.mxu0 0
    %124 = vmatprep.subr.bf16.mxu0 0
    %125 = vmatpush1.bf16.msra.mxu0 0
    %126 = vmatprep.subr.bf16.mxu0 0
    %127 = vmatpush1.bf16.msra.mxu0 0
    %128 = vmatprep.subr.bf16.mxu0 0
    %129 = vmatpush1.bf16.msra.mxu0 0
    %130 = vmatprep.subr.bf16.mxu0 0
    %131 = vmatpush1.bf16.msra.mxu0 0
    %132 = vmatprep.subr.bf16.mxu0 0
    %133 = vmatpush1.bf16.msra.mxu0 0
    %134 = vmatprep.subr.bf16.mxu0 0
    %135 = vmatpush1.bf16.msra.mxu0 0
    %136 = vmatprep.mubr.bf16.mxu0 0
    %137 = vmatmul.mubr.bf16.gmra.mrb[0].mxu0 %v54
    %v138 = vpop.f32.mrb[0].mxu0
    %v139 = vadd.f32 0.0, %v138
    %v140 = vpop.f32.mrb[0].mxu0
    %v141 = vpop.f32.mrb[0].mxu0
    %v142 = vadd.f32 0.0, %v141
    %v143 = vpop.f32.mrb[0].mxu0
    %144 = vdwg.mxu0
    %145 = vst [vmem:[#allocation2] sm:$0xff] %v139
    %146 = vst [vmem:[#allocation2 + $0x8] sm:$0xff] %v142
    %147 = vadd.xlane.f32.xlu0 %v139
    %v148 = vpop.xlane.xlu0 %147
    %149 = vadd.xlane.f32.xlu0 %v142
    %v150 = vpop.xlane.xlu0 %149
    %v151 = vadd.f32 %v148, 0.0
    %v152 = vadd.f32 %v150, 0.0
    %s153 = scalar_lea.vmem [#allocation3], 8
    %v154 = vld [vmem:[%s153] sm:$0xf]
    %v155 = vld [vmem:[%s153 + $0x4] sm:$0xf]
    %s156 = scalar_lea.vmem %s0, 64
    %v157 = vld [vmem:[%s156] sm:$0xf]
    %v158 = vld [vmem:[%s156 + $0x4] sm:$0xf]
    %v159 = vld [vmem:[%s156 + $0x8] sm:$0xf]
    %v160 = vld [vmem:[%s156 + $0xc] sm:$0xf]
    %v161 = vld [vmem:[%s156 + $0x10] sm:$0xf]
    %v162 = vld [vmem:[%s156 + $0x14] sm:$0xf]
    %v163 = vld [vmem:[%s156 + $0x18] sm:$0xf]
    %v164 = vld [vmem:[%s156 + $0x1c] sm:$0xf]
    %v165 = vld [vmem:[%s156 + $0x20] sm:$0xf]
    %v166 = vld [vmem:[%s156 + $0x24] sm:$0xf]
    %v167 = vld [vmem:[%s156 + $0x28] sm:$0xf]
    %v168 = vld [vmem:[%s156 + $0x2c] sm:$0xf]
    %v169 = vld [vmem:[%s156 + $0x30] sm:$0xf]
    %v170 = vld [vmem:[%s156 + $0x34] sm:$0xf]
    %v171 = vld [vmem:[%s156 + $0x38] sm:$0xf]
    %v172 = vld [vmem:[%s156 + $0x3c] sm:$0xf]
    %v175 = vunpack.c.l.b16 %v154
    %v176 = vunpack.c.l.b16 %v155
    %v177 = vpack.c.b16 %v176, %v175
    %v195 = vunpack.c.l.b16 %v157
    %v196 = vunpack.c.l.b16 %v158
    %v197 = vunpack.c.l.b16 %v159
    %v198 = vunpack.c.l.b16 %v160
    %v199 = vunpack.c.l.b16 %v161
    %v200 = vunpack.c.l.b16 %v162
    %v201 = vunpack.c.l.b16 %v163
    %v202 = vunpack.c.l.b16 %v164
    %v203 = vunpack.c.l.b16 %v165
    %v204 = vunpack.c.l.b16 %v166
    %v205 = vunpack.c.l.b16 %v167
    %v206 = vunpack.c.l.b16 %v168
    %v207 = vunpack.c.l.b16 %v169
    %v208 = vunpack.c.l.b16 %v170
    %v209 = vunpack.c.l.b16 %v171
    %v210 = vunpack.c.l.b16 %v172
    %v211 = vpack.c.b16 %v196, %v195
    %v212 = vpack.c.b16 %v198, %v197
    %v213 = vpack.c.b16 %v200, %v199
    %v214 = vpack.c.b16 %v202, %v201
    %v215 = vpack.c.b16 %v204, %v203
    %v216 = vpack.c.b16 %v206, %v205
    %v217 = vpack.c.b16 %v208, %v207
    %v218 = vpack.c.b16 %v210, %v209
    %227 = vmatprep.subr.bf16.mxu0 0
    %228 = vmatpush1.bf16.msra.mxu0 %v211
    %229 = vmatprep.subr.bf16.mxu0 0
    %230 = vmatpush1.bf16.msra.mxu0 %v212
    %231 = vmatprep.subr.bf16.mxu0 0
    %232 = vmatpush1.bf16.msra.mxu0 %v213
    %233 = vmatprep.subr.bf16.mxu0 0
    %234 = vmatpush1.bf16.msra.mxu0 %v214
    %235 = vmatprep.subr.bf16.mxu0 0
    %236 = vmatpush1.bf16.msra.mxu0 %v215
    %237 = vmatprep.subr.bf16.mxu0 0
    %238 = vmatpush1.bf16.msra.mxu0 %v216
    %239 = vmatprep.subr.bf16.mxu0 0
    %240 = vmatpush1.bf16.msra.mxu0 %v217
    %241 = vmatprep.subr.bf16.mxu0 0
    %242 = vmatpush1.bf16.msra.mxu0 %v218
    %243 = vmatprep.subr.bf16.mxu0 0
    %244 = vmatpush1.bf16.msra.mxu0 0
    %245 = vmatprep.subr.bf16.mxu0 0
    %246 = vmatpush1.bf16.msra.mxu0 0
    %247 = vmatprep.subr.bf16.mxu0 0
    %248 = vmatpush1.bf16.msra.mxu0 0
    %249 = vmatprep.subr.bf16.mxu0 0
    %250 = vmatpush1.bf16.msra.mxu0 0
    %251 = vmatprep.subr.bf16.mxu0 0
    %252 = vmatpush1.bf16.msra.mxu0 0
    %253 = vmatprep.subr.bf16.mxu0 0
    %254 = vmatpush1.bf16.msra.mxu0 0
    %255 = vmatprep.subr.bf16.mxu0 0
    %256 = vmatpush1.bf16.msra.mxu0 0
    %257 = vmatprep.subr.bf16.mxu0 0
    %258 = vmatpush1.bf16.msra.mxu0 0
    %259 = vmatprep.mubr.bf16.mxu0 0
    %260 = vmatmul.mubr.bf16.gmra.mrb[0].mxu0 %v177
    %v261 = vpop.f32.mrb[0].mxu0
    %v262 = vadd.f32 0.0, %v261
    %v263 = vpop.f32.mrb[0].mxu0
    %v264 = vpop.f32.mrb[0].mxu0
    %v265 = vadd.f32 0.0, %v264
    %v266 = vpop.f32.mrb[0].mxu0
    %267 = vdwg.mxu0
    %s268 = scalar_lea.vmem [#allocation2], 16
    %269 = vst [vmem:[%s268] sm:$0xff] %v262
    %270 = vst [vmem:[%s268 + $0x8] sm:$0xff] %v265
    %271 = vadd.xlane.f32.xlu0 %v262
    %v272 = vpop.xlane.xlu0 %271
    %273 = vadd.xlane.f32.xlu0 %v265
    %v274 = vpop.xlane.xlu0 %273
    %v275 = vadd.f32 %v151, %v272
    %v276 = vadd.f32 %v152, %v274
    %s277 = scalar_lea.vmem [#allocation3], 16
    %v278 = vld [vmem:[%s277] sm:$0xf]
    %v279 = vld [vmem:[%s277 + $0x4] sm:$0xf]
    %s280 = scalar_lea.vmem %s0, 128
    %v281 = vld [vmem:[%s280] sm:$0xf]
    %v282 = vld [vmem:[%s280 + $0x4] sm:$0xf]
    %v283 = vld [vmem:[%s280 + $0x8] sm:$0xf]
    %v284 = vld [vmem:[%s280 + $0xc] sm:$0xf]
    %v285 = vld [vmem:[%s280 + $0x10] sm:$0xf]
    %v286 = vld [vmem:[%s280 + $0x14] sm:$0xf]
    %v287 = vld [vmem:[%s280 + $0x18] sm:$0xf]
    %v288 = vld [vmem:[%s280 + $0x1c] sm:$0xf]
    %v289 = vld [vmem:[%s280 + $0x20] sm:$0xf]
    %v290 = vld [vmem:[%s280 + $0x24] sm:$0xf]
    %v291 = vld [vmem:[%s280 + $0x28] sm:$0xf]
    %v292 = vld [vmem:[%s280 + $0x2c] sm:$0xf]
    %v293 = vld [vmem:[%s280 + $0x30] sm:$0xf]
    %v294 = vld [vmem:[%s280 + $0x34] sm:$0xf]
    %v295 = vld [vmem:[%s280 + $0x38] sm:$0xf]
    %v296 = vld [vmem:[%s280 + $0x3c] sm:$0xf]
    %v299 = vunpack.c.l.b16 %v278
    %v300 = vunpack.c.l.b16 %v279
    %v301 = vpack.c.b16 %v300, %v299
    %v319 = vunpack.c.l.b16 %v281
    %v320 = vunpack.c.l.b16 %v282
    %v321 = vunpack.c.l.b16 %v283
    %v322 = vunpack.c.l.b16 %v284
    %v323 = vunpack.c.l.b16 %v285
    %v324 = vunpack.c.l.b16 %v286
    %v325 = vunpack.c.l.b16 %v287
    %v326 = vunpack.c.l.b16 %v288
    %v327 = vunpack.c.l.b16 %v289
    %v328 = vunpack.c.l.b16 %v290
    %v329 = vunpack.c.l.b16 %v291
    %v330 = vunpack.c.l.b16 %v292
    %v331 = vunpack.c.l.b16 %v293
    %v332 = vunpack.c.l.b16 %v294
    %v333 = vunpack.c.l.b16 %v295
    %v334 = vunpack.c.l.b16 %v296
    %v335 = vpack.c.b16 %v320, %v319
    %v336 = vpack.c.b16 %v322, %v321
    %v337 = vpack.c.b16 %v324, %v323
    %v338 = vpack.c.b16 %v326, %v325
    %v339 = vpack.c.b16 %v328, %v327
    %v340 = vpack.c.b16 %v330, %v329
    %v341 = vpack.c.b16 %v332, %v331
    %v342 = vpack.c.b16 %v334, %v333
    %351 = vmatprep.subr.bf16.mxu0 0
    %352 = vmatpush1.bf16.msra.mxu0 %v335
    %353 = vmatprep.subr.bf16.mxu0 0
    %354 = vmatpush1.bf16.msra.mxu0 %v336
    %355 = vmatprep.subr.bf16.mxu0 0
    %356 = vmatpush1.bf16.msra.mxu0 %v337
    %357 = vmatprep.subr.bf16.mxu0 0
    %358 = vmatpush1.bf16.msra.mxu0 %v338
    %359 = vmatprep.subr.bf16.mxu0 0
    %360 = vmatpush1.bf16.msra.mxu0 %v339
    %361 = vmatprep.subr.bf16.mxu0 0
    %362 = vmatpush1.bf16.msra.mxu0 %v340
    %363 = vmatprep.subr.bf16.mxu0 0
    %364 = vmatpush1.bf16.msra.mxu0 %v341
    %365 = vmatprep.subr.bf16.mxu0 0
    %366 = vmatpush1.bf16.msra.mxu0 %v342
    %367 = vmatprep.subr.bf16.mxu0 0
    %368 = vmatpush1.bf16.msra.mxu0 0
    %369 = vmatprep.subr.bf16.mxu0 0
    %370 = vmatpush1.bf16.msra.mxu0 0
    %371 = vmatprep.subr.bf16.mxu0 0
    %372 = vmatpush1.bf16.msra.mxu0 0
    %373 = vmatprep.subr.bf16.mxu0 0
    %374 = vmatpush1.bf16.msra.mxu0 0
    %375 = vmatprep.subr.bf16.mxu0 0
    %376 = vmatpush1.bf16.msra.mxu0 0
    %377 = vmatprep.subr.bf16.mxu0 0
    %378 = vmatpush1.bf16.msra.mxu0 0
    %379 = vmatprep.subr.bf16.mxu0 0
    %380 = vmatpush1.bf16.msra.mxu0 0
    %381 = vmatprep.subr.bf16.mxu0 0
    %382 = vmatpush1.bf16.msra.mxu0 0
    %383 = vmatprep.mubr.bf16.mxu0 0
    %384 = vmatmul.mubr.bf16.gmra.mrb[0].mxu0 %v301
    %v385 = vpop.f32.mrb[0].mxu0
    %v386 = vadd.f32 0.0, %v385
    %v387 = vpop.f32.mrb[0].mxu0
    %v388 = vpop.f32.mrb[0].mxu0
    %v389 = vadd.f32 0.0, %v388
    %v390 = vpop.f32.mrb[0].mxu0
    %391 = vdwg.mxu0
    %s392 = scalar_lea.vmem [#allocation2], 32
    %393 = vst [vmem:[%s392] sm:$0xff] %v386
    %394 = vst [vmem:[%s392 + $0x8] sm:$0xff] %v389
    %395 = vadd.xlane.f32.xlu0 %v386
    %v396 = vpop.xlane.xlu0 %395
    %397 = vadd.xlane.f32.xlu0 %v389
    %v398 = vpop.xlane.xlu0 %397
    %v399 = vadd.f32 %v275, %v396
    %v400 = vadd.f32 %v276, %v398
    %s401 = scalar_lea.vmem [#allocation3], 24
    %v402 = vld [vmem:[%s401] sm:$0xf]
    %v403 = vld [vmem:[%s401 + $0x4] sm:$0xf]
    %s404 = scalar_lea.vmem %s0, 192
    %v405 = vld [vmem:[%s404] sm:$0xf]
    %v406 = vld [vmem:[%s404 + $0x4] sm:$0xf]
    %v407 = vld [vmem:[%s404 + $0x8] sm:$0xf]
    %v408 = vld [vmem:[%s404 + $0xc] sm:$0xf]
    %v409 = vld [vmem:[%s404 + $0x10] sm:$0xf]
    %v410 = vld [vmem:[%s404 + $0x14] sm:$0xf]
    %v411 = vld [vmem:[%s404 + $0x18] sm:$0xf]
    %v412 = vld [vmem:[%s404 + $0x1c] sm:$0xf]
    %v413 = vld [vmem:[%s404 + $0x20] sm:$0xf]
    %v414 = vld [vmem:[%s404 + $0x24] sm:$0xf]
    %v415 = vld [vmem:[%s404 + $0x28] sm:$0xf]
    %v416 = vld [vmem:[%s404 + $0x2c] sm:$0xf]
    %v417 = vld [vmem:[%s404 + $0x30] sm:$0xf]
    %v418 = vld [vmem:[%s404 + $0x34] sm:$0xf]
    %v419 = vld [vmem:[%s404 + $0x38] sm:$0xf]
    %v420 = vld [vmem:[%s404 + $0x3c] sm:$0xf]
    %v423 = vunpack.c.l.b16 %v402
    %v424 = vunpack.c.l.b16 %v403
    %v425 = vpack.c.b16 %v424, %v423
    %v443 = vunpack.c.l.b16 %v405
    %v444 = vunpack.c.l.b16 %v406
    %v445 = vunpack.c.l.b16 %v407
    %v446 = vunpack.c.l.b16 %v408
    %v447 = vunpack.c.l.b16 %v409
    %v448 = vunpack.c.l.b16 %v410
    %v449 = vunpack.c.l.b16 %v411
    %v450 = vunpack.c.l.b16 %v412
    %v451 = vunpack.c.l.b16 %v413
    %v452 = vunpack.c.l.b16 %v414
    %v453 = vunpack.c.l.b16 %v415
    %v454 = vunpack.c.l.b16 %v416
    %v455 = vunpack.c.l.b16 %v417
    %v456 = vunpack.c.l.b16 %v418
    %v457 = vunpack.c.l.b16 %v419
    %v458 = vunpack.c.l.b16 %v420
    %v459 = vpack.c.b16 %v444, %v443
    %v460 = vpack.c.b16 %v446, %v445
    %v461 = vpack.c.b16 %v448, %v447
    %v462 = vpack.c.b16 %v450, %v449
    %v463 = vpack.c.b16 %v452, %v451
    %v464 = vpack.c.b16 %v454, %v453
    %v465 = vpack.c.b16 %v456, %v455
    %v466 = vpack.c.b16 %v458, %v457
    %475 = vmatprep.subr.bf16.mxu0 0
    %476 = vmatpush1.bf16.msra.mxu0 %v459
    %477 = vmatprep.subr.bf16.mxu0 0
    %478 = vmatpush1.bf16.msra.mxu0 %v460
    %479 = vmatprep.subr.bf16.mxu0 0
    %480 = vmatpush1.bf16.msra.mxu0 %v461
    %481 = vmatprep.subr.bf16.mxu0 0
    %482 = vmatpush1.bf16.msra.mxu0 %v462
    %483 = vmatprep.subr.bf16.mxu0 0
    %484 = vmatpush1.bf16.msra.mxu0 %v463
    %485 = vmatprep.subr.bf16.mxu0 0
    %486 = vmatpush1.bf16.msra.mxu0 %v464
    %487 = vmatprep.subr.bf16.mxu0 0
    %488 = vmatpush1.bf16.msra.mxu0 %v465
    %489 = vmatprep.subr.bf16.mxu0 0
    %490 = vmatpush1.bf16.msra.mxu0 %v466
    %491 = vmatprep.subr.bf16.mxu0 0
    %492 = vmatpush1.bf16.msra.mxu0 0
    %493 = vmatprep.subr.bf16.mxu0 0
    %494 = vmatpush1.bf16.msra.mxu0 0
    %495 = vmatprep.subr.bf16.mxu0 0
    %496 = vmatpush1.bf16.msra.mxu0 0
    %497 = vmatprep.subr.bf16.mxu0 0
    %498 = vmatpush1.bf16.msra.mxu0 0
    %499 = vmatprep.subr.bf16.mxu0 0
    %500 = vmatpush1.bf16.msra.mxu0 0
    %501 = vmatprep.subr.bf16.mxu0 0
    %502 = vmatpush1.bf16.msra.mxu0 0
    %503 = vmatprep.subr.bf16.mxu0 0
    %504 = vmatpush1.bf16.msra.mxu0 0
    %505 = vmatprep.subr.bf16.mxu0 0
    %506 = vmatpush1.bf16.msra.mxu0 0
    %507 = vmatprep.mubr.bf16.mxu0 0
    %508 = vmatmul.mubr.bf16.gmra.mrb[0].mxu0 %v425
    %v509 = vpop.f32.mrb[0].mxu0
    %v510 = vadd.f32 0.0, %v509
    %v511 = vpop.f32.mrb[0].mxu0
    %v512 = vpop.f32.mrb[0].mxu0
    %v513 = vadd.f32 0.0, %v512
    %v514 = vpop.f32.mrb[0].mxu0
    %515 = vdwg.mxu0
    %s516 = scalar_lea.vmem [#allocation2], 48
    %517 = vst [vmem:[%s516] sm:$0xff] %v510
    %518 = vst [vmem:[%s516 + $0x8] sm:$0xff] %v513
    %519 = vadd.xlane.f32.xlu0 %v510
    %v520 = vpop.xlane.xlu0 %519
    %521 = vadd.xlane.f32.xlu0 %v513
    %v522 = vpop.xlane.xlu0 %521
    %v523 = vadd.f32 %v399, %v520
    %v524 = vadd.f32 %v400, %v522
    %v525 = vmul.f32 %v523, 0.001953125
    %v526 = vmul.f32 %v524, 0.001953125
    %v527 = vld [vmem:[#allocation2] sm:$0xff]
    %v528 = vld [vmem:[#allocation2 + $0x8] sm:$0xff]
    %v529 = vsub.f32 %v527, %v525
    %v530 = vsub.f32 %v528, %v526
    %v531 = vmul.f32 %v529, %v529
    %v532 = vmul.f32 %v530, %v530
    %533 = vadd.xlane.f32.xlu0 %v531
    %v534 = vpop.xlane.xlu0 %533
    %535 = vadd.xlane.f32.xlu0 %v532
    %v536 = vpop.xlane.xlu0 %535
    %v537 = vadd.f32 %v534, 0.0
    %v538 = vadd.f32 %v536, 0.0
    %v539 = vld [vmem:[%s268] sm:$0xff]
    %v540 = vld [vmem:[%s268 + $0x8] sm:$0xff]
    %v541 = vsub.f32 %v539, %v525
    %v542 = vsub.f32 %v540, %v526
    %v543 = vmul.f32 %v541, %v541
    %v544 = vmul.f32 %v542, %v542
    %545 = vadd.xlane.f32.xlu0 %v543
    %v546 = vpop.xlane.xlu0 %545
    %547 = vadd.xlane.f32.xlu0 %v544
    %v548 = vpop.xlane.xlu0 %547
    %v549 = vadd.f32 %v537, %v546
    %v550 = vadd.f32 %v538, %v548
    %v551 = vld [vmem:[%s392] sm:$0xff]
    %v552 = vld [vmem:[%s392 + $0x8] sm:$0xff]
    %v553 = vsub.f32 %v551, %v525
    %v554 = vsub.f32 %v552, %v526
    %v555 = vmul.f32 %v553, %v553
    %v556 = vmul.f32 %v554, %v554
    %557 = vadd.xlane.f32.xlu0 %v555
    %v558 = vpop.xlane.xlu0 %557
    %559 = vadd.xlane.f32.xlu0 %v556
    %v560 = vpop.xlane.xlu0 %559
    %v561 = vadd.f32 %v549, %v558
    %v562 = vadd.f32 %v550, %v560
    %v563 = vld [vmem:[%s516] sm:$0xff]
    %v564 = vld [vmem:[%s516 + $0x8] sm:$0xff]
    %v565 = vsub.f32 %v563, %v525
    %v566 = vsub.f32 %v564, %v526
    %v567 = vmul.f32 %v565, %v565
    %v568 = vmul.f32 %v566, %v566
    %569 = vadd.xlane.f32.xlu0 %v567
    %v570 = vpop.xlane.xlu0 %569
    %571 = vadd.xlane.f32.xlu0 %v568
    %v572 = vpop.xlane.xlu0 %571
    %v573 = vadd.f32 %v561, %v570
    %v574 = vadd.f32 %v562, %v572
    %v575 = vmul.f32 %v573, 0.001953125
    %v576 = vmul.f32 %v574, 0.001953125
    %v577 = vadd.f32 %v575, 1e-05
    %v578 = vadd.f32 %v576, 1e-05
    %v579 = vrsqrt.pop %v577
    %v580 = vrsqrt.pop %v578
    %v581 = vld [vmem:[%s2] sm:$0xff]
    %v582 = vld [vmem:[%s2 + $0x8] sm:$0xff]
    %v583 = vmul.f32 %v581, %v579
    %v584 = vmul.f32 %v582, %v580
    %v585 = vld [vmem:[%s3] sm:$0xff]
    %v586 = vld [vmem:[%s3 + $0x8] sm:$0xff]
    %v587 = vmul.f32 %v525, %v583
    %v588 = vmul.f32 %v526, %v584
    %v589 = vsub.f32 %v585, %v587
    %v590 = vsub.f32 %v586, %v588
    %592 = vset.pattern.permute.xlu0 0
    %593 = vperm.xlu0 %592, %v583
    %v594 = vpop.permute.xlu0 %593
    %597 = vset.pattern.permute.xlu0 0
    %598 = vperm.xlu0 %597, %v584
    %v599 = vpop.permute.xlu0 %598
    %v601 = vmul.f32 %v527, %v594
    %v602 = vmul.f32 %v528, %v599
    %604 = vset.pattern.permute.xlu0 0
    %605 = vperm.xlu0 %604, %v589
    %v606 = vpop.permute.xlu0 %605
    %609 = vset.pattern.permute.xlu0 0
    %610 = vperm.xlu0 %609, %v590
    %v611 = vpop.permute.xlu0 %610
    %v613 = vadd.f32 %v601, %v606
    %v614 = vadd.f32 %v602, %v611
    %v615 = vmax.f32 %v613, 0.0
    %v616 = vmax.f32 %v614, 0.0
    %v617 = vpack.c.bf16 %v616, %v615
    %v619 = vunpack.c.l.b16 %v617
    %v620 = vunpack.c.h.b16 %v617
    %v621 = vpack.c.b16 %v619, %v619
    %v622 = vpack.c.b16 %v620, %v620
    %625 = vst [vmem:[%s4] sm:$0xf] %v621
    %626 = vst [vmem:[%s4 + $0x4] sm:$0xf] %v622
    %v627 = vld [vmem:[%s268] sm:$0xff]
    %v628 = vld [vmem:[%s268 + $0x8] sm:$0xff]
    %v629 = vmul.f32 %v627, %v594
    %v630 = vmul.f32 %v628, %v599
    %v631 = vadd.f32 %v629, %v606
    %v632 = vadd.f32 %v630, %v611
    %v633 = vmax.f32 %v631, 0.0
    %v634 = vmax.f32 %v632, 0.0
    %v635 = vpack.c.bf16 %v634, %v633
    %v637 = vunpack.c.l.b16 %v635
    %v638 = vunpack.c.h.b16 %v635
    %v639 = vpack.c.b16 %v637, %v637
    %v640 = vpack.c.b16 %v638, %v638
    %s643 = scalar_lea.vmem %s4, 8
    %644 = vst [vmem:[%s643] sm:$0xf] %v639
    %645 = vst [vmem:[%s643 + $0x4] sm:$0xf] %v640
    %v646 = vld [vmem:[%s392] sm:$0xff]
    %v647 = vld [vmem:[%s392 + $0x8] sm:$0xff]
    %v648 = vmul.f32 %v646, %v594
    %v649 = vmul.f32 %v647, %v599
    %v650 = vadd.f32 %v648, %v606
    %v651 = vadd.f32 %v649, %v611
    %v652 = vmax.f32 %v650, 0.0
    %v653 = vmax.f32 %v651, 0.0
    %v654 = vpack.c.bf16 %v653, %v652
    %v656 = vunpack.c.l.b16 %v654
    %v657 = vunpack.c.h.b16 %v654
    %v658 = vpack.c.b16 %v656, %v656
    %v659 = vpack.c.b16 %v657, %v657
    %s662 = scalar_lea.vmem %s4, 16
    %663 = vst [vmem:[%s662] sm:$0xf] %v658
    %664 = vst [vmem:[%s662 + $0x4] sm:$0xf] %v659
    %v665 = vld [vmem:[%s516] sm:$0xff]
    %v666 = vld [vmem:[%s516 + $0x8] sm:$0xff]
    %v667 = vmul.f32 %v665, %v594
    %v668 = vmul.f32 %v666, %v599
    %v669 = vadd.f32 %v667, %v606
    %v670 = vadd.f32 %v668, %v611
    %v671 = vmax.f32 %v669, 0.0
    %v672 = vmax.f32 %v670, 0.0
    %v673 = vpack.c.bf16 %v672, %v671
    %v675 = vunpack.c.l.b16 %v673
    %v676 = vunpack.c.h.b16 %v673
    %v677 = vpack.c.b16 %v675, %v675
    %v678 = vpack.c.b16 %v676, %v676
    %s681 = scalar_lea.vmem %s4, 24
    %682 = vst [vmem:[%s681] sm:$0xf] %v677
    %683 = vst [vmem:[%s681 + $0x4] sm:$0xf] %v678
    // Predicated region
    $region22: #{generator_forward.7} parent=1 // pred_check
      _
    $region23: #{generator_forward.7} parent=1 // pred_check_branch
      %685 = sbr.rel (0) target = $region25
    $region24: #{generator_forward.7} parent=1 // pred_region
      _
    $region25: #{generator_forward.7} parent=1 // pred_fallthru
      _
    // Predicated region
    $region26: #{generator_forward.7} parent=1 // pred_check
      _
    $region27: #{generator_forward.7} parent=1 // pred_check_branch
      %687 = sbr.rel (0) target = $region29
    $region28: #{generator_forward.7} parent=1 // pred_region
      _
    $region29: #{generator_forward.7} parent=1 // pred_fallthru
      _
    %688 = vsyncpa [#allocation4], 1

// kernel: generator_forward.8
$region0: #{generator_forward.8}
  #allocation0 [shape = 'u32[]', space=smem, size = 0x4, offset = 0x4, fixed_abs, tag = 'smem constant byte address 0x4 - core index']
  #allocation1 [shape = 'u32[144,128]{1,0:T(1,128)}', space=vmem, size = 0x12000, scoped, tag = 'internal scratch']
  #allocation2 [shape = 'f32[4,8,512]{2,1,0:T(8,128)}', space=vmem, size = 0x10000, scoped, tag = 'scratch operand']
  %s0 = inlined_call_operand.vmem [shape: bf16[4,64,512], index: 0, kind: input, shape index: {}]
  %s1 = inlined_call_operand.vmem [shape: bf16[4,8,64], index: 1, kind: input, shape index: {}]
  %s2 = inlined_call_operand.vmem [shape: f32[8,1], index: 2, kind: input, shape index: {}]
  %s3 = inlined_call_operand.vmem [shape: f32[8,1], index: 3, kind: input, shape index: {}]
  %s4 = inlined_call_operand.vmem [shape: bf16[4,8,512], index: 4, kind: output, shape index: {}]
  %s5 = sld [smem:[#allocation0]]
  $region26: #{generator_forward.8} parent=0
    _
  %s7 = ssub.s32 1, %s5
  %s8 = scalar_select 0, %s7, %s5
  // Predicated region
  $region2: #{generator_forward.8} parent=0 // pred_check
    _
  $region3: #{generator_forward.8} parent=0 // pred_check_branch
    %10 = sbr.rel (0) target = $region5
  $region4: #{generator_forward.8} parent=0 // pred_region
    _
  $region5: #{generator_forward.8} parent=0 // pred_fallthru
    _
  // Predicated region
  $region6: #{generator_forward.8} parent=0 // pred_check
    _
  $region7: #{generator_forward.8} parent=0 // pred_check_branch
    %12 = sbr.rel (0) target = $region9
  $region8: #{generator_forward.8} parent=0 // pred_region
    _
  $region9: #{generator_forward.8} parent=0 // pred_fallthru
    _
  // Predicated region
  $region10: #{generator_forward.8} parent=0 // pred_check
    _
  $region11: #{generator_forward.8} parent=0 // pred_check_branch
    %14 = sbr.rel (0) target = $region13
  $region12: #{generator_forward.8} parent=0 // pred_region
    _
  $region13: #{generator_forward.8} parent=0 // pred_fallthru
    _
  // Predicated region
  $region14: #{generator_forward.8} parent=0 // pred_check
    _
  $region15: #{generator_forward.8} parent=0 // pred_check_branch
    %16 = sbr.rel (0) target = $region17
  $region16: #{generator_forward.8} parent=0 // pred_region
    _
  $region17: #{generator_forward.8} parent=0 // pred_fallthru
    _
  %v18 = vld [vmem:[%s1] sm:$0xf]
  %v19 = vld [vmem:[%s0] sm:$0xff]
  %v20 = vld [vmem:[%s0 + $0x8] sm:$0xff]
  %v21 = vld [vmem:[%s0 + $0x10] sm:$0xff]
  %v22 = vld [vmem:[%s0 + $0x18] sm:$0xff]
  %v23 = vld [vmem:[%s0 + $0x20] sm:$0xff]
  %v24 = vld [vmem:[%s0 + $0x28] sm:$0xff]
  %v25 = vld [vmem:[%s0 + $0x30] sm:$0xff]
  %v26 = vld [vmem:[%s0 + $0x38] sm:$0xff]
  %v27 = vld [vmem:[%s0 + $0x40] sm:$0xff]
  %v28 = vld [vmem:[%s0 + $0x48] sm:$0xff]
  %v29 = vld [vmem:[%s0 + $0x50] sm:$0xff]
  %v30 = vld [vmem:[%s0 + $0x58] sm:$0xff]
  %v31 = vld [vmem:[%s0 + $0x60] sm:$0xff]
  %v32 = vld [vmem:[%s0 + $0x68] sm:$0xff]
  %v33 = vld [vmem:[%s0 + $0x70] sm:$0xff]
  %v34 = vld [vmem:[%s0 + $0x78] sm:$0xff]
  %v51 = vunpack.c.l.b16 %v19
  %v52 = vunpack.c.h.b16 %v19
  %v53 = vunpack.c.l.b16 %v20
  %v54 = vunpack.c.h.b16 %v20
  %v55 = vunpack.c.l.b16 %v21
  %v56 = vunpack.c.h.b16 %v21
  %v57 = vunpack.c.l.b16 %v22
  %v58 = vunpack.c.h.b16 %v22
  %v59 = vunpack.c.l.b16 %v23
  %v60 = vunpack.c.h.b16 %v23
  %v61 = vunpack.c.l.b16 %v24
  %v62 = vunpack.c.h.b16 %v24
  %v63 = vunpack.c.l.b16 %v25
  %v64 = vunpack.c.h.b16 %v25
  %v65 = vunpack.c.l.b16 %v26
  %v66 = vunpack.c.h.b16 %v26
  %v67 = vunpack.c.l.b16 %v27
  %v68 = vunpack.c.h.b16 %v27
  %v69 = vunpack.c.l.b16 %v28
  %v70 = vunpack.c.h.b16 %v28
  %v71 = vunpack.c.l.b16 %v29
  %v72 = vunpack.c.h.b16 %v29
  %v73 = vunpack.c.l.b16 %v30
  %v74 = vunpack.c.h.b16 %v30
  %v75 = vunpack.c.l.b16 %v31
  %v76 = vunpack.c.h.b16 %v31
  %v77 = vunpack.c.l.b16 %v32
  %v78 = vunpack.c.h.b16 %v32
  %v79 = vunpack.c.l.b16 %v33
  %v80 = vunpack.c.h.b16 %v33
  %v81 = vunpack.c.l.b16 %v34
  %v82 = vunpack.c.h.b16 %v34
  %v83 = vpack.c.b16 %v55, %v51
  %v84 = vpack.c.b16 %v56, %v52
  %v85 = vpack.c.b16 %v57, %v53
  %v86 = vpack.c.b16 %v58, %v54
  %v87 = vpack.c.b16 %v63, %v59
  %v88 = vpack.c.b16 %v64, %v60
  %v89 = vpack.c.b16 %v65, %v61
  %v90 = vpack.c.b16 %v66, %v62
  %v91 = vpack.c.b16 %v71, %v67
  %v92 = vpack.c.b16 %v72, %v68
  %v93 = vpack.c.b16 %v73, %v69
  %v94 = vpack.c.b16 %v74, %v70
  %v95 = vpack.c.b16 %v79, %v75
  %v96 = vpack.c.b16 %v80, %v76
  %v97 = vpack.c.b16 %v81, %v77
  %v98 = vpack.c.b16 %v82, %v78
  %vm115 = vcmask 523264
  %v117 = vsel %vm115, %v18, 0
  %119 = vmatprep.subr.bf16.mxu0 %v84
  %120 = vmatpush1.bf16.msra.mxu0 %v83
  %121 = vmatprep.subr.bf16.mxu0 %v88
  %122 = vmatpush1.bf16.msra.mxu0 %v87
  %123 = vmatprep.subr.bf16.mxu0 %v92
  %124 = vmatpush1.bf16.msra.mxu0 %v91
  %125 = vmatprep.subr.bf16.mxu0 %v96
  %126 = vmatpush1.bf16.msra.mxu0 %v95
  %127 = vmatprep.subr.bf16.mxu0 0
  %128 = vmatpush1.bf16.msra.mxu0 0
  %129 = vmatprep.subr.bf16.mxu0 0
  %130 = vmatpush1.bf16.msra.mxu0 0
  %131 = vmatprep.subr.bf16.mxu0 0
  %132 = vmatpush1.bf16.msra.mxu0 0
  %133 = vmatprep.subr.bf16.mxu0 0
  %134 = vmatpush1.bf16.msra.mxu0 0
  %135 = vmatprep.subr.bf16.mxu0 0
  %136 = vmatpush1.bf16.msra.mxu0 0
  %137 = vmatprep.subr.bf16.mxu0 0
  %138 = vmatpush1.bf16.msra.mxu0 0
  %139 = vmatprep.subr.bf16.mxu0 0
  %140 = vmatpush1.bf16.msra.mxu0 0
  %141 = vmatprep.subr.bf16.mxu0 0
  %142 = vmatpush1.bf16.msra.mxu0 0
  %143 = vmatprep.subr.bf16.mxu0 0
  %144 = vmatpush1.bf16.msra.mxu0 0
  %145 = vmatprep.subr.bf16.mxu0 0
  %146 = vmatpush1.bf16.msra.mxu0 0
  %147 = vmatprep.subr.bf16.mxu0 0
  %148 = vmatpush1.bf16.msra.mxu0 0
  %149 = vmatprep.subr.bf16.mxu0 0
  %150 = vmatpush1.bf16.msra.mxu0 0
  %151 = vmatprep.mubr.bf16.mxu0 0
  %152 = vmatmul.mubr.bf16.gmra.mrb[0].mxu0 %v117
  %v153 = vpop.f32.mrb[0].mxu0
  %v154 = vadd.f32 0.0, %v153
  %v155 = vpop.f32.mrb[0].mxu0
  %v156 = vadd.f32 0.0, %v155
  %v157 = vpop.f32.mrb[0].mxu0
  %v158 = vpop.f32.mrb[0].mxu0
  %159 = vdwg.mxu0
  %160 = vmatprep.subr.bf16.mxu0 %v86
  %161 = vmatpush1.bf16.msra.mxu0 %v85
  %162 = vmatprep.subr.bf16.mxu0 %v90
  %163 = vmatpush1.bf16.msra.mxu0 %v89
  %164 = vmatprep.subr.bf16.mxu0 %v94
  %165 = vmatpush1.bf16.msra.mxu0 %v93
  %166 = vmatprep.subr.bf16.mxu0 %v98
  %167 = vmatpush1.bf16.msra.mxu0 %v97
  %168 = vmatprep.subr.bf16.mxu0 0
  %169 = vmatpush1.bf16.msra.mxu0 0
  %170 = vmatprep.subr.bf16.mxu0 0
  %171 = vmatpush1.bf16.msra.mxu0 0
  %172 = vmatprep.subr.bf16.mxu0 0
  %173 = vmatpush1.bf16.msra.mxu0 0
  %174 = vmatprep.subr.bf16.mxu0 0
  %175 = vmatpush1.bf16.msra.mxu0 0
  %176 = vmatprep.subr.bf16.mxu0 0
  %177 = vmatpush1.bf16.msra.mxu0 0
  %178 = vmatprep.subr.bf16.mxu0 0
  %179 = vmatpush1.bf16.msra.mxu0 0
  %180 = vmatprep.subr.bf16.mxu0 0
  %181 = vmatpush1.bf16.msra.mxu0 0
  %182 = vmatprep.subr.bf16.mxu0 0
  %183 = vmatpush1.bf16.msra.mxu0 0
  %184 = vmatprep.subr.bf16.mxu0 0
  %185 = vmatpush1.bf16.msra.mxu0 0
  %186 = vmatprep.subr.bf16.mxu0 0
  %187 = vmatpush1.bf16.msra.mxu0 0
  %188 = vmatprep.subr.bf16.mxu0 0
  %189 = vmatpush1.bf16.msra.mxu0 0
  %190 = vmatprep.subr.bf16.mxu0 0
  %191 = vmatpush1.bf16.msra.mxu0 0
  %192 = vmatprep.mubr.bf16.mxu0 0
  %193 = vmatmul.mubr.bf16.gmra.mrb[0].mxu0 %v117
  %v194 = vpop.f32.mrb[0].mxu0
  %v195 = vadd.f32 0.0, %v194
  %v196 = vpop.f32.mrb[0].mxu0
  %v197 = vadd.f32 0.0, %v196
  %v198 = vpop.f32.mrb[0].mxu0
  %v199 = vpop.f32.mrb[0].mxu0
  %200 = vdwg.mxu0
  %201 = vst [vmem:[#allocation2] sm:$0xff] %v154
  %202 = vst [vmem:[#allocation2 + $0x8] sm:$0xff] %v156
  %203 = vst [vmem:[#allocation2 + $0x10] sm:$0xff] %v195
  %204 = vst [vmem:[#allocation2 + $0x18] sm:$0xff] %v197
  %v205 = vadd.f32 %v154, %v156
  %v206 = vadd.f32 %v205, %v195
  %v207 = vadd.f32 %v206, %v197
  %208 = vadd.xlane.f32.xlu0 %v207
  %v209 = vpop.xlane.xlu0 %208
  %v210 = vadd.f32 %v209, 0.0
  %s211 = scalar_lea.vmem %s1, 4
  %v212 = vld [vmem:[%s211] sm:$0xf]
  %s213 = scalar_lea.vmem %s0, 128
  %v214 = vld [vmem:[%s213] sm:$0xff]
  %v215 = vld [vmem:[%s213 + $0x8] sm:$0xff]
  %v216 = vld [vmem:[%s213 + $0x10] sm:$0xff]
  %v217 = vld [vmem:[%s213 + $0x18] sm:$0xff]
  %v218 = vld [vmem:[%s213 + $0x20] sm:$0xff]
  %v219 = vld [vmem:[%s213 + $0x28] sm:$0xff]
  %v220 = vld [vmem:[%s213 + $0x30] sm:$0xff]
  %v221 = vld [vmem:[%s213 + $0x38] sm:$0xff]
  %v222 = vld [vmem:[%s213 + $0x40] sm:$0xff]
  %v223 = vld [vmem:[%s213 + $0x48] sm:$0xff]
  %v224 = vld [vmem:[%s213 + $0x50] sm:$0xff]
  %v225 = vld [vmem:[%s213 + $0x58] sm:$0xff]
  %v226 = vld [vmem:[%s213 + $0x60] sm:$0xff]
  %v227 = vld [vmem:[%s213 + $0x68] sm:$0xff]
  %v228 = vld [vmem:[%s213 + $0x70] sm:$0xff]
  %v229 = vld [vmem:[%s213 + $0x78] sm:$0xff]
  %v246 = vunpack.c.l.b16 %v214
  %v247 = vunpack.c.h.b16 %v214
  %v248 = vunpack.c.l.b16 %v215
  %v249 = vunpack.c.h.b16 %v215
  %v250 = vunpack.c.l.b16 %v216
  %v251 = vunpack.c.h.b16 %v216
  %v252 = vunpack.c.l.b16 %v217
  %v253 = vunpack.c.h.b16 %v217
  %v254 = vunpack.c.l.b16 %v218
  %v255 = vunpack.c.h.b16 %v218
  %v256 = vunpack.c.l.b16 %v219
  %v257 = vunpack.c.h.b16 %v219
  %v258 = vunpack.c.l.b16 %v220
  %v259 = vunpack.c.h.b16 %v220
  %v260 = vunpack.c.l.b16 %v221
  %v261 = vunpack.c.h.b16 %v221
  %v262 = vunpack.c.l.b16 %v222
  %v263 = vunpack.c.h.b16 %v222
  %v264 = vunpack.c.l.b16 %v223
  %v265 = vunpack.c.h.b16 %v223
  %v266 = vunpack.c.l.b16 %v224
  %v267 = vunpack.c.h.b16 %v224
  %v268 = vunpack.c.l.b16 %v225
  %v269 = vunpack.c.h.b16 %v225
  %v270 = vunpack.c.l.b16 %v226
  %v271 = vunpack.c.h.b16 %v226
  %v272 = vunpack.c.l.b16 %v227
  %v273 = vunpack.c.h.b16 %v227
  %v274 = vunpack.c.l.b16 %v228
  %v275 = vunpack.c.h.b16 %v228
  %v276 = vunpack.c.l.b16 %v229
  %v277 = vunpack.c.h.b16 %v229
  %v278 = vpack.c.b16 %v250, %v246
  %v279 = vpack.c.b16 %v251, %v247
  %v280 = vpack.c.b16 %v252, %v248
  %v281 = vpack.c.b16 %v253, %v249
  %v282 = vpack.c.b16 %v258, %v254
  %v283 = vpack.c.b16 %v259, %v255
  %v284 = vpack.c.b16 %v260, %v256
  %v285 = vpack.c.b16 %v261, %v257
  %v286 = vpack.c.b16 %v266, %v262
  %v287 = vpack.c.b16 %v267, %v263
  %v288 = vpack.c.b16 %v268, %v264
  %v289 = vpack.c.b16 %v269, %v265
  %v290 = vpack.c.b16 %v274, %v270
  %v291 = vpack.c.b16 %v275, %v271
  %v292 = vpack.c.b16 %v276, %v272
  %v293 = vpack.c.b16 %v277, %v273
  %v311 = vsel %vm115, %v212, 0
  %313 = vmatprep.subr.bf16.mxu0 %v279
  %314 = vmatpush1.bf16.msra.mxu0 %v278
  %315 = vmatprep.subr.bf16.mxu0 %v283
  %316 = vmatpush1.bf16.msra.mxu0 %v282
  %317 = vmatprep.subr.bf16.mxu0 %v287
  %318 = vmatpush1.bf16.msra.mxu0 %v286
  %319 = vmatprep.subr.bf16.mxu0 %v291
  %320 = vmatpush1.bf16.msra.mxu0 %v290
  %321 = vmatprep.subr.bf16.mxu0 0
  %322 = vmatpush1.bf16.msra.mxu0 0
  %323 = vmatprep.subr.bf16.mxu0 0
  %324 = vmatpush1.bf16.msra.mxu0 0
  %325 = vmatprep.subr.bf16.mxu0 0
  %326 = vmatpush1.bf16.msra.mxu0 0
  %327 = vmatprep.subr.bf16.mxu0 0
  %328 = vmatpush1.bf16.msra.mxu0 0
  %329 = vmatprep.subr.bf16.mxu0 0
  %330 = vmatpush1.bf16.msra.mxu0 0
  %331 = vmatprep.subr.bf16.mxu0 0
  %332 = vmatpush1.bf16.msra.mxu0 0
  %333 = vmatprep.subr.bf16.mxu0 0
  %334 = vmatpush1.bf16.msra.mxu0 0
  %335 = vmatprep.subr.bf16.mxu0 0
  %336 = vmatpush1.bf16.msra.mxu0 0
  %337 = vmatprep.subr.bf16.mxu0 0
  %338 = vmatpush1.bf16.msra.mxu0 0
  %339 = vmatprep.subr.bf16.mxu0 0
  %340 = vmatpush1.bf16.msra.mxu0 0
  %341 = vmatprep.subr.bf16.mxu0 0
  %342 = vmatpush1.bf16.msra.mxu0 0
  %343 = vmatprep.subr.bf16.mxu0 0
  %344 = vmatpush1.bf16.msra.mxu0 0
  %345 = vmatprep.mubr.bf16.mxu0 0
  %346 = vmatmul.mubr.bf16.gmra.mrb[0].mxu0 %v311
  %v347 = vpop.f32.mrb[0].mxu0
  %v348 = vadd.f32 0.0, %v347
  %v349 = vpop.f32.mrb[0].mxu0
  %v350 = vadd.f32 0.0, %v349
  %v351 = vpop.f32.mrb[0].mxu0
  %v352 = vpop.f32.mrb[0].mxu0
  %353 = vdwg.mxu0
  %354 = vmatprep.subr.bf16.mxu0 %v281
  %355 = vmatpush1.bf16.msra.mxu0 %v280
  %356 = vmatprep.subr.bf16.mxu0 %v285
  %357 = vmatpush1.bf16.msra.mxu0 %v284
  %358 = vmatprep.subr.bf16.mxu0 %v289
  %359 = vmatpush1.bf16.msra.mxu0 %v288
  %360 = vmatprep.subr.bf16.mxu0 %v293
  %361 = vmatpush1.bf16.msra.mxu0 %v292
  %362 = vmatprep.subr.bf16.mxu0 0
  %363 = vmatpush1.bf16.msra.mxu0 0
  %364 = vmatprep.subr.bf16.mxu0 0
  %365 = vmatpush1.bf16.msra.mxu0 0
  %366 = vmatprep.subr.bf16.mxu0 0
  %367 = vmatpush1.bf16.msra.mxu0 0
  %368 = vmatprep.subr.bf16.mxu0 0
  %369 = vmatpush1.bf16.msra.mxu0 0
  %370 = vmatprep.subr.bf16.mxu0 0
  %371 = vmatpush1.bf16.msra.mxu0 0
  %372 = vmatprep.subr.bf16.mxu0 0
  %373 = vmatpush1.bf16.msra.mxu0 0
  %374 = vmatprep.subr.bf16.mxu0 0
  %375 = vmatpush1.bf16.msra.mxu0 0
  %376 = vmatprep.subr.bf16.mxu0 0
  %377 = vmatpush1.bf16.msra.mxu0 0
  %378 = vmatprep.subr.bf16.mxu0 0
  %379 = vmatpush1.bf16.msra.mxu0 0
  %380 = vmatprep.subr.bf16.mxu0 0
  %381 = vmatpush1.bf16.msra.mxu0 0
  %382 = vmatprep.subr.bf16.mxu0 0
  %383 = vmatpush1.bf16.msra.mxu0 0
  %384 = vmatprep.subr.bf16.mxu0 0
  %385 = vmatpush1.bf16.msra.mxu0 0
  %386 = vmatprep.mubr.bf16.mxu0 0
  %387 = vmatmul.mubr.bf16.gmra.mrb[0].mxu0 %v311
  %v388 = vpop.f32.mrb[0].mxu0
  %v389 = vadd.f32 0.0, %v388
  %v390 = vpop.f32.mrb[0].mxu0
  %v391 = vadd.f32 0.0, %v390
  %v392 = vpop.f32.mrb[0].mxu0
  %v393 = vpop.f32.mrb[0].mxu0
  %394 = vdwg.mxu0
  %s395 = scalar_lea.vmem [#allocation2], 32
  %396 = vst [vmem:[%s395] sm:$0xff] %v348
  %397 = vst [vmem:[%s395 + $0x8] sm:$0xff] %v350
  %398 = vst [vmem:[%s395 + $0x10] sm:$0xff] %v389
  %399 = vst [vmem:[%s395 + $0x18] sm:$0xff] %v391
  %v400 = vadd.f32 %v348, %v350
  %v401 = vadd.f32 %v400, %v389
  %v402 = vadd.f32 %v401, %v391
  %403 = vadd.xlane.f32.xlu0 %v402
  %v404 = vpop.xlane.xlu0 %403
  %v405 = vadd.f32 %v210, %v404
  %s406 = scalar_lea.vmem %s1, 8
  %v407 = vld [vmem:[%s406] sm:$0xf]
  %s408 = scalar_lea.vmem %s0, 256
  %v409 = vld [vmem:[%s408] sm:$0xff]
  %v410 = vld [vmem:[%s408 + $0x8] sm:$0xff]
  %v411 = vld [vmem:[%s408 + $0x10] sm:$0xff]
  %v412 = vld [vmem:[%s408 + $0x18] sm:$0xff]
  %v413 = vld [vmem:[%s408 + $0x20] sm:$0xff]
  %v414 = vld [vmem:[%s408 + $0x28] sm:$0xff]
  %v415 = vld [vmem:[%s408 + $0x30] sm:$0xff]
  %v416 = vld [vmem:[%s408 + $0x38] sm:$0xff]
  %v417 = vld [vmem:[%s408 + $0x40] sm:$0xff]
  %v418 = vld [vmem:[%s408 + $0x48] sm:$0xff]
  %v419 = vld [vmem:[%s408 + $0x50] sm:$0xff]
  %v420 = vld [vmem:[%s408 + $0x58] sm:$0xff]
  %v421 = vld [vmem:[%s408 + $0x60] sm:$0xff]
  %v422 = vld [vmem:[%s408 + $0x68] sm:$0xff]
  %v423 = vld [vmem:[%s408 + $0x70] sm:$0xff]
  %v424 = vld [vmem:[%s408 + $0x78] sm:$0xff]
  %v441 = vunpack.c.l.b16 %v409
  %v442 = vunpack.c.h.b16 %v409
  %v443 = vunpack.c.l.b16 %v410
  %v444 = vunpack.c.h.b16 %v410
  %v445 = vunpack.c.l.b16 %v411
  %v446 = vunpack.c.h.b16 %v411
  %v447 = vunpack.c.l.b16 %v412
  %v448 = vunpack.c.h.b16 %v412
  %v449 = vunpack.c.l.b16 %v413
  %v450 = vunpack.c.h.b16 %v413
  %v451 = vunpack.c.l.b16 %v414
  %v452 = vunpack.c.h.b16 %v414
  %v453 = vunpack.c.l.b16 %v415
  %v454 = vunpack.c.h.b16 %v415
  %v455 = vunpack.c.l.b16 %v416
  %v456 = vunpack.c.h.b16 %v416
  %v457 = vunpack.c.l.b16 %v417
  %v458 = vunpack.c.h.b16 %v417
  %v459 = vunpack.c.l.b16 %v418
  %v460 = vunpack.c.h.b16 %v418
  %v461 = vunpack.c.l.b16 %v419
  %v462 = vunpack.c.h.b16 %v419
  %v463 = vunpack.c.l.b16 %v420
  %v464 = vunpack.c.h.b16 %v420
  %v465 = vunpack.c.l.b16 %v421
  %v466 = vunpack.c.h.b16 %v421
  %v467 = vunpack.c.l.b16 %v422
  %v468 = vunpack.c.h.b16 %v422
  %v469 = vunpack.c.l.b16 %v423
  %v470 = vunpack.c.h.b16 %v423
  %v471 = vunpack.c.l.b16 %v424
  %v472 = vunpack.c.h.b16 %v424
  %v473 = vpack.c.b16 %v445, %v441
  %v474 = vpack.c.b16 %v446, %v442
  %v475 = vpack.c.b16 %v447, %v443
  %v476 = vpack.c.b16 %v448, %v444
  %v477 = vpack.c.b16 %v453, %v449
  %v478 = vpack.c.b16 %v454, %v450
  %v479 = vpack.c.b16 %v455, %v451
  %v480 = vpack.c.b16 %v456, %v452
  %v481 = vpack.c.b16 %v461, %v457
  %v482 = vpack.c.b16 %v462, %v458
  %v483 = vpack.c.b16 %v463, %v459
  %v484 = vpack.c.b16 %v464, %v460
  %v485 = vpack.c.b16 %v469, %v465
  %v486 = vpack.c.b16 %v470, %v466
  %v487 = vpack.c.b16 %v471, %v467
  %v488 = vpack.c.b16 %v472, %v468
  %v506 = vsel %vm115, %v407, 0
  %508 = vmatprep.subr.bf16.mxu0 %v474
  %509 = vmatpush1.bf16.msra.mxu0 %v473
  %510 = vmatprep.subr.bf16.mxu0 %v478
  %511 = vmatpush1.bf16.msra.mxu0 %v477
  %512 = vmatprep.subr.bf16.mxu0 %v482
  %513 = vmatpush1.bf16.msra.mxu0 %v481
  %514 = vmatprep.subr.bf16.mxu0 %v486
  %515 = vmatpush1.bf16.msra.mxu0 %v485
  %516 = vmatprep.subr.bf16.mxu0 0
  %517 = vmatpush1.bf16.msra.mxu0 0
  %518 = vmatprep.subr.bf16.mxu0 0
  %519 = vmatpush1.bf16.msra.mxu0 0
  %520 = vmatprep.subr.bf16.mxu0 0
  %521 = vmatpush1.bf16.msra.mxu0 0
  %522 = vmatprep.subr.bf16.mxu0 0
  %523 = vmatpush1.bf16.msra.mxu0 0
  %524 = vmatprep.subr.bf16.mxu0 0
  %525 = vmatpush1.bf16.msra.mxu0 0
  %526 = vmatprep.subr.bf16.mxu0 0
  %527 = vmatpush1.bf16.msra.mxu0 0
  %528 = vmatprep.subr.bf16.mxu0 0
  %529 = vmatpush1.bf16.msra.mxu0 0
  %530 = vmatprep.subr.bf16.mxu0 0
  %531 = vmatpush1.bf16.msra.mxu0 0
  %532 = vmatprep.subr.bf16.mxu0 0
  %533 = vmatpush1.bf16.msra.mxu0 0
  %534 = vmatprep.subr.bf16.mxu0 0
  %535 = vmatpush1.bf16.msra.mxu0 0
  %536 = vmatprep.subr.bf16.mxu0 0
  %537 = vmatpush1.bf16.msra.mxu0 0
  %538 = vmatprep.subr.bf16.mxu0 0
  %539 = vmatpush1.bf16.msra.mxu0 0
  %540 = vmatprep.mubr.bf16.mxu0 0
  %541 = vmatmul.mubr.bf16.gmra.mrb[0].mxu0 %v506
  %v542 = vpop.f32.mrb[0].mxu0
  %v543 = vadd.f32 0.0, %v542
  %v544 = vpop.f32.mrb[0].mxu0
  %v545 = vadd.f32 0.0, %v544
  %v546 = vpop.f32.mrb[0].mxu0
  %v547 = vpop.f32.mrb[0].mxu0
  %548 = vdwg.mxu0
  %549 = vmatprep.subr.bf16.mxu0 %v476
  %550 = vmatpush1.bf16.msra.mxu0 %v475
  %551 = vmatprep.subr.bf16.mxu0 %v480
  %552 = vmatpush1.bf16.msra.mxu0 %v479
  %553 = vmatprep.subr.bf16.mxu0 %v484
  %554 = vmatpush1.bf16.msra.mxu0 %v483
  %555 = vmatprep.subr.bf16.mxu0 %v488
  %556 = vmatpush1.bf16.msra.mxu0 %v487
  %557 = vmatprep.subr.bf16.mxu0 0
  %558 = vmatpush1.bf16.msra.mxu0 0
  %559 = vmatprep.subr.bf16.mxu0 0
  %560 = vmatpush1.bf16.msra.mxu0 0
  %561 = vmatprep.subr.bf16.mxu0 0
  %562 = vmatpush1.bf16.msra.mxu0 0
  %563 = vmatprep.subr.bf16.mxu0 0
  %564 = vmatpush1.bf16.msra.mxu0 0
  %565 = vmatprep.subr.bf16.mxu0 0
  %566 = vmatpush1.bf16.msra.mxu0 0
  %567 = vmatprep.subr.bf16.mxu0 0
  %568 = vmatpush1.bf16.msra.mxu0 0
  %569 = vmatprep.subr.bf16.mxu0 0
  %570 = vmatpush1.bf16.msra.mxu0 0
  %571 = vmatprep.subr.bf16.mxu0 0
  %572 = vmatpush1.bf16.msra.mxu0 0
  %573 = vmatprep.subr.bf16.mxu0 0
  %574 = vmatpush1.bf16.msra.mxu0 0
  %575 = vmatprep.subr.bf16.mxu0 0
  %576 = vmatpush1.bf16.msra.mxu0 0
  %577 = vmatprep.subr.bf16.mxu0 0
  %578 = vmatpush1.bf16.msra.mxu0 0
  %579 = vmatprep.subr.bf16.mxu0 0
  %580 = vmatpush1.bf16.msra.mxu0 0
  %581 = vmatprep.mubr.bf16.mxu0 0
  %582 = vmatmul.mubr.bf16.gmra.mrb[0].mxu0 %v506
  %v583 = vpop.f32.mrb[0].mxu0
  %v584 = vadd.f32 0.0, %v583
  %v585 = vpop.f32.mrb[0].mxu0
  %v586 = vadd.f32 0.0, %v585
  %v587 = vpop.f32.mrb[0].mxu0
  %v588 = vpop.f32.mrb[0].mxu0
  %589 = vdwg.mxu0
  %s590 = scalar_lea.vmem [#allocation2], 64
  %591 = vst [vmem:[%s590] sm:$0xff] %v543
  %592 = vst [vmem:[%s590 + $0x8] sm:$0xff] %v545
  %593 = vst [vmem:[%s590 + $0x10] sm:$0xff] %v584
  %594 = vst [vmem:[%s590 + $0x18] sm:$0xff] %v586
  %v595 = vadd.f32 %v543, %v545
  %v596 = vadd.f32 %v595, %v584
  %v597 = vadd.f32 %v596, %v586
  %598 = vadd.xlane.f32.xlu0 %v597
  %v599 = vpop.xlane.xlu0 %598
  %v600 = vadd.f32 %v405, %v599
  %s601 = scalar_lea.vmem %s1, 12
  %v602 = vld [vmem:[%s601] sm:$0xf]
  %s603 = scalar_lea.vmem %s0, 384
  %v604 = vld [vmem:[%s603] sm:$0xff]
  %v605 = vld [vmem:[%s603 + $0x8] sm:$0xff]
  %v606 = vld [vmem:[%s603 + $0x10] sm:$0xff]
  %v607 = vld [vmem:[%s603 + $0x18] sm:$0xff]
  %v608 = vld [vmem:[%s603 + $0x20] sm:$0xff]
  %v609 = vld [vmem:[%s603 + $0x28] sm:$0xff]
  %v610 = vld [vmem:[%s603 + $0x30] sm:$0xff]
  %v611 = vld [vmem:[%s603 + $0x38] sm:$0xff]
  %v612 = vld [vmem:[%s603 + $0x40] sm:$0xff]
  %v613 = vld [vmem:[%s603 + $0x48] sm:$0xff]
  %v614 = vld [vmem:[%s603 + $0x50] sm:$0xff]
  %v615 = vld [vmem:[%s603 + $0x58] sm:$0xff]
  %v616 = vld [vmem:[%s603 + $0x60] sm:$0xff]
  %v617 = vld [vmem:[%s603 + $0x68] sm:$0xff]
  %v618 = vld [vmem:[%s603 + $0x70] sm:$0xff]
  %v619 = vld [vmem:[%s603 + $0x78] sm:$0xff]
  %v636 = vunpack.c.l.b16 %v604
  %v637 = vunpack.c.h.b16 %v604
  %v638 = vunpack.c.l.b16 %v605
  %v639 = vunpack.c.h.b16 %v605
  %v640 = vunpack.c.l.b16 %v606
  %v641 = vunpack.c.h.b16 %v606
  %v642 = vunpack.c.l.b16 %v607
  %v643 = vunpack.c.h.b16 %v607
  %v644 = vunpack.c.l.b16 %v608
  %v645 = vunpack.c.h.b16 %v608
  %v646 = vunpack.c.l.b16 %v609
  %v647 = vunpack.c.h.b16 %v609
  %v648 = vunpack.c.l.b16 %v610
  %v649 = vunpack.c.h.b16 %v610
  %v650 = vunpack.c.l.b16 %v611
  %v651 = vunpack.c.h.b16 %v611
  %v652 = vunpack.c.l.b16 %v612
  %v653 = vunpack.c.h.b16 %v612
  %v654 = vunpack.c.l.b16 %v613
  %v655 = vunpack.c.h.b16 %v613
  %v656 = vunpack.c.l.b16 %v614
  %v657 = vunpack.c.h.b16 %v614
  %v658 = vunpack.c.l.b16 %v615
  %v659 = vunpack.c.h.b16 %v615
  %v660 = vunpack.c.l.b16 %v616
  %v661 = vunpack.c.h.b16 %v616
  %v662 = vunpack.c.l.b16 %v617
  %v663 = vunpack.c.h.b16 %v617
  %v664 = vunpack.c.l.b16 %v618
  %v665 = vunpack.c.h.b16 %v618
  %v666 = vunpack.c.l.b16 %v619
  %v667 = vunpack.c.h.b16 %v619
  %v668 = vpack.c.b16 %v640, %v636
  %v669 = vpack.c.b16 %v641, %v637
  %v670 = vpack.c.b16 %v642, %v638
  %v671 = vpack.c.b16 %v643, %v639
  %v672 = vpack.c.b16 %v648, %v644
  %v673 = vpack.c.b16 %v649, %v645
  %v674 = vpack.c.b16 %v650, %v646
  %v675 = vpack.c.b16 %v651, %v647
  %v676 = vpack.c.b16 %v656, %v652
  %v677 = vpack.c.b16 %v657, %v653
  %v678 = vpack.c.b16 %v658, %v654
  %v679 = vpack.c.b16 %v659, %v655
  %v680 = vpack.c.b16 %v664, %v660
  %v681 = vpack.c.b16 %v665, %v661
  %v682 = vpack.c.b16 %v666, %v662
  %v683 = vpack.c.b16 %v667, %v663
  %v701 = vsel %vm115, %v602, 0
  %703 = vmatprep.subr.bf16.mxu0 %v669
  %704 = vmatpush1.bf16.msra.mxu0 %v668
  %705 = vmatprep.subr.bf16.mxu0 %v673
  %706 = vmatpush1.bf16.msra.mxu0 %v672
  %707 = vmatprep.subr.bf16.mxu0 %v677
  %708 = vmatpush1.bf16.msra.mxu0 %v676
  %709 = vmatprep.subr.bf16.mxu0 %v681
  %710 = vmatpush1.bf16.msra.mxu0 %v680
  %711 = vmatprep.subr.bf16.mxu0 0
  %712 = vmatpush1.bf16.msra.mxu0 0
  %713 = vmatprep.subr.bf16.mxu0 0
  %714 = vmatpush1.bf16.msra.mxu0 0
  %715 = vmatprep.subr.bf16.mxu0 0
  %716 = vmatpush1.bf16.msra.mxu0 0
  %717 = vmatprep.subr.bf16.mxu0 0
  %718 = vmatpush1.bf16.msra.mxu0 0
  %719 = vmatprep.subr.bf16.mxu0 0
  %720 = vmatpush1.bf16.msra.mxu0 0
  %721 = vmatprep.subr.bf16.mxu0 0
  %722 = vmatpush1.bf16.msra.mxu0 0
  %723 = vmatprep.subr.bf16.mxu0 0
  %724 = vmatpush1.bf16.msra.mxu0 0
  %725 = vmatprep.subr.bf16.mxu0 0
  %726 = vmatpush1.bf16.msra.mxu0 0
  %727 = vmatprep.subr.bf16.mxu0 0
  %728 = vmatpush1.bf16.msra.mxu0 0
  %729 = vmatprep.subr.bf16.mxu0 0
  %730 = vmatpush1.bf16.msra.mxu0 0
  %731 = vmatprep.subr.bf16.mxu0 0
  %732 = vmatpush1.bf16.msra.mxu0 0
  %733 = vmatprep.subr.bf16.mxu0 0
  %734 = vmatpush1.bf16.msra.mxu0 0
  %735 = vmatprep.mubr.bf16.mxu0 0
  %736 = vmatmul.mubr.bf16.gmra.mrb[0].mxu0 %v701
  %v737 = vpop.f32.mrb[0].mxu0
  %v738 = vadd.f32 0.0, %v737
  %v739 = vpop.f32.mrb[0].mxu0
  %v740 = vadd.f32 0.0, %v739
  %v741 = vpop.f32.mrb[0].mxu0
  %v742 = vpop.f32.mrb[0].mxu0
  %743 = vdwg.mxu0
  %744 = vmatprep.subr.bf16.mxu0 %v671
  %745 = vmatpush1.bf16.msra.mxu0 %v670
  %746 = vmatprep.subr.bf16.mxu0 %v675
  %747 = vmatpush1.bf16.msra.mxu0 %v674
  %748 = vmatprep.subr.bf16.mxu0 %v679
  %749 = vmatpush1.bf16.msra.mxu0 %v678
  %750 = vmatprep.subr.bf16.mxu0 %v683
  %751 = vmatpush1.bf16.msra.mxu0 %v682
  %752 = vmatprep.subr.bf16.mxu0 0
  %753 = vmatpush1.bf16.msra.mxu0 0
  %754 = vmatprep.subr.bf16.mxu0 0
  %755 = vmatpush1.bf16.msra.mxu0 0
  %756 = vmatprep.subr.bf16.mxu0 0
  %757 = vmatpush1.bf16.msra.mxu0 0
  %758 = vmatprep.subr.bf16.mxu0 0
  %759 = vmatpush1.bf16.msra.mxu0 0
  %760 = vmatprep.subr.bf16.mxu0 0
  %761 = vmatpush1.bf16.msra.mxu0 0
  %762 = vmatprep.subr.bf16.mxu0 0
  %763 = vmatpush1.bf16.msra.mxu0 0
  %764 = vmatprep.subr.bf16.mxu0 0
  %765 = vmatpush1.bf16.msra.mxu0 0
  %766 = vmatprep.subr.bf16.mxu0 0
  %767 = vmatpush1.bf16.msra.mxu0 0
  %768 = vmatprep.subr.bf16.mxu0 0
  %769 = vmatpush1.bf16.msra.mxu0 0
  %770 = vmatprep.subr.bf16.mxu0 0
  %771 = vmatpush1.bf16.msra.mxu0 0
  %772 = vmatprep.subr.bf16.mxu0 0
  %773 = vmatpush1.bf16.msra.mxu0 0
  %774 = vmatprep.subr.bf16.mxu0 0
  %775 = vmatpush1.bf16.msra.mxu0 0
  %776 = vmatprep.mubr.bf16.mxu0 0
  %777 = vmatmul.mubr.bf16.gmra.mrb[0].mxu0 %v701
  %v778 = vpop.f32.mrb[0].mxu0
  %v779 = vadd.f32 0.0, %v778
  %v780 = vpop.f32.mrb[0].mxu0
  %v781 = vadd.f32 0.0, %v780
  %v782 = vpop.f32.mrb[0].mxu0
  %v783 = vpop.f32.mrb[0].mxu0
  %784 = vdwg.mxu0
  %s785 = scalar_lea.vmem [#allocation2], 96
  %786 = vst [vmem:[%s785] sm:$0xff] %v738
  %787 = vst [vmem:[%s785 + $0x8] sm:$0xff] %v740
  %788 = vst [vmem:[%s785 + $0x10] sm:$0xff] %v779
  %789 = vst [vmem:[%s785 + $0x18] sm:$0xff] %v781
  %v790 = vadd.f32 %v738, %v740
  %v791 = vadd.f32 %v790, %v779
  %v792 = vadd.f32 %v791, %v781
  %793 = vadd.xlane.f32.xlu0 %v792
  %v794 = vpop.xlane.xlu0 %793
  %v795 = vadd.f32 %v600, %v794
  %v796 = vmul.f32 %v795, 0.00048828125
  %v797 = vld [vmem:[#allocation2] sm:$0xff]
  %v798 = vld [vmem:[#allocation2 + $0x8] sm:$0xff]
  %v799 = vld [vmem:[#allocation2 + $0x10] sm:$0xff]
  %v800 = vld [vmem:[#allocation2 + $0x18] sm:$0xff]
  %v801 = vsub.f32 %v797, %v796
  %v802 = vsub.f32 %v798, %v796
  %v803 = vsub.f32 %v799, %v796
  %v804 = vsub.f32 %v800, %v796
  %v805 = vmul.f32 %v801, %v801
  %v806 = vmul.f32 %v802, %v802
  %v807 = vmul.f32 %v803, %v803
  %v808 = vmul.f32 %v804, %v804
  %v809 = vadd.f32 %v805, %v806
  %v810 = vadd.f32 %v809, %v807
  %v811 = vadd.f32 %v810, %v808
  %812 = vadd.xlane.f32.xlu0 %v811
  %v813 = vpop.xlane.xlu0 %812
  %v814 = vadd.f32 %v813, 0.0
  %v815 = vld [vmem:[%s395] sm:$0xff]
  %v816 = vld [vmem:[%s395 + $0x8] sm:$0xff]
  %v817 = vld [vmem:[%s395 + $0x10] sm:$0xff]
  %v818 = vld [vmem:[%s395 + $0x18] sm:$0xff]
  %v819 = vsub.f32 %v815, %v796
  %v820 = vsub.f32 %v816, %v796
  %v821 = vsub.f32 %v817, %v796
  %v822 = vsub.f32 %v818, %v796
  %v823 = vmul.f32 %v819, %v819
  %v824 = vmul.f32 %v820, %v820
  %v825 = vmul.f32 %v821, %v821
  %v826 = vmul.f32 %v822, %v822
  %v827 = vadd.f32 %v823, %v824
  %v828 = vadd.f32 %v827, %v825
  %v829 = vadd.f32 %v828, %v826
  %830 = vadd.xlane.f32.xlu0 %v829
  %v831 = vpop.xlane.xlu0 %830
  %v832 = vadd.f32 %v814, %v831
  %v833 = vld [vmem:[%s590] sm:$0xff]
  %v834 = vld [vmem:[%s590 + $0x8] sm:$0xff]
  %v835 = vld [vmem:[%s590 + $0x10] sm:$0xff]
  %v836 = vld [vmem:[%s590 + $0x18] sm:$0xff]
  %v837 = vsub.f32 %v833, %v796
  %v838 = vsub.f32 %v834, %v796
  %v839 = vsub.f32 %v835, %v796
  %v840 = vsub.f32 %v836, %v796
  %v841 = vmul.f32 %v837, %v837
  %v842 = vmul.f32 %v838, %v838
  %v843 = vmul.f32 %v839, %v839
  %v844 = vmul.f32 %v840, %v840
  %v845 = vadd.f32 %v841, %v842
  %v846 = vadd.f32 %v845, %v843
  %v847 = vadd.f32 %v846, %v844
  %848 = vadd.xlane.f32.xlu0 %v847
  %v849 = vpop.xlane.xlu0 %848
  %v850 = vadd.f32 %v832, %v849
  %v851 = vld [vmem:[%s785] sm:$0xff]
  %v852 = vld [vmem:[%s785 + $0x8] sm:$0xff]
  %v853 = vld [vmem:[%s785 + $0x10] sm:$0xff]
  %v854 = vld [vmem:[%s785 + $0x18] sm:$0xff]
  %v855 = vsub.f32 %v851, %v796
  %v856 = vsub.f32 %v852, %v796
  %v857 = vsub.f32 %v853, %v796
  %v858 = vsub.f32 %v854, %v796
  %v859 = vmul.f32 %v855, %v855
  %v860 = vmul.f32 %v856, %v856
  %v861 = vmul.f32 %v857, %v857
  %v862 = vmul.f32 %v858, %v858
  %v863 = vadd.f32 %v859, %v860
  %v864 = vadd.f32 %v863, %v861
  %v865 = vadd.f32 %v864, %v862
  %866 = vadd.xlane.f32.xlu0 %v865
  %v867 = vpop.xlane.xlu0 %866
  %v868 = vadd.f32 %v850, %v867
  %v869 = vmul.f32 %v868, 0.00048828125
  %v870 = vadd.f32 %v869, 1e-05
  %v871 = vrsqrt.pop %v870
  %v872 = vld [vmem:[%s2] sm:$0xff]
  %v873 = vmul.f32 %v872, %v871
  %v874 = vld [vmem:[%s3] sm:$0xff]
  %v875 = vmul.f32 %v796, %v873
  %v876 = vsub.f32 %v874, %v875
  %878 = vset.pattern.permute.xlu0 0
  %879 = vperm.xlu0 %878, %v873
  %v880 = vpop.permute.xlu0 %879
  %v882 = vmul.f32 %v797, %v880
  %v883 = vmul.f32 %v798, %v880
  %v884 = vmul.f32 %v799, %v880
  %v885 = vmul.f32 %v800, %v880
  %887 = vset.pattern.permute.xlu0 0
  %888 = vperm.xlu0 %887, %v876
  %v889 = vpop.permute.xlu0 %888
  %v891 = vadd.f32 %v882, %v889
  %v892 = vadd.f32 %v883, %v889
  %v893 = vadd.f32 %v884, %v889
  %v894 = vadd.f32 %v885, %v889
  %v895 = vmax.f32 %v891, 0.0
  %v896 = vmax.f32 %v892, 0.0
  %v897 = vmax.f32 %v893, 0.0
  %v898 = vmax.f32 %v894, 0.0
  %v899 = vpack.c.bf16 %v895, %v895
  %v900 = vpack.c.bf16 %v896, %v896
  %v901 = vpack.c.bf16 %v897, %v897
  %v902 = vpack.c.bf16 %v898, %v898
  %v907 = vunpack.c.l.b16 %v899
  %v908 = vunpack.c.l.b16 %v900
  %v909 = vunpack.c.l.b16 %v901
  %v910 = vunpack.c.l.b16 %v902
  %v911 = vpack.c.b16 %v908, %v907
  %v912 = vpack.c.b16 %v910, %v909
  %915 = vst [vmem:[%s4] sm:$0xff] %v911
  %916 = vst [vmem:[%s4 + $0x8] sm:$0xff] %v912
  %v917 = vld [vmem:[%s395] sm:$0xff]
  %v918 = vld [vmem:[%s395 + $0x8] sm:$0xff]
  %v919 = vld [vmem:[%s395 + $0x10] sm:$0xff]
  %v920 = vld [vmem:[%s395 + $0x18] sm:$0xff]
  %v921 = vmul.f32 %v917, %v880
  %v922 = vmul.f32 %v918, %v880
  %v923 = vmul.f32 %v919, %v880
  %v924 = vmul.f32 %v920, %v880
  %v925 = vadd.f32 %v921, %v889
  %v926 = vadd.f32 %v922, %v889
  %v927 = vadd.f32 %v923, %v889
  %v928 = vadd.f32 %v924, %v889
  %v929 = vmax.f32 %v925, 0.0
  %v930 = vmax.f32 %v926, 0.0
  %v931 = vmax.f32 %v927, 0.0
  %v932 = vmax.f32 %v928, 0.0
  %v933 = vpack.c.bf16 %v929, %v929
  %v934 = vpack.c.bf16 %v930, %v930
  %v935 = vpack.c.bf16 %v931, %v931
  %v936 = vpack.c.bf16 %v932, %v932
  %v941 = vunpack.c.l.b16 %v933
  %v942 = vunpack.c.l.b16 %v934
  %v943 = vunpack.c.l.b16 %v935
  %v944 = vunpack.c.l.b16 %v936
  %v945 = vpack.c.b16 %v942, %v941
  %v946 = vpack.c.b16 %v944, %v943
  %s949 = scalar_lea.vmem %s4, 16
  %950 = vst [vmem:[%s949] sm:$0xff] %v945
  %951 = vst [vmem:[%s949 + $0x8] sm:$0xff] %v946
  %v952 = vld [vmem:[%s590] sm:$0xff]
  %v953 = vld [vmem:[%s590 + $0x8] sm:$0xff]
  %v954 = vld [vmem:[%s590 + $0x10] sm:$0xff]
  %v955 = vld [vmem:[%s590 + $0x18] sm:$0xff]
  %v956 = vmul.f32 %v952, %v880
  %v957 = vmul.f32 %v953, %v880
  %v958 = vmul.f32 %v954, %v880
  %v959 = vmul.f32 %v955, %v880
  %v960 = vadd.f32 %v956, %v889
  %v961 = vadd.f32 %v957, %v889
  %v962 = vadd.f32 %v958, %v889
  %v963 = vadd.f32 %v959, %v889
  %v964 = vmax.f32 %v960, 0.0
  %v965 = vmax.f32 %v961, 0.0
  %v966 = vmax.f32 %v962, 0.0
  %v967 = vmax.f32 %v963, 0.0
  %v968 = vpack.c.bf16 %v964, %v964
  %v969 = vpack.c.bf16 %v965, %v965
  %v970 = vpack.c.bf16 %v966, %v966
  %v971 = vpack.c.bf16 %v967, %v967
  %v976 = vunpack.c.l.b16 %v968
  %v977 = vunpack.c.l.b16 %v969
  %v978 = vunpack.c.l.b16 %v970
  %v979 = vunpack.c.l.b16 %v971
  %v980 = vpack.c.b16 %v977, %v976
  %v981 = vpack.c.b16 %v979, %v978
  %s984 = scalar_lea.vmem %s4, 32
  %985 = vst [vmem:[%s984] sm:$0xff] %v980
  %986 = vst [vmem:[%s984 + $0x8] sm:$0xff] %v981
  %v987 = vld [vmem:[%s785] sm:$0xff]
  %v988 = vld [vmem:[%s785 + $0x8] sm:$0xff]
  %v989 = vld [vmem:[%s785 + $0x10] sm:$0xff]
  %v990 = vld [vmem:[%s785 + $0x18] sm:$0xff]
  %v991 = vmul.f32 %v987, %v880
  %v992 = vmul.f32 %v988, %v880
  %v993 = vmul.f32 %v989, %v880
  %v994 = vmul.f32 %v990, %v880
  %v995 = vadd.f32 %v991, %v889
  %v996 = vadd.f32 %v992, %v889
  %v997 = vadd.f32 %v993, %v889
  %v998 = vadd.f32 %v994, %v889
  %v999 = vmax.f32 %v995, 0.0
  %v1000 = vmax.f32 %v996, 0.0
  %v1001 = vmax.f32 %v997, 0.0
  %v1002 = vmax.f32 %v998, 0.0
  %v1003 = vpack.c.bf16 %v999, %v999
  %v1004 = vpack.c.bf16 %v1000, %v1000
  %v1005 = vpack.c.bf16 %v1001, %v1001
  %v1006 = vpack.c.bf16 %v1002, %v1002
  %v1011 = vunpack.c.l.b16 %v1003
  %v1012 = vunpack.c.l.b16 %v1004
  %v1013 = vunpack.c.l.b16 %v1005
  %v1014 = vunpack.c.l.b16 %v1006
  %v1015 = vpack.c.b16 %v1012, %v1011
  %v1016 = vpack.c.b16 %v1014, %v1013
  %s1019 = scalar_lea.vmem %s4, 48
  %1020 = vst [vmem:[%s1019] sm:$0xff] %v1015
  %1021 = vst [vmem:[%s1019 + $0x8] sm:$0xff] %v1016
  // Predicated region
  $region18: #{generator_forward.8} parent=0 // pred_check
    _
  $region19: #{generator_forward.8} parent=0 // pred_check_branch
    %1023 = sbr.rel (0) target = $region21
  $region20: #{generator_forward.8} parent=0 // pred_region
    _
  $region21: #{generator_forward.8} parent=0 // pred_fallthru
    _
  // Predicated region
  $region22: #{generator_forward.8} parent=0 // pred_check
    _
  $region23: #{generator_forward.8} parent=0 // pred_check_branch
    %1025 = sbr.rel (0) target = $region25
  $region24: #{generator_forward.8} parent=0 // pred_region
    _
  $region25: #{generator_forward.8} parent=0 // pred_fallthru
    _

// kernel: generator_forward.9
$region0: #{generator_forward.9}
  #allocation0 [shape = 'u32[]', space=smem, size = 0x4, offset = 0x4, fixed_abs, tag = 'smem constant byte address 0x4 - core index']
  #allocation1 [shape = 'u32[144,128]{1,0:T(1,128)}', space=vmem, size = 0x12000, scoped, tag = 'internal scratch']
  %s0 = inlined_call_operand.vmem [shape: bf16[4,32,2048], index: 0, kind: input, shape index: {}]
  %s1 = inlined_call_operand.vmem [shape: bf16[4,3,32], index: 1, kind: input, shape index: {}]
  %s2 = inlined_call_operand.vmem [shape: f32[3,1], index: 2, kind: input, shape index: {}]
  %s3 = inlined_call_operand.vmem [shape: f32[4,3,2048], index: 3, kind: output, shape index: {}]
  %s4 = sld [smem:[#allocation0]]
  $region22: #{generator_forward.9} parent=0
    _
  %s6 = ssub.s32 1, %s4
  %s7 = scalar_select 0, %s6, %s4
  // Predicated region
  $region2: #{generator_forward.9} parent=0 // pred_check
    _
  $region3: #{generator_forward.9} parent=0 // pred_check_branch
    %9 = sbr.rel (0) target = $region5
  $region4: #{generator_forward.9} parent=0 // pred_region
    _
  $region5: #{generator_forward.9} parent=0 // pred_fallthru
    _
  // Predicated region
  $region6: #{generator_forward.9} parent=0 // pred_check
    _
  $region7: #{generator_forward.9} parent=0 // pred_check_branch
    %11 = sbr.rel (0) target = $region9
  $region8: #{generator_forward.9} parent=0 // pred_region
    _
  $region9: #{generator_forward.9} parent=0 // pred_fallthru
    _
  // Predicated region
  $region10: #{generator_forward.9} parent=0 // pred_check
    _
  $region11: #{generator_forward.9} parent=0 // pred_check_branch
    %13 = sbr.rel (0) target = $region13
  $region12: #{generator_forward.9} parent=0 // pred_region
    _
  $region13: #{generator_forward.9} parent=0 // pred_fallthru
    _
  %v15 = vld [vmem:[%s1] sm:$0x3]
  %v16 = vld [vmem:[%s0] sm:$0xff]
  %v17 = vld [vmem:[%s0 + $0x8] sm:$0xff]
  %v18 = vld [vmem:[%s0 + $0x10] sm:$0xff]
  %v19 = vld [vmem:[%s0 + $0x18] sm:$0xff]
  %v20 = vld [vmem:[%s0 + $0x20] sm:$0xff]
  %v21 = vld [vmem:[%s0 + $0x28] sm:$0xff]
  %v22 = vld [vmem:[%s0 + $0x30] sm:$0xff]
  %v23 = vld [vmem:[%s0 + $0x38] sm:$0xff]
  %v24 = vld [vmem:[%s0 + $0x40] sm:$0xff]
  %v25 = vld [vmem:[%s0 + $0x48] sm:$0xff]
  %v26 = vld [vmem:[%s0 + $0x50] sm:$0xff]
  %v27 = vld [vmem:[%s0 + $0x58] sm:$0xff]
  %v28 = vld [vmem:[%s0 + $0x60] sm:$0xff]
  %v29 = vld [vmem:[%s0 + $0x68] sm:$0xff]
  %v30 = vld [vmem:[%s0 + $0x70] sm:$0xff]
  %v31 = vld [vmem:[%s0 + $0x78] sm:$0xff]
  %v32 = vld [vmem:[%s0 + $0x80] sm:$0xff]
  %v33 = vld [vmem:[%s0 + $0x88] sm:$0xff]
  %v34 = vld [vmem:[%s0 + $0x90] sm:$0xff]
  %v35 = vld [vmem:[%s0 + $0x98] sm:$0xff]
  %v36 = vld [vmem:[%s0 + $0xa0] sm:$0xff]
  %v37 = vld [vmem:[%s0 + $0xa8] sm:$0xff]
  %v38 = vld [vmem:[%s0 + $0xb0] sm:$0xff]
  %v39 = vld [vmem:[%s0 + $0xb8] sm:$0xff]
  %v40 = vld [vmem:[%s0 + $0xc0] sm:$0xff]
  %v41 = vld [vmem:[%s0 + $0xc8] sm:$0xff]
  %v42 = vld [vmem:[%s0 + $0xd0] sm:$0xff]
  %v43 = vld [vmem:[%s0 + $0xd8] sm:$0xff]
  %v44 = vld [vmem:[%s0 + $0xe0] sm:$0xff]
  %v45 = vld [vmem:[%s0 + $0xe8] sm:$0xff]
  %v46 = vld [vmem:[%s0 + $0xf0] sm:$0xff]
  %v47 = vld [vmem:[%s0 + $0xf8] sm:$0xff]
  %v48 = vld [vmem:[%s2] sm:$0x7]
  %50 = vset.pattern.permute.xlu0 0
  %51 = vperm.xlu0 %50, %v48
  %v52 = vpop.permute.xlu0 %51
  %v86 = vunpack.c.l.b16 %v16
  %v87 = vunpack.c.h.b16 %v16
  %v88 = vunpack.c.l.b16 %v17
  %v89 = vunpack.c.h.b16 %v17
  %v90 = vunpack.c.l.b16 %v18
  %v91 = vunpack.c.h.b16 %v18
  %v92 = vunpack.c.l.b16 %v19
  %v93 = vunpack.c.h.b16 %v19
  %v94 = vunpack.c.l.b16 %v20
  %v95 = vunpack.c.h.b16 %v20
  %v96 = vunpack.c.l.b16 %v21
  %v97 = vunpack.c.h.b16 %v21
  %v98 = vunpack.c.l.b16 %v22
  %v99 = vunpack.c.h.b16 %v22
  %v100 = vunpack.c.l.b16 %v23
  %v101 = vunpack.c.h.b16 %v23
  %v102 = vunpack.c.l.b16 %v24
  %v103 = vunpack.c.h.b16 %v24
  %v104 = vunpack.c.l.b16 %v25
  %v105 = vunpack.c.h.b16 %v25
  %v106 = vunpack.c.l.b16 %v26
  %v107 = vunpack.c.h.b16 %v26
  %v108 = vunpack.c.l.b16 %v27
  %v109 = vunpack.c.h.b16 %v27
  %v110 = vunpack.c.l.b16 %v28
  %v111 = vunpack.c.h.b16 %v28
  %v112 = vunpack.c.l.b16 %v29
  %v113 = vunpack.c.h.b16 %v29
  %v114 = vunpack.c.l.b16 %v30
  %v115 = vunpack.c.h.b16 %v30
  %v116 = vunpack.c.l.b16 %v31
  %v117 = vunpack.c.h.b16 %v31
  %v118 = vunpack.c.l.b16 %v32
  %v119 = vunpack.c.h.b16 %v32
  %v120 = vunpack.c.l.b16 %v33
  %v121 = vunpack.c.h.b16 %v33
  %v122 = vunpack.c.l.b16 %v34
  %v123 = vunpack.c.h.b16 %v34
  %v124 = vunpack.c.l.b16 %v35
  %v125 = vunpack.c.h.b16 %v35
  %v126 = vunpack.c.l.b16 %v36
  %v127 = vunpack.c.h.b16 %v36
  %v128 = vunpack.c.l.b16 %v37
  %v129 = vunpack.c.h.b16 %v37
  %v130 = vunpack.c.l.b16 %v38
  %v131 = vunpack.c.h.b16 %v38
  %v132 = vunpack.c.l.b16 %v39
  %v133 = vunpack.c.h.b16 %v39
  %v134 = vunpack.c.l.b16 %v40
  %v135 = vunpack.c.h.b16 %v40
  %v136 = vunpack.c.l.b16 %v41
  %v137 = vunpack.c.h.b16 %v41
  %v138 = vunpack.c.l.b16 %v42
  %v139 = vunpack.c.h.b16 %v42
  %v140 = vunpack.c.l.b16 %v43
  %v141 = vunpack.c.h.b16 %v43
  %v142 = vunpack.c.l.b16 %v44
  %v143 = vunpack.c.h.b16 %v44
  %v144 = vunpack.c.l.b16 %v45
  %v145 = vunpack.c.h.b16 %v45
  %v146 = vunpack.c.l.b16 %v46
  %v147 = vunpack.c.h.b16 %v46
  %v148 = vunpack.c.l.b16 %v47
  %v149 = vunpack.c.h.b16 %v47
  %v150 = vpack.c.b16 %v102, %v86
  %v151 = vpack.c.b16 %v103, %v87
  %v152 = vpack.c.b16 %v104, %v88
  %v153 = vpack.c.b16 %v105, %v89
  %v154 = vpack.c.b16 %v106, %v90
  %v155 = vpack.c.b16 %v107, %v91
  %v156 = vpack.c.b16 %v108, %v92
  %v157 = vpack.c.b16 %v109, %v93
  %v158 = vpack.c.b16 %v110, %v94
  %v159 = vpack.c.b16 %v111, %v95
  %v160 = vpack.c.b16 %v112, %v96
  %v161 = vpack.c.b16 %v113, %v97
  %v162 = vpack.c.b16 %v114, %v98
  %v163 = vpack.c.b16 %v115, %v99
  %v164 = vpack.c.b16 %v116, %v100
  %v165 = vpack.c.b16 %v117, %v101
  %v166 = vpack.c.b16 %v134, %v118
  %v167 = vpack.c.b16 %v135, %v119
  %v168 = vpack.c.b16 %v136, %v120
  %v169 = vpack.c.b16 %v137, %v121
  %v170 = vpack.c.b16 %v138, %v122
  %v171 = vpack.c.b16 %v139, %v123
  %v172 = vpack.c.b16 %v140, %v124
  %v173 = vpack.c.b16 %v141, %v125
  %v174 = vpack.c.b16 %v142, %v126
  %v175 = vpack.c.b16 %v143, %v127
  %v176 = vpack.c.b16 %v144, %v128
  %v177 = vpack.c.b16 %v145, %v129
  %v178 = vpack.c.b16 %v146, %v130
  %v179 = vpack.c.b16 %v147, %v131
  %v180 = vpack.c.b16 %v148, %v132
  %v181 = vpack.c.b16 %v149, %v133
  %vm214 = vcmask 261120
  %v216 = vsel %vm214, %v15, 0
  %218 = vmatprep.subr.bf16.mxu0 %v151
  %219 = vmatpush1.bf16.msra.mxu0 %v150
  %220 = vmatprep.subr.bf16.mxu0 %v167
  %221 = vmatpush1.bf16.msra.mxu0 %v166
  %222 = vmatprep.subr.bf16.mxu0 0
  %223 = vmatpush1.bf16.msra.mxu0 0
  %224 = vmatprep.subr.bf16.mxu0 0
  %225 = vmatpush1.bf16.msra.mxu0 0
  %226 = vmatprep.subr.bf16.mxu0 0
  %227 = vmatpush1.bf16.msra.mxu0 0
  %228 = vmatprep.subr.bf16.mxu0 0
  %229 = vmatpush1.bf16.msra.mxu0 0
  %230 = vmatprep.subr.bf16.mxu0 0
  %231 = vmatpush1.bf16.msra.mxu0 0
  %232 = vmatprep.subr.bf16.mxu0 0
  %233 = vmatpush1.bf16.msra.mxu0 0
  %234 = vmatprep.subr.bf16.mxu0 0
  %235 = vmatpush1.bf16.msra.mxu0 0
  %236 = vmatprep.subr.bf16.mxu0 0
  %237 = vmatpush1.bf16.msra.mxu0 0
  %238 = vmatprep.subr.bf16.mxu0 0
  %239 = vmatpush1.bf16.msra.mxu0 0
  %240 = vmatprep.subr.bf16.mxu0 0
  %241 = vmatpush1.bf16.msra.mxu0 0
  %242 = vmatprep.subr.bf16.mxu0 0
  %243 = vmatpush1.bf16.msra.mxu0 0
  %244 = vmatprep.subr.bf16.mxu0 0
  %245 = vmatpush1.bf16.msra.mxu0 0
  %246 = vmatprep.subr.bf16.mxu0 0
  %247 = vmatpush1.bf16.msra.mxu0 0
  %248 = vmatprep.subr.bf16.mxu0 0
  %249 = vmatpush1.bf16.msra.mxu0 0
  %250 = vmatprep.mubr.bf16.mxu0 0
  %251 = vmatmul.mubr.bf16.gmra.mrb[0].mxu0 %v216
  %v252 = vpop.f32.mrb[0].mxu0
  %v253 = vadd.f32 %v52, %v252
  %v254 = vpop.f32.mrb[0].mxu0
  %v255 = vadd.f32 %v52, %v254
  %v256 = vpop.f32.mrb[0].mxu0
  %v257 = vpop.f32.mrb[0].mxu0
  %258 = vdwg.mxu0
  %259 = vmatprep.subr.bf16.mxu0 %v153
  %260 = vmatpush1.bf16.msra.mxu0 %v152
  %261 = vmatprep.subr.bf16.mxu0 %v169
  %262 = vmatpush1.bf16.msra.mxu0 %v168
  %263 = vmatprep.subr.bf16.mxu0 0
  %264 = vmatpush1.bf16.msra.mxu0 0
  %265 = vmatprep.subr.bf16.mxu0 0
  %266 = vmatpush1.bf16.msra.mxu0 0
  %267 = vmatprep.subr.bf16.mxu0 0
  %268 = vmatpush1.bf16.msra.mxu0 0
  %269 = vmatprep.subr.bf16.mxu0 0
  %270 = vmatpush1.bf16.msra.mxu0 0
  %271 = vmatprep.subr.bf16.mxu0 0
  %272 = vmatpush1.bf16.msra.mxu0 0
  %273 = vmatprep.subr.bf16.mxu0 0
  %274 = vmatpush1.bf16.msra.mxu0 0
  %275 = vmatprep.subr.bf16.mxu0 0
  %276 = vmatpush1.bf16.msra.mxu0 0
  %277 = vmatprep.subr.bf16.mxu0 0
  %278 = vmatpush1.bf16.msra.mxu0 0
  %279 = vmatprep.subr.bf16.mxu0 0
  %280 = vmatpush1.bf16.msra.mxu0 0
  %281 = vmatprep.subr.bf16.mxu0 0
  %282 = vmatpush1.bf16.msra.mxu0 0
  %283 = vmatprep.subr.bf16.mxu0 0
  %284 = vmatpush1.bf16.msra.mxu0 0
  %285 = vmatprep.subr.bf16.mxu0 0
  %286 = vmatpush1.bf16.msra.mxu0 0
  %287 = vmatprep.subr.bf16.mxu0 0
  %288 = vmatpush1.bf16.msra.mxu0 0
  %289 = vmatprep.subr.bf16.mxu0 0
  %290 = vmatpush1.bf16.msra.mxu0 0
  %291 = vmatprep.mubr.bf16.mxu0 0
  %292 = vmatmul.mubr.bf16.gmra.mrb[0].mxu0 %v216
  %v293 = vpop.f32.mrb[0].mxu0
  %v294 = vadd.f32 %v52, %v293
  %v295 = vpop.f32.mrb[0].mxu0
  %v296 = vadd.f32 %v52, %v295
  %v297 = vpop.f32.mrb[0].mxu0
  %v298 = vpop.f32.mrb[0].mxu0
  %299 = vdwg.mxu0
  %300 = vmatprep.subr.bf16.mxu0 %v155
  %301 = vmatpush1.bf16.msra.mxu0 %v154
  %302 = vmatprep.subr.bf16.mxu0 %v171
  %303 = vmatpush1.bf16.msra.mxu0 %v170
  %304 = vmatprep.subr.bf16.mxu0 0
  %305 = vmatpush1.bf16.msra.mxu0 0
  %306 = vmatprep.subr.bf16.mxu0 0
  %307 = vmatpush1.bf16.msra.mxu0 0
  %308 = vmatprep.subr.bf16.mxu0 0
  %309 = vmatpush1.bf16.msra.mxu0 0
  %310 = vmatprep.subr.bf16.mxu0 0
  %311 = vmatpush1.bf16.msra.mxu0 0
  %312 = vmatprep.subr.bf16.mxu0 0
  %313 = vmatpush1.bf16.msra.mxu0 0
  %314 = vmatprep.subr.bf16.mxu0 0
  %315 = vmatpush1.bf16.msra.mxu0 0
  %316 = vmatprep.subr.bf16.mxu0 0
  %317 = vmatpush1.bf16.msra.mxu0 0
  %318 = vmatprep.subr.bf16.mxu0 0
  %319 = vmatpush1.bf16.msra.mxu0 0
  %320 = vmatprep.subr.bf16.mxu0 0
  %321 = vmatpush1.bf16.msra.mxu0 0
  %322 = vmatprep.subr.bf16.mxu0 0
  %323 = vmatpush1.bf16.msra.mxu0 0
  %324 = vmatprep.subr.bf16.mxu0 0
  %325 = vmatpush1.bf16.msra.mxu0 0
  %326 = vmatprep.subr.bf16.mxu0 0
  %327 = vmatpush1.bf16.msra.mxu0 0
  %328 = vmatprep.subr.bf16.mxu0 0
  %329 = vmatpush1.bf16.msra.mxu0 0
  %330 = vmatprep.subr.bf16.mxu0 0
  %331 = vmatpush1.bf16.msra.mxu0 0
  %332 = vmatprep.mubr.bf16.mxu0 0
  %333 = vmatmul.mubr.bf16.gmra.mrb[0].mxu0 %v216
  %v334 = vpop.f32.mrb[0].mxu0
  %v335 = vadd.f32 %v52, %v334
  %v336 = vpop.f32.mrb[0].mxu0
  %v337 = vadd.f32 %v52, %v336
  %v338 = vpop.f32.mrb[0].mxu0
  %v339 = vpop.f32.mrb[0].mxu0
  %340 = vdwg.mxu0
  %341 = vmatprep.subr.bf16.mxu0 %v157
  %342 = vmatpush1.bf16.msra.mxu0 %v156
  %343 = vmatprep.subr.bf16.mxu0 %v173
  %344 = vmatpush1.bf16.msra.mxu0 %v172
  %345 = vmatprep.subr.bf16.mxu0 0
  %346 = vmatpush1.bf16.msra.mxu0 0
  %347 = vmatprep.subr.bf16.mxu0 0
  %348 = vmatpush1.bf16.msra.mxu0 0
  %349 = vmatprep.subr.bf16.mxu0 0
  %350 = vmatpush1.bf16.msra.mxu0 0
  %351 = vmatprep.subr.bf16.mxu0 0
  %352 = vmatpush1.bf16.msra.mxu0 0
  %353 = vmatprep.subr.bf16.mxu0 0
  %354 = vmatpush1.bf16.msra.mxu0 0
  %355 = vmatprep.subr.bf16.mxu0 0
  %356 = vmatpush1.bf16.msra.mxu0 0
  %357 = vmatprep.subr.bf16.mxu0 0
  %358 = vmatpush1.bf16.msra.mxu0 0
  %359 = vmatprep.subr.bf16.mxu0 0
  %360 = vmatpush1.bf16.msra.mxu0 0
  %361 = vmatprep.subr.bf16.mxu0 0
  %362 = vmatpush1.bf16.msra.mxu0 0
  %363 = vmatprep.subr.bf16.mxu0 0
  %364 = vmatpush1.bf16.msra.mxu0 0
  %365 = vmatprep.subr.bf16.mxu0 0
  %366 = vmatpush1.bf16.msra.mxu0 0
  %367 = vmatprep.subr.bf16.mxu0 0
  %368 = vmatpush1.bf16.msra.mxu0 0
  %369 = vmatprep.subr.bf16.mxu0 0
  %370 = vmatpush1.bf16.msra.mxu0 0
  %371 = vmatprep.subr.bf16.mxu0 0
  %372 = vmatpush1.bf16.msra.mxu0 0
  %373 = vmatprep.mubr.bf16.mxu0 0
  %374 = vmatmul.mubr.bf16.gmra.mrb[0].mxu0 %v216
  %v375 = vpop.f32.mrb[0].mxu0
  %v376 = vadd.f32 %v52, %v375
  %v377 = vpop.f32.mrb[0].mxu0
  %v378 = vadd.f32 %v52, %v377
  %v379 = vpop.f32.mrb[0].mxu0
  %v380 = vpop.f32.mrb[0].mxu0
  %381 = vdwg.mxu0
  %382 = vmatprep.subr.bf16.mxu0 %v159
  %383 = vmatpush1.bf16.msra.mxu0 %v158
  %384 = vmatprep.subr.bf16.mxu0 %v175
  %385 = vmatpush1.bf16.msra.mxu0 %v174
  %386 = vmatprep.subr.bf16.mxu0 0
  %387 = vmatpush1.bf16.msra.mxu0 0
  %388 = vmatprep.subr.bf16.mxu0 0
  %389 = vmatpush1.bf16.msra.mxu0 0
  %390 = vmatprep.subr.bf16.mxu0 0
  %391 = vmatpush1.bf16.msra.mxu0 0
  %392 = vmatprep.subr.bf16.mxu0 0
  %393 = vmatpush1.bf16.msra.mxu0 0
  %394 = vmatprep.subr.bf16.mxu0 0
  %395 = vmatpush1.bf16.msra.mxu0 0
  %396 = vmatprep.subr.bf16.mxu0 0
  %397 = vmatpush1.bf16.msra.mxu0 0
  %398 = vmatprep.subr.bf16.mxu0 0
  %399 = vmatpush1.bf16.msra.mxu0 0
  %400 = vmatprep.subr.bf16.mxu0 0
  %401 = vmatpush1.bf16.msra.mxu0 0
  %402 = vmatprep.subr.bf16.mxu0 0
  %403 = vmatpush1.bf16.msra.mxu0 0
  %404 = vmatprep.subr.bf16.mxu0 0
  %405 = vmatpush1.bf16.msra.mxu0 0
  %406 = vmatprep.subr.bf16.mxu0 0
  %407 = vmatpush1.bf16.msra.mxu0 0
  %408 = vmatprep.subr.bf16.mxu0 0
  %409 = vmatpush1.bf16.msra.mxu0 0
  %410 = vmatprep.subr.bf16.mxu0 0
  %411 = vmatpush1.bf16.msra.mxu0 0
  %412 = vmatprep.subr.bf16.mxu0 0
  %413 = vmatpush1.bf16.msra.mxu0 0
  %414 = vmatprep.mubr.bf16.mxu0 0
  %415 = vmatmul.mubr.bf16.gmra.mrb[0].mxu0 %v216
  %v416 = vpop.f32.mrb[0].mxu0
  %v417 = vadd.f32 %v52, %v416
  %v418 = vpop.f32.mrb[0].mxu0
  %v419 = vadd.f32 %v52, %v418
  %v420 = vpop.f32.mrb[0].mxu0
  %v421 = vpop.f32.mrb[0].mxu0
  %422 = vdwg.mxu0
  %423 = vmatprep.subr.bf16.mxu0 %v161
  %424 = vmatpush1.bf16.msra.mxu0 %v160
  %425 = vmatprep.subr.bf16.mxu0 %v177
  %426 = vmatpush1.bf16.msra.mxu0 %v176
  %427 = vmatprep.subr.bf16.mxu0 0
  %428 = vmatpush1.bf16.msra.mxu0 0
  %429 = vmatprep.subr.bf16.mxu0 0
  %430 = vmatpush1.bf16.msra.mxu0 0
  %431 = vmatprep.subr.bf16.mxu0 0
  %432 = vmatpush1.bf16.msra.mxu0 0
  %433 = vmatprep.subr.bf16.mxu0 0
  %434 = vmatpush1.bf16.msra.mxu0 0
  %435 = vmatprep.subr.bf16.mxu0 0
  %436 = vmatpush1.bf16.msra.mxu0 0
  %437 = vmatprep.subr.bf16.mxu0 0
  %438 = vmatpush1.bf16.msra.mxu0 0
  %439 = vmatprep.subr.bf16.mxu0 0
  %440 = vmatpush1.bf16.msra.mxu0 0
  %441 = vmatprep.subr.bf16.mxu0 0
  %442 = vmatpush1.bf16.msra.mxu0 0
  %443 = vmatprep.subr.bf16.mxu0 0
  %444 = vmatpush1.bf16.msra.mxu0 0
  %445 = vmatprep.subr.bf16.mxu0 0
  %446 = vmatpush1.bf16.msra.mxu0 0
  %447 = vmatprep.subr.bf16.mxu0 0
  %448 = vmatpush1.bf16.msra.mxu0 0
  %449 = vmatprep.subr.bf16.mxu0 0
  %450 = vmatpush1.bf16.msra.mxu0 0
  %451 = vmatprep.subr.bf16.mxu0 0
  %452 = vmatpush1.bf16.msra.mxu0 0
  %453 = vmatprep.subr.bf16.mxu0 0
  %454 = vmatpush1.bf16.msra.mxu0 0
  %455 = vmatprep.mubr.bf16.mxu0 0
  %456 = vmatmul.mubr.bf16.gmra.mrb[0].mxu0 %v216
  %v457 = vpop.f32.mrb[0].mxu0
  %v458 = vadd.f32 %v52, %v457
  %v459 = vpop.f32.mrb[0].mxu0
  %v460 = vadd.f32 %v52, %v459
  %v461 = vpop.f32.mrb[0].mxu0
  %v462 = vpop.f32.mrb[0].mxu0
  %463 = vdwg.mxu0
  %464 = vmatprep.subr.bf16.mxu0 %v163
  %465 = vmatpush1.bf16.msra.mxu0 %v162
  %466 = vmatprep.subr.bf16.mxu0 %v179
  %467 = vmatpush1.bf16.msra.mxu0 %v178
  %468 = vmatprep.subr.bf16.mxu0 0
  %469 = vmatpush1.bf16.msra.mxu0 0
  %470 = vmatprep.subr.bf16.mxu0 0
  %471 = vmatpush1.bf16.msra.mxu0 0
  %472 = vmatprep.subr.bf16.mxu0 0
  %473 = vmatpush1.bf16.msra.mxu0 0
  %474 = vmatprep.subr.bf16.mxu0 0
  %475 = vmatpush1.bf16.msra.mxu0 0
  %476 = vmatprep.subr.bf16.mxu0 0
  %477 = vmatpush1.bf16.msra.mxu0 0
  %478 = vmatprep.subr.bf16.mxu0 0
  %479 = vmatpush1.bf16.msra.mxu0 0
  %480 = vmatprep.subr.bf16.mxu0 0
  %481 = vmatpush1.bf16.msra.mxu0 0
  %482 = vmatprep.subr.bf16.mxu0 0
  %483 = vmatpush1.bf16.msra.mxu0 0
  %484 = vmatprep.subr.bf16.mxu0 0
  %485 = vmatpush1.bf16.msra.mxu0 0
  %486 = vmatprep.subr.bf16.mxu0 0
  %487 = vmatpush1.bf16.msra.mxu0 0
  %488 = vmatprep.subr.bf16.mxu0 0
  %489 = vmatpush1.bf16.msra.mxu0 0
  %490 = vmatprep.subr.bf16.mxu0 0
  %491 = vmatpush1.bf16.msra.mxu0 0
  %492 = vmatprep.subr.bf16.mxu0 0
  %493 = vmatpush1.bf16.msra.mxu0 0
  %494 = vmatprep.subr.bf16.mxu0 0
  %495 = vmatpush1.bf16.msra.mxu0 0
  %496 = vmatprep.mubr.bf16.mxu0 0
  %497 = vmatmul.mubr.bf16.gmra.mrb[0].mxu0 %v216
  %v498 = vpop.f32.mrb[0].mxu0
  %v499 = vadd.f32 %v52, %v498
  %v500 = vpop.f32.mrb[0].mxu0
  %v501 = vadd.f32 %v52, %v500
  %v502 = vpop.f32.mrb[0].mxu0
  %v503 = vpop.f32.mrb[0].mxu0
  %504 = vdwg.mxu0
  %505 = vmatprep.subr.bf16.mxu0 %v165
  %506 = vmatpush1.bf16.msra.mxu0 %v164
  %507 = vmatprep.subr.bf16.mxu0 %v181
  %508 = vmatpush1.bf16.msra.mxu0 %v180
  %509 = vmatprep.subr.bf16.mxu0 0
  %510 = vmatpush1.bf16.msra.mxu0 0
  %511 = vmatprep.subr.bf16.mxu0 0
  %512 = vmatpush1.bf16.msra.mxu0 0
  %513 = vmatprep.subr.bf16.mxu0 0
  %514 = vmatpush1.bf16.msra.mxu0 0
  %515 = vmatprep.subr.bf16.mxu0 0
  %516 = vmatpush1.bf16.msra.mxu0 0
  %517 = vmatprep.subr.bf16.mxu0 0
  %518 = vmatpush1.bf16.msra.mxu0 0
  %519 = vmatprep.subr.bf16.mxu0 0
  %520 = vmatpush1.bf16.msra.mxu0 0
  %521 = vmatprep.subr.bf16.mxu0 0
  %522 = vmatpush1.bf16.msra.mxu0 0
  %523 = vmatprep.subr.bf16.mxu0 0
  %524 = vmatpush1.bf16.msra.mxu0 0
  %525 = vmatprep.subr.bf16.mxu0 0
  %526 = vmatpush1.bf16.msra.mxu0 0
  %527 = vmatprep.subr.bf16.mxu0 0
  %528 = vmatpush1.bf16.msra.mxu0 0
  %529 = vmatprep.subr.bf16.mxu0 0
  %530 = vmatpush1.bf16.msra.mxu0 0
  %531 = vmatprep.subr.bf16.mxu0 0
  %532 = vmatpush1.bf16.msra.mxu0 0
  %533 = vmatprep.subr.bf16.mxu0 0
  %534 = vmatpush1.bf16.msra.mxu0 0
  %535 = vmatprep.subr.bf16.mxu0 0
  %536 = vmatpush1.bf16.msra.mxu0 0
  %537 = vmatprep.mubr.bf16.mxu0 0
  %538 = vmatmul.mubr.bf16.gmra.mrb[0].mxu0 %v216
  %v539 = vpop.f32.mrb[0].mxu0
  %v540 = vadd.f32 %v52, %v539
  %v541 = vpop.f32.mrb[0].mxu0
  %v542 = vadd.f32 %v52, %v541
  %v543 = vpop.f32.mrb[0].mxu0
  %v544 = vpop.f32.mrb[0].mxu0
  %545 = vdwg.mxu0
  %v546 = vtanh.pop %v253
  %v547 = vtanh.pop %v255
  %v548 = vtanh.pop %v294
  %v549 = vtanh.pop %v296
  %v550 = vtanh.pop %v335
  %v551 = vtanh.pop %v337
  %v552 = vtanh.pop %v376
  %v553 = vtanh.pop %v378
  %v554 = vtanh.pop %v417
  %v555 = vtanh.pop %v419
  %v556 = vtanh.pop %v458
  %v557 = vtanh.pop %v460
  %v558 = vtanh.pop %v499
  %v559 = vtanh.pop %v501
  %v560 = vtanh.pop %v540
  %v561 = vtanh.pop %v542
  %v578 = vcombine.low %v546, %v547
  %v579 = vcombine.low %v548, %v549
  %v580 = vcombine.low %v550, %v551
  %v581 = vcombine.low %v552, %v553
  %v582 = vcombine.low %v554, %v555
  %v583 = vcombine.low %v556, %v557
  %v584 = vcombine.low %v558, %v559
  %v585 = vcombine.low %v560, %v561
  %594 = vst [vmem:[%s3] sm:$0x77] %v578
  %595 = vst [vmem:[%s3 + $0x8] sm:$0x77] %v579
  %596 = vst [vmem:[%s3 + $0x10] sm:$0x77] %v580
  %597 = vst [vmem:[%s3 + $0x18] sm:$0x77] %v581
  %598 = vst [vmem:[%s3 + $0x20] sm:$0x77] %v582
  %599 = vst [vmem:[%s3 + $0x28] sm:$0x77] %v583
  %600 = vst [vmem:[%s3 + $0x30] sm:$0x77] %v584
  %601 = vst [vmem:[%s3 + $0x38] sm:$0x77] %v585
  %s602 = scalar_lea.vmem %s1, 2
  %v603 = vld [vmem:[%s602] sm:$0x3]
  %s604 = scalar_lea.vmem %s0, 256
  %v605 = vld [vmem:[%s604] sm:$0xff]
  %v606 = vld [vmem:[%s604 + $0x8] sm:$0xff]
  %v607 = vld [vmem:[%s604 + $0x10] sm:$0xff]
  %v608 = vld [vmem:[%s604 + $0x18] sm:$0xff]
  %v609 = vld [vmem:[%s604 + $0x20] sm:$0xff]
  %v610 = vld [vmem:[%s604 + $0x28] sm:$0xff]
  %v611 = vld [vmem:[%s604 + $0x30] sm:$0xff]
  %v612 = vld [vmem:[%s604 + $0x38] sm:$0xff]
  %v613 = vld [vmem:[%s604 + $0x40] sm:$0xff]
  %v614 = vld [vmem:[%s604 + $0x48] sm:$0xff]
  %v615 = vld [vmem:[%s604 + $0x50] sm:$0xff]
  %v616 = vld [vmem:[%s604 + $0x58] sm:$0xff]
  %v617 = vld [vmem:[%s604 + $0x60] sm:$0xff]
  %v618 = vld [vmem:[%s604 + $0x68] sm:$0xff]
  %v619 = vld [vmem:[%s604 + $0x70] sm:$0xff]
  %v620 = vld [vmem:[%s604 + $0x78] sm:$0xff]
  %v621 = vld [vmem:[%s604 + $0x80] sm:$0xff]
  %v622 = vld [vmem:[%s604 + $0x88] sm:$0xff]
  %v623 = vld [vmem:[%s604 + $0x90] sm:$0xff]
  %v624 = vld [vmem:[%s604 + $0x98] sm:$0xff]
  %v625 = vld [vmem:[%s604 + $0xa0] sm:$0xff]
  %v626 = vld [vmem:[%s604 + $0xa8] sm:$0xff]
  %v627 = vld [vmem:[%s604 + $0xb0] sm:$0xff]
  %v628 = vld [vmem:[%s604 + $0xb8] sm:$0xff]
  %v629 = vld [vmem:[%s604 + $0xc0] sm:$0xff]
  %v630 = vld [vmem:[%s604 + $0xc8] sm:$0xff]
  %v631 = vld [vmem:[%s604 + $0xd0] sm:$0xff]
  %v632 = vld [vmem:[%s604 + $0xd8] sm:$0xff]
  %v633 = vld [vmem:[%s604 + $0xe0] sm:$0xff]
  %v634 = vld [vmem:[%s604 + $0xe8] sm:$0xff]
  %v635 = vld [vmem:[%s604 + $0xf0] sm:$0xff]
  %v636 = vld [vmem:[%s604 + $0xf8] sm:$0xff]
  %v637 = vld [vmem:[%s2] sm:$0x7]
  %639 = vset.pattern.permute.xlu0 0
  %640 = vperm.xlu0 %639, %v637
  %v641 = vpop.permute.xlu0 %640
  %v675 = vunpack.c.l.b16 %v605
  %v676 = vunpack.c.h.b16 %v605
  %v677 = vunpack.c.l.b16 %v606
  %v678 = vunpack.c.h.b16 %v606
  %v679 = vunpack.c.l.b16 %v607
  %v680 = vunpack.c.h.b16 %v607
  %v681 = vunpack.c.l.b16 %v608
  %v682 = vunpack.c.h.b16 %v608
  %v683 = vunpack.c.l.b16 %v609
  %v684 = vunpack.c.h.b16 %v609
  %v685 = vunpack.c.l.b16 %v610
  %v686 = vunpack.c.h.b16 %v610
  %v687 = vunpack.c.l.b16 %v611
  %v688 = vunpack.c.h.b16 %v611
  %v689 = vunpack.c.l.b16 %v612
  %v690 = vunpack.c.h.b16 %v612
  %v691 = vunpack.c.l.b16 %v613
  %v692 = vunpack.c.h.b16 %v613
  %v693 = vunpack.c.l.b16 %v614
  %v694 = vunpack.c.h.b16 %v614
  %v695 = vunpack.c.l.b16 %v615
  %v696 = vunpack.c.h.b16 %v615
  %v697 = vunpack.c.l.b16 %v616
  %v698 = vunpack.c.h.b16 %v616
  %v699 = vunpack.c.l.b16 %v617
  %v700 = vunpack.c.h.b16 %v617
  %v701 = vunpack.c.l.b16 %v618
  %v702 = vunpack.c.h.b16 %v618
  %v703 = vunpack.c.l.b16 %v619
  %v704 = vunpack.c.h.b16 %v619
  %v705 = vunpack.c.l.b16 %v620
  %v706 = vunpack.c.h.b16 %v620
  %v707 = vunpack.c.l.b16 %v621
  %v708 = vunpack.c.h.b16 %v621
  %v709 = vunpack.c.l.b16 %v622
  %v710 = vunpack.c.h.b16 %v622
  %v711 = vunpack.c.l.b16 %v623
  %v712 = vunpack.c.h.b16 %v623
  %v713 = vunpack.c.l.b16 %v624
  %v714 = vunpack.c.h.b16 %v624
  %v715 = vunpack.c.l.b16 %v625
  %v716 = vunpack.c.h.b16 %v625
  %v717 = vunpack.c.l.b16 %v626
  %v718 = vunpack.c.h.b16 %v626
  %v719 = vunpack.c.l.b16 %v627
  %v720 = vunpack.c.h.b16 %v627
  %v721 = vunpack.c.l.b16 %v628
  %v722 = vunpack.c.h.b16 %v628
  %v723 = vunpack.c.l.b16 %v629
  %v724 = vunpack.c.h.b16 %v629
  %v725 = vunpack.c.l.b16 %v630
  %v726 = vunpack.c.h.b16 %v630
  %v727 = vunpack.c.l.b16 %v631
  %v728 = vunpack.c.h.b16 %v631
  %v729 = vunpack.c.l.b16 %v632
  %v730 = vunpack.c.h.b16 %v632
  %v731 = vunpack.c.l.b16 %v633
  %v732 = vunpack.c.h.b16 %v633
  %v733 = vunpack.c.l.b16 %v634
  %v734 = vunpack.c.h.b16 %v634
  %v735 = vunpack.c.l.b16 %v635
  %v736 = vunpack.c.h.b16 %v635
  %v737 = vunpack.c.l.b16 %v636
  %v738 = vunpack.c.h.b16 %v636
  %v739 = vpack.c.b16 %v691, %v675
  %v740 = vpack.c.b16 %v692, %v676
  %v741 = vpack.c.b16 %v693, %v677
  %v742 = vpack.c.b16 %v694, %v678
  %v743 = vpack.c.b16 %v695, %v679
  %v744 = vpack.c.b16 %v696, %v680
  %v745 = vpack.c.b16 %v697, %v681
  %v746 = vpack.c.b16 %v698, %v682
  %v747 = vpack.c.b16 %v699, %v683
  %v748 = vpack.c.b16 %v700, %v684
  %v749 = vpack.c.b16 %v701, %v685
  %v750 = vpack.c.b16 %v702, %v686
  %v751 = vpack.c.b16 %v703, %v687
  %v752 = vpack.c.b16 %v704, %v688
  %v753 = vpack.c.b16 %v705, %v689
  %v754 = vpack.c.b16 %v706, %v690
  %v755 = vpack.c.b16 %v723, %v707
  %v756 = vpack.c.b16 %v724, %v708
  %v757 = vpack.c.b16 %v725, %v709
  %v758 = vpack.c.b16 %v726, %v710
  %v759 = vpack.c.b16 %v727, %v711
  %v760 = vpack.c.b16 %v728, %v712
  %v761 = vpack.c.b16 %v729, %v713
  %v762 = vpack.c.b16 %v730, %v714
  %v763 = vpack.c.b16 %v731, %v715
  %v764 = vpack.c.b16 %v732, %v716
  %v765 = vpack.c.b16 %v733, %v717
  %v766 = vpack.c.b16 %v734, %v718
  %v767 = vpack.c.b16 %v735, %v719
  %v768 = vpack.c.b16 %v736, %v720
  %v769 = vpack.c.b16 %v737, %v721
  %v770 = vpack.c.b16 %v738, %v722
  %v804 = vsel %vm214, %v603, 0
  %806 = vmatprep.subr.bf16.mxu0 %v740
  %807 = vmatpush1.bf16.msra.mxu0 %v739
  %808 = vmatprep.subr.bf16.mxu0 %v756
  %809 = vmatpush1.bf16.msra.mxu0 %v755
  %810 = vmatprep.subr.bf16.mxu0 0
  %811 = vmatpush1.bf16.msra.mxu0 0
  %812 = vmatprep.subr.bf16.mxu0 0
  %813 = vmatpush1.bf16.msra.mxu0 0
  %814 = vmatprep.subr.bf16.mxu0 0
  %815 = vmatpush1.bf16.msra.mxu0 0
  %816 = vmatprep.subr.bf16.mxu0 0
  %817 = vmatpush1.bf16.msra.mxu0 0
  %818 = vmatprep.subr.bf16.mxu0 0
  %819 = vmatpush1.bf16.msra.mxu0 0
  %820 = vmatprep.subr.bf16.mxu0 0
  %821 = vmatpush1.bf16.msra.mxu0 0
  %822 = vmatprep.subr.bf16.mxu0 0
  %823 = vmatpush1.bf16.msra.mxu0 0
  %824 = vmatprep.subr.bf16.mxu0 0
  %825 = vmatpush1.bf16.msra.mxu0 0
  %826 = vmatprep.subr.bf16.mxu0 0
  %827 = vmatpush1.bf16.msra.mxu0 0
  %828 = vmatprep.subr.bf16.mxu0 0
  %829 = vmatpush1.bf16.msra.mxu0 0
  %830 = vmatprep.subr.bf16.mxu0 0
  %831 = vmatpush1.bf16.msra.mxu0 0
  %832 = vmatprep.subr.bf16.mxu0 0
  %833 = vmatpush1.bf16.msra.mxu0 0
  %834 = vmatprep.subr.bf16.mxu0 0
  %835 = vmatpush1.bf16.msra.mxu0 0
  %836 = vmatprep.subr.bf16.mxu0 0
  %837 = vmatpush1.bf16.msra.mxu0 0
  %838 = vmatprep.mubr.bf16.mxu0 0
  %839 = vmatmul.mubr.bf16.gmra.mrb[0].mxu0 %v804
  %v840 = vpop.f32.mrb[0].mxu0
  %v841 = vadd.f32 %v641, %v840
  %v842 = vpop.f32.mrb[0].mxu0
  %v843 = vadd.f32 %v641, %v842
  %v844 = vpop.f32.mrb[0].mxu0
  %v845 = vpop.f32.mrb[0].mxu0
  %846 = vdwg.mxu0
  %847 = vmatprep.subr.bf16.mxu0 %v742
  %848 = vmatpush1.bf16.msra.mxu0 %v741
  %849 = vmatprep.subr.bf16.mxu0 %v758
  %850 = vmatpush1.bf16.msra.mxu0 %v757
  %851 = vmatprep.subr.bf16.mxu0 0
  %852 = vmatpush1.bf16.msra.mxu0 0
  %853 = vmatprep.subr.bf16.mxu0 0
  %854 = vmatpush1.bf16.msra.mxu0 0
  %855 = vmatprep.subr.bf16.mxu0 0
  %856 = vmatpush1.bf16.msra.mxu0 0
  %857 = vmatprep.subr.bf16.mxu0 0
  %858 = vmatpush1.bf16.msra.mxu0 0
  %859 = vmatprep.subr.bf16.mxu0 0
  %860 = vmatpush1.bf16.msra.mxu0 0
  %861 = vmatprep.subr.bf16.mxu0 0
  %862 = vmatpush1.bf16.msra.mxu0 0
  %863 = vmatprep.subr.bf16.mxu0 0
  %864 = vmatpush1.bf16.msra.mxu0 0
  %865 = vmatprep.subr.bf16.mxu0 0
  %866 = vmatpush1.bf16.msra.mxu0 0
  %867 = vmatprep.subr.bf16.mxu0 0
  %868 = vmatpush1.bf16.msra.mxu0 0
  %869 = vmatprep.subr.bf16.mxu0 0
  %870 = vmatpush1.bf16.msra.mxu0 0
  %871 = vmatprep.subr.bf16.mxu0 0
  %872 = vmatpush1.bf16.msra.mxu0 0
  %873 = vmatprep.subr.bf16.mxu0 0
  %874 = vmatpush1.bf16.msra.mxu0 0
  %875 = vmatprep.subr.bf16.mxu0 0
  %876 = vmatpush1.bf16.msra.mxu0 0
  %877 = vmatprep.subr.bf16.mxu0 0
  %878 = vmatpush1.bf16.msra.mxu0 0
  %879 = vmatprep.mubr.bf16.mxu0 0
  %880 = vmatmul.mubr.bf16.gmra.mrb[0].mxu0 %v804
  %v881 = vpop.f32.mrb[0].mxu0
  %v882 = vadd.f32 %v641, %v881
  %v883 = vpop.f32.mrb[0].mxu0
  %v884 = vadd.f32 %v641, %v883
  %v885 = vpop.f32.mrb[0].mxu0
  %v886 = vpop.f32.mrb[0].mxu0
  %887 = vdwg.mxu0
  %888 = vmatprep.subr.bf16.mxu0 %v744
  %889 = vmatpush1.bf16.msra.mxu0 %v743
  %890 = vmatprep.subr.bf16.mxu0 %v760
  %891 = vmatpush1.bf16.msra.mxu0 %v759
  %892 = vmatprep.subr.bf16.mxu0 0
  %893 = vmatpush1.bf16.msra.mxu0 0
  %894 = vmatprep.subr.bf16.mxu0 0
  %895 = vmatpush1.bf16.msra.mxu0 0
  %896 = vmatprep.subr.bf16.mxu0 0
  %897 = vmatpush1.bf16.msra.mxu0 0
  %898 = vmatprep.subr.bf16.mxu0 0
  %899 = vmatpush1.bf16.msra.mxu0 0
  %900 = vmatprep.subr.bf16.mxu0 0
  %901 = vmatpush1.bf16.msra.mxu0 0
  %902 = vmatprep.subr.bf16.mxu0 0
  %903 = vmatpush1.bf16.msra.mxu0 0
  %904 = vmatprep.subr.bf16.mxu0 0
  %905 = vmatpush1.bf16.msra.mxu0 0
  %906 = vmatprep.subr.bf16.mxu0 0
  %907 = vmatpush1.bf16.msra.mxu0 0
  %908 = vmatprep.subr.bf16.mxu0 0
  %909 = vmatpush1.bf16.msra.mxu0 0
  %910 = vmatprep.subr.bf16.mxu0 0
  %911 = vmatpush1.bf16.msra.mxu0 0
  %912 = vmatprep.subr.bf16.mxu0 0
  %913 = vmatpush1.bf16.msra.mxu0 0
  %914 = vmatprep.subr.bf16.mxu0 0
  %915 = vmatpush1.bf16.msra.mxu0 0
  %916 = vmatprep.subr.bf16.mxu0 0
  %917 = vmatpush1.bf16.msra.mxu0 0
  %918 = vmatprep.subr.bf16.mxu0 0
  %919 = vmatpush1.bf16.msra.mxu0 0
  %920 = vmatprep.mubr.bf16.mxu0 0
  %921 = vmatmul.mubr.bf16.gmra.mrb[0].mxu0 %v804
  %v922 = vpop.f32.mrb[0].mxu0
  %v923 = vadd.f32 %v641, %v922
  %v924 = vpop.f32.mrb[0].mxu0
  %v925 = vadd.f32 %v641, %v924
  %v926 = vpop.f32.mrb[0].mxu0
  %v927 = vpop.f32.mrb[0].mxu0
  %928 = vdwg.mxu0
  %929 = vmatprep.subr.bf16.mxu0 %v746
  %930 = vmatpush1.bf16.msra.mxu0 %v745
  %931 = vmatprep.subr.bf16.mxu0 %v762
  %932 = vmatpush1.bf16.msra.mxu0 %v761
  %933 = vmatprep.subr.bf16.mxu0 0
  %934 = vmatpush1.bf16.msra.mxu0 0
  %935 = vmatprep.subr.bf16.mxu0 0
  %936 = vmatpush1.bf16.msra.mxu0 0
  %937 = vmatprep.subr.bf16.mxu0 0
  %938 = vmatpush1.bf16.msra.mxu0 0
  %939 = vmatprep.subr.bf16.mxu0 0
  %940 = vmatpush1.bf16.msra.mxu0 0
  %941 = vmatprep.subr.bf16.mxu0 0
  %942 = vmatpush1.bf16.msra.mxu0 0
  %943 = vmatprep.subr.bf16.mxu0 0
  %944 = vmatpush1.bf16.msra.mxu0 0
  %945 = vmatprep.subr.bf16.mxu0 0
  %946 = vmatpush1.bf16.msra.mxu0 0
  %947 = vmatprep.subr.bf16.mxu0 0
  %948 = vmatpush1.bf16.msra.mxu0 0
  %949 = vmatprep.subr.bf16.mxu0 0
  %950 = vmatpush1.bf16.msra.mxu0 0
  %951 = vmatprep.subr.bf16.mxu0 0
  %952 = vmatpush1.bf16.msra.mxu0 0
  %953 = vmatprep.subr.bf16.mxu0 0
  %954 = vmatpush1.bf16.msra.mxu0 0
  %955 = vmatprep.subr.bf16.mxu0 0
  %956 = vmatpush1.bf16.msra.mxu0 0
  %957 = vmatprep.subr.bf16.mxu0 0
  %958 = vmatpush1.bf16.msra.mxu0 0
  %959 = vmatprep.subr.bf16.mxu0 0
  %960 = vmatpush1.bf16.msra.mxu0 0
  %961 = vmatprep.mubr.bf16.mxu0 0
  %962 = vmatmul.mubr.bf16.gmra.mrb[0].mxu0 %v804
  %v963 = vpop.f32.mrb[0].mxu0
  %v964 = vadd.f32 %v641, %v963
  %v965 = vpop.f32.mrb[0].mxu0
  %v966 = vadd.f32 %v641, %v965
  %v967 = vpop.f32.mrb[0].mxu0
  %v968 = vpop.f32.mrb[0].mxu0
  %969 = vdwg.mxu0
  %970 = vmatprep.subr.bf16.mxu0 %v748
  %971 = vmatpush1.bf16.msra.mxu0 %v747
  %972 = vmatprep.subr.bf16.mxu0 %v764
  %973 = vmatpush1.bf16.msra.mxu0 %v763
  %974 = vmatprep.subr.bf16.mxu0 0
  %975 = vmatpush1.bf16.msra.mxu0 0
  %976 = vmatprep.subr.bf16.mxu0 0
  %977 = vmatpush1.bf16.msra.mxu0 0
  %978 = vmatprep.subr.bf16.mxu0 0
  %979 = vmatpush1.bf16.msra.mxu0 0
  %980 = vmatprep.subr.bf16.mxu0 0
  %981 = vmatpush1.bf16.msra.mxu0 0
  %982 = vmatprep.subr.bf16.mxu0 0
  %983 = vmatpush1.bf16.msra.mxu0 0
  %984 = vmatprep.subr.bf16.mxu0 0
  %985 = vmatpush1.bf16.msra.mxu0 0
  %986 = vmatprep.subr.bf16.mxu0 0
  %987 = vmatpush1.bf16.msra.mxu0 0
  %988 = vmatprep.subr.bf16.mxu0 0
  %989 = vmatpush1.bf16.msra.mxu0 0
  %990 = vmatprep.subr.bf16.mxu0 0
  %991 = vmatpush1.bf16.msra.mxu0 0
  %992 = vmatprep.subr.bf16.mxu0 0
  %993 = vmatpush1.bf16.msra.mxu0 0
  %994 = vmatprep.subr.bf16.mxu0 0
  %995 = vmatpush1.bf16.msra.mxu0 0
  %996 = vmatprep.subr.bf16.mxu0 0
  %997 = vmatpush1.bf16.msra.mxu0 0
  %998 = vmatprep.subr.bf16.mxu0 0
  %999 = vmatpush1.bf16.msra.mxu0 0
  %1000 = vmatprep.subr.bf16.mxu0 0
  %1001 = vmatpush1.bf16.msra.mxu0 0
  %1002 = vmatprep.mubr.bf16.mxu0 0
  %1003 = vmatmul.mubr.bf16.gmra.mrb[0].mxu0 %v804
  %v1004 = vpop.f32.mrb[0].mxu0
  %v1005 = vadd.f32 %v641, %v1004
  %v1006 = vpop.f32.mrb[0].mxu0
  %v1007 = vadd.f32 %v641, %v1006
  %v1008 = vpop.f32.mrb[0].mxu0
  %v1009 = vpop.f32.mrb[0].mxu0
  %1010 = vdwg.mxu0
  %1011 = vmatprep.subr.bf16.mxu0 %v750
  %1012 = vmatpush1.bf16.msra.mxu0 %v749
  %1013 = vmatprep.subr.bf16.mxu0 %v766
  %1014 = vmatpush1.bf16.msra.mxu0 %v765
  %1015 = vmatprep.subr.bf16.mxu0 0
  %1016 = vmatpush1.bf16.msra.mxu0 0
  %1017 = vmatprep.subr.bf16.mxu0 0
  %1018 = vmatpush1.bf16.msra.mxu0 0
  %1019 = vmatprep.subr.bf16.mxu0 0
  %1020 = vmatpush1.bf16.msra.mxu0 0
  %1021 = vmatprep.subr.bf16.mxu0 0
  %1022 = vmatpush1.bf16.msra.mxu0 0
  %1023 = vmatprep.subr.bf16.mxu0 0
  %1024 = vmatpush1.bf16.msra.mxu0 0
  %1025 = vmatprep.subr.bf16.mxu0 0
  %1026 = vmatpush1.bf16.msra.mxu0 0
  %1027 = vmatprep.subr.bf16.mxu0 0
  %1028 = vmatpush1.bf16.msra.mxu0 0
  %1029 = vmatprep.subr.bf16.mxu0 0
  %1030 = vmatpush1.bf16.msra.mxu0 0
  %1031 = vmatprep.subr.bf16.mxu0 0
  %1032 = vmatpush1.bf16.msra.mxu0 0
  %1033 = vmatprep.subr.bf16.mxu0 0
  %1034 = vmatpush1.bf16.msra.mxu0 0
  %1035 = vmatprep.subr.bf16.mxu0 0
  %1036 = vmatpush1.bf16.msra.mxu0 0
  %1037 = vmatprep.subr.bf16.mxu0 0
  %1038 = vmatpush1.bf16.msra.mxu0 0
  %1039 = vmatprep.subr.bf16.mxu0 0
  %1040 = vmatpush1.bf16.msra.mxu0 0
  %1041 = vmatprep.subr.bf16.mxu0 0
  %1042 = vmatpush1.bf16.msra.mxu0 0
  %1043 = vmatprep.mubr.bf16.mxu0 0
  %1044 = vmatmul.mubr.bf16.gmra.mrb[0].mxu0 %v804
  %v1045 = vpop.f32.mrb[0].mxu0
  %v1046 = vadd.f32 %v641, %v1045
  %v1047 = vpop.f32.mrb[0].mxu0
  %v1048 = vadd.f32 %v641, %v1047
  %v1049 = vpop.f32.mrb[0].mxu0
  %v1050 = vpop.f32.mrb[0].mxu0
  %1051 = vdwg.mxu0
  %1052 = vmatprep.subr.bf16.mxu0 %v752
  %1053 = vmatpush1.bf16.msra.mxu0 %v751
  %1054 = vmatprep.subr.bf16.mxu0 %v768
  %1055 = vmatpush1.bf16.msra.mxu0 %v767
  %1056 = vmatprep.subr.bf16.mxu0 0
  %1057 = vmatpush1.bf16.msra.mxu0 0
  %1058 = vmatprep.subr.bf16.mxu0 0
  %1059 = vmatpush1.bf16.msra.mxu0 0
  %1060 = vmatprep.subr.bf16.mxu0 0
  %1061 = vmatpush1.bf16.msra.mxu0 0
  %1062 = vmatprep.subr.bf16.mxu0 0
  %1063 = vmatpush1.bf16.msra.mxu0 0
  %1064 = vmatprep.subr.bf16.mxu0 0
  %1065 = vmatpush1.bf16.msra.mxu0 0
  %1066 = vmatprep.subr.bf16.mxu0 0
  %1067 = vmatpush1.bf16.msra.mxu0 0
  %1068 = vmatprep.subr.bf16.mxu0 0
  %1069 = vmatpush1.bf16.msra.mxu0 0
  %1070 = vmatprep.subr.bf16.mxu0 0
  %1071 = vmatpush1.bf16.msra.mxu0 0
  %1072 = vmatprep.subr.bf16.mxu0 0
  %1073 = vmatpush1.bf16.msra.mxu0 0
  %1074 = vmatprep.subr.bf16.mxu0 0
  %1075 = vmatpush1.bf16.msra.mxu0 0
  %1076 = vmatprep.subr.bf16.mxu0 0
  %1077 = vmatpush1.bf16.msra.mxu0 0
  %1078 = vmatprep.subr.bf16.mxu0 0
  %1079 = vmatpush1.bf16.msra.mxu0 0
  %1080 = vmatprep.subr.bf16.mxu0 0
  %1081 = vmatpush1.bf16.msra.mxu0 0
  %1082 = vmatprep.subr.bf16.mxu0 0
  %1083 = vmatpush1.bf16.msra.mxu0 0
  %1084 = vmatprep.mubr.bf16.mxu0 0
  %1085 = vmatmul.mubr.bf16.gmra.mrb[0].mxu0 %v804
  %v1086 = vpop.f32.mrb[0].mxu0
  %v1087 = vadd.f32 %v641, %v1086
  %v1088 = vpop.f32.mrb[0].mxu0
  %v1089 = vadd.f32 %v641, %v1088
  %v1090 = vpop.f32.mrb[0].mxu0
  %v1091 = vpop.f32.mrb[0].mxu0
  %1092 = vdwg.mxu0
  %1093 = vmatprep.subr.bf16.mxu0 %v754
  %1094 = vmatpush1.bf16.msra.mxu0 %v753
  %1095 = vmatprep.subr.bf16.mxu0 %v770
  %1096 = vmatpush1.bf16.msra.mxu0 %v769
  %1097 = vmatprep.subr.bf16.mxu0 0
  %1098 = vmatpush1.bf16.msra.mxu0 0
  %1099 = vmatprep.subr.bf16.mxu0 0
  %1100 = vmatpush1.bf16.msra.mxu0 0
  %1101 = vmatprep.subr.bf16.mxu0 0
  %1102 = vmatpush1.bf16.msra.mxu0 0
  %1103 = vmatprep.subr.bf16.mxu0 0
  %1104 = vmatpush1.bf16.msra.mxu0 0
  %1105 = vmatprep.subr.bf16.mxu0 0
  %1106 = vmatpush1.bf16.msra.mxu0 0
  %1107 = vmatprep.subr.bf16.mxu0 0
  %1108 = vmatpush1.bf16.msra.mxu0 0
  %1109 = vmatprep.subr.bf16.mxu0 0
  %1110 = vmatpush1.bf16.msra.mxu0 0
  %1111 = vmatprep.subr.bf16.mxu0 0
  %1112 = vmatpush1.bf16.msra.mxu0 0
  %1113 = vmatprep.subr.bf16.mxu0 0
  %1114 = vmatpush1.bf16.msra.mxu0 0
  %1115 = vmatprep.subr.bf16.mxu0 0
  %1116 = vmatpush1.bf16.msra.mxu0 0
  %1117 = vmatprep.subr.bf16.mxu0 0
  %1118 = vmatpush1.bf16.msra.mxu0 0
  %1119 = vmatprep.subr.bf16.mxu0 0
  %1120 = vmatpush1.bf16.msra.mxu0 0
  %1121 = vmatprep.subr.bf16.mxu0 0
  %1122 = vmatpush1.bf16.msra.mxu0 0
  %1123 = vmatprep.subr.bf16.mxu0 0
  %1124 = vmatpush1.bf16.msra.mxu0 0
  %1125 = vmatprep.mubr.bf16.mxu0 0
  %1126 = vmatmul.mubr.bf16.gmra.mrb[0].mxu0 %v804
  %v1127 = vpop.f32.mrb[0].mxu0
  %v1128 = vadd.f32 %v641, %v1127
  %v1129 = vpop.f32.mrb[0].mxu0
  %v1130 = vadd.f32 %v641, %v1129
  %v1131 = vpop.f32.mrb[0].mxu0
  %v1132 = vpop.f32.mrb[0].mxu0
  %1133 = vdwg.mxu0
  %v1134 = vtanh.pop %v841
  %v1135 = vtanh.pop %v843
  %v1136 = vtanh.pop %v882
  %v1137 = vtanh.pop %v884
  %v1138 = vtanh.pop %v923
  %v1139 = vtanh.pop %v925
  %v1140 = vtanh.pop %v964
  %v1141 = vtanh.pop %v966
  %v1142 = vtanh.pop %v1005
  %v1143 = vtanh.pop %v1007
  %v1144 = vtanh.pop %v1046
  %v1145 = vtanh.pop %v1048
  %v1146 = vtanh.pop %v1087
  %v1147 = vtanh.pop %v1089
  %v1148 = vtanh.pop %v1128
  %v1149 = vtanh.pop %v1130
  %v1166 = vcombine.low %v1134, %v1135
  %v1167 = vcombine.low %v1136, %v1137
  %v1168 = vcombine.low %v1138, %v1139
  %v1169 = vcombine.low %v1140, %v1141
  %v1170 = vcombine.low %v1142, %v1143
  %v1171 = vcombine.low %v1144, %v1145
  %v1172 = vcombine.low %v1146, %v1147
  %v1173 = vcombine.low %v1148, %v1149
  %s1182 = scalar_lea.vmem %s3, 64
  %1183 = vst [vmem:[%s1182] sm:$0x77] %v1166
  %1184 = vst [vmem:[%s1182 + $0x8] sm:$0x77] %v1167
  %1185 = vst [vmem:[%s1182 + $0x10] sm:$0x77] %v1168
  %1186 = vst [vmem:[%s1182 + $0x18] sm:$0x77] %v1169
  %1187 = vst [vmem:[%s1182 + $0x20] sm:$0x77] %v1170
  %1188 = vst [vmem:[%s1182 + $0x28] sm:$0x77] %v1171
  %1189 = vst [vmem:[%s1182 + $0x30] sm:$0x77] %v1172
  %1190 = vst [vmem:[%s1182 + $0x38] sm:$0x77] %v1173
  %s1191 = scalar_lea.vmem %s1, 4
  %v1192 = vld [vmem:[%s1191] sm:$0x3]
  %s1193 = scalar_lea.vmem %s0, 512
  %v1194 = vld [vmem:[%s1193] sm:$0xff]
  %v1195 = vld [vmem:[%s1193 + $0x8] sm:$0xff]
  %v1196 = vld [vmem:[%s1193 + $0x10] sm:$0xff]
  %v1197 = vld [vmem:[%s1193 + $0x18] sm:$0xff]
  %v1198 = vld [vmem:[%s1193 + $0x20] sm:$0xff]
  %v1199 = vld [vmem:[%s1193 + $0x28] sm:$0xff]
  %v1200 = vld [vmem:[%s1193 + $0x30] sm:$0xff]
  %v1201 = vld [vmem:[%s1193 + $0x38] sm:$0xff]
  %v1202 = vld [vmem:[%s1193 + $0x40] sm:$0xff]
  %v1203 = vld [vmem:[%s1193 + $0x48] sm:$0xff]
  %v1204 = vld [vmem:[%s1193 + $0x50] sm:$0xff]
  %v1205 = vld [vmem:[%s1193 + $0x58] sm:$0xff]
  %v1206 = vld [vmem:[%s1193 + $0x60] sm:$0xff]
  %v1207 = vld [vmem:[%s1193 + $0x68] sm:$0xff]
  %v1208 = vld [vmem:[%s1193 + $0x70] sm:$0xff]
  %v1209 = vld [vmem:[%s1193 + $0x78] sm:$0xff]
  %v1210 = vld [vmem:[%s1193 + $0x80] sm:$0xff]
  %v1211 = vld [vmem:[%s1193 + $0x88] sm:$0xff]
  %v1212 = vld [vmem:[%s1193 + $0x90] sm:$0xff]
  %v1213 = vld [vmem:[%s1193 + $0x98] sm:$0xff]
  %v1214 = vld [vmem:[%s1193 + $0xa0] sm:$0xff]
  %v1215 = vld [vmem:[%s1193 + $0xa8] sm:$0xff]
  %v1216 = vld [vmem:[%s1193 + $0xb0] sm:$0xff]
  %v1217 = vld [vmem:[%s1193 + $0xb8] sm:$0xff]
  %v1218 = vld [vmem:[%s1193 + $0xc0] sm:$0xff]
  %v1219 = vld [vmem:[%s1193 + $0xc8] sm:$0xff]
  %v1220 = vld [vmem:[%s1193 + $0xd0] sm:$0xff]
  %v1221 = vld [vmem:[%s1193 + $0xd8] sm:$0xff]
  %v1222 = vld [vmem:[%s1193 + $0xe0] sm:$0xff]
  %v1223 = vld [vmem:[%s1193 + $0xe8] sm:$0xff]
  %v1224 = vld [vmem:[%s1193 + $0xf0] sm:$0xff]
  %v1225 = vld [vmem:[%s1193 + $0xf8] sm:$0xff]
  %v1226 = vld [vmem:[%s2] sm:$0x7]
  %1228 = vset.pattern.permute.xlu0 0
  %1229 = vperm.xlu0 %1228, %v1226
  %v1230 = vpop.permute.xlu0 %1229
  %v1264 = vunpack.c.l.b16 %v1194
  %v1265 = vunpack.c.h.b16 %v1194
  %v1266 = vunpack.c.l.b16 %v1195
  %v1267 = vunpack.c.h.b16 %v1195
  %v1268 = vunpack.c.l.b16 %v1196
  %v1269 = vunpack.c.h.b16 %v1196
  %v1270 = vunpack.c.l.b16 %v1197
  %v1271 = vunpack.c.h.b16 %v1197
  %v1272 = vunpack.c.l.b16 %v1198
  %v1273 = vunpack.c.h.b16 %v1198
  %v1274 = vunpack.c.l.b16 %v1199
  %v1275 = vunpack.c.h.b16 %v1199
  %v1276 = vunpack.c.l.b16 %v1200
  %v1277 = vunpack.c.h.b16 %v1200
  %v1278 = vunpack.c.l.b16 %v1201
  %v1279 = vunpack.c.h.b16 %v1201
  %v1280 = vunpack.c.l.b16 %v1202
  %v1281 = vunpack.c.h.b16 %v1202
  %v1282 = vunpack.c.l.b16 %v1203
  %v1283 = vunpack.c.h.b16 %v1203
  %v1284 = vunpack.c.l.b16 %v1204
  %v1285 = vunpack.c.h.b16 %v1204
  %v1286 = vunpack.c.l.b16 %v1205
  %v1287 = vunpack.c.h.b16 %v1205
  %v1288 = vunpack.c.l.b16 %v1206
  %v1289 = vunpack.c.h.b16 %v1206
  %v1290 = vunpack.c.l.b16 %v1207
  %v1291 = vunpack.c.h.b16 %v1207
  %v1292 = vunpack.c.l.b16 %v1208
  %v1293 = vunpack.c.h.b16 %v1208
  %v1294 = vunpack.c.l.b16 %v1209
  %v1295 = vunpack.c.h.b16 %v1209
  %v1296 = vunpack.c.l.b16 %v1210
  %v1297 = vunpack.c.h.b16 %v1210
  %v1298 = vunpack.c.l.b16 %v1211
  %v1299 = vunpack.c.h.b16 %v1211
  %v1300 = vunpack.c.l.b16 %v1212
  %v1301 = vunpack.c.h.b16 %v1212
  %v1302 = vunpack.c.l.b16 %v1213
  %v1303 = vunpack.c.h.b16 %v1213
  %v1304 = vunpack.c.l.b16 %v1214
  %v1305 = vunpack.c.h.b16 %v1214
  %v1306 = vunpack.c.l.b16 %v1215
  %v1307 = vunpack.c.h.b16 %v1215
  %v1308 = vunpack.c.l.b16 %v1216
  %v1309 = vunpack.c.h.b16 %v1216
  %v1310 = vunpack.c.l.b16 %v1217
  %v1311 = vunpack.c.h.b16 %v1217
  %v1312 = vunpack.c.l.b16 %v1218
  %v1313 = vunpack.c.h.b16 %v1218
  %v1314 = vunpack.c.l.b16 %v1219
  %v1315 = vunpack.c.h.b16 %v1219
  %v1316 = vunpack.c.l.b16 %v1220
  %v1317 = vunpack.c.h.b16 %v1220
  %v1318 = vunpack.c.l.b16 %v1221
  %v1319 = vunpack.c.h.b16 %v1221
  %v1320 = vunpack.c.l.b16 %v1222
  %v1321 = vunpack.c.h.b16 %v1222
  %v1322 = vunpack.c.l.b16 %v1223
  %v1323 = vunpack.c.h.b16 %v1223
  %v1324 = vunpack.c.l.b16 %v1224
  %v1325 = vunpack.c.h.b16 %v1224
  %v1326 = vunpack.c.l.b16 %v1225
  %v1327 = vunpack.c.h.b16 %v1225
  %v1328 = vpack.c.b16 %v1280, %v1264
  %v1329 = vpack.c.b16 %v1281, %v1265
  %v1330 = vpack.c.b16 %v1282, %v1266
  %v1331 = vpack.c.b16 %v1283, %v1267
  %v1332 = vpack.c.b16 %v1284, %v1268
  %v1333 = vpack.c.b16 %v1285, %v1269
  %v1334 = vpack.c.b16 %v1286, %v1270
  %v1335 = vpack.c.b16 %v1287, %v1271
  %v1336 = vpack.c.b16 %v1288, %v1272
  %v1337 = vpack.c.b16 %v1289, %v1273
  %v1338 = vpack.c.b16 %v1290, %v1274
  %v1339 = vpack.c.b16 %v1291, %v1275
  %v1340 = vpack.c.b16 %v1292, %v1276
  %v1341 = vpack.c.b16 %v1293, %v1277
  %v1342 = vpack.c.b16 %v1294, %v1278
  %v1343 = vpack.c.b16 %v1295, %v1279
  %v1344 = vpack.c.b16 %v1312, %v1296
  %v1345 = vpack.c.b16 %v1313, %v1297
  %v1346 = vpack.c.b16 %v1314, %v1298
  %v1347 = vpack.c.b16 %v1315, %v1299
  %v1348 = vpack.c.b16 %v1316, %v1300
  %v1349 = vpack.c.b16 %v1317, %v1301
  %v1350 = vpack.c.b16 %v1318, %v1302
  %v1351 = vpack.c.b16 %v1319, %v1303
  %v1352 = vpack.c.b16 %v1320, %v1304
  %v1353 = vpack.c.b16 %v1321, %v1305
  %v1354 = vpack.c.b16 %v1322, %v1306
  %v1355 = vpack.c.b16 %v1323, %v1307
  %v1356 = vpack.c.b16 %v1324, %v1308
  %v1357 = vpack.c.b16 %v1325, %v1309
  %v1358 = vpack.c.b16 %v1326, %v1310
  %v1359 = vpack.c.b16 %v1327, %v1311
  %v1393 = vsel %vm214, %v1192, 0
  %1395 = vmatprep.subr.bf16.mxu0 %v1329
  %1396 = vmatpush1.bf16.msra.mxu0 %v1328
  %1397 = vmatprep.subr.bf16.mxu0 %v1345
  %1398 = vmatpush1.bf16.msra.mxu0 %v1344
  %1399 = vmatprep.subr.bf16.mxu0 0
  %1400 = vmatpush1.bf16.msra.mxu0 0
  %1401 = vmatprep.subr.bf16.mxu0 0
  %1402 = vmatpush1.bf16.msra.mxu0 0
  %1403 = vmatprep.subr.bf16.mxu0 0
  %1404 = vmatpush1.bf16.msra.mxu0 0
  %1405 = vmatprep.subr.bf16.mxu0 0
  %1406 = vmatpush1.bf16.msra.mxu0 0
  %1407 = vmatprep.subr.bf16.mxu0 0
  %1408 = vmatpush1.bf16.msra.mxu0 0
  %1409 = vmatprep.subr.bf16.mxu0 0
  %1410 = vmatpush1.bf16.msra.mxu0 0
  %1411 = vmatprep.subr.bf16.mxu0 0
  %1412 = vmatpush1.bf16.msra.mxu0 0
  %1413 = vmatprep.subr.bf16.mxu0 0
  %1414 = vmatpush1.bf16.msra.mxu0 0
  %1415 = vmatprep.subr.bf16.mxu0 0
  %1416 = vmatpush1.bf16.msra.mxu0 0
  %1417 = vmatprep.subr.bf16.mxu0 0
  %1418 = vmatpush1.bf16.msra.mxu0 0
  %1419 = vmatprep.subr.bf16.mxu0 0
  %1420 = vmatpush1.bf16.msra.mxu0 0
  %1421 = vmatprep.subr.bf16.mxu0 0
  %1422 = vmatpush1.bf16.msra.mxu0 0
  %1423 = vmatprep.subr.bf16.mxu0 0
  %1424 = vmatpush1.bf16.msra.mxu0 0
  %1425 = vmatprep.subr.bf16.mxu0 0
  %1426 = vmatpush1.bf16.msra.mxu0 0
  %1427 = vmatprep.mubr.bf16.mxu0 0
  %1428 = vmatmul.mubr.bf16.gmra.mrb[0].mxu0 %v1393
  %v1429 = vpop.f32.mrb[0].mxu0
  %v1430 = vadd.f32 %v1230, %v1429
  %v1431 = vpop.f32.mrb[0].mxu0
  %v1432 = vadd.f32 %v1230, %v1431
  %v1433 = vpop.f32.mrb[0].mxu0
  %v1434 = vpop.f32.mrb[0].mxu0
  %1435 = vdwg.mxu0
  %1436 = vmatprep.subr.bf16.mxu0 %v1331
  %1437 = vmatpush1.bf16.msra.mxu0 %v1330
  %1438 = vmatprep.subr.bf16.mxu0 %v1347
  %1439 = vmatpush1.bf16.msra.mxu0 %v1346
  %1440 = vmatprep.subr.bf16.mxu0 0
  %1441 = vmatpush1.bf16.msra.mxu0 0
  %1442 = vmatprep.subr.bf16.mxu0 0
  %1443 = vmatpush1.bf16.msra.mxu0 0
  %1444 = vmatprep.subr.bf16.mxu0 0
  %1445 = vmatpush1.bf16.msra.mxu0 0
  %1446 = vmatprep.subr.bf16.mxu0 0
  %1447 = vmatpush1.bf16.msra.mxu0 0
  %1448 = vmatprep.subr.bf16.mxu0 0
  %1449 = vmatpush1.bf16.msra.mxu0 0
  %1450 = vmatprep.subr.bf16.mxu0 0
  %1451 = vmatpush1.bf16.msra.mxu0 0
  %1452 = vmatprep.subr.bf16.mxu0 0
  %1453 = vmatpush1.bf16.msra.mxu0 0
  %1454 = vmatprep.subr.bf16.mxu0 0
  %1455 = vmatpush1.bf16.msra.mxu0 0
  %1456 = vmatprep.subr.bf16.mxu0 0
  %1457 = vmatpush1.bf16.msra.mxu0 0
  %1458 = vmatprep.subr.bf16.mxu0 0
  %1459 = vmatpush1.bf16.msra.mxu0 0
  %1460 = vmatprep.subr.bf16.mxu0 0
  %1461 = vmatpush1.bf16.msra.mxu0 0
  %1462 = vmatprep.subr.bf16.mxu0 0
  %1463 = vmatpush1.bf16.msra.mxu0 0
  %1464 = vmatprep.subr.bf16.mxu0 0
  %1465 = vmatpush1.bf16.msra.mxu0 0
  %1466 = vmatprep.subr.bf16.mxu0 0
  %1467 = vmatpush1.bf16.msra.mxu0 0
  %1468 = vmatprep.mubr.bf16.mxu0 0
  %1469 = vmatmul.mubr.bf16.gmra.mrb[0].mxu0 %v1393
  %v1470 = vpop.f32.mrb[0].mxu0
  %v1471 = vadd.f32 %v1230, %v1470
  %v1472 = vpop.f32.mrb[0].mxu0
  %v1473 = vadd.f32 %v1230, %v1472
  %v1474 = vpop.f32.mrb[0].mxu0
  %v1475 = vpop.f32.mrb[0].mxu0
  %1476 = vdwg.mxu0
  %1477 = vmatprep.subr.bf16.mxu0 %v1333
  %1478 = vmatpush1.bf16.msra.mxu0 %v1332
  %1479 = vmatprep.subr.bf16.mxu0 %v1349
  %1480 = vmatpush1.bf16.msra.mxu0 %v1348
  %1481 = vmatprep.subr.bf16.mxu0 0
  %1482 = vmatpush1.bf16.msra.mxu0 0
  %1483 = vmatprep.subr.bf16.mxu0 0
  %1484 = vmatpush1.bf16.msra.mxu0 0
  %1485 = vmatprep.subr.bf16.mxu0 0
  %1486 = vmatpush1.bf16.msra.mxu0 0
  %1487 = vmatprep.subr.bf16.mxu0 0
  %1488 = vmatpush1.bf16.msra.mxu0 0
  %1489 = vmatprep.subr.bf16.mxu0 0
  %1490 = vmatpush1.bf16.msra.mxu0 0
  %1491 = vmatprep.subr.bf16.mxu0 0
  %1492 = vmatpush1.bf16.msra.mxu0 0
  %1493 = vmatprep.subr.bf16.mxu0 0
  %1494 = vmatpush1.bf16.msra.mxu0 0
  %1495 = vmatprep.subr.bf16.mxu0 0
  %1496 = vmatpush1.bf16.msra.mxu0 0
  %1497 = vmatprep.subr.bf16.mxu0 0
  %1498 = vmatpush1.bf16.msra.mxu0 0
  %1499 = vmatprep.subr.bf16.mxu0 0
  %1500 = vmatpush1.bf16.msra.mxu0 0
  %1501 = vmatprep.subr.bf16.mxu0 0
  %1502 = vmatpush1.bf16.msra.mxu0 0
  %1503 = vmatprep.subr.bf16.mxu0 0
  %1504 = vmatpush1.bf16.msra.mxu0 0
  %1505 = vmatprep.subr.bf16.mxu0 0
  %1506 = vmatpush1.bf16.msra.mxu0 0
  %1507 = vmatprep.subr.bf16.mxu0 0
  %1508 = vmatpush1.bf16.msra.mxu0 0
  %1509 = vmatprep.mubr.bf16.mxu0 0
  %1510 = vmatmul.mubr.bf16.gmra.mrb[0].mxu0 %v1393
  %v1511 = vpop.f32.mrb[0].mxu0
  %v1512 = vadd.f32 %v1230, %v1511
  %v1513 = vpop.f32.mrb[0].mxu0
  %v1514 = vadd.f32 %v1230, %v1513
  %v1515 = vpop.f32.mrb[0].mxu0
  %v1516 = vpop.f32.mrb[0].mxu0
  %1517 = vdwg.mxu0
  %1518 = vmatprep.subr.bf16.mxu0 %v1335
  %1519 = vmatpush1.bf16.msra.mxu0 %v1334
  %1520 = vmatprep.subr.bf16.mxu0 %v1351
  %1521 = vmatpush1.bf16.msra.mxu0 %v1350
  %1522 = vmatprep.subr.bf16.mxu0 0
  %1523 = vmatpush1.bf16.msra.mxu0 0
  %1524 = vmatprep.subr.bf16.mxu0 0
  %1525 = vmatpush1.bf16.msra.mxu0 0
  %1526 = vmatprep.subr.bf16.mxu0 0
  %1527 = vmatpush1.bf16.msra.mxu0 0
  %1528 = vmatprep.subr.bf16.mxu0 0
  %1529 = vmatpush1.bf16.msra.mxu0 0
  %1530 = vmatprep.subr.bf16.mxu0 0
  %1531 = vmatpush1.bf16.msra.mxu0 0
  %1532 = vmatprep.subr.bf16.mxu0 0
  %1533 = vmatpush1.bf16.msra.mxu0 0
  %1534 = vmatprep.subr.bf16.mxu0 0
  %1535 = vmatpush1.bf16.msra.mxu0 0
  %1536 = vmatprep.subr.bf16.mxu0 0
  %1537 = vmatpush1.bf16.msra.mxu0 0
  %1538 = vmatprep.subr.bf16.mxu0 0
  %1539 = vmatpush1.bf16.msra.mxu0 0
  %1540 = vmatprep.subr.bf16.mxu0 0
  %1541 = vmatpush1.bf16.msra.mxu0 0
  %1542 = vmatprep.subr.bf16.mxu0 0
  %1543 = vmatpush1.bf16.msra.mxu0 0
  %1544 = vmatprep.subr.bf16.mxu0 0
  %1545 = vmatpush1.bf16.msra.mxu0 0
  %1546 = vmatprep.subr.bf16.mxu0 0
  %1547 = vmatpush1.bf16.msra.mxu0 0
  %1548 = vmatprep.subr.bf16.mxu0 0
  %1549 = vmatpush1.bf16.msra.mxu0 0
  %1550 = vmatprep.mubr.bf16.mxu0 0
  %1551 = vmatmul.mubr.bf16.gmra.mrb[0].mxu0 %v1393
  %v1552 = vpop.f32.mrb[0].mxu0
  %v1553 = vadd.f32 %v1230, %v1552
  %v1554 = vpop.f32.mrb[0].mxu0
  %v1555 = vadd.f32 %v1230, %v1554
  %v1556 = vpop.f32.mrb[0].mxu0
  %v1557 = vpop.f32.mrb[0].mxu0
  %1558 = vdwg.mxu0
  %1559 = vmatprep.subr.bf16.mxu0 %v1337
  %1560 = vmatpush1.bf16.msra.mxu0 %v1336
  %1561 = vmatprep.subr.bf16.mxu0 %v1353
  %1562 = vmatpush1.bf16.msra.mxu0 %v1352
  %1563 = vmatprep.subr.bf16.mxu0 0
  %1564 = vmatpush1.bf16.msra.mxu0 0
  %1565 = vmatprep.subr.bf16.mxu0 0
  %1566 = vmatpush1.bf16.msra.mxu0 0
  %1567 = vmatprep.subr.bf16.mxu0 0
  %1568 = vmatpush1.bf16.msra.mxu0 0
  %1569 = vmatprep.subr.bf16.mxu0 0
  %1570 = vmatpush1.bf16.msra.mxu0 0
  %1571 = vmatprep.subr.bf16.mxu0 0
  %1572 = vmatpush1.bf16.msra.mxu0 0
  %1573 = vmatprep.subr.bf16.mxu0 0
  %1574 = vmatpush1.bf16.msra.mxu0 0
  %1575 = vmatprep.subr.bf16.mxu0 0
  %1576 = vmatpush1.bf16.msra.mxu0 0
  %1577 = vmatprep.subr.bf16.mxu0 0
  %1578 = vmatpush1.bf16.msra.mxu0 0
  %1579 = vmatprep.subr.bf16.mxu0 0
  %1580 = vmatpush1.bf16.msra.mxu0 0
  %1581 = vmatprep.subr.bf16.mxu0 0
  %1582 = vmatpush1.bf16.msra.mxu0 0
  %1583 = vmatprep.subr.bf16.mxu0 0
  %1584 = vmatpush1.bf16.msra.mxu0 0
  %1585 = vmatprep.subr.bf16.mxu0 0
  %1586 = vmatpush1.bf16.msra.mxu0 0
  %1587 = vmatprep.subr.bf16.mxu0 0
  %1588 = vmatpush1.bf16.msra.mxu0 0
  %1589 = vmatprep.subr.bf16.mxu0 0
  %1590 = vmatpush1.bf16.msra.mxu0 0
  %1591 = vmatprep.mubr.bf16.mxu0 0
  %1592 = vmatmul.mubr.bf16.gmra.mrb[0].mxu0 %v1393
  %v1593 = vpop.f32.mrb[0].mxu0
  %v1594 = vadd.f32 %v1230, %v1593
  %v1595 = vpop.f32.mrb[0].mxu0
  %v1596 = vadd.f32 %v1230, %v1595
  %v1597 = vpop.f32.mrb[0].mxu0
  %v1598 = vpop.f32.mrb[0].mxu0
  %1599 = vdwg.mxu0
  %1600 = vmatprep.subr.bf16.mxu0 %v1339
  %1601 = vmatpush1.bf16.msra.mxu0 %v1338
  %1602 = vmatprep.subr.bf16.mxu0 %v1355
  %1603 = vmatpush1.bf16.msra.mxu0 %v1354
  %1604 = vmatprep.subr.bf16.mxu0 0
  %1605 = vmatpush1.bf16.msra.mxu0 0
  %1606 = vmatprep.subr.bf16.mxu0 0
  %1607 = vmatpush1.bf16.msra.mxu0 0
  %1608 = vmatprep.subr.bf16.mxu0 0
  %1609 = vmatpush1.bf16.msra.mxu0 0
  %1610 = vmatprep.subr.bf16.mxu0 0
  %1611 = vmatpush1.bf16.msra.mxu0 0
  %1612 = vmatprep.subr.bf16.mxu0 0
  %1613 = vmatpush1.bf16.msra.mxu0 0
  %1614 = vmatprep.subr.bf16.mxu0 0
  %1615 = vmatpush1.bf16.msra.mxu0 0
  %1616 = vmatprep.subr.bf16.mxu0 0
  %1617 = vmatpush1.bf16.msra.mxu0 0
  %1618 = vmatprep.subr.bf16.mxu0 0
  %1619 = vmatpush1.bf16.msra.mxu0 0
  %1620 = vmatprep.subr.bf16.mxu0 0
  %1621 = vmatpush1.bf16.msra.mxu0 0
  %1622 = vmatprep.subr.bf16.mxu0 0
  %1623 = vmatpush1.bf16.msra.mxu0 0
  %1624 = vmatprep.subr.bf16.mxu0 0
  %1625 = vmatpush1.bf16.msra.mxu0 0
  %1626 = vmatprep.subr.bf16.mxu0 0
  %1627 = vmatpush1.bf16.msra.mxu0 0
  %1628 = vmatprep.subr.bf16.mxu0 0
  %1629 = vmatpush1.bf16.msra.mxu0 0
  %1630 = vmatprep.subr.bf16.mxu0 0
  %1631 = vmatpush1.bf16.msra.mxu0 0
  %1632 = vmatprep.mubr.bf16.mxu0 0
  %1633 = vmatmul.mubr.bf16.gmra.mrb[0].mxu0 %v1393
  %v1634 = vpop.f32.mrb[0].mxu0
  %v1635 = vadd.f32 %v1230, %v1634
  %v1636 = vpop.f32.mrb[0].mxu0
  %v1637 = vadd.f32 %v1230, %v1636
  %v1638 = vpop.f32.mrb[0].mxu0
  %v1639 = vpop.f32.mrb[0].mxu0
  %1640 = vdwg.mxu0
  %1641 = vmatprep.subr.bf16.mxu0 %v1341
  %1642 = vmatpush1.bf16.msra.mxu0 %v1340
  %1643 = vmatprep.subr.bf16.mxu0 %v1357
  %1644 = vmatpush1.bf16.msra.mxu0 %v1356
  %1645 = vmatprep.subr.bf16.mxu0 0
  %1646 = vmatpush1.bf16.msra.mxu0 0
  %1647 = vmatprep.subr.bf16.mxu0 0
  %1648 = vmatpush1.bf16.msra.mxu0 0
  %1649 = vmatprep.subr.bf16.mxu0 0
  %1650 = vmatpush1.bf16.msra.mxu0 0
  %1651 = vmatprep.subr.bf16.mxu0 0
  %1652 = vmatpush1.bf16.msra.mxu0 0
  %1653 = vmatprep.subr.bf16.mxu0 0
  %1654 = vmatpush1.bf16.msra.mxu0 0
  %1655 = vmatprep.subr.bf16.mxu0 0
  %1656 = vmatpush1.bf16.msra.mxu0 0
  %1657 = vmatprep.subr.bf16.mxu0 0
  %1658 = vmatpush1.bf16.msra.mxu0 0
  %1659 = vmatprep.subr.bf16.mxu0 0
  %1660 = vmatpush1.bf16.msra.mxu0 0
  %1661 = vmatprep.subr.bf16.mxu0 0
  %1662 = vmatpush1.bf16.msra.mxu0 0
  %1663 = vmatprep.subr.bf16.mxu0 0
  %1664 = vmatpush1.bf16.msra.mxu0 0
  %1665 = vmatprep.subr.bf16.mxu0 0
  %1666 = vmatpush1.bf16.msra.mxu0 0
  %1667 = vmatprep.subr.bf16.mxu0 0
  %1668 = vmatpush1.bf16.msra.mxu0 0
  %1669 = vmatprep.subr.bf16.mxu0 0
  %1670 = vmatpush1.bf16.msra.mxu0 0
  %1671 = vmatprep.subr.bf16.mxu0 0
  %1672 = vmatpush1.bf16.msra.mxu0 0
  %1673 = vmatprep.mubr.bf16.mxu0 0
  %1674 = vmatmul.mubr.bf16.gmra.mrb[0].mxu0 %v1393
  %v1675 = vpop.f32.mrb[0].mxu0
  %v1676 = vadd.f32 %v1230, %v1675
  %v1677 = vpop.f32.mrb[0].mxu0
  %v1678 = vadd.f32 %v1230, %v1677
  %v1679 = vpop.f32.mrb[0].mxu0
  %v1680 = vpop.f32.mrb[0].mxu0
  %1681 = vdwg.mxu0
  %1682 = vmatprep.subr.bf16.mxu0 %v1343
  %1683 = vmatpush1.bf16.msra.mxu0 %v1342
  %1684 = vmatprep.subr.bf16.mxu0 %v1359
  %1685 = vmatpush1.bf16.msra.mxu0 %v1358
  %1686 = vmatprep.subr.bf16.mxu0 0
  %1687 = vmatpush1.bf16.msra.mxu0 0
  %1688 = vmatprep.subr.bf16.mxu0 0
  %1689 = vmatpush1.bf16.msra.mxu0 0
  %1690 = vmatprep.subr.bf16.mxu0 0
  %1691 = vmatpush1.bf16.msra.mxu0 0
  %1692 = vmatprep.subr.bf16.mxu0 0
  %1693 = vmatpush1.bf16.msra.mxu0 0
  %1694 = vmatprep.subr.bf16.mxu0 0
  %1695 = vmatpush1.bf16.msra.mxu0 0
  %1696 = vmatprep.subr.bf16.mxu0 0
  %1697 = vmatpush1.bf16.msra.mxu0 0
  %1698 = vmatprep.subr.bf16.mxu0 0
  %1699 = vmatpush1.bf16.msra.mxu0 0
  %1700 = vmatprep.subr.bf16.mxu0 0
  %1701 = vmatpush1.bf16.msra.mxu0 0
  %1702 = vmatprep.subr.bf16.mxu0 0
  %1703 = vmatpush1.bf16.msra.mxu0 0
  %1704 = vmatprep.subr.bf16.mxu0 0
  %1705 = vmatpush1.bf16.msra.mxu0 0
  %1706 = vmatprep.subr.bf16.mxu0 0
  %1707 = vmatpush1.bf16.msra.mxu0 0
  %1708 = vmatprep.subr.bf16.mxu0 0
  %1709 = vmatpush1.bf16.msra.mxu0 0
  %1710 = vmatprep.subr.bf16.mxu0 0
  %1711 = vmatpush1.bf16.msra.mxu0 0
  %1712 = vmatprep.subr.bf16.mxu0 0
  %1713 = vmatpush1.bf16.msra.mxu0 0
  %1714 = vmatprep.mubr.bf16.mxu0 0
  %1715 = vmatmul.mubr.bf16.gmra.mrb[0].mxu0 %v1393
  %v1716 = vpop.f32.mrb[0].mxu0
  %v1717 = vadd.f32 %v1230, %v1716
  %v1718 = vpop.f32.mrb[0].mxu0
  %v1719 = vadd.f32 %v1230, %v1718
  %v1720 = vpop.f32.mrb[0].mxu0
  %v1721 = vpop.f32.mrb[0].mxu0
  %1722 = vdwg.mxu0
  %v1723 = vtanh.pop %v1430
  %v1724 = vtanh.pop %v1432
  %v1725 = vtanh.pop %v1471
  %v1726 = vtanh.pop %v1473
  %v1727 = vtanh.pop %v1512
  %v1728 = vtanh.pop %v1514
  %v1729 = vtanh.pop %v1553
  %v1730 = vtanh.pop %v1555
  %v1731 = vtanh.pop %v1594
  %v1732 = vtanh.pop %v1596
  %v1733 = vtanh.pop %v1635
  %v1734 = vtanh.pop %v1637
  %v1735 = vtanh.pop %v1676
  %v1736 = vtanh.pop %v1678
  %v1737 = vtanh.pop %v1717
  %v1738 = vtanh.pop %v1719
  %v1755 = vcombine.low %v1723, %v1724
  %v1756 = vcombine.low %v1725, %v1726
  %v1757 = vcombine.low %v1727, %v1728
  %v1758 = vcombine.low %v1729, %v1730
  %v1759 = vcombine.low %v1731, %v1732
  %v1760 = vcombine.low %v1733, %v1734
  %v1761 = vcombine.low %v1735, %v1736
  %v1762 = vcombine.low %v1737, %v1738
  %s1771 = scalar_lea.vmem %s3, 128
  %1772 = vst [vmem:[%s1771] sm:$0x77] %v1755
  %1773 = vst [vmem:[%s1771 + $0x8] sm:$0x77] %v1756
  %1774 = vst [vmem:[%s1771 + $0x10] sm:$0x77] %v1757
  %1775 = vst [vmem:[%s1771 + $0x18] sm:$0x77] %v1758
  %1776 = vst [vmem:[%s1771 + $0x20] sm:$0x77] %v1759
  %1777 = vst [vmem:[%s1771 + $0x28] sm:$0x77] %v1760
  %1778 = vst [vmem:[%s1771 + $0x30] sm:$0x77] %v1761
  %1779 = vst [vmem:[%s1771 + $0x38] sm:$0x77] %v1762
  %s1780 = scalar_lea.vmem %s1, 6
  %v1781 = vld [vmem:[%s1780] sm:$0x3]
  %s1782 = scalar_lea.vmem %s0, 768
  %v1783 = vld [vmem:[%s1782] sm:$0xff]
  %v1784 = vld [vmem:[%s1782 + $0x8] sm:$0xff]
  %v1785 = vld [vmem:[%s1782 + $0x10] sm:$0xff]
  %v1786 = vld [vmem:[%s1782 + $0x18] sm:$0xff]
  %v1787 = vld [vmem:[%s1782 + $0x20] sm:$0xff]
  %v1788 = vld [vmem:[%s1782 + $0x28] sm:$0xff]
  %v1789 = vld [vmem:[%s1782 + $0x30] sm:$0xff]
  %v1790 = vld [vmem:[%s1782 + $0x38] sm:$0xff]
  %v1791 = vld [vmem:[%s1782 + $0x40] sm:$0xff]
  %v1792 = vld [vmem:[%s1782 + $0x48] sm:$0xff]
  %v1793 = vld [vmem:[%s1782 + $0x50] sm:$0xff]
  %v1794 = vld [vmem:[%s1782 + $0x58] sm:$0xff]
  %v1795 = vld [vmem:[%s1782 + $0x60] sm:$0xff]
  %v1796 = vld [vmem:[%s1782 + $0x68] sm:$0xff]
  %v1797 = vld [vmem:[%s1782 + $0x70] sm:$0xff]
  %v1798 = vld [vmem:[%s1782 + $0x78] sm:$0xff]
  %v1799 = vld [vmem:[%s1782 + $0x80] sm:$0xff]
  %v1800 = vld [vmem:[%s1782 + $0x88] sm:$0xff]
  %v1801 = vld [vmem:[%s1782 + $0x90] sm:$0xff]
  %v1802 = vld [vmem:[%s1782 + $0x98] sm:$0xff]
  %v1803 = vld [vmem:[%s1782 + $0xa0] sm:$0xff]
  %v1804 = vld [vmem:[%s1782 + $0xa8] sm:$0xff]
  %v1805 = vld [vmem:[%s1782 + $0xb0] sm:$0xff]
  %v1806 = vld [vmem:[%s1782 + $0xb8] sm:$0xff]
  %v1807 = vld [vmem:[%s1782 + $0xc0] sm:$0xff]
  %v1808 = vld [vmem:[%s1782 + $0xc8] sm:$0xff]
  %v1809 = vld [vmem:[%s1782 + $0xd0] sm:$0xff]
  %v1810 = vld [vmem:[%s1782 + $0xd8] sm:$0xff]
  %v1811 = vld [vmem:[%s1782 + $0xe0] sm:$0xff]
  %v1812 = vld [vmem:[%s1782 + $0xe8] sm:$0xff]
  %v1813 = vld [vmem:[%s1782 + $0xf0] sm:$0xff]
  %v1814 = vld [vmem:[%s1782 + $0xf8] sm:$0xff]
  %v1815 = vld [vmem:[%s2] sm:$0x7]
  %1817 = vset.pattern.permute.xlu0 0
  %1818 = vperm.xlu0 %1817, %v1815
  %v1819 = vpop.permute.xlu0 %1818
  %v1853 = vunpack.c.l.b16 %v1783
  %v1854 = vunpack.c.h.b16 %v1783
  %v1855 = vunpack.c.l.b16 %v1784
  %v1856 = vunpack.c.h.b16 %v1784
  %v1857 = vunpack.c.l.b16 %v1785
  %v1858 = vunpack.c.h.b16 %v1785
  %v1859 = vunpack.c.l.b16 %v1786
  %v1860 = vunpack.c.h.b16 %v1786
  %v1861 = vunpack.c.l.b16 %v1787
  %v1862 = vunpack.c.h.b16 %v1787
  %v1863 = vunpack.c.l.b16 %v1788
  %v1864 = vunpack.c.h.b16 %v1788
  %v1865 = vunpack.c.l.b16 %v1789
  %v1866 = vunpack.c.h.b16 %v1789
  %v1867 = vunpack.c.l.b16 %v1790
  %v1868 = vunpack.c.h.b16 %v1790
  %v1869 = vunpack.c.l.b16 %v1791
  %v1870 = vunpack.c.h.b16 %v1791
  %v1871 = vunpack.c.l.b16 %v1792
  %v1872 = vunpack.c.h.b16 %v1792
  %v1873 = vunpack.c.l.b16 %v1793
  %v1874 = vunpack.c.h.b16 %v1793
  %v1875 = vunpack.c.l.b16 %v1794
  %v1876 = vunpack.c.h.b16 %v1794
  %v1877 = vunpack.c.l.b16 %v1795
  %v1878 = vunpack.c.h.b16 %v1795
  %v1879 = vunpack.c.l.b16 %v1796
  %v1880 = vunpack.c.h.b16 %v1796
  %v1881 = vunpack.c.l.b16 %v1797
  %v1882 = vunpack.c.h.b16 %v1797
  %v1883 = vunpack.c.l.b16 %v1798
  %v1884 = vunpack.c.h.b16 %v1798
  %v1885 = vunpack.c.l.b16 %v1799
  %v1886 = vunpack.c.h.b16 %v1799
  %v1887 = vunpack.c.l.b16 %v1800
  %v1888 = vunpack.c.h.b16 %v1800
  %v1889 = vunpack.c.l.b16 %v1801
  %v1890 = vunpack.c.h.b16 %v1801
  %v1891 = vunpack.c.l.b16 %v1802
  %v1892 = vunpack.c.h.b16 %v1802
  %v1893 = vunpack.c.l.b16 %v1803
  %v1894 = vunpack.c.h.b16 %v1803
  %v1895 = vunpack.c.l.b16 %v1804
  %v1896 = vunpack.c.h.b16 %v1804
  %v1897 = vunpack.c.l.b16 %v1805
  %v1898 = vunpack.c.h.b16 %v1805
  %v1899 = vunpack.c.l.b16 %v1806
  %v1900 = vunpack.c.h.b16 %v1806
  %v1901 = vunpack.c.l.b16 %v1807
  %v1902 = vunpack.c.h.b16 %v1807
  %v1903 = vunpack.c.l.b16 %v1808
  %v1904 = vunpack.c.h.b16 %v1808
  %v1905 = vunpack.c.l.b16 %v1809
  %v1906 = vunpack.c.h.b16 %v1809
  %v1907 = vunpack.c.l.b16 %v1810
  %v1908 = vunpack.c.h.b16 %v1810
  %v1909 = vunpack.c.l.b16 %v1811
  %v1910 = vunpack.c.h.b16 %v1811
  %v1911 = vunpack.c.l.b16 %v1812
  %v1912 = vunpack.c.h.b16 %v1812
  %v1913 = vunpack.c.l.b16 %v1813
  %v1914 = vunpack.c.h.b16 %v1813
  %v1915 = vunpack.c.l.b16 %v1814
  %v1916 = vunpack.c.h.b16 %v1814
  %v1917 = vpack.c.b16 %v1869, %v1853
  %v1918 = vpack.c.b16 %v1870, %v1854
  %v1919 = vpack.c.b16 %v1871, %v1855
  %v1920 = vpack.c.b16 %v1872, %v1856
  %v1921 = vpack.c.b16 %v1873, %v1857
  %v1922 = vpack.c.b16 %v1874, %v1858
  %v1923 = vpack.c.b16 %v1875, %v1859
  %v1924 = vpack.c.b16 %v1876, %v1860
  %v1925 = vpack.c.b16 %v1877, %v1861
  %v1926 = vpack.c.b16 %v1878, %v1862
  %v1927 = vpack.c.b16 %v1879, %v1863
  %v1928 = vpack.c.b16 %v1880, %v1864
  %v1929 = vpack.c.b16 %v1881, %v1865
  %v1930 = vpack.c.b16 %v1882, %v1866
  %v1931 = vpack.c.b16 %v1883, %v1867
  %v1932 = vpack.c.b16 %v1884, %v1868
  %v1933 = vpack.c.b16 %v1901, %v1885
  %v1934 = vpack.c.b16 %v1902, %v1886
  %v1935 = vpack.c.b16 %v1903, %v1887
  %v1936 = vpack.c.b16 %v1904, %v1888
  %v1937 = vpack.c.b16 %v1905, %v1889
  %v1938 = vpack.c.b16 %v1906, %v1890
  %v1939 = vpack.c.b16 %v1907, %v1891
  %v1940 = vpack.c.b16 %v1908, %v1892
  %v1941 = vpack.c.b16 %v1909, %v1893
  %v1942 = vpack.c.b16 %v1910, %v1894
  %v1943 = vpack.c.b16 %v1911, %v1895
  %v1944 = vpack.c.b16 %v1912, %v1896
  %v1945 = vpack.c.b16 %v1913, %v1897
  %v1946 = vpack.c.b16 %v1914, %v1898
  %v1947 = vpack.c.b16 %v1915, %v1899
  %v1948 = vpack.c.b16 %v1916, %v1900
  %v1982 = vsel %vm214, %v1781, 0
  %1984 = vmatprep.subr.bf16.mxu0 %v1918
  %1985 = vmatpush1.bf16.msra.mxu0 %v1917
  %1986 = vmatprep.subr.bf16.mxu0 %v1934
  %1987 = vmatpush1.bf16.msra.mxu0 %v1933
  %1988 = vmatprep.subr.bf16.mxu0 0
  %1989 = vmatpush1.bf16.msra.mxu0 0
  %1990 = vmatprep.subr.bf16.mxu0 0
  %1991 = vmatpush1.bf16.msra.mxu0 0
  %1992 = vmatprep.subr.bf16.mxu0 0
  %1993 = vmatpush1.bf16.msra.mxu0 0
  %1994 = vmatprep.subr.bf16.mxu0 0
  %1995 = vmatpush1.bf16.msra.mxu0 0
  %1996 = vmatprep.subr.bf16.mxu0 0
  %1997 = vmatpush1.bf16.msra.mxu0 0
  %1998 = vmatprep.subr.bf16.mxu0 0
  %1999 = vmatpush1.bf16.msra.mxu0 0
  %2000 = vmatprep.subr.bf16.mxu0 0
  %2001 = vmatpush1.bf16.msra.mxu0 0
  %2002 = vmatprep.subr.bf16.mxu0 0
  %2003 = vmatpush1.bf16.msra.mxu0 0
  %2004 = vmatprep.subr.bf16.mxu0 0
  %2005 = vmatpush1.bf16.msra.mxu0 0
  %2006 = vmatprep.subr.bf16.mxu0 0
  %2007 = vmatpush1.bf16.msra.mxu0 0
  %2008 = vmatprep.subr.bf16.mxu0 0
  %2009 = vmatpush1.bf16.msra.mxu0 0
  %2010 = vmatprep.subr.bf16.mxu0 0
  %2011 = vmatpush1.bf16.msra.mxu0 0
  %2012 = vmatprep.subr.bf16.mxu0 0
  %2013 = vmatpush1.bf16.msra.mxu0 0
  %2014 = vmatprep.subr.bf16.mxu0 0
  %2015 = vmatpush1.bf16.msra.mxu0 0
  %2016 = vmatprep.mubr.bf16.mxu0 0
  %2017 = vmatmul.mubr.bf16.gmra.mrb[0].mxu0 %v1982
  %v2018 = vpop.f32.mrb[0].mxu0
  %v2019 = vadd.f32 %v1819, %v2018
  %v2020 = vpop.f32.mrb[0].mxu0
  %v2021 = vadd.f32 %v1819, %v2020
  %v2022 = vpop.f32.mrb[0].mxu0
  %v2023 = vpop.f32.mrb[0].mxu0
  %2024 = vdwg.mxu0
  %2025 = vmatprep.subr.bf16.mxu0 %v1920
  %2026 = vmatpush1.bf16.msra.mxu0 %v1919
  %2027 = vmatprep.subr.bf16.mxu0 %v1936
  %2028 = vmatpush1.bf16.msra.mxu0 %v1935
  %2029 = vmatprep.subr.bf16.mxu0 0
  %2030 = vmatpush1.bf16.msra.mxu0 0
  %2031 = vmatprep.subr.bf16.mxu0 0
  %2032 = vmatpush1.bf16.msra.mxu0 0
  %2033 = vmatprep.subr.bf16.mxu0 0
  %2034 = vmatpush1.bf16.msra.mxu0 0
  %2035 = vmatprep.subr.bf16.mxu0 0
  %2036 = vmatpush1.bf16.msra.mxu0 0
  %2037 = vmatprep.subr.bf16.mxu0 0
  %2038 = vmatpush1.bf16.msra.mxu0 0
  %2039 = vmatprep.subr.bf16.mxu0 0
  %2040 = vmatpush1.bf16.msra.mxu0 0
  %2041 = vmatprep.subr.bf16.mxu0 0
  %2042 = vmatpush1.bf16.msra.mxu0 0
  %2043 = vmatprep.subr.bf16.mxu0 0
  %2044 = vmatpush1.bf16.msra.mxu0 0
  %2045 = vmatprep.subr.bf16.mxu0 0
  %2046 = vmatpush1.bf16.msra.mxu0 0
  %2047 = vmatprep.subr.bf16.mxu0 0
  %2048 = vmatpush1.bf16.msra.mxu0 0
  %2049 = vmatprep.subr.bf16.mxu0 0
  %2050 = vmatpush1.bf16.msra.mxu0 0
  %2051 = vmatprep.subr.bf16.mxu0 0
  %2052 = vmatpush1.bf16.msra.mxu0 0
  %2053 = vmatprep.subr.bf16.mxu0 0
  %2054 = vmatpush1.bf16.msra.mxu0 0
  %2055 = vmatprep.subr.bf16.mxu0 0
  %2056 = vmatpush1.bf16.msra.mxu0 0
  %2057 = vmatprep.mubr.bf16.mxu0 0
  %2058 = vmatmul.mubr.bf16.gmra.mrb[0].mxu0 %v1982
  %v2059 = vpop.f32.mrb[0].mxu0
  %v2060 = vadd.f32 %v1819, %v2059
  %v2061 = vpop.f32.mrb[0].mxu0
  %v2062 = vadd.f32 %v1819, %v2061
  %v2063 = vpop.f32.mrb[0].mxu0
  %v2064 = vpop.f32.mrb[0].mxu0
  %2065 = vdwg.mxu0
  %2066 = vmatprep.subr.bf16.mxu0 %v1922
  %2067 = vmatpush1.bf16.msra.mxu0 %v1921
  %2068 = vmatprep.subr.bf16.mxu0 %v1938
  %2069 = vmatpush1.bf16.msra.mxu0 %v1937
  %2070 = vmatprep.subr.bf16.mxu0 0
  %2071 = vmatpush1.bf16.msra.mxu0 0
  %2072 = vmatprep.subr.bf16.mxu0 0
  %2073 = vmatpush1.bf16.msra.mxu0 0
  %2074 = vmatprep.subr.bf16.mxu0 0
  %2075 = vmatpush1.bf16.msra.mxu0 0
  %2076 = vmatprep.subr.bf16.mxu0 0
  %2077 = vmatpush1.bf16.msra.mxu0 0
  %2078 = vmatprep.subr.bf16.mxu0 0
  %2079 = vmatpush1.bf16.msra.mxu0 0
  %2080 = vmatprep.subr.bf16.mxu0 0
  %2081 = vmatpush1.bf16.msra.mxu0 0
  %2082 = vmatprep.subr.bf16.mxu0 0
  %2083 = vmatpush1.bf16.msra.mxu0 0
  %2084 = vmatprep.subr.bf16.mxu0 0
  %2085 = vmatpush1.bf16.msra.mxu0 0
  %2086 = vmatprep.subr.bf16.mxu0 0
  %2087 = vmatpush1.bf16.msra.mxu0 0
  %2088 = vmatprep.subr.bf16.mxu0 0
  %2089 = vmatpush1.bf16.msra.mxu0 0
  %2090 = vmatprep.subr.bf16.mxu0 0
  %2091 = vmatpush1.bf16.msra.mxu0 0
  %2092 = vmatprep.subr.bf16.mxu0 0
  %2093 = vmatpush1.bf16.msra.mxu0 0
  %2094 = vmatprep.subr.bf16.mxu0 0
  %2095 = vmatpush1.bf16.msra.mxu0 0
  %2096 = vmatprep.subr.bf16.mxu0 0
  %2097 = vmatpush1.bf16.msra.mxu0 0
  %2098 = vmatprep.mubr.bf16.mxu0 0
  %2099 = vmatmul.mubr.bf16.gmra.mrb[0].mxu0 %v1982
  %v2100 = vpop.f32.mrb[0].mxu0
  %v2101 = vadd.f32 %v1819, %v2100
  %v2102 = vpop.f32.mrb[0].mxu0
  %v2103 = vadd.f32 %v1819, %v2102
  %v2104 = vpop.f32.mrb[0].mxu0
  %v2105 = vpop.f32.mrb[0].mxu0
  %2106 = vdwg.mxu0
  %2107 = vmatprep.subr.bf16.mxu0 %v1924
  %2108 = vmatpush1.bf16.msra.mxu0 %v1923
  %2109 = vmatprep.subr.bf16.mxu0 %v1940
  %2110 = vmatpush1.bf16.msra.mxu0 %v1939
  %2111 = vmatprep.subr.bf16.mxu0 0
  %2112 = vmatpush1.bf16.msra.mxu0 0
  %2113 = vmatprep.subr.bf16.mxu0 0
  %2114 = vmatpush1.bf16.msra.mxu0 0
  %2115 = vmatprep.subr.bf16.mxu0 0
  %2116 = vmatpush1.bf16.msra.mxu0 0
  %2117 = vmatprep.subr.bf16.mxu0 0
  %2118 = vmatpush1.bf16.msra.mxu0 0
  %2119 = vmatprep.subr.bf16.mxu0 0
  %2120 = vmatpush1.bf16.msra.mxu0 0
  %2121 = vmatprep.subr.bf16.mxu0 0
  %2122 = vmatpush1.bf16.msra.mxu0 0
  %2123 = vmatprep.subr.bf16.mxu0 0
  %2124 = vmatpush1.bf16.msra.mxu0 0
  %2125 = vmatprep.subr.bf16.mxu0 0
  %2126 = vmatpush1.bf16.msra.mxu0 0
  %2127 = vmatprep.subr.bf16.mxu0 0
  %2128 = vmatpush1.bf16.msra.mxu0 0
  %2129 = vmatprep.subr.bf16.mxu0 0
  %2130 = vmatpush1.bf16.msra.mxu0 0
  %2131 = vmatprep.subr.bf16.mxu0 0
  %2132 = vmatpush1.bf16.msra.mxu0 0
  %2133 = vmatprep.subr.bf16.mxu0 0
  %2134 = vmatpush1.bf16.msra.mxu0 0
  %2135 = vmatprep.subr.bf16.mxu0 0
  %2136 = vmatpush1.bf16.msra.mxu0 0
  %2137 = vmatprep.subr.bf16.mxu0 0
  %2138 = vmatpush1.bf16.msra.mxu0 0
  %2139 = vmatprep.mubr.bf16.mxu0 0
  %2140 = vmatmul.mubr.bf16.gmra.mrb[0].mxu0 %v1982
  %v2141 = vpop.f32.mrb[0].mxu0
  %v2142 = vadd.f32 %v1819, %v2141
  %v2143 = vpop.f32.mrb[0].mxu0
  %v2144 = vadd.f32 %v1819, %v2143
  %v2145 = vpop.f32.mrb[0].mxu0
  %v2146 = vpop.f32.mrb[0].mxu0
  %2147 = vdwg.mxu0
  %2148 = vmatprep.subr.bf16.mxu0 %v1926
  %2149 = vmatpush1.bf16.msra.mxu0 %v1925
  %2150 = vmatprep.subr.bf16.mxu0 %v1942
  %2151 = vmatpush1.bf16.msra.mxu0 %v1941
  %2152 = vmatprep.subr.bf16.mxu0 0
  %2153 = vmatpush1.bf16.msra.mxu0 0
  %2154 = vmatprep.subr.bf16.mxu0 0
  %2155 = vmatpush1.bf16.msra.mxu0 0
  %2156 = vmatprep.subr.bf16.mxu0 0
  %2157 = vmatpush1.bf16.msra.mxu0 0
  %2158 = vmatprep.subr.bf16.mxu0 0
  %2159 = vmatpush1.bf16.msra.mxu0 0
  %2160 = vmatprep.subr.bf16.mxu0 0
  %2161 = vmatpush1.bf16.msra.mxu0 0
  %2162 = vmatprep.subr.bf16.mxu0 0
  %2163 = vmatpush1.bf16.msra.mxu0 0
  %2164 = vmatprep.subr.bf16.mxu0 0
  %2165 = vmatpush1.bf16.msra.mxu0 0
  %2166 = vmatprep.subr.bf16.mxu0 0
  %2167 = vmatpush1.bf16.msra.mxu0 0
  %2168 = vmatprep.subr.bf16.mxu0 0
  %2169 = vmatpush1.bf16.msra.mxu0 0
  %2170 = vmatprep.subr.bf16.mxu0 0
  %2171 = vmatpush1.bf16.msra.mxu0 0
  %2172 = vmatprep.subr.bf16.mxu0 0
  %2173 = vmatpush1.bf16.msra.mxu0 0
  %2174 = vmatprep.subr.bf16.mxu0 0
  %2175 = vmatpush1.bf16.msra.mxu0 0
  %2176 = vmatprep.subr.bf16.mxu0 0
  %2177 = vmatpush1.bf16.msra.mxu0 0
  %2178 = vmatprep.subr.bf16.mxu0 0
  %2179 = vmatpush1.bf16.msra.mxu0 0
  %2180 = vmatprep.mubr.bf16.mxu0 0
  %2181 = vmatmul.mubr.bf16.gmra.mrb[0].mxu0 %v1982
  %v2182 = vpop.f32.mrb[0].mxu0
  %v2183 = vadd.f32 %v1819, %v2182
  %v2184 = vpop.f32.mrb[0].mxu0
  %v2185 = vadd.f32 %v1819, %v2184
  %v2186 = vpop.f32.mrb[0].mxu0
  %v2187 = vpop.f32.mrb[0].mxu0
  %2188 = vdwg.mxu0
  %2189 = vmatprep.subr.bf16.mxu0 %v1928
  %2190 = vmatpush1.bf16.msra.mxu0 %v1927
  %2191 = vmatprep.subr.bf16.mxu0 %v1944
  %2192 = vmatpush1.bf16.msra.mxu0 %v1943
  %2193 = vmatprep.subr.bf16.mxu0 0
  %2194 = vmatpush1.bf16.msra.mxu0 0
  %2195 = vmatprep.subr.bf16.mxu0 0
  %2196 = vmatpush1.bf16.msra.mxu0 0
  %2197 = vmatprep.subr.bf16.mxu0 0
  %2198 = vmatpush1.bf16.msra.mxu0 0
  %2199 = vmatprep.subr.bf16.mxu0 0
  %2200 = vmatpush1.bf16.msra.mxu0 0
  %2201 = vmatprep.subr.bf16.mxu0 0
  %2202 = vmatpush1.bf16.msra.mxu0 0
  %2203 = vmatprep.subr.bf16.mxu0 0
  %2204 = vmatpush1.bf16.msra.mxu0 0
  %2205 = vmatprep.subr.bf16.mxu0 0
  %2206 = vmatpush1.bf16.msra.mxu0 0
  %2207 = vmatprep.subr.bf16.mxu0 0
  %2208 = vmatpush1.bf16.msra.mxu0 0
  %2209 = vmatprep.subr.bf16.mxu0 0
  %2210 = vmatpush1.bf16.msra.mxu0 0
  %2211 = vmatprep.subr.bf16.mxu0 0
  %2212 = vmatpush1.bf16.msra.mxu0 0
  %2213 = vmatprep.subr.bf16.mxu0 0
  %2214 = vmatpush1.bf16.msra.mxu0 0
  %2215 = vmatprep.subr.bf16.mxu0 0
  %2216 = vmatpush1.bf16.msra.mxu0 0
  %2217 = vmatprep.subr.bf16.mxu0 0
  %2218 = vmatpush1.bf16.msra.mxu0 0
  %2219 = vmatprep.subr.bf16.mxu0 0
  %2220 = vmatpush1.bf16.msra.mxu0 0
  %2221 = vmatprep.mubr.bf16.mxu0 0
  %2222 = vmatmul.mubr.bf16.gmra.mrb[0].mxu0 %v1982
  %v2223 = vpop.f32.mrb[0].mxu0
  %v2224 = vadd.f32 %v1819, %v2223
  %v2225 = vpop.f32.mrb[0].mxu0
  %v2226 = vadd.f32 %v1819, %v2225
  %v2227 = vpop.f32.mrb[0].mxu0
  %v2228 = vpop.f32.mrb[0].mxu0
  %2229 = vdwg.mxu0
  %2230 = vmatprep.subr.bf16.mxu0 %v1930
  %2231 = vmatpush1.bf16.msra.mxu0 %v1929
  %2232 = vmatprep.subr.bf16.mxu0 %v1946
  %2233 = vmatpush1.bf16.msra.mxu0 %v1945
  %2234 = vmatprep.subr.bf16.mxu0 0
  %2235 = vmatpush1.bf16.msra.mxu0 0
  %2236 = vmatprep.subr.bf16.mxu0 0
  %2237 = vmatpush1.bf16.msra.mxu0 0
  %2238 = vmatprep.subr.bf16.mxu0 0
  %2239 = vmatpush1.bf16.msra.mxu0 0
  %2240 = vmatprep.subr.bf16.mxu0 0
  %2241 = vmatpush1.bf16.msra.mxu0 0
  %2242 = vmatprep.subr.bf16.mxu0 0
  %2243 = vmatpush1.bf16.msra.mxu0 0
  %2244 = vmatprep.subr.bf16.mxu0 0
  %2245 = vmatpush1.bf16.msra.mxu0 0
  %2246 = vmatprep.subr.bf16.mxu0 0
  %2247 = vmatpush1.bf16.msra.mxu0 0
  %2248 = vmatprep.subr.bf16.mxu0 0
  %2249 = vmatpush1.bf16.msra.mxu0 0
  %2250 = vmatprep.subr.bf16.mxu0 0
  %2251 = vmatpush1.bf16.msra.mxu0 0
  %2252 = vmatprep.subr.bf16.mxu0 0
  %2253 = vmatpush1.bf16.msra.mxu0 0
  %2254 = vmatprep.subr.bf16.mxu0 0
  %2255 = vmatpush1.bf16.msra.mxu0 0
  %2256 = vmatprep.subr.bf16.mxu0 0
  %2257 = vmatpush1.bf16.msra.mxu0 0
  %2258 = vmatprep.subr.bf16.mxu0 0
  %2259 = vmatpush1.bf16.msra.mxu0 0
  %2260 = vmatprep.subr.bf16.mxu0 0
  %2261 = vmatpush1.bf16.msra.mxu0 0
  %2262 = vmatprep.mubr.bf16.mxu0 0
  %2263 = vmatmul.mubr.bf16.gmra.mrb[0].mxu0 %v1982
  %v2264 = vpop.f32.mrb[0].mxu0
  %v2265 = vadd.f32 %v1819, %v2264
  %v2266 = vpop.f32.mrb[0].mxu0
  %v2267 = vadd.f32 %v1819, %v2266
  %v2268 = vpop.f32.mrb[0].mxu0
  %v2269 = vpop.f32.mrb[0].mxu0
  %2270 = vdwg.mxu0
  %2271 = vmatprep.subr.bf16.mxu0 %v1932
  %2272 = vmatpush1.bf16.msra.mxu0 %v1931
  %2273 = vmatprep.subr.bf16.mxu0 %v1948
  %2274 = vmatpush1.bf16.msra.mxu0 %v1947
  %2275 = vmatprep.subr.bf16.mxu0 0
  %2276 = vmatpush1.bf16.msra.mxu0 0
  %2277 = vmatprep.subr.bf16.mxu0 0
  %2278 = vmatpush1.bf16.msra.mxu0 0
  %2279 = vmatprep.subr.bf16.mxu0 0
  %2280 = vmatpush1.bf16.msra.mxu0 0
  %2281 = vmatprep.subr.bf16.mxu0 0
  %2282 = vmatpush1.bf16.msra.mxu0 0
  %2283 = vmatprep.subr.bf16.mxu0 0
  %2284 = vmatpush1.bf16.msra.mxu0 0
  %2285 = vmatprep.subr.bf16.mxu0 0
  %2286 = vmatpush1.bf16.msra.mxu0 0
  %2287 = vmatprep.subr.bf16.mxu0 0
  %2288 = vmatpush1.bf16.msra.mxu0 0
  %2289 = vmatprep.subr.bf16.mxu0 0
  %2290 = vmatpush1.bf16.msra.mxu0 0
  %2291 = vmatprep.subr.bf16.mxu0 0
  %2292 = vmatpush1.bf16.msra.mxu0 0
  %2293 = vmatprep.subr.bf16.mxu0 0
  %2294 = vmatpush1.bf16.msra.mxu0 0
  %2295 = vmatprep.subr.bf16.mxu0 0
  %2296 = vmatpush1.bf16.msra.mxu0 0
  %2297 = vmatprep.subr.bf16.mxu0 0
  %2298 = vmatpush1.bf16.msra.mxu0 0
  %2299 = vmatprep.subr.bf16.mxu0 0
  %2300 = vmatpush1.bf16.msra.mxu0 0
  %2301 = vmatprep.subr.bf16.mxu0 0
  %2302 = vmatpush1.bf16.msra.mxu0 0
  %2303 = vmatprep.mubr.bf16.mxu0 0
  %2304 = vmatmul.mubr.bf16.gmra.mrb[0].mxu0 %v1982
  %v2305 = vpop.f32.mrb[0].mxu0
  %v2306 = vadd.f32 %v1819, %v2305
  %v2307 = vpop.f32.mrb[0].mxu0
  %v2308 = vadd.f32 %v1819, %v2307
  %v2309 = vpop.f32.mrb[0].mxu0
  %v2310 = vpop.f32.mrb[0].mxu0
  %2311 = vdwg.mxu0
  %v2312 = vtanh.pop %v2019
  %v2313 = vtanh.pop %v2021
  %v2314 = vtanh.pop %v2060
  %v2315 = vtanh.pop %v2062
  %v2316 = vtanh.pop %v2101
  %v2317 = vtanh.pop %v2103
  %v2318 = vtanh.pop %v2142
  %v2319 = vtanh.pop %v2144
  %v2320 = vtanh.pop %v2183
  %v2321 = vtanh.pop %v2185
  %v2322 = vtanh.pop %v2224
  %v2323 = vtanh.pop %v2226
  %v2324 = vtanh.pop %v2265
  %v2325 = vtanh.pop %v2267
  %v2326 = vtanh.pop %v2306
  %v2327 = vtanh.pop %v2308
  %v2344 = vcombine.low %v2312, %v2313
  %v2345 = vcombine.low %v2314, %v2315
  %v2346 = vcombine.low %v2316, %v2317
  %v2347 = vcombine.low %v2318, %v2319
  %v2348 = vcombine.low %v2320, %v2321
  %v2349 = vcombine.low %v2322, %v2323
  %v2350 = vcombine.low %v2324, %v2325
  %v2351 = vcombine.low %v2326, %v2327
  %s2360 = scalar_lea.vmem %s3, 192
  %2361 = vst [vmem:[%s2360] sm:$0x77] %v2344
  %2362 = vst [vmem:[%s2360 + $0x8] sm:$0x77] %v2345
  %2363 = vst [vmem:[%s2360 + $0x10] sm:$0x77] %v2346
  %2364 = vst [vmem:[%s2360 + $0x18] sm:$0x77] %v2347
  %2365 = vst [vmem:[%s2360 + $0x20] sm:$0x77] %v2348
  %2366 = vst [vmem:[%s2360 + $0x28] sm:$0x77] %v2349
  %2367 = vst [vmem:[%s2360 + $0x30] sm:$0x77] %v2350
  %2368 = vst [vmem:[%s2360 + $0x38] sm:$0x77] %v2351
  // Predicated region
  $region14: #{generator_forward.9} parent=0 // pred_check
    _
  $region15: #{generator_forward.9} parent=0 // pred_check_branch
    %2370 = sbr.rel (0) target = $region17
  $region16: #{generator_forward.9} parent=0 // pred_region
    _
  $region17: #{generator_forward.9} parent=0 // pred_fallthru
    _
  // Predicated region
  $region18: #{generator_forward.9} parent=0 // pred_check
    _
  $region19: #{generator_forward.9} parent=0 // pred_check_branch
    %2372 = sbr.rel (0) target = $region21
  $region20: #{generator_forward.9} parent=0 // pred_region
    _
  $region21: #{generator_forward.9} parent=0 // pred_fallthru
    _

</llo_original>
